<compile_context>
chip_gen: v5e
topology: v5e:2x2
jax: 0.10.0
libtpu: 0.0.40
codegen_flags: <defaults>
</compile_context>

<pallas_src>
import functools

import numpy as np
import jax
import jax.numpy as jnp
from jax.experimental import pallas as pl
from jax.experimental.pallas import tpu as pltpu

_LN_EPS = 1e-5                      # torch.nn.LayerNorm default
_INV_SQRT2 = 0.7071067811865476


def _round_up(n, m):
    return -(-n // m) * m


def _gelu_exact(x):
    # torch.nn.GELU() default is the exact (erf-based) formulation.
    return 0.5 * x * (1.0 + jax.lax.erf(x * _INV_SQRT2))


def _ln_gelu(y, gamma, beta):
    mu = jnp.mean(y, axis=-1, keepdims=True)
    var = jnp.mean(jnp.square(y - mu), axis=-1, keepdims=True)
    yn = (y - mu) * jax.lax.rsqrt(var + _LN_EPS)
    return _gelu_exact(yn * gamma + beta)


def _vmem_limit_bytes():
    """Per-generation scoped-VMEM limit: ~3/4 of physical VMEM (96 MiB on 128-MiB chips,
    48 MiB on v7x's 64 MiB).  Falls back to a conservative 64-MiB assumption."""
    phys = None
    try:
        cap = int(pltpu.get_tpu_info().vmem_capacity_bytes)
        if 16 * 1024 * 1024 <= cap <= 1024 * 1024 * 1024:
            phys = cap
    except Exception:
        phys = None
    if phys is None:
        try:
            kind = jax.devices()[0].device_kind.lower()
            phys = 64 * 1024 * 1024 if "7" in kind else 128 * 1024 * 1024
        except Exception:
            phys = 64 * 1024 * 1024
    return int(max(phys - 32 * 1024 * 1024, (phys * 3) // 4))


# ------------------- Pallas kernel 1: fused per-scale 1x1 conv + LN + GELU -------------------
def _pw_ln_gelu_kernel(x_ref, w_ref, b_ref, g_ref, beta_ref, o_ref):
    y = jnp.dot(x_ref[0], w_ref[0], preferred_element_type=jnp.float32) + b_ref[0]
    o_ref[0] = _ln_gelu(y, g_ref[0], beta_ref[0]).astype(o_ref.dtype)


def fused_pointwise_ln_gelu(x_stacked, w_stacked, b_stacked, g_stacked, beta_stacked,
                            *, vmem_limit):
    """One pallas_call for all pyramid scales.  x_stacked: (n_scales, R, Cin)."""
    ns, r, cin = x_stacked.shape
    cout = w_stacked.shape[-1]
    cost = pl.CostEstimate(
        flops=int(2 * ns * r * cin * cout),
        transcendentals=int(ns * r * cout),
        bytes_accessed=int(4 * (ns * r * cin + ns * cin * cout + 3 * ns * cout
                                + ns * r * cout)))
    return pl.pallas_call(
        _pw_ln_gelu_kernel,
        out_shape=jax.ShapeDtypeStruct((ns, r, cout), jnp.float32),
        grid=(ns,),
        in_specs=[
            pl.BlockSpec((1, r, cin), lambda i: (i, 0, 0)),
            pl.BlockSpec((1, cin, cout), lambda i: (i, 0, 0)),
            pl.BlockSpec((1, 1, cout), lambda i: (i, 0, 0)),
            pl.BlockSpec((1, 1, cout), lambda i: (i, 0, 0)),
            pl.BlockSpec((1, 1, cout), lambda i: (i, 0, 0)),
        ],
        out_specs=pl.BlockSpec((1, r, cout), lambda i: (i, 0, 0)),
        compiler_params=pltpu.CompilerParams(
            dimension_semantics=("parallel",),
            vmem_limit_bytes=vmem_limit),
        cost_estimate=cost,
    )(x_stacked, w_stacked, b_stacked, g_stacked, beta_stacked)


# -------------- Pallas kernel 2: row-tiled 3x3 conv (+fused upsample) + LN + GELU --------------
def _make_conv3x3_kernel(row_tile, w, w2p):
    """Inputs are flattened over (padded rows, padded cols): flat index = r * w2p + c.
    Tap (dh, dw) needs input row (r+dh, c+dw) = flat index + (dh*w2p + dw), so every tap is
    one full-slab matmul per channel group followed by a static shift-on-output row slice."""
    l_acc = row_tile * w2p

    def kernel(x_ref, u_ref, wx_ref, z_ref, b_ref, g_ref, beta_ref, o_ref):
        cout = o_ref.shape[-1]
        xf = x_ref[0, 0]                  # (flat, Cin)   original-x group (halo'd, padded)
        uf = u_ref[0]                     # (flat, K_up)  static bilinear/zero-pad operator
        wxf = wx_ref[...]                 # (9, Cin, Cout)
        zf = z_ref[0]                     # (9, K_up, Cout)  pooled maps x per-tap weights
        acc = jnp.zeros((l_acc, cout), jnp.float32)
        for dh in range(3):
            for dw in range(3):
                t = 3 * dh + dw
                y = (jnp.dot(xf, wxf[t], preferred_element_type=jnp.float32)
                     + jnp.dot(uf, zf[t], preferred_element_type=jnp.float32))
                d = dh * w2p + dw
                acc = acc + y[d:d + l_acc]          # shift-on-output (static row slice)
        yb = acc.reshape(row_tile, w2p, cout)[:, :w, :] + b_ref[...]
        o_ref[0] = _ln_gelu(yb, g_ref[...], beta_ref[...]).astype(o_ref.dtype)

    return kernel


def conv3x3_ln_gelu_fused(x_unf, u_all, wx, z_all, b, gamma, beta, *,
                          out_hw, row_tile, w2p, vmem_limit):
    """x_unf: (B, ntiles, flat, Cin)  u_all: (ntiles, flat, K_up)
       wx: (9, Cin, Cout)             z_all: (B, 9, K_up, Cout)"""
    h, w = out_hw
    bsz, ntiles, flat, cin = x_unf.shape
    k_up = u_all.shape[-1]
    cout = wx.shape[-1]
    bytes_in = int(x_unf.dtype.itemsize)

    cost = pl.CostEstimate(
        flops=int(2 * bsz * ntiles * flat * (cin + k_up) * cout * 9),
        transcendentals=int(bsz * h * w * cout),
        bytes_accessed=int(bytes_in * (x_unf.size + bsz * u_all.size + z_all.size + wx.size)
                           + 4 * bsz * h * w * cout))

    kernel = _make_conv3x3_kernel(row_tile, w, w2p)
    return pl.pallas_call(
        kernel,
        out_shape=jax.ShapeDtypeStruct((bsz, h, w, cout), jnp.float32),
        grid=(bsz, ntiles),
        in_specs=[
            pl.BlockSpec((1, 1, flat, cin), lambda bi, ti: (bi, ti, 0, 0)),
            pl.BlockSpec((1, flat, k_up), lambda bi, ti: (ti, 0, 0)),
            pl.BlockSpec((9, cin, cout), lambda bi, ti: (0, 0, 0)),
            pl.BlockSpec((1, 9, k_up, cout), lambda bi, ti: (bi, 0, 0, 0)),
            pl.BlockSpec((1, cout), lambda bi, ti: (0, 0)),
            pl.BlockSpec((1, cout), lambda bi, ti: (0, 0)),
            pl.BlockSpec((1, cout), lambda bi, ti: (0, 0)),
        ],
        out_specs=pl.BlockSpec((1, row_tile, w, cout), lambda bi, ti: (bi, ti, 0, 0)),
        compiler_params=pltpu.CompilerParams(
            dimension_semantics=("parallel", "parallel"),   # batch x row tiles -> both TCs
            vmem_limit_bytes=vmem_limit),
        cost_estimate=cost,
    )(x_unf, u_all, wx, z_all,
      b.reshape(1, cout), gamma.reshape(1, cout), beta.reshape(1, cout))


# ------------------------------------- JAX glue -------------------------------------
def adaptive_avg_pool_nhwc(x, out_size):
    """Exact torch.nn.AdaptiveAvgPool2d binning (separable mean-of-means)."""
    _, h, w, _ = x.shape

    def pool_axis(arr, in_size, axis):
        pieces = []
        for i in range(out_size):
            start = (i * in_size) // out_size
            end = -((-(i + 1) * in_size) // out_size)          # ceil((i+1)*in/out)
            sl = jax.lax.slice_in_dim(arr, start, end, axis=axis)
            pieces.append(jnp.mean(sl, axis=axis, keepdims=True))
        return jnp.concatenate(pieces, axis=axis)

    return pool_axis(pool_axis(x, h, axis=1), w, axis=2)


def bilinear_resize_matrix(out_size, in_size):
    """Row-stochastic matrix reproducing F.interpolate(mode='bilinear', align_corners=False)."""
    m = np.zeros((out_size, in_size), dtype=np.float32)
    scale = in_size / out_size
    for i in range(out_size):
        src = (i + 0.5) * scale - 0.5
        if src < 0.0:
            src = 0.0
        x0 = min(int(np.floor(src)), in_size - 1)
        x1 = min(x0 + 1, in_size - 1)
        lam = src - x0
        m[i, x0] += 1.0 - lam
        m[i, x1] += lam
    return m


def _pick_row_tile(h, w, cin, cout, k_up, *, vmem_limit, bytes_in,
                   min_m=256, max_m=4096):
    """Largest divisor of H whose tiles (double-buffered operands + resident weights +
    in-kernel f32 temporaries) fit ~80% of the per-chip VMEM limit, preferring
    M = row_tile * W >= 256 so the MXU is actually fed."""
    w2p = _round_up(w + 2, 8)
    budget = int(vmem_limit * 0.8)

    def need(tr):
        flat = (tr + 2) * w2p + 8
        x_t = flat * cin * bytes_in
        u_t = flat * k_up * bytes_in
        o_t = tr * w * cout * 4
        pipelined = 2 * (x_t + u_t + o_t)                               # double-buffered DMA
        weights = 2 * (9 * cin * cout + 9 * k_up * cout) * bytes_in + 6 * cout * 4
        temps = 4 * (tr * w2p * cout * 2        # acc + sliced tap contribution (f32)
                     + flat * cout * 2          # per-tap matmul result + reshape copy
                     + tr * w2p * cout)         # LN temporaries
        return pipelined + weights + temps + (2 << 20)                  # fixed slack

    divisors = [d for d in range(1, h + 1) if h % d == 0]
    fitting = [d for d in divisors if need(d) <= budget] or divisors[:1]
    preferred = [d for d in fitting if min_m <= d * w <= max_m]
    return max(preferred or fitting)


def ppm_block_forward_pallas(x_nchw, params, ppm_scales, *, row_tile=None,
                             mxu_dtype=jnp.float32):
    x = jnp.transpose(x_nchw, (0, 2, 3, 1)).astype(jnp.float32)   # NCHW -> NHWC
    b, h, w, cin = x.shape
    n_scales = len(ppm_scales)
    cout = params["ap_blocks"][0]["w"].shape[1]

    w2p = _round_up(w + 2, 8)                 # padded width (left/right conv pad + lane tidy)
    k_raw = sum(s * s for s in ppm_scales)    # all pyramid scales collapse to K_up channels
    k_up = _round_up(k_raw, 8)
    vmem_limit = _vmem_limit_bytes()
    bytes_in = int(np.dtype(mxu_dtype).itemsize)

    if row_tile is None:
        row_tile = _pick_row_tile(h, w, cin, cout, k_up,
                                  vmem_limit=vmem_limit, bytes_in=bytes_in)
    assert h % row_tile == 0, (h, row_tile)
    ntiles = h // row_tile
    # +8 zero rows let every tap slice a full row_tile*w2p window without going OOB.
    flat = (row_tile + 2) * w2p + 8

    # ---- pyramid pooling + fused 1x1 conv / LN / GELU (single pallas_call) ----
    r_pad = _round_up(max(b * s * s for s in ppm_scales), 8)
    xs, ws, bs, gs, betas = [], [], [], [], []
    for s, p in zip(ppm_scales, params["ap_blocks"]):
        pooled = adaptive_avg_pool_nhwc(x, s).reshape(b * s * s, cin)
        xs.append(jnp.pad(pooled, ((0, r_pad - b * s * s), (0, 0))))
        ws.append(p["w"]); bs.append(p["b"]); gs.append(p["gamma"]); betas.append(p["beta"])
    y_all = fused_pointwise_ln_gelu(
        jnp.stack(xs), jnp.stack(ws),
        jnp.stack(bs).reshape(n_scales, 1, cout),
        jnp.stack(gs).reshape(n_scales, 1, cout),
        jnp.stack(betas).reshape(n_scales, 1, cout),
        vmem_limit=vmem_limit)                                     # (ns, r_pad, cout)

    # ---- fold pooled maps with the per-tap 3x3 weights: z (B, 9, K_up, Cout), tiny ----
    fp = params["final"]
    w9 = fp["w"]                                                   # (9, Cin_tot, Cout)
    z_parts = []
    for i, s in enumerate(ppm_scales):
        yv = y_all[i, :b * s * s].reshape(b, s * s, cout)
        wp = w9[:, cin + i * cout: cin + (i + 1) * cout, :]        # (9, Cout, Cout)
        z_parts.append(jnp.einsum("bkc,tcd->btkd", yv, wp))
    z_all = jnp.concatenate(z_parts, axis=2)
    if k_up > k_raw:
        z_all = jnp.pad(z_all, ((0, 0), (0, 0), (0, k_up - k_raw), (0, 0)))

    # ---- static per-tile bilinear-upsample operator with conv zero-pad folded in ----
    u_np = np.zeros((ntiles, flat, k_up), np.float32)
    col = 0
    for i, s in enumerate(ppm_scales):
        rh = np.zeros((h + 2, s), np.float32)                      # zero first/last row = pad
        rh[1:h + 1] = bilinear_resize_matrix(h, s)
        rw = np.zeros((w2p, s), np.float32)                        # zero border/extra cols
        rw[1:w + 1] = bilinear_resize_matrix(w, s)
        for ti in range(ntiles):
            rh_t = rh[ti * row_tile: ti * row_tile + row_tile + 2]
            blk = np.einsum("ra,cb->rcab", rh_t, rw).reshape((row_tile + 2) * w2p, s * s)
            u_np[ti, :(row_tile + 2) * w2p, col:col + s * s] = blk
        col += s * s
    u_all = jnp.asarray(u_np)

    # ---- original x: pad, halo row-unfold, flatten (rows, cols) ----
    xp = jnp.pad(x, ((0, 0), (1, 1), (1, w2p - w - 1), (0, 0)))    # (B, H+2, w2p, Cin)
    row_idx = (np.arange(ntiles)[:, None] * row_tile
               + np.arange(row_tile + 2)[None, :]).reshape(-1).astype(np.int32)
    x_unf = jnp.take(xp, jnp.asarray(row_idx), axis=1)
    x_unf = x_unf.reshape(b, ntiles, (row_tile + 2) * w2p, cin)
    x_unf = jnp.pad(x_unf, ((0, 0), (0, 0), (0, flat - (row_tile + 2) * w2p), (0, 0)))

    wx = w9[:, :cin, :]                                            # (9, Cin, Cout)
    out = conv3x3_ln_gelu_fused(
        x_unf.astype(mxu_dtype), u_all.astype(mxu_dtype),
        wx.astype(mxu_dtype), z_all.astype(mxu_dtype),
        fp["b"], fp["gamma"], fp["beta"],
        out_hw=(h, w), row_tile=row_tile, w2p=w2p, vmem_limit=vmem_limit)
    return jnp.transpose(out, (0, 3, 1, 2))                        # NHWC -> NCHW


# ------------------------------- pure-JAX reference -------------------------------
def _conv3x3_ref(x_nhwc, w9, b, gamma, beta):
    bsz, h, w, cin = x_nhwc.shape
    cout = w9.shape[2]
    xp = jnp.pad(x_nhwc, ((0, 0), (1, 1), (1, 1), (0, 0)))
    acc = jnp.zeros((bsz, h, w, cout), jnp.float32)
    for dh in range(3):
        for dw in range(3):
            acc = acc + jnp.einsum("bhwc,cd->bhwd",
                                   xp[:, dh:dh + h, dw:dw + w, :], w9[3 * dh + dw])
    return _ln_gelu(acc + b, gamma, beta)


def ppm_block_forward_ref(x_nchw, params, ppm_scales):
    x = jnp.transpose(x_nchw, (0, 2, 3, 1))
    b, h, w, cin = x.shape
    feats = [x]
    for s, p in zip(ppm_scales, params["ap_blocks"]):
        pooled = adaptive_avg_pool_nhwc(x, s)
        cout = p["w"].shape[1]
        y = _ln_gelu(pooled.reshape(b * s * s, cin) @ p["w"] + p["b"], p["gamma"], p["beta"])
        y = y.reshape(b, s, s, cout)
        wh = jnp.asarray(bilinear_resize_matrix(h, s))
        ww = jnp.asarray(bilinear_resize_matrix(w, s))
        feats.append(jnp.einsum("hs,bstc,wt->bhwc", wh, y, ww))
    cat = jnp.concatenate(feats, axis=-1)
    fp = params["final"]
    out = _conv3x3_ref(cat, fp["w"], fp["b"], fp["gamma"], fp["beta"])
    return jnp.transpose(out, (0, 3, 1, 2))


def init_params(key, ppm_scales, in_channels, out_channels):
    n = len(ppm_scales)
    keys = jax.random.split(key, n + 1)
    ap = []
    for i in range(n):
        k1, k2, k3, k4 = jax.random.split(keys[i], 4)
        ap.append(dict(
            w=0.2 * jax.random.normal(k1, (in_channels, out_channels), jnp.float32),
            b=0.02 * jax.random.normal(k2, (out_channels,), jnp.float32),
            gamma=1.0 + 0.05 * jax.random.normal(k3, (out_channels,), jnp.float32),
            beta=0.05 * jax.random.normal(k4, (out_channels,), jnp.float32),
        ))
    cin_tot = in_channels + n * out_channels
    k1, k2, k3, k4 = jax.random.split(keys[n], 4)
    final = dict(
        w=0.1 * jax.random.normal(k1, (9, cin_tot, out_channels), jnp.float32),
        b=0.02 * jax.random.normal(k2, (out_channels,), jnp.float32),
        gamma=1.0 + 0.05 * jax.random.normal(k3, (out_channels,), jnp.float32),
        beta=0.05 * jax.random.normal(k4, (out_channels,), jnp.float32),
    )
    return dict(ap_blocks=ap, final=final)


if __name__ == "__main__":
    B, C_IN, H, W = 2, 4, 16, 16
    C_OUT = 8
    SCALES = (1, 2, 3, 6)

    key = jax.random.PRNGKey(0)
    kx, kp = jax.random.split(key)
    x = jax.random.normal(kx, (B, C_IN, H, W), jnp.float32)
    params = init_params(kp, SCALES, C_IN, C_OUT)

    ref = jax.block_until_ready(ppm_block_forward_ref(x, params, SCALES))

    # Auto-sized row tile (picks the full 16 rows here -> M = 256 rows per matmul).
    fwd_auto = jax.jit(functools.partial(ppm_block_forward_pallas, ppm_scales=SCALES))
    out_auto = jax.block_until_ready(fwd_auto(x, params))
    assert out_auto.shape == (B, C_OUT, H, W), out_auto.shape
    np.testing.assert_allclose(np.asarray(out_auto), np.asarray(ref), rtol=5e-3, atol=5e-3)

    # Forced small tile: exercises halo rows and the per-tile upsample operator across tiles.
    fwd_tiled = jax.jit(functools.partial(ppm_block_forward_pallas, ppm_scales=SCALES,
                                          row_tile=4))
    out_tiled = jax.block_until_ready(fwd_tiled(x, params))
    np.testing.assert_allclose(np.asarray(out_tiled), np.asarray(ref), rtol=5e-3, atol=5e-3)

    print("KERNEL_OK")
</pallas_src>

<mosaic_0001>
module attributes {stable_mosaic.version = 11 : i64} {
  func.func @_pw_ln_gelu_kernel(%arg0: i32, %arg1: memref<1x72x4xf32, #tpu.memory_space<vmem>>, %arg2: memref<1x4x8xf32, #tpu.memory_space<vmem>>, %arg3: memref<1x1x8xf32, #tpu.memory_space<vmem>>, %arg4: memref<1x1x8xf32, #tpu.memory_space<vmem>>, %arg5: memref<1x1x8xf32, #tpu.memory_space<vmem>>, %arg6: memref<1x72x8xf32, #tpu.memory_space<vmem>>) attributes {dimension_semantics = [#tpu.dimension_semantics<parallel>], iteration_bounds = array<i64: 4>, scalar_prefetch = 0 : i64, scratch_operands = 0 : i64, tpu.core_type = #tpu.core_type<tc>, window_params = [{transform_indices = @transform_0, window_bounds = array<i64: 1, 72, 4>}, {transform_indices = @transform_1, window_bounds = array<i64: 1, 4, 8>}, {transform_indices = @transform_2, window_bounds = array<i64: 1, 1, 8>}, {transform_indices = @transform_3, window_bounds = array<i64: 1, 1, 8>}, {transform_indices = @transform_4, window_bounds = array<i64: 1, 1, 8>}, {transform_indices = @transform_5, window_bounds = array<i64: 1, 72, 8>}]} {
    %c0 = arith.constant 0 : index
    %c0_0 = arith.constant 0 : index
    %c0_1 = arith.constant 0 : index
    %0 = vector.load %arg1[%c0, %c0_0, %c0_1] : memref<1x72x4xf32, #tpu.memory_space<vmem>>, vector<1x72x4xf32>
    %1 = vector.shape_cast %0 : vector<1x72x4xf32> to vector<72x4xf32>
    %c0_2 = arith.constant 0 : index
    %c0_3 = arith.constant 0 : index
    %c0_4 = arith.constant 0 : index
    %2 = vector.load %arg2[%c0_2, %c0_3, %c0_4] : memref<1x4x8xf32, #tpu.memory_space<vmem>>, vector<1x4x8xf32>
    %3 = vector.shape_cast %2 : vector<1x4x8xf32> to vector<4x8xf32>
    %cst = arith.constant dense<0.000000e+00> : vector<72x8xf32>
    %4 = tpu.matmul %1, %3, %cst {dimension_numbers = #tpu.dot_dimension_numbers<[1], [0], [0], [1], [0, 0, 1, 1], [], []>} : vector<72x4xf32>, vector<4x8xf32>, vector<72x8xf32> -> vector<72x8xf32>
    %c0_5 = arith.constant 0 : index
    %c0_6 = arith.constant 0 : index
    %c0_7 = arith.constant 0 : index
    %5 = vector.load %arg3[%c0_5, %c0_6, %c0_7] : memref<1x1x8xf32, #tpu.memory_space<vmem>>, vector<1x1x8xf32>
    %6 = vector.shape_cast %5 : vector<1x1x8xf32> to vector<1x8xf32>
    %7 = vector.broadcast %6 : vector<1x8xf32> to vector<72x8xf32>
    %8 = arith.addf %4, %7 : vector<72x8xf32>
    %c0_8 = arith.constant 0 : index
    %c0_9 = arith.constant 0 : index
    %c0_10 = arith.constant 0 : index
    %9 = vector.load %arg4[%c0_8, %c0_9, %c0_10] : memref<1x1x8xf32, #tpu.memory_space<vmem>>, vector<1x1x8xf32>
    %10 = vector.shape_cast %9 : vector<1x1x8xf32> to vector<1x8xf32>
    %c0_11 = arith.constant 0 : index
    %c0_12 = arith.constant 0 : index
    %c0_13 = arith.constant 0 : index
    %11 = vector.load %arg5[%c0_11, %c0_12, %c0_13] : memref<1x1x8xf32, #tpu.memory_space<vmem>>, vector<1x1x8xf32>
    %12 = vector.shape_cast %11 : vector<1x1x8xf32> to vector<1x8xf32>
    %cst_14 = arith.constant dense<0.000000e+00> : vector<72xf32>
    %13 = vector.multi_reduction <add>, %8, %cst_14 [1] : vector<72x8xf32> to vector<72xf32>
    %14 = vector.shape_cast %13 : vector<72xf32> to vector<72x1xf32>
    %cst_15 = arith.constant 8.000000e+00 : f32
    %15 = vector.broadcast %cst_15 : f32 to vector<72x1xf32>
    %16 = arith.divf %14, %15 : vector<72x1xf32>
    %17 = vector.broadcast %16 : vector<72x1xf32> to vector<72x8xf32>
    %18 = arith.subf %8, %17 : vector<72x8xf32>
    %19 = arith.mulf %18, %18 : vector<72x8xf32>
    %cst_16 = arith.constant dense<0.000000e+00> : vector<72xf32>
    %20 = vector.multi_reduction <add>, %19, %cst_16 [1] : vector<72x8xf32> to vector<72xf32>
    %21 = vector.shape_cast %20 : vector<72xf32> to vector<72x1xf32>
    %cst_17 = arith.constant 8.000000e+00 : f32
    %22 = vector.broadcast %cst_17 : f32 to vector<72x1xf32>
    %23 = arith.divf %21, %22 : vector<72x1xf32>
    %24 = vector.broadcast %16 : vector<72x1xf32> to vector<72x8xf32>
    %25 = arith.subf %8, %24 : vector<72x8xf32>
    %cst_18 = arith.constant 9.99999974E-6 : f32
    %26 = vector.broadcast %cst_18 : f32 to vector<72x1xf32>
    %27 = arith.addf %23, %26 : vector<72x1xf32>
    %28 = math.rsqrt %27 : vector<72x1xf32>
    %29 = vector.broadcast %28 : vector<72x1xf32> to vector<72x8xf32>
    %30 = arith.mulf %25, %29 : vector<72x8xf32>
    %31 = vector.broadcast %10 : vector<1x8xf32> to vector<72x8xf32>
    %32 = arith.mulf %30, %31 : vector<72x8xf32>
    %33 = vector.broadcast %12 : vector<1x8xf32> to vector<72x8xf32>
    %34 = arith.addf %32, %33 : vector<72x8xf32>
    %cst_19 = arith.constant 5.000000e-01 : f32
    %35 = vector.broadcast %cst_19 : f32 to vector<72x8xf32>
    %36 = arith.mulf %35, %34 : vector<72x8xf32>
    %cst_20 = arith.constant 0.707106769 : f32
    %37 = vector.broadcast %cst_20 : f32 to vector<72x8xf32>
    %38 = arith.mulf %34, %37 : vector<72x8xf32>
    %39 = math.erf %38 : vector<72x8xf32>
    %cst_21 = arith.constant 1.000000e+00 : f32
    %40 = vector.broadcast %cst_21 : f32 to vector<72x8xf32>
    %41 = arith.addf %40, %39 : vector<72x8xf32>
    %42 = arith.mulf %36, %41 : vector<72x8xf32>
    %c0_22 = arith.constant 0 : index
    %c0_23 = arith.constant 0 : index
    %c0_24 = arith.constant 0 : index
    %43 = vector.load %arg6[%c0_22, %c0_23, %c0_24] : memref<1x72x8xf32, #tpu.memory_space<vmem>>, vector<1x72x8xf32>
    %44 = vector.shape_cast %43 : vector<1x72x8xf32> to vector<72x8xf32>
    %45 = vector.shape_cast %42 : vector<72x8xf32> to vector<1x72x8xf32>
    tpu.vector_store %arg6[%c0_22, %c0_23, %c0_24], %45 {strides = array<i32>} : memref<1x72x8xf32, #tpu.memory_space<vmem>>, vector<1x72x8xf32>,
    return
  }
  func.func @transform_0(%arg0: i32) -> (i32, i32, i32) {
    %c0_i32 = arith.constant 0 : i32
    %c0_i32_0 = arith.constant 0 : i32
    %c0_i32_1 = arith.constant 0 : i32
    return %arg0, %c0_i32, %c0_i32_0 : i32, i32, i32
  }
  func.func @transform_1(%arg0: i32) -> (i32, i32, i32) {
    %c0_i32 = arith.constant 0 : i32
    %c0_i32_0 = arith.constant 0 : i32
    %c0_i32_1 = arith.constant 0 : i32
    return %arg0, %c0_i32, %c0_i32_0 : i32, i32, i32
  }
  func.func @transform_2(%arg0: i32) -> (i32, i32, i32) {
    %c0_i32 = arith.constant 0 : i32
    %c0_i32_0 = arith.constant 0 : i32
    %c0_i32_1 = arith.constant 0 : i32
    return %arg0, %c0_i32, %c0_i32_0 : i32, i32, i32
  }
  func.func @transform_3(%arg0: i32) -> (i32, i32, i32) {
    %c0_i32 = arith.constant 0 : i32
    %c0_i32_0 = arith.constant 0 : i32
    %c0_i32_1 = arith.constant 0 : i32
    return %arg0, %c0_i32, %c0_i32_0 : i32, i32, i32
  }
  func.func @transform_4(%arg0: i32) -> (i32, i32, i32) {
    %c0_i32 = arith.constant 0 : i32
    %c0_i32_0 = arith.constant 0 : i32
    %c0_i32_1 = arith.constant 0 : i32
    return %arg0, %c0_i32, %c0_i32_0 : i32, i32, i32
  }
  func.func @transform_5(%arg0: i32) -> (i32, i32, i32) {
    %c0_i32 = arith.constant 0 : i32
    %c0_i32_0 = arith.constant 0 : i32
    %c0_i32_1 = arith.constant 0 : i32
    return %arg0, %c0_i32, %c0_i32_0 : i32, i32, i32
  }
}

module attributes {stable_mosaic.version = 11 : i64} {
  func.func @kernel(%arg0: i32, %arg1: i32, %arg2: memref<1x1x440x4xf32, #tpu.memory_space<vmem>>, %arg3: memref<1x440x56xf32, #tpu.memory_space<vmem>>, %arg4: memref<9x4x8xf32, #tpu.memory_space<vmem>>, %arg5: memref<1x9x56x8xf32, #tpu.memory_space<vmem>>, %arg6: memref<1x8xf32, #tpu.memory_space<vmem>>, %arg7: memref<1x8xf32, #tpu.memory_space<vmem>>, %arg8: memref<1x8xf32, #tpu.memory_space<vmem>>, %arg9: memref<1x16x16x8xf32, #tpu.memory_space<vmem>>) attributes {dimension_semantics = [#tpu.dimension_semantics<parallel>, #tpu.dimension_semantics<parallel>], iteration_bounds = array<i64: 2, 1>, scalar_prefetch = 0 : i64, scratch_operands = 0 : i64, tpu.core_type = #tpu.core_type<tc>, window_params = [{transform_indices = @transform_0, window_bounds = array<i64: 1, 1, 440, 4>}, {transform_indices = @transform_1, window_bounds = array<i64: 1, 440, 56>}, {pipeline_mode = #tpu.pipeline_mode<synchronous>, transform_indices = @transform_2, window_bounds = array<i64: 9, 4, 8>}, {transform_indices = @transform_3, window_bounds = array<i64: 1, 9, 56, 8>}, {pipeline_mode = #tpu.pipeline_mode<synchronous>, transform_indices = @transform_4, window_bounds = array<i64: 1, 8>}, {pipeline_mode = #tpu.pipeline_mode<synchronous>, transform_indices = @transform_5, window_bounds = array<i64: 1, 8>}, {pipeline_mode = #tpu.pipeline_mode<synchronous>, transform_indices = @transform_6, window_bounds = array<i64: 1, 8>}, {transform_indices = @transform_7, window_bounds = array<i64: 1, 16, 16, 8>}]} {
    %c0 = arith.constant 0 : index
    %c0_0 = arith.constant 0 : index
    %c0_1 = arith.constant 0 : index
    %c0_2 = arith.constant 0 : index
    %0 = vector.load %arg2[%c0, %c0_0, %c0_1, %c0_2] : memref<1x1x440x4xf32, #tpu.memory_space<vmem>>, vector<1x1x440x4xf32>
    %1 = vector.shape_cast %0 : vector<1x1x440x4xf32> to vector<440x4xf32>
    %c0_3 = arith.constant 0 : index
    %c0_4 = arith.constant 0 : index
    %c0_5 = arith.constant 0 : index
    %2 = vector.load %arg3[%c0_3, %c0_4, %c0_5] : memref<1x440x56xf32, #tpu.memory_space<vmem>>, vector<1x440x56xf32>
    %3 = vector.shape_cast %2 : vector<1x440x56xf32> to vector<440x56xf32>
    %c0_6 = arith.constant 0 : index
    %c0_7 = arith.constant 0 : index
    %c0_8 = arith.constant 0 : index
    %4 = vector.load %arg4[%c0_6, %c0_7, %c0_8] : memref<9x4x8xf32, #tpu.memory_space<vmem>>, vector<9x4x8xf32>
    %c0_9 = arith.constant 0 : index
    %c0_10 = arith.constant 0 : index
    %c0_11 = arith.constant 0 : index
    %c0_12 = arith.constant 0 : index
    %5 = vector.load %arg5[%c0_9, %c0_10, %c0_11, %c0_12] : memref<1x9x56x8xf32, #tpu.memory_space<vmem>>, vector<1x9x56x8xf32>
    %6 = vector.shape_cast %5 : vector<1x9x56x8xf32> to vector<9x56x8xf32>
    %cst = arith.constant 0.000000e+00 : f32
    %7 = vector.broadcast %cst : f32 to vector<384x8xf32>
    %8 = vector.extract_strided_slice %4 {offsets = [0, 0, 0], sizes = [1, 4, 8], strides = [1, 1, 1]} : vector<9x4x8xf32> to vector<1x4x8xf32>
    %9 = vector.shape_cast %8 : vector<1x4x8xf32> to vector<4x8xf32>
    %cst_13 = arith.constant dense<0.000000e+00> : vector<440x8xf32>
    %10 = tpu.matmul %1, %9, %cst_13 {dimension_numbers = #tpu.dot_dimension_numbers<[1], [0], [0], [1], [0, 0, 1, 1], [], []>} : vector<440x4xf32>, vector<4x8xf32>, vector<440x8xf32> -> vector<440x8xf32>
    %11 = vector.extract_strided_slice %6 {offsets = [0, 0, 0], sizes = [1, 56, 8], strides = [1, 1, 1]} : vector<9x56x8xf32> to vector<1x56x8xf32>
    %12 = vector.shape_cast %11 : vector<1x56x8xf32> to vector<56x8xf32>
    %cst_14 = arith.constant dense<0.000000e+00> : vector<440x8xf32>
    %13 = tpu.matmul %3, %12, %cst_14 {dimension_numbers = #tpu.dot_dimension_numbers<[1], [0], [0], [1], [0, 0, 1, 1], [], []>} : vector<440x56xf32>, vector<56x8xf32>, vector<440x8xf32> -> vector<440x8xf32>
    %14 = arith.addf %10, %13 : vector<440x8xf32>
    %15 = vector.extract_strided_slice %14 {offsets = [0, 0], sizes = [384, 8], strides = [1, 1]} : vector<440x8xf32> to vector<384x8xf32>
    %16 = arith.addf %7, %15 : vector<384x8xf32>
    %17 = vector.extract_strided_slice %4 {offsets = [1, 0, 0], sizes = [1, 4, 8], strides = [1, 1, 1]} : vector<9x4x8xf32> to vector<1x4x8xf32>
    %18 = vector.shape_cast %17 : vector<1x4x8xf32> to vector<4x8xf32>
    %cst_15 = arith.constant dense<0.000000e+00> : vector<440x8xf32>
    %19 = tpu.matmul %1, %18, %cst_15 {dimension_numbers = #tpu.dot_dimension_numbers<[1], [0], [0], [1], [0, 0, 1, 1], [], []>} : vector<440x4xf32>, vector<4x8xf32>, vector<440x8xf32> -> vector<440x8xf32>
    %20 = vector.extract_strided_slice %6 {offsets = [1, 0, 0], sizes = [1, 56, 8], strides = [1, 1, 1]} : vector<9x56x8xf32> to vector<1x56x8xf32>
    %21 = vector.shape_cast %20 : vector<1x56x8xf32> to vector<56x8xf32>
    %cst_16 = arith.constant dense<0.000000e+00> : vector<440x8xf32>
    %22 = tpu.matmul %3, %21, %cst_16 {dimension_numbers = #tpu.dot_dimension_numbers<[1], [0], [0], [1], [0, 0, 1, 1], [], []>} : vector<440x56xf32>, vector<56x8xf32>, vector<440x8xf32> -> vector<440x8xf32>
    %23 = arith.addf %19, %22 : vector<440x8xf32>
    %24 = vector.extract_strided_slice %23 {offsets = [1, 0], sizes = [384, 8], strides = [1, 1]} : vector<440x8xf32> to vector<384x8xf32>
    %25 = arith.addf %16, %24 : vector<384x8xf32>
    %26 = vector.extract_strided_slice %4 {offsets = [2, 0, 0], sizes = [1, 4, 8], strides = [1, 1, 1]} : vector<9x4x8xf32> to vector<1x4x8xf32>
    %27 = vector.shape_cast %26 : vector<1x4x8xf32> to vector<4x8xf32>
    %cst_17 = arith.constant dense<0.000000e+00> : vector<440x8xf32>
    %28 = tpu.matmul %1, %27, %cst_17 {dimension_numbers = #tpu.dot_dimension_numbers<[1], [0], [0], [1], [0, 0, 1, 1], [], []>} : vector<440x4xf32>, vector<4x8xf32>, vector<440x8xf32> -> vector<440x8xf32>
    %29 = vector.extract_strided_slice %6 {offsets = [2, 0, 0], sizes = [1, 56, 8], strides = [1, 1, 1]} : vector<9x56x8xf32> to vector<1x56x8xf32>
    %30 = vector.shape_cast %29 : vector<1x56x8xf32> to vector<56x8xf32>
    %cst_18 = arith.constant dense<0.000000e+00> : vector<440x8xf32>
    %31 = tpu.matmul %3, %30, %cst_18 {dimension_numbers = #tpu.dot_dimension_numbers<[1], [0], [0], [1], [0, 0, 1, 1], [], []>} : vector<440x56xf32>, vector<56x8xf32>, vector<440x8xf32> -> vector<440x8xf32>
    %32 = arith.addf %28, %31 : vector<440x8xf32>
    %33 = vector.extract_strided_slice %32 {offsets = [2, 0], sizes = [384, 8], strides = [1, 1]} : vector<440x8xf32> to vector<384x8xf32>
    %34 = arith.addf %25, %33 : vector<384x8xf32>
    %35 = vector.extract_strided_slice %4 {offsets = [3, 0, 0], sizes = [1, 4, 8], strides = [1, 1, 1]} : vector<9x4x8xf32> to vector<1x4x8xf32>
    %36 = vector.shape_cast %35 : vector<1x4x8xf32> to vector<4x8xf32>
    %cst_19 = arith.constant dense<0.000000e+00> : vector<440x8xf32>
    %37 = tpu.matmul %1, %36, %cst_19 {dimension_numbers = #tpu.dot_dimension_numbers<[1], [0], [0], [1], [0, 0, 1, 1], [], []>} : vector<440x4xf32>, vector<4x8xf32>, vector<440x8xf32> -> vector<440x8xf32>
    %38 = vector.extract_strided_slice %6 {offsets = [3, 0, 0], sizes = [1, 56, 8], strides = [1, 1, 1]} : vector<9x56x8xf32> to vector<1x56x8xf32>
    %39 = vector.shape_cast %38 : vector<1x56x8xf32> to vector<56x8xf32>
    %cst_20 = arith.constant dense<0.000000e+00> : vector<440x8xf32>
    %40 = tpu.matmul %3, %39, %cst_20 {dimension_numbers = #tpu.dot_dimension_numbers<[1], [0], [0], [1], [0, 0, 1, 1], [], []>} : vector<440x56xf32>, vector<56x8xf32>, vector<440x8xf32> -> vector<440x8xf32>
    %41 = arith.addf %37, %40 : vector<440x8xf32>
    %42 = vector.extract_strided_slice %41 {offsets = [24, 0], sizes = [384, 8], strides = [1, 1]} : vector<440x8xf32> to vector<384x8xf32>
    %43 = arith.addf %34, %42 : vector<384x8xf32>
    %44 = vector.extract_strided_slice %4 {offsets = [4, 0, 0], sizes = [1, 4, 8], strides = [1, 1, 1]} : vector<9x4x8xf32> to vector<1x4x8xf32>
    %45 = vector.shape_cast %44 : vector<1x4x8xf32> to vector<4x8xf32>
    %cst_21 = arith.constant dense<0.000000e+00> : vector<440x8xf32>
    %46 = tpu.matmul %1, %45, %cst_21 {dimension_numbers = #tpu.dot_dimension_numbers<[1], [0], [0], [1], [0, 0, 1, 1], [], []>} : vector<440x4xf32>, vector<4x8xf32>, vector<440x8xf32> -> vector<440x8xf32>
    %47 = vector.extract_strided_slice %6 {offsets = [4, 0, 0], sizes = [1, 56, 8], strides = [1, 1, 1]} : vector<9x56x8xf32> to vector<1x56x8xf32>
    %48 = vector.shape_cast %47 : vector<1x56x8xf32> to vector<56x8xf32>
    %cst_22 = arith.constant dense<0.000000e+00> : vector<440x8xf32>
    %49 = tpu.matmul %3, %48, %cst_22 {dimension_numbers = #tpu.dot_dimension_numbers<[1], [0], [0], [1], [0, 0, 1, 1], [], []>} : vector<440x56xf32>, vector<56x8xf32>, vector<440x8xf32> -> vector<440x8xf32>
    %50 = arith.addf %46, %49 : vector<440x8xf32>
    %51 = vector.extract_strided_slice %50 {offsets = [25, 0], sizes = [384, 8], strides = [1, 1]} : vector<440x8xf32> to vector<384x8xf32>
    %52 = arith.addf %43, %51 : vector<384x8xf32>
    %53 = vector.extract_strided_slice %4 {offsets = [5, 0, 0], sizes = [1, 4, 8], strides = [1, 1, 1]} : vector<9x4x8xf32> to vector<1x4x8xf32>
    %54 = vector.shape_cast %53 : vector<1x4x8xf32> to vector<4x8xf32>
    %cst_23 = arith.constant dense<0.000000e+00> : vector<440x8xf32>
    %55 = tpu.matmul %1, %54, %cst_23 {dimension_numbers = #tpu.dot_dimension_numbers<[1], [0], [0], [1], [0, 0, 1, 1], [], []>} : vector<440x4xf32>, vector<4x8xf32>, vector<440x8xf32> -> vector<440x8xf32>
    %56 = vector.extract_strided_slice %6 {offsets = [5, 0, 0], sizes = [1, 56, 8], strides = [1, 1, 1]} : vector<9x56x8xf32> to vector<1x56x8xf32>
    %57 = vector.shape_cast %56 : vector<1x56x8xf32> to vector<56x8xf32>
    %cst_24 = arith.constant dense<0.000000e+00> : vector<440x8xf32>
    %58 = tpu.matmul %3, %57, %cst_24 {dimension_numbers = #tpu.dot_dimension_numbers<[1], [0], [0], [1], [0, 0, 1, 1], [], []>} : vector<440x56xf32>, vector<56x8xf32>, vector<440x8xf32> -> vector<440x8xf32>
    %59 = arith.addf %55, %58 : vector<440x8xf32>
    %60 = vector.extract_strided_slice %59 {offsets = [26, 0], sizes = [384, 8], strides = [1, 1]} : vector<440x8xf32> to vector<384x8xf32>
    %61 = arith.addf %52, %60 : vector<384x8xf32>
    %62 = vector.extract_strided_slice %4 {offsets = [6, 0, 0], sizes = [1, 4, 8], strides = [1, 1, 1]} : vector<9x4x8xf32> to vector<1x4x8xf32>
    %63 = vector.shape_cast %62 : vector<1x4x8xf32> to vector<4x8xf32>
    %cst_25 = arith.constant dense<0.000000e+00> : vector<440x8xf32>
    %64 = tpu.matmul %1, %63, %cst_25 {dimension_numbers = #tpu.dot_dimension_numbers<[1], [0], [0], [1], [0, 0, 1, 1], [], []>} : vector<440x4xf32>, vector<4x8xf32>, vector<440x8xf32> -> vector<440x8xf32>
    %65 = vector.extract_strided_slice %6 {offsets = [6, 0, 0], sizes = [1, 56, 8], strides = [1, 1, 1]} : vector<9x56x8xf32> to vector<1x56x8xf32>
    %66 = vector.shape_cast %65 : vector<1x56x8xf32> to vector<56x8xf32>
    %cst_26 = arith.constant dense<0.000000e+00> : vector<440x8xf32>
    %67 = tpu.matmul %3, %66, %cst_26 {dimension_numbers = #tpu.dot_dimension_numbers<[1], [0], [0], [1], [0, 0, 1, 1], [], []>} : vector<440x56xf32>, vector<56x8xf32>, vector<440x8xf32> -> vector<440x8xf32>
    %68 = arith.addf %64, %67 : vector<440x8xf32>
    %69 = vector.extract_strided_slice %68 {offsets = [48, 0], sizes = [384, 8], strides = [1, 1]} : vector<440x8xf32> to vector<384x8xf32>
    %70 = arith.addf %61, %69 : vector<384x8xf32>
    %71 = vector.extract_strided_slice %4 {offsets = [7, 0, 0], sizes = [1, 4, 8], strides = [1, 1, 1]} : vector<9x4x8xf32> to vector<1x4x8xf32>
    %72 = vector.shape_cast %71 : vector<1x4x8xf32> to vector<4x8xf32>
    %cst_27 = arith.constant dense<0.000000e+00> : vector<440x8xf32>
    %73 = tpu.matmul %1, %72, %cst_27 {dimension_numbers = #tpu.dot_dimension_numbers<[1], [0], [0], [1], [0, 0, 1, 1], [], []>} : vector<440x4xf32>, vector<4x8xf32>, vector<440x8xf32> -> vector<440x8xf32>
    %74 = vector.extract_strided_slice %6 {offsets = [7, 0, 0], sizes = [1, 56, 8], strides = [1, 1, 1]} : vector<9x56x8xf32> to vector<1x56x8xf32>
    %75 = vector.shape_cast %74 : vector<1x56x8xf32> to vector<56x8xf32>
    %cst_28 = arith.constant dense<0.000000e+00> : vector<440x8xf32>
    %76 = tpu.matmul %3, %75, %cst_28 {dimension_numbers = #tpu.dot_dimension_numbers<[1], [0], [0], [1], [0, 0, 1, 1], [], []>} : vector<440x56xf32>, vector<56x8xf32>, vector<440x8xf32> -> vector<440x8xf32>
    %77 = arith.addf %73, %76 : vector<440x8xf32>
    %78 = vector.extract_strided_slice %77 {offsets = [49, 0], sizes = [384, 8], strides = [1, 1]} : vector<440x8xf32> to vector<384x8xf32>
    %79 = arith.addf %70, %78 : vector<384x8xf32>
    %80 = vector.extract_strided_slice %4 {offsets = [8, 0, 0], sizes = [1, 4, 8], strides = [1, 1, 1]} : vector<9x4x8xf32> to vector<1x4x8xf32>
    %81 = vector.shape_cast %80 : vector<1x4x8xf32> to vector<4x8xf32>
    %cst_29 = arith.constant dense<0.000000e+00> : vector<440x8xf32>
    %82 = tpu.matmul %1, %81, %cst_29 {dimension_numbers = #tpu.dot_dimension_numbers<[1], [0], [0], [1], [0, 0, 1, 1], [], []>} : vector<440x4xf32>, vector<4x8xf32>, vector<440x8xf32> -> vector<440x8xf32>
    %83 = vector.extract_strided_slice %6 {offsets = [8, 0, 0], sizes = [1, 56, 8], strides = [1, 1, 1]} : vector<9x56x8xf32> to vector<1x56x8xf32>
    %84 = vector.shape_cast %83 : vector<1x56x8xf32> to vector<56x8xf32>
    %cst_30 = arith.constant dense<0.000000e+00> : vector<440x8xf32>
    %85 = tpu.matmul %3, %84, %cst_30 {dimension_numbers = #tpu.dot_dimension_numbers<[1], [0], [0], [1], [0, 0, 1, 1], [], []>} : vector<440x56xf32>, vector<56x8xf32>, vector<440x8xf32> -> vector<440x8xf32>
    %86 = arith.addf %82, %85 : vector<440x8xf32>
    %87 = vector.extract_strided_slice %86 {offsets = [50, 0], sizes = [384, 8], strides = [1, 1]} : vector<440x8xf32> to vector<384x8xf32>
    %88 = arith.addf %79, %87 : vector<384x8xf32>
    %89 = vector.shape_cast %88 : vector<384x8xf32> to vector<16x24x8xf32>
    %90 = vector.extract_strided_slice %89 {offsets = [0, 0, 0], sizes = [16, 16, 8], strides = [1, 1, 1]} : vector<16x24x8xf32> to vector<16x16x8xf32>
    %c0_31 = arith.constant 0 : index
    %c0_32 = arith.constant 0 : index
    %91 = vector.load %arg6[%c0_31, %c0_32] : memref<1x8xf32, #tpu.memory_space<vmem>>, vector<1x8xf32>
    %92 = vector.shape_cast %91 : vector<1x8xf32> to vector<1x1x8xf32>
    %93 = vector.broadcast %92 : vector<1x1x8xf32> to vector<16x16x8xf32>
    %94 = arith.addf %90, %93 : vector<16x16x8xf32>
    %c0_33 = arith.constant 0 : index
    %c0_34 = arith.constant 0 : index
    %95 = vector.load %arg7[%c0_33, %c0_34] : memref<1x8xf32, #tpu.memory_space<vmem>>, vector<1x8xf32>
    %c0_35 = arith.constant 0 : index
    %c0_36 = arith.constant 0 : index
    %96 = vector.load %arg8[%c0_35, %c0_36] : memref<1x8xf32, #tpu.memory_space<vmem>>, vector<1x8xf32>
    %cst_37 = arith.constant dense<0.000000e+00> : vector<16x16xf32>
    %97 = vector.multi_reduction <add>, %94, %cst_37 [2] : vector<16x16x8xf32> to vector<16x16xf32>
    %98 = vector.shape_cast %97 : vector<16x16xf32> to vector<16x16x1xf32>
    %cst_38 = arith.constant 8.000000e+00 : f32
    %99 = vector.broadcast %cst_38 : f32 to vector<16x16x1xf32>
    %100 = arith.divf %98, %99 : vector<16x16x1xf32>
    %101 = vector.broadcast %100 : vector<16x16x1xf32> to vector<16x16x8xf32>
    %102 = arith.subf %94, %101 : vector<16x16x8xf32>
    %103 = arith.mulf %102, %102 : vector<16x16x8xf32>
    %cst_39 = arith.constant dense<0.000000e+00> : vector<16x16xf32>
    %104 = vector.multi_reduction <add>, %103, %cst_39 [2] : vector<16x16x8xf32> to vector<16x16xf32>
    %105 = vector.shape_cast %104 : vector<16x16xf32> to vector<16x16x1xf32>
    %cst_40 = arith.constant 8.000000e+00 : f32
    %106 = vector.broadcast %cst_40 : f32 to vector<16x16x1xf32>
    %107 = arith.divf %105, %106 : vector<16x16x1xf32>
    %108 = vector.broadcast %100 : vector<16x16x1xf32> to vector<16x16x8xf32>
    %109 = arith.subf %94, %108 : vector<16x16x8xf32>
    %cst_41 = arith.constant 9.99999974E-6 : f32
    %110 = vector.broadcast %cst_41 : f32 to vector<16x16x1xf32>
    %111 = arith.addf %107, %110 : vector<16x16x1xf32>
    %112 = math.rsqrt %111 : vector<16x16x1xf32>
    %113 = vector.broadcast %112 : vector<16x16x1xf32> to vector<16x16x8xf32>
    %114 = arith.mulf %109, %113 : vector<16x16x8xf32>
    %115 = vector.shape_cast %95 : vector<1x8xf32> to vector<1x1x8xf32>
    %116 = vector.broadcast %115 : vector<1x1x8xf32> to vector<16x16x8xf32>
    %117 = arith.mulf %114, %116 : vector<16x16x8xf32>
    %118 = vector.shape_cast %96 : vector<1x8xf32> to vector<1x1x8xf32>
    %119 = vector.broadcast %118 : vector<1x1x8xf32> to vector<16x16x8xf32>
    %120 = arith.addf %117, %119 : vector<16x16x8xf32>
    %cst_42 = arith.constant 5.000000e-01 : f32
    %121 = vector.broadcast %cst_42 : f32 to vector<16x16x8xf32>
    %122 = arith.mulf %121, %120 : vector<16x16x8xf32>
    %cst_43 = arith.constant 0.707106769 : f32
    %123 = vector.broadcast %cst_43 : f32 to vector<16x16x8xf32>
    %124 = arith.mulf %120, %123 : vector<16x16x8xf32>
    %125 = math.erf %124 : vector<16x16x8xf32>
    %cst_44 = arith.constant 1.000000e+00 : f32
    %126 = vector.broadcast %cst_44 : f32 to vector<16x16x8xf32>
    %127 = arith.addf %126, %125 : vector<16x16x8xf32>
    %128 = arith.mulf %122, %127 : vector<16x16x8xf32>
    %c0_45 = arith.constant 0 : index
    %c0_46 = arith.constant 0 : index
    %c0_47 = arith.constant 0 : index
    %c0_48 = arith.constant 0 : index
    %129 = vector.load %arg9[%c0_45, %c0_46, %c0_47, %c0_48] : memref<1x16x16x8xf32, #tpu.memory_space<vmem>>, vector<1x16x16x8xf32>
    %130 = vector.shape_cast %129 : vector<1x16x16x8xf32> to vector<16x16x8xf32>
    %131 = vector.shape_cast %128 : vector<16x16x8xf32> to vector<1x16x16x8xf32>
    tpu.vector_store %arg9[%c0_45, %c0_46, %c0_47, %c0_48], %131 {strides = array<i32>} : memref<1x16x16x8xf32, #tpu.memory_space<vmem>>, vector<1x16x16x8xf32>,
    return
  }
  func.func @transform_0(%arg0: i32, %arg1: i32) -> (i32, i32, i32, i32) {
    %c0_i32 = arith.constant 0 : i32
    %c0_i32_0 = arith.constant 0 : i32
    %c0_i32_1 = arith.constant 0 : i32
    return %arg0, %arg1, %c0_i32, %c0_i32_0 : i32, i32, i32, i32
  }
  func.func @transform_1(%arg0: i32, %arg1: i32) -> (i32, i32, i32) {
    %c0_i32 = arith.constant 0 : i32
    %c0_i32_0 = arith.constant 0 : i32
    %c0_i32_1 = arith.constant 0 : i32
    return %arg1, %c0_i32, %c0_i32_0 : i32, i32, i32
  }
  func.func @transform_2(%arg0: i32, %arg1: i32) -> (i32, i32, i32) {
    %c0_i32 = arith.constant 0 : i32
    %c0_i32_0 = arith.constant 0 : i32
    %c0_i32_1 = arith.constant 0 : i32
    %c0_i32_2 = arith.constant 0 : i32
    return %c0_i32, %c0_i32_0, %c0_i32_1 : i32, i32, i32
  }
  func.func @transform_3(%arg0: i32, %arg1: i32) -> (i32, i32, i32, i32) {
    %c0_i32 = arith.constant 0 : i32
    %c0_i32_0 = arith.constant 0 : i32
    %c0_i32_1 = arith.constant 0 : i32
    %c0_i32_2 = arith.constant 0 : i32
    return %arg0, %c0_i32, %c0_i32_0, %c0_i32_1 : i32, i32, i32, i32
  }
  func.func @transform_4(%arg0: i32, %arg1: i32) -> (i32, i32) {
    %c0_i32 = arith.constant 0 : i32
    %c0_i32_0 = arith.constant 0 : i32
    %c0_i32_1 = arith.constant 0 : i32
    return %c0_i32, %c0_i32_0 : i32, i32
  }
  func.func @transform_5(%arg0: i32, %arg1: i32) -> (i32, i32) {
    %c0_i32 = arith.constant 0 : i32
    %c0_i32_0 = arith.constant 0 : i32
    %c0_i32_1 = arith.constant 0 : i32
    return %c0_i32, %c0_i32_0 : i32, i32
  }
  func.func @transform_6(%arg0: i32, %arg1: i32) -> (i32, i32) {
    %c0_i32 = arith.constant 0 : i32
    %c0_i32_0 = arith.constant 0 : i32
    %c0_i32_1 = arith.constant 0 : i32
    return %c0_i32, %c0_i32_0 : i32, i32
  }
  func.func @transform_7(%arg0: i32, %arg1: i32) -> (i32, i32, i32, i32) {
    %c0_i32 = arith.constant 0 : i32
    %c0_i32_0 = arith.constant 0 : i32
    %c0_i32_1 = arith.constant 0 : i32
    return %arg0, %arg1, %c0_i32, %c0_i32_0 : i32, i32, i32, i32
  }
}

</mosaic_0001>

<llo_original>
// kernel: squeeze.6
$region0: #{squeeze.6}
  %s0 = inlined_call_operand.vmem [shape: bf16[1,18,8], index: 0, kind: input, shape index: {}]
  %s1 = inlined_call_operand.vmem [shape: bf16[2,9,8], index: 1, kind: output, shape index: {}]
  $region1: #{squeeze.6} parent=0
    #allocation0 [shape = 'u8[32768]{0}', space=vmem, size = 0x8000, scoped, tag = 'scoped mem for output reshape']
    #allocation1 [shape = 'u8[4096]{0}', space=vmem, size = 0x1000, scoped, tag = 'scoped mem for input reshape']
    %s3 = ssub.s32 256, 1
    %s4 = sshrl.u32 %s3, 1
    %s5 = sor.u32 %s3, %s4
    %s6 = sand.u32 %s5, 85
    %s7 = sshrl.u32 %s6, 1
    %s8 = sor.u32 %s6, %s7
    %s9 = sand.u32 51, %s8
    %s10 = sshrl.u32 %s9, 2
    %s11 = sor.u32 %s9, %s10
    %s12 = sand.u32 15, %s11
    %v13 = vld [vmem:[%s0] sm:%s12]
    %v14 = vunpack.c.l.bf16 %v13
    %v15 = vunpack.c.h.bf16 %v13
    %16 = vst [vmem:[#allocation1] sm:%s3] %v14
    %v17 = vld [vmem:[#allocation1] sm:$0xff]
    %vm18 = vcmask 72704
    %19 = vst.msk [vmem:[#allocation0] ss:$8 sm:$0xf] %vm18, %v17
    %20 = vst.msk [vmem:[#allocation0] ss:$8 sm:$0xf0] %vm18, %v17
    %v21 = vld [vmem:[#allocation1] sm:$0xff]
    %22 = vrot.lane.b32.xlu0 %v21, 119
    %v23 = vpop.permute.xlu0 %22
    %vm24 = vcmask 72704
    %s25 = scalar_lea.vmem [#allocation0], 1
    %26 = vst.msk [vmem:[%s25] ss:$8 sm:$0xf] %vm24, %v23
    %s27 = scalar_lea.vmem [#allocation0], 1
    %28 = vst.msk [vmem:[%s27] ss:$8 sm:$0xf0] %vm24, %v23
    %s30 = ssub.s32 4, 1
    %v31 = vld [vmem:[#allocation0] sm:%s30]
    %v32 = vpack.c.bf16 0.0, %v31
    %s34 = ssub.s32 2, 1
    %35 = vst [vmem:[%s1] sm:%s34] %v32
    %s36 = scalar_lea.vmem [#allocation0], 8
    %v37 = vld [vmem:[%s36] sm:%s30]
    %v38 = vpack.c.bf16 0.0, %v37
    %s40 = ssub.s32 2, 1
    %s41 = scalar_lea.vmem %s1, 1
    %42 = vst [vmem:[%s41] sm:%s40] %v38
    %s43 = scalar_lea.vmem [#allocation0], 16
    %v44 = vld [vmem:[%s43] sm:%s30]
    %v45 = vpack.c.bf16 0.0, %v44
    %s47 = ssub.s32 2, 1
    %s48 = scalar_lea.vmem %s1, 2
    %49 = vst [vmem:[%s48] sm:%s47] %v45
    %s50 = scalar_lea.vmem [#allocation0], 24
    %v51 = vld [vmem:[%s50] sm:%s30]
    %v52 = vpack.c.bf16 0.0, %v51
    %s54 = ssub.s32 2, 1
    %s55 = scalar_lea.vmem %s1, 3
    %56 = vst [vmem:[%s55] sm:%s54] %v52
    %s57 = scalar_lea.vmem [#allocation0], 32
    %v58 = vld [vmem:[%s57] sm:%s30]
    %v59 = vpack.c.bf16 0.0, %v58
    %s61 = ssub.s32 2, 1
    %s62 = scalar_lea.vmem %s1, 4
    %63 = vst [vmem:[%s62] sm:%s61] %v59
    %s64 = scalar_lea.vmem [#allocation0], 40
    %v65 = vld [vmem:[%s64] sm:%s30]
    %v66 = vpack.c.bf16 0.0, %v65
    %s68 = ssub.s32 2, 1
    %s69 = scalar_lea.vmem %s1, 5
    %70 = vst [vmem:[%s69] sm:%s68] %v66
    %s71 = scalar_lea.vmem [#allocation0], 48
    %v72 = vld [vmem:[%s71] sm:%s30]
    %v73 = vpack.c.bf16 0.0, %v72
    %s75 = ssub.s32 2, 1
    %s76 = scalar_lea.vmem %s1, 6
    %77 = vst [vmem:[%s76] sm:%s75] %v73
    %s78 = scalar_lea.vmem [#allocation0], 56
    %v79 = vld [vmem:[%s78] sm:%s30]
    %v80 = vpack.c.bf16 0.0, %v79
    %s82 = ssub.s32 2, 1
    %s83 = scalar_lea.vmem %s1, 7
    %84 = vst [vmem:[%s83] sm:%s82] %v80

// kernel: squeeze.7
$region0: #{squeeze.7}
  %s0 = inlined_call_operand.vmem [shape: bf16[1,72,8], index: 0, kind: input, shape index: {}]
  %s1 = inlined_call_operand.vmem [shape: bf16[2,36,8], index: 1, kind: output, shape index: {}]
  $region1: #{squeeze.7} parent=0
    #allocation0 [shape = 'u8[32768]{0}', space=vmem, size = 0x8000, scoped, tag = 'scoped mem for output reshape']
    #allocation1 [shape = 'u8[4096]{0}', space=vmem, size = 0x1000, scoped, tag = 'scoped mem for input reshape']
    %s3 = ssub.s32 256, 1
    %s4 = sshrl.u32 %s3, 1
    %s5 = sor.u32 %s3, %s4
    %s6 = sand.u32 %s5, 85
    %s7 = sshrl.u32 %s6, 1
    %s8 = sor.u32 %s6, %s7
    %s9 = sand.u32 51, %s8
    %s10 = sshrl.u32 %s9, 2
    %s11 = sor.u32 %s9, %s10
    %s12 = sand.u32 15, %s11
    %v13 = vld [vmem:[%s0] sm:%s12]
    %v14 = vunpack.c.l.bf16 %v13
    %v15 = vunpack.c.h.bf16 %v13
    %16 = vst [vmem:[#allocation1] sm:%s3] %v14
    %v17 = vld [vmem:[#allocation1] sm:$0xff]
    %vm18 = vcmask 293888
    %19 = vst.msk [vmem:[#allocation0] ss:$8 sm:$0xf] %vm18, %v17
    %20 = vst.msk [vmem:[#allocation0] ss:$8 sm:$0xf0] %vm18, %v17
    %v21 = vld [vmem:[#allocation1] sm:$0xff]
    %22 = vrot.lane.b32.xlu0 %v21, 92
    %v23 = vpop.permute.xlu0 %22
    %vm24 = vcmask 293888
    %s25 = scalar_lea.vmem [#allocation0], 1
    %26 = vst.msk [vmem:[%s25] ss:$8 sm:$0xf] %vm24, %v23
    %s27 = scalar_lea.vmem [#allocation0], 1
    %28 = vst.msk [vmem:[%s27] ss:$8 sm:$0xf0] %vm24, %v23
    %s30 = ssub.s32 4, 1
    %v31 = vld [vmem:[#allocation0] sm:%s30]
    %v32 = vpack.c.bf16 0.0, %v31
    %s34 = ssub.s32 2, 1
    %35 = vst [vmem:[%s1] sm:%s34] %v32
    %s36 = scalar_lea.vmem [#allocation0], 8
    %v37 = vld [vmem:[%s36] sm:%s30]
    %v38 = vpack.c.bf16 0.0, %v37
    %s40 = ssub.s32 2, 1
    %s41 = scalar_lea.vmem %s1, 1
    %42 = vst [vmem:[%s41] sm:%s40] %v38
    %s43 = scalar_lea.vmem [#allocation0], 16
    %v44 = vld [vmem:[%s43] sm:%s30]
    %v45 = vpack.c.bf16 0.0, %v44
    %s47 = ssub.s32 2, 1
    %s48 = scalar_lea.vmem %s1, 2
    %49 = vst [vmem:[%s48] sm:%s47] %v45
    %s50 = scalar_lea.vmem [#allocation0], 24
    %v51 = vld [vmem:[%s50] sm:%s30]
    %v52 = vpack.c.bf16 0.0, %v51
    %s54 = ssub.s32 2, 1
    %s55 = scalar_lea.vmem %s1, 3
    %56 = vst [vmem:[%s55] sm:%s54] %v52
    %s57 = scalar_lea.vmem [#allocation0], 32
    %v58 = vld [vmem:[%s57] sm:%s30]
    %v59 = vpack.c.bf16 0.0, %v58
    %s61 = ssub.s32 2, 1
    %s62 = scalar_lea.vmem %s1, 4
    %63 = vst [vmem:[%s62] sm:%s61] %v59
    %s64 = scalar_lea.vmem [#allocation0], 40
    %v65 = vld [vmem:[%s64] sm:%s30]
    %v66 = vpack.c.bf16 0.0, %v65
    %s68 = ssub.s32 2, 1
    %s69 = scalar_lea.vmem %s1, 5
    %70 = vst [vmem:[%s69] sm:%s68] %v66
    %s71 = scalar_lea.vmem [#allocation0], 48
    %v72 = vld [vmem:[%s71] sm:%s30]
    %v73 = vpack.c.bf16 0.0, %v72
    %s75 = ssub.s32 2, 1
    %s76 = scalar_lea.vmem %s1, 6
    %77 = vst [vmem:[%s76] sm:%s75] %v73
    %s78 = scalar_lea.vmem [#allocation0], 56
    %v79 = vld [vmem:[%s78] sm:%s30]
    %v80 = vpack.c.bf16 0.0, %v79
    %s82 = ssub.s32 2, 1
    %s83 = scalar_lea.vmem %s1, 7
    %84 = vst [vmem:[%s83] sm:%s82] %v80

// kernel: ppm_block_forward_pallas.2
$region0: #{ppm_block_forward_pallas.2}
  #allocation0 [shape = 'u32[]', space=smem, size = 0x4, offset = 0x4, fixed_abs, tag = 'smem constant byte address 0x4 - core index']
  #allocation1 [shape = 'u32[72,128]{1,0:T(1,128)}', space=vmem, size = 0x9000, scoped, tag = 'internal scratch']
  %s0 = inlined_call_operand.vmem [shape: f32[4,72,4], index: 0, kind: input, shape index: {}]
  %s1 = inlined_call_operand.vmem [shape: f32[4,4,8], index: 1, kind: input, shape index: {}]
  %s2 = inlined_call_operand.vmem [shape: f32[4,1,8], index: 2, kind: input, shape index: {}]
  %s3 = inlined_call_operand.vmem [shape: f32[4,1,8], index: 3, kind: input, shape index: {}]
  %s4 = inlined_call_operand.vmem [shape: f32[4,1,8], index: 4, kind: input, shape index: {}]
  %s5 = inlined_call_operand.vmem [shape: f32[4,72,8], index: 5, kind: output, shape index: {}]
  %s6 = sld [smem:[#allocation0]]
  $region53: #{ppm_block_forward_pallas.2} parent=0
    _
  %s8 = ssub.s32 1, %s6
  %s9 = scalar_select 0, %s8, %s6
  loop: start=0, step=1, limit=6
  $region2: #{ppm_block_forward_pallas.2} parent=0 // loop_pre_header
    _
  $region3: #{ppm_block_forward_pallas.2} parent=0 // loop_header
    %s11 = sphi 0, %s15
    %p12 = scmp.ge.s32.totalorder %s11, 6
    %s21 = sphi 0, %s23
    %s24 = sphi 0, %s21
    %s25 = sphi 0, %s24
    %s41 = sphi 0, %s25
    %s47 = sphi 0, %s49
    %s50 = sphi 0, %s47
    %s51 = sphi 0, %s50
    %s67 = sphi 0, %s51
    %s73 = sphi 0, %s75
    %s76 = sphi 0, %s73
    %s77 = sphi 0, %s76
    %s93 = sphi 0, %s77
    %s99 = sphi 0, %s101
    %s102 = sphi 0, %s99
    %s103 = sphi 0, %s102
    %s119 = sphi 0, %s103
    %s125 = sphi 0, %s127
    %s128 = sphi 0, %s125
    %s129 = sphi 0, %s128
    %s145 = sphi 0, %s129
    %s151 = sphi 0, %s153
    %s154 = sphi 0, %s151
    %s155 = sphi 0, %s154
    %s171 = sphi 0, %s155
  $region4: #{ppm_block_forward_pallas.2} parent=0 // loop_header_branch
    %14 = sbr.rel (%p12) target = $region8
  $region5: #{ppm_block_forward_pallas.2} parent=0 // loop_body
    %s16 = ssub.s32 %s11, 1
    %s17 = ssub.s32 %s11, 2
    %s18 = sadd.s32 %s11, 1
    %s19 = ssub.s32 %s11, %s18
    %p20 = scmp.eq.s32.totalorder %s19, 0
    %s22 = sadd.s32 %s21, 1
    %s23 = scalar_select %p20, %s21, %s22
    %p26 = pneg %p20
    %p27 = scmp.eq.s32.totalorder %s11, 3
    %p28 = por %p26, %p27
    %p29 = scmp.ne.s32.totalorder %s21, %s24
    %p30 = scmp.eq.s32.totalorder %s11, 0
    %p31 = por %p29, %p30
    %p32 = scmp.ne.s32.totalorder %s21, %s24
    %p33 = scmp.eq.s32.totalorder %s16, 3
    %p34 = por %p32, %p33
    %p35 = scmp.ne.s32.totalorder %s24, %s25
    %p36 = scmp.eq.s32.totalorder %s16, 0
    %p37 = por %p35, %p36
    %p38 = scmp.ne.s32.totalorder %s24, %s25
    %p39 = scmp.eq.s32.totalorder %s17, 3
    %p40 = por %p38, %p39
    %p42 = scmp.ne.s32.totalorder %s25, %s41
    %p43 = scmp.eq.s32.totalorder %s17, 0
    %p44 = por %p42, %p43
    %s45 = ssub.s32 %s11, %s18
    %p46 = scmp.eq.s32.totalorder %s45, 0
    %s48 = sadd.s32 %s47, 1
    %s49 = scalar_select %p46, %s47, %s48
    %p52 = pneg %p46
    %p53 = scmp.eq.s32.totalorder %s11, 3
    %p54 = por %p52, %p53
    %p55 = scmp.ne.s32.totalorder %s47, %s50
    %p56 = scmp.eq.s32.totalorder %s11, 0
    %p57 = por %p55, %p56
    %p58 = scmp.ne.s32.totalorder %s47, %s50
    %p59 = scmp.eq.s32.totalorder %s16, 3
    %p60 = por %p58, %p59
    %p61 = scmp.ne.s32.totalorder %s50, %s51
    %p62 = scmp.eq.s32.totalorder %s16, 0
    %p63 = por %p61, %p62
    %p64 = scmp.ne.s32.totalorder %s50, %s51
    %p65 = scmp.eq.s32.totalorder %s17, 3
    %p66 = por %p64, %p65
    %p68 = scmp.ne.s32.totalorder %s51, %s67
    %p69 = scmp.eq.s32.totalorder %s17, 0
    %p70 = por %p68, %p69
    %s71 = ssub.s32 %s11, %s18
    %p72 = scmp.eq.s32.totalorder %s71, 0
    %s74 = sadd.s32 %s73, 1
    %s75 = scalar_select %p72, %s73, %s74
    %p78 = pneg %p72
    %p79 = scmp.eq.s32.totalorder %s11, 3
    %p80 = por %p78, %p79
    %p81 = scmp.ne.s32.totalorder %s73, %s76
    %p82 = scmp.eq.s32.totalorder %s11, 0
    %p83 = por %p81, %p82
    %p84 = scmp.ne.s32.totalorder %s73, %s76
    %p85 = scmp.eq.s32.totalorder %s16, 3
    %p86 = por %p84, %p85
    %p87 = scmp.ne.s32.totalorder %s76, %s77
    %p88 = scmp.eq.s32.totalorder %s16, 0
    %p89 = por %p87, %p88
    %p90 = scmp.ne.s32.totalorder %s76, %s77
    %p91 = scmp.eq.s32.totalorder %s17, 3
    %p92 = por %p90, %p91
    %p94 = scmp.ne.s32.totalorder %s77, %s93
    %p95 = scmp.eq.s32.totalorder %s17, 0
    %p96 = por %p94, %p95
    %s97 = ssub.s32 %s11, %s18
    %p98 = scmp.eq.s32.totalorder %s97, 0
    %s100 = sadd.s32 %s99, 1
    %s101 = scalar_select %p98, %s99, %s100
    %p104 = pneg %p98
    %p105 = scmp.eq.s32.totalorder %s11, 3
    %p106 = por %p104, %p105
    %p107 = scmp.ne.s32.totalorder %s99, %s102
    %p108 = scmp.eq.s32.totalorder %s11, 0
    %p109 = por %p107, %p108
    %p110 = scmp.ne.s32.totalorder %s99, %s102
    %p111 = scmp.eq.s32.totalorder %s16, 3
    %p112 = por %p110, %p111
    %p113 = scmp.ne.s32.totalorder %s102, %s103
    %p114 = scmp.eq.s32.totalorder %s16, 0
    %p115 = por %p113, %p114
    %p116 = scmp.ne.s32.totalorder %s102, %s103
    %p117 = scmp.eq.s32.totalorder %s17, 3
    %p118 = por %p116, %p117
    %p120 = scmp.ne.s32.totalorder %s103, %s119
    %p121 = scmp.eq.s32.totalorder %s17, 0
    %p122 = por %p120, %p121
    %s123 = ssub.s32 %s11, %s18
    %p124 = scmp.eq.s32.totalorder %s123, 0
    %s126 = sadd.s32 %s125, 1
    %s127 = scalar_select %p124, %s125, %s126
    %p130 = pneg %p124
    %p131 = scmp.eq.s32.totalorder %s11, 3
    %p132 = por %p130, %p131
    %p133 = scmp.ne.s32.totalorder %s125, %s128
    %p134 = scmp.eq.s32.totalorder %s11, 0
    %p135 = por %p133, %p134
    %p136 = scmp.ne.s32.totalorder %s125, %s128
    %p137 = scmp.eq.s32.totalorder %s16, 3
    %p138 = por %p136, %p137
    %p139 = scmp.ne.s32.totalorder %s128, %s129
    %p140 = scmp.eq.s32.totalorder %s16, 0
    %p141 = por %p139, %p140
    %p142 = scmp.ne.s32.totalorder %s128, %s129
    %p143 = scmp.eq.s32.totalorder %s17, 3
    %p144 = por %p142, %p143
    %p146 = scmp.ne.s32.totalorder %s129, %s145
    %p147 = scmp.eq.s32.totalorder %s17, 0
    %p148 = por %p146, %p147
    %s149 = ssub.s32 %s11, %s18
    %p150 = scmp.eq.s32.totalorder %s149, 0
    %s152 = sadd.s32 %s151, 1
    %s153 = scalar_select %p150, %s151, %s152
    %p156 = pneg %p150
    %p157 = scmp.eq.s32.totalorder %s11, 3
    %p158 = por %p156, %p157
    %p159 = scmp.ne.s32.totalorder %s151, %s154
    %p160 = scmp.eq.s32.totalorder %s11, 0
    %p161 = por %p159, %p160
    %p162 = scmp.ne.s32.totalorder %s151, %s154
    %p163 = scmp.eq.s32.totalorder %s16, 3
    %p164 = por %p162, %p163
    %p165 = scmp.ne.s32.totalorder %s154, %s155
    %p166 = scmp.eq.s32.totalorder %s16, 0
    %p167 = por %p165, %p166
    %p168 = scmp.ne.s32.totalorder %s154, %s155
    %p169 = scmp.eq.s32.totalorder %s17, 3
    %p170 = por %p168, %p169
    %p172 = scmp.ne.s32.totalorder %s155, %s171
    %p173 = scmp.eq.s32.totalorder %s17, 0
    %p174 = por %p172, %p173
    %p175 = scmp.le.s32.totalorder 1, %s11
    %p176 = scmp.lt.s32.totalorder %s11, 5
    %p177 = pnand %p175, %p176
    %p178 = pneg %p177
    // Predicated region
    $region9: #{ppm_block_forward_pallas.2} parent=5 // pred_check
      _
    $region10: #{ppm_block_forward_pallas.2} parent=5 // pred_check_branch
      %180 = sbr.rel (%p177) target = $region12
    $region11: #{ppm_block_forward_pallas.2} parent=5 // pred_region
      %s181 = ssub.s32 %s11, 1
    $region12: #{ppm_block_forward_pallas.2} parent=5 // pred_fallthru
      _
    %p182 = scmp.lt.s32.totalorder %s11, 4
    // Predicated region
    $region13: #{ppm_block_forward_pallas.2} parent=5 // pred_check
      %p183 = pneg %p182
    $region14: #{ppm_block_forward_pallas.2} parent=5 // pred_check_branch
      %185 = sbr.rel (%p183) target = $region16
    $region15: #{ppm_block_forward_pallas.2} parent=5 // pred_region
      // Predicated region
      $region17: #{ppm_block_forward_pallas.2} parent=15 // pred_check
        %p186 = pneg %p31
      $region18: #{ppm_block_forward_pallas.2} parent=15 // pred_check_branch
        %188 = sbr.rel (%p186) target = $region20
      $region19: #{ppm_block_forward_pallas.2} parent=15 // pred_region
        %p189 = scmp.lt.s32.totalorder %s11, 3
        %s190 = scalar_select %p189, %s11, 3
        %s191 = smul.addr %s190, 9
        %s192 = smul.addr %s191, 8
        %s193 = scalar_lea.vmem %s0, %s192
      $region20: #{ppm_block_forward_pallas.2} parent=15 // pred_fallthru
        _
      // Predicated region
      $region21: #{ppm_block_forward_pallas.2} parent=15 // pred_check
        %p194 = pneg %p57
      $region22: #{ppm_block_forward_pallas.2} parent=15 // pred_check_branch
        %196 = sbr.rel (%p194) target = $region24
      $region23: #{ppm_block_forward_pallas.2} parent=15 // pred_region
        %p197 = scmp.lt.s32.totalorder %s11, 3
        %s198 = scalar_select %p197, %s11, 3
        %s199 = smul.addr %s198, 4
        %s200 = scalar_lea.vmem %s1, %s199
      $region24: #{ppm_block_forward_pallas.2} parent=15 // pred_fallthru
        _
      // Predicated region
      $region25: #{ppm_block_forward_pallas.2} parent=15 // pred_check
        %p201 = pneg %p83
      $region26: #{ppm_block_forward_pallas.2} parent=15 // pred_check_branch
        %203 = sbr.rel (%p201) target = $region28
      $region27: #{ppm_block_forward_pallas.2} parent=15 // pred_region
        %p204 = scmp.lt.s32.totalorder %s11, 3
        %s205 = scalar_select %p204, %s11, 3
        %s206 = scalar_lea.vmem %s2, %s205
      $region28: #{ppm_block_forward_pallas.2} parent=15 // pred_fallthru
        _
      // Predicated region
      $region29: #{ppm_block_forward_pallas.2} parent=15 // pred_check
        %p207 = pneg %p109
      $region30: #{ppm_block_forward_pallas.2} parent=15 // pred_check_branch
        %209 = sbr.rel (%p207) target = $region32
      $region31: #{ppm_block_forward_pallas.2} parent=15 // pred_region
        %p210 = scmp.lt.s32.totalorder %s11, 3
        %s211 = scalar_select %p210, %s11, 3
        %s212 = scalar_lea.vmem %s3, %s211
      $region32: #{ppm_block_forward_pallas.2} parent=15 // pred_fallthru
        _
      // Predicated region
      $region33: #{ppm_block_forward_pallas.2} parent=15 // pred_check
        %p213 = pneg %p135
      $region34: #{ppm_block_forward_pallas.2} parent=15 // pred_check_branch
        %215 = sbr.rel (%p213) target = $region36
      $region35: #{ppm_block_forward_pallas.2} parent=15 // pred_region
        %p216 = scmp.lt.s32.totalorder %s11, 3
        %s217 = scalar_select %p216, %s11, 3
        %s218 = scalar_lea.vmem %s4, %s217
      $region36: #{ppm_block_forward_pallas.2} parent=15 // pred_fallthru
        _
    $region16: #{ppm_block_forward_pallas.2} parent=5 // pred_fallthru
      _
    %p219 = scmp.le.s32.totalorder 1, %s11
    %p220 = scmp.lt.s32.totalorder %s11, 5
    %p221 = pnand %p219, %p220
    %p222 = pneg %p221
    // Predicated region
    $region37: #{ppm_block_forward_pallas.2} parent=5 // pred_check
      _
    $region38: #{ppm_block_forward_pallas.2} parent=5 // pred_check_branch
      %224 = sbr.rel (%p221) target = $region40
    $region39: #{ppm_block_forward_pallas.2} parent=5 // pred_region
      %s225 = ssub.s32 %s11, 1
      %p226 = scmp.lt.s32.totalorder %s16, 3
      %s227 = scalar_select %p226, %s16, 3
      %s228 = smul.addr %s227, 9
      %s229 = smul.addr %s228, 8
      %s230 = scalar_lea.vmem %s0, %s229
      %p231 = pneg %p37
      %p232 = pneg %p34
      %p233 = scmp.lt.s32.totalorder %s16, 3
      %s234 = scalar_select %p233, %s16, 3
      %s235 = smul.addr %s234, 4
      %s236 = scalar_lea.vmem %s1, %s235
      %p237 = pneg %p63
      %p238 = pneg %p60
      %p239 = scmp.lt.s32.totalorder %s16, 3
      %s240 = scalar_select %p239, %s16, 3
      %s241 = scalar_lea.vmem %s2, %s240
      %p242 = pneg %p89
      %p243 = pneg %p86
      %p244 = scmp.lt.s32.totalorder %s16, 3
      %s245 = scalar_select %p244, %s16, 3
      %s246 = scalar_lea.vmem %s3, %s245
      %p247 = pneg %p115
      %p248 = pneg %p112
      %p249 = scmp.lt.s32.totalorder %s16, 3
      %s250 = scalar_select %p249, %s16, 3
      %s251 = scalar_lea.vmem %s4, %s250
      %p252 = pneg %p141
      %p253 = pneg %p138
      %p254 = pneg %p167
      %p255 = pneg %p164
      %p256 = scmp.lt.s32.totalorder %s16, 3
      %s257 = scalar_select %p256, %s16, 3
      %s258 = smul.addr %s257, 9
      %s259 = smul.addr %s258, 8
      %s260 = scalar_lea.vmem %s5, %s259
      %p261 = scmp.lt.s32.totalorder %s16, 3
      %s262 = scalar_select %p261, %s16, 3
      %s263 = smul.addr %s262, 9
      %s264 = smul.addr %s263, 8
      %s265 = scalar_lea.vmem %s0, %s264
      %p266 = scmp.lt.s32.totalorder %s16, 3
      %s267 = scalar_select %p266, %s16, 3
      %s268 = smul.addr %s267, 4
      %s269 = scalar_lea.vmem %s1, %s268
      %p270 = scmp.lt.s32.totalorder %s16, 3
      %s271 = scalar_select %p270, %s16, 3
      %s272 = scalar_lea.vmem %s2, %s271
      %p273 = scmp.lt.s32.totalorder %s16, 3
      %s274 = scalar_select %p273, %s16, 3
      %s275 = scalar_lea.vmem %s3, %s274
      %p276 = scmp.lt.s32.totalorder %s16, 3
      %s277 = scalar_select %p276, %s16, 3
      %s278 = scalar_lea.vmem %s4, %s277
      %p279 = scmp.lt.s32.totalorder %s16, 3
      %s280 = scalar_select %p279, %s16, 3
      %s281 = smul.addr %s280, 9
      %s282 = smul.addr %s281, 8
      %s283 = scalar_lea.vmem %s5, %s282
      %v284 = vld [vmem:[%s265] sm:$0xff]
      %v285 = vld [vmem:[%s265 + $0x8] sm:$0xff]
      %v286 = vld [vmem:[%s265 + $0x10] sm:$0xff]
      %v287 = vld [vmem:[%s265 + $0x18] sm:$0xff]
      %v288 = vld [vmem:[%s265 + $0x20] sm:$0xff]
      %v289 = vld [vmem:[%s265 + $0x28] sm:$0xff]
      %v290 = vld [vmem:[%s265 + $0x30] sm:$0xff]
      %v291 = vld [vmem:[%s265 + $0x38] sm:$0xff]
      %v292 = vld [vmem:[%s265 + $0x40] sm:$0xff]
      %v293 = vld [vmem:[%s269] sm:$0xf]
      %v294 = vld [vmem:[%s272] sm:$0x1]
      %v296 = vperm.slane %v294, 0
      %vm298 = vcmask 31744
      %v300 = vsel %vm298, %v284, 0
      %v303 = vsel %vm298, %v285, 0
      %v306 = vsel %vm298, %v286, 0
      %v309 = vsel %vm298, %v287, 0
      %v312 = vsel %vm298, %v288, 0
      %v315 = vsel %vm298, %v289, 0
      %v318 = vsel %vm298, %v290, 0
      %v321 = vsel %vm298, %v291, 0
      %v324 = vsel %vm298, %v292, 0
      %vm326 = vcmask 1043456
      %v328 = vsel %vm326, %v293, 0
      %330 = vmatpush.msra.mxu0 0.0
      %331 = vmatpush.msra.mxu0 0.0
      %332 = vmatpush.msra.mxu0 0.0
      %333 = vmatpush.msra.mxu0 0.0
      %334 = vmatpush.msra.mxu0 0.0
      %335 = vmatpush.msra.mxu0 0.0
      %336 = vmatpush.msra.mxu0 0.0
      %337 = vmatpush.msra.mxu0 0.0
      %338 = vmatpush.msra.mxu0 0.0
      %339 = vmatpush.msra.mxu0 0.0
      %340 = vmatpush.msra.mxu0 0.0
      %341 = vmatpush.msra.mxu0 0.0
      %342 = vmatpush.msra.mxu0 0.0
      %343 = vmatpush.msra.mxu0 0.0
      %344 = vmatpush.msra.mxu0 0.0
      %345 = vmatpush.msra.mxu0 %v328
      %346 = vmatmul.f32.gmra.mxu0 %v300
      %v347 = vpop.f32.mrf.mxu0
      %v348 = vadd.f32 %v296, %v347
      %349 = vmatmul.f32.gmra.mxu0 %v303
      %v350 = vpop.f32.mrf.mxu0
      %v351 = vadd.f32 %v296, %v350
      %352 = vmatmul.f32.gmra.mxu0 %v306
      %v353 = vpop.f32.mrf.mxu0
      %v354 = vadd.f32 %v296, %v353
      %355 = vmatmul.f32.gmra.mxu0 %v309
      %v356 = vpop.f32.mrf.mxu0
      %v357 = vadd.f32 %v296, %v356
      %358 = vmatmul.f32.gmra.mxu0 %v312
      %v359 = vpop.f32.mrf.mxu0
      %v360 = vadd.f32 %v296, %v359
      %361 = vmatmul.f32.gmra.mxu0 %v315
      %v362 = vpop.f32.mrf.mxu0
      %v363 = vadd.f32 %v296, %v362
      %364 = vmatmul.f32.gmra.mxu0 %v318
      %v365 = vpop.f32.mrf.mxu0
      %v366 = vadd.f32 %v296, %v365
      %367 = vmatmul.f32.gmra.mxu0 %v321
      %v368 = vpop.f32.mrf.mxu0
      %v369 = vadd.f32 %v296, %v368
      %370 = vmatmul.f32.gmra.mxu0 %v324
      %v371 = vpop.f32.mrf.mxu0
      %v372 = vadd.f32 %v296, %v371
      %373 = vdwg.mxu0
      %v374 = vld [vmem:[%s275] sm:$0x1]
      %v375 = vld [vmem:[%s278] sm:$0x1]
      %vm376 = vcmask 64512
      %v377 = vsel %vm376, %v348, 0.0
      %378 = vadd.xlane.f32.xlu0 %v377
      %v379 = vpop.xlane.xlu0 %378
      %v380 = vsel %vm376, %v351, 0.0
      %381 = vadd.xlane.f32.xlu0 %v380
      %v382 = vpop.xlane.xlu0 %381
      %v383 = vsel %vm376, %v354, 0.0
      %384 = vadd.xlane.f32.xlu0 %v383
      %v385 = vpop.xlane.xlu0 %384
      %v386 = vsel %vm376, %v357, 0.0
      %387 = vadd.xlane.f32.xlu0 %v386
      %v388 = vpop.xlane.xlu0 %387
      %v389 = vsel %vm376, %v360, 0.0
      %390 = vadd.xlane.f32.xlu0 %v389
      %v391 = vpop.xlane.xlu0 %390
      %v392 = vsel %vm376, %v363, 0.0
      %393 = vadd.xlane.f32.xlu0 %v392
      %v394 = vpop.xlane.xlu0 %393
      %v395 = vsel %vm376, %v366, 0.0
      %396 = vadd.xlane.f32.xlu0 %v395
      %v397 = vpop.xlane.xlu0 %396
      %v398 = vsel %vm376, %v369, 0.0
      %399 = vadd.xlane.f32.xlu0 %v398
      %v400 = vpop.xlane.xlu0 %399
      %v401 = vsel %vm376, %v372, 0.0
      %402 = vadd.xlane.f32.xlu0 %v401
      %v403 = vpop.xlane.xlu0 %402
      %v404 = vrcp.pop 8.0
      %v405 = vmul.f32 8.0, %v404
      %v406 = vsub.f32 1.0, %v405
      %v407 = vmul.f32 %v404, %v406
      %v408 = vadd.f32 %v404, %v407
      %vm409 = vweird.f32 %v404
      %v410 = vsel %vm409, %v404, %v408
      %v411 = vmul.f32 %v379, %v410
      %v412 = vmul.f32 %v382, %v410
      %v413 = vmul.f32 %v385, %v410
      %v414 = vmul.f32 %v388, %v410
      %v415 = vmul.f32 %v391, %v410
      %v416 = vmul.f32 %v394, %v410
      %v417 = vmul.f32 %v397, %v410
      %v418 = vmul.f32 %v400, %v410
      %v419 = vmul.f32 %v403, %v410
      %v420 = vsub.f32 %v348, %v411
      %v421 = vsub.f32 %v351, %v412
      %v422 = vsub.f32 %v354, %v413
      %v423 = vsub.f32 %v357, %v414
      %v424 = vsub.f32 %v360, %v415
      %v425 = vsub.f32 %v363, %v416
      %v426 = vsub.f32 %v366, %v417
      %v427 = vsub.f32 %v369, %v418
      %v428 = vsub.f32 %v372, %v419
      %v429 = vmul.f32 %v420, %v420
      %v430 = vmul.f32 %v421, %v421
      %v431 = vmul.f32 %v422, %v422
      %v432 = vmul.f32 %v423, %v423
      %v433 = vmul.f32 %v424, %v424
      %v434 = vmul.f32 %v425, %v425
      %v435 = vmul.f32 %v426, %v426
      %v436 = vmul.f32 %v427, %v427
      %v437 = vmul.f32 %v428, %v428
      %v438 = vsel %vm376, %v429, 0.0
      %439 = vadd.xlane.f32.xlu0 %v438
      %v440 = vpop.xlane.xlu0 %439
      %v441 = vsel %vm376, %v430, 0.0
      %442 = vadd.xlane.f32.xlu0 %v441
      %v443 = vpop.xlane.xlu0 %442
      %v444 = vsel %vm376, %v431, 0.0
      %445 = vadd.xlane.f32.xlu0 %v444
      %v446 = vpop.xlane.xlu0 %445
      %v447 = vsel %vm376, %v432, 0.0
      %448 = vadd.xlane.f32.xlu0 %v447
      %v449 = vpop.xlane.xlu0 %448
      %v450 = vsel %vm376, %v433, 0.0
      %451 = vadd.xlane.f32.xlu0 %v450
      %v452 = vpop.xlane.xlu0 %451
      %v453 = vsel %vm376, %v434, 0.0
      %454 = vadd.xlane.f32.xlu0 %v453
      %v455 = vpop.xlane.xlu0 %454
      %v456 = vsel %vm376, %v435, 0.0
      %457 = vadd.xlane.f32.xlu0 %v456
      %v458 = vpop.xlane.xlu0 %457
      %v459 = vsel %vm376, %v436, 0.0
      %460 = vadd.xlane.f32.xlu0 %v459
      %v461 = vpop.xlane.xlu0 %460
      %v462 = vsel %vm376, %v437, 0.0
      %463 = vadd.xlane.f32.xlu0 %v462
      %v464 = vpop.xlane.xlu0 %463
      %v465 = vmul.f32 %v440, %v410
      %v466 = vmul.f32 %v443, %v410
      %v467 = vmul.f32 %v446, %v410
      %v468 = vmul.f32 %v449, %v410
      %v469 = vmul.f32 %v452, %v410
      %v470 = vmul.f32 %v455, %v410
      %v471 = vmul.f32 %v458, %v410
      %v472 = vmul.f32 %v461, %v410
      %v473 = vmul.f32 %v464, %v410
      %v474 = vadd.f32 %v465, 1e-05
      %v475 = vadd.f32 %v466, 1e-05
      %v476 = vadd.f32 %v467, 1e-05
      %v477 = vadd.f32 %v468, 1e-05
      %v478 = vadd.f32 %v469, 1e-05
      %v479 = vadd.f32 %v470, 1e-05
      %v480 = vadd.f32 %v471, 1e-05
      %v481 = vadd.f32 %v472, 1e-05
      %v482 = vadd.f32 %v473, 1e-05
      %v483 = vrsqrt.pop %v474
      %v484 = vmul.f32 %v483, %v474
      %v485 = vmul.f32 %v484, %v483
      %v486 = vmul.f32 0.5, %v485
      %v487 = vsub.f32 1.5, %v486
      %v488 = vmul.f32 %v483, %v487
      %vm489 = vweird.f32 %v474
      %vm490 = vweird.f32 %v483
      %vm491 = vmor %vm489, %vm490
      %v492 = vsel %vm491, %v483, %v488
      %v493 = vrsqrt.pop %v475
      %v494 = vmul.f32 %v493, %v475
      %v495 = vmul.f32 %v494, %v493
      %v496 = vmul.f32 0.5, %v495
      %v497 = vsub.f32 1.5, %v496
      %v498 = vmul.f32 %v493, %v497
      %vm499 = vweird.f32 %v475
      %vm500 = vweird.f32 %v493
      %vm501 = vmor %vm499, %vm500
      %v502 = vsel %vm501, %v493, %v498
      %v503 = vrsqrt.pop %v476
      %v504 = vmul.f32 %v503, %v476
      %v505 = vmul.f32 %v504, %v503
      %v506 = vmul.f32 0.5, %v505
      %v507 = vsub.f32 1.5, %v506
      %v508 = vmul.f32 %v503, %v507
      %vm509 = vweird.f32 %v476
      %vm510 = vweird.f32 %v503
      %vm511 = vmor %vm509, %vm510
      %v512 = vsel %vm511, %v503, %v508
      %v513 = vrsqrt.pop %v477
      %v514 = vmul.f32 %v513, %v477
      %v515 = vmul.f32 %v514, %v513
      %v516 = vmul.f32 0.5, %v515
      %v517 = vsub.f32 1.5, %v516
      %v518 = vmul.f32 %v513, %v517
      %vm519 = vweird.f32 %v477
      %vm520 = vweird.f32 %v513
      %vm521 = vmor %vm519, %vm520
      %v522 = vsel %vm521, %v513, %v518
      %v523 = vrsqrt.pop %v478
      %v524 = vmul.f32 %v523, %v478
      %v525 = vmul.f32 %v524, %v523
      %v526 = vmul.f32 0.5, %v525
      %v527 = vsub.f32 1.5, %v526
      %v528 = vmul.f32 %v523, %v527
      %vm529 = vweird.f32 %v478
      %vm530 = vweird.f32 %v523
      %vm531 = vmor %vm529, %vm530
      %v532 = vsel %vm531, %v523, %v528
      %v533 = vrsqrt.pop %v479
      %v534 = vmul.f32 %v533, %v479
      %v535 = vmul.f32 %v534, %v533
      %v536 = vmul.f32 0.5, %v535
      %v537 = vsub.f32 1.5, %v536
      %v538 = vmul.f32 %v533, %v537
      %vm539 = vweird.f32 %v479
      %vm540 = vweird.f32 %v533
      %vm541 = vmor %vm539, %vm540
      %v542 = vsel %vm541, %v533, %v538
      %v543 = vrsqrt.pop %v480
      %v544 = vmul.f32 %v543, %v480
      %v545 = vmul.f32 %v544, %v543
      %v546 = vmul.f32 0.5, %v545
      %v547 = vsub.f32 1.5, %v546
      %v548 = vmul.f32 %v543, %v547
      %vm549 = vweird.f32 %v480
      %vm550 = vweird.f32 %v543
      %vm551 = vmor %vm549, %vm550
      %v552 = vsel %vm551, %v543, %v548
      %v553 = vrsqrt.pop %v481
      %v554 = vmul.f32 %v553, %v481
      %v555 = vmul.f32 %v554, %v553
      %v556 = vmul.f32 0.5, %v555
      %v557 = vsub.f32 1.5, %v556
      %v558 = vmul.f32 %v553, %v557
      %vm559 = vweird.f32 %v481
      %vm560 = vweird.f32 %v553
      %vm561 = vmor %vm559, %vm560
      %v562 = vsel %vm561, %v553, %v558
      %v563 = vrsqrt.pop %v482
      %v564 = vmul.f32 %v563, %v482
      %v565 = vmul.f32 %v564, %v563
      %v566 = vmul.f32 0.5, %v565
      %v567 = vsub.f32 1.5, %v566
      %v568 = vmul.f32 %v563, %v567
      %vm569 = vweird.f32 %v482
      %vm570 = vweird.f32 %v563
      %vm571 = vmor %vm569, %vm570
      %v572 = vsel %vm571, %v563, %v568
      %v573 = vmul.f32 %v420, %v492
      %v574 = vmul.f32 %v421, %v502
      %v575 = vmul.f32 %v422, %v512
      %v576 = vmul.f32 %v423, %v522
      %v577 = vmul.f32 %v424, %v532
      %v578 = vmul.f32 %v425, %v542
      %v579 = vmul.f32 %v426, %v552
      %v580 = vmul.f32 %v427, %v562
      %v581 = vmul.f32 %v428, %v572
      %v583 = vperm.slane %v374, 0
      %v585 = vmul.f32 %v573, %v583
      %v586 = vmul.f32 %v574, %v583
      %v587 = vmul.f32 %v575, %v583
      %v588 = vmul.f32 %v576, %v583
      %v589 = vmul.f32 %v577, %v583
      %v590 = vmul.f32 %v578, %v583
      %v591 = vmul.f32 %v579, %v583
      %v592 = vmul.f32 %v580, %v583
      %v593 = vmul.f32 %v581, %v583
      %v595 = vperm.slane %v375, 0
      %v597 = vadd.f32 %v585, %v595
      %v598 = vadd.f32 %v586, %v595
      %v599 = vadd.f32 %v587, %v595
      %v600 = vadd.f32 %v588, %v595
      %v601 = vadd.f32 %v589, %v595
      %v602 = vadd.f32 %v590, %v595
      %v603 = vadd.f32 %v591, %v595
      %v604 = vadd.f32 %v592, %v595
      %v605 = vadd.f32 %v593, %v595
      %v606 = vmul.f32 %v597, 0.5
      %v607 = vmul.f32 %v598, 0.5
      %v608 = vmul.f32 %v599, 0.5
      %v609 = vmul.f32 %v600, 0.5
      %v610 = vmul.f32 %v601, 0.5
      %v611 = vmul.f32 %v602, 0.5
      %v612 = vmul.f32 %v603, 0.5
      %v613 = vmul.f32 %v604, 0.5
      %v614 = vmul.f32 %v605, 0.5
      %v615 = vmul.f32 %v597, 0.70710677
      %v616 = vmul.f32 %v598, 0.70710677
      %v617 = vmul.f32 %v599, 0.70710677
      %v618 = vmul.f32 %v600, 0.70710677
      %v619 = vmul.f32 %v601, 0.70710677
      %v620 = vmul.f32 %v602, 0.70710677
      %v621 = vmul.f32 %v603, 0.70710677
      %v622 = vmul.f32 %v604, 0.70710677
      %v623 = vmul.f32 %v605, 0.70710677
      %v624 = vmul.f32 %v615, %v615
      %v625 = vmin.f32 16.0, %v624
      %v626 = vmul.f32 %v625, 2.1237322e-06
      %v627 = vadd.f32 %v626, 0.00028619796
      %v628 = vmul.f32 %v625, %v627
      %v629 = vadd.f32 %v628, 0.0036580483
      %v630 = vmul.f32 %v625, %v629
      %v631 = vadd.f32 %v630, 0.05243302
      %v632 = vmul.f32 %v625, %v631
      %v633 = vadd.f32 %v632, 0.18741608
      %v634 = vmul.f32 %v625, %v633
      %v635 = vadd.f32 %v634, 1.1283791
      %v636 = vmul.f32 %v615, %v635
      %v637 = vmul.f32 %v625, 3.8918573e-05
      %v638 = vadd.f32 %v637, 0.001143296
      %v639 = vmul.f32 %v625, %v638
      %v640 = vadd.f32 %v639, 0.014752088
      %v641 = vmul.f32 %v625, %v640
      %v642 = vadd.f32 %v641, 0.112945676
      %v643 = vmul.f32 %v625, %v642
      %v644 = vadd.f32 %v643, 0.4994258
      %v645 = vmul.f32 %v625, %v644
      %v646 = vadd.f32 %v645, 1.0
      %v647 = vrcp.pop %v646
      %v648 = vmul.f32 %v646, %v647
      %v649 = vsub.f32 1.0, %v648
      %v650 = vmul.f32 %v647, %v649
      %v651 = vadd.f32 %v647, %v650
      %vm652 = vweird.f32 %v646
      %vm653 = vweird.f32 %v647
      %vm654 = vmor %vm652, %vm653
      %v655 = vsel %vm654, %v647, %v651
      %v656 = vand.u32 2147483647, %v646
      %vm657 = vcmp.eq.f32.partialorder %v656, 8.507059e+37
      %v658 = vand.u32 %v646, 2147483648
      %v659 = vor.u32 1.1754944e-38, %v658
      %v660 = vsel %vm657, %v659, %v655
      %v661 = vmul.f32 %v636, %v660
      %v662 = vmin.f32 %v661, 1.0
      %v663 = vmax.f32 %v662, -1.0
      %v664 = vmul.f32 %v616, %v616
      %v665 = vmin.f32 16.0, %v664
      %v666 = vmul.f32 %v665, 2.1237322e-06
      %v667 = vadd.f32 %v666, 0.00028619796
      %v668 = vmul.f32 %v665, %v667
      %v669 = vadd.f32 %v668, 0.0036580483
      %v670 = vmul.f32 %v665, %v669
      %v671 = vadd.f32 %v670, 0.05243302
      %v672 = vmul.f32 %v665, %v671
      %v673 = vadd.f32 %v672, 0.18741608
      %v674 = vmul.f32 %v665, %v673
      %v675 = vadd.f32 %v674, 1.1283791
      %v676 = vmul.f32 %v616, %v675
      %v677 = vmul.f32 %v665, 3.8918573e-05
      %v678 = vadd.f32 %v677, 0.001143296
      %v679 = vmul.f32 %v665, %v678
      %v680 = vadd.f32 %v679, 0.014752088
      %v681 = vmul.f32 %v665, %v680
      %v682 = vadd.f32 %v681, 0.112945676
      %v683 = vmul.f32 %v665, %v682
      %v684 = vadd.f32 %v683, 0.4994258
      %v685 = vmul.f32 %v665, %v684
      %v686 = vadd.f32 %v685, 1.0
      %v687 = vrcp.pop %v686
      %v688 = vmul.f32 %v686, %v687
      %v689 = vsub.f32 1.0, %v688
      %v690 = vmul.f32 %v687, %v689
      %v691 = vadd.f32 %v687, %v690
      %vm692 = vweird.f32 %v686
      %vm693 = vweird.f32 %v687
      %vm694 = vmor %vm692, %vm693
      %v695 = vsel %vm694, %v687, %v691
      %v696 = vand.u32 2147483647, %v686
      %vm697 = vcmp.eq.f32.partialorder %v696, 8.507059e+37
      %v698 = vand.u32 %v686, 2147483648
      %v699 = vor.u32 1.1754944e-38, %v698
      %v700 = vsel %vm697, %v699, %v695
      %v701 = vmul.f32 %v676, %v700
      %v702 = vmin.f32 %v701, 1.0
      %v703 = vmax.f32 %v702, -1.0
      %v704 = vmul.f32 %v617, %v617
      %v705 = vmin.f32 16.0, %v704
      %v706 = vmul.f32 %v705, 2.1237322e-06
      %v707 = vadd.f32 %v706, 0.00028619796
      %v708 = vmul.f32 %v705, %v707
      %v709 = vadd.f32 %v708, 0.0036580483
      %v710 = vmul.f32 %v705, %v709
      %v711 = vadd.f32 %v710, 0.05243302
      %v712 = vmul.f32 %v705, %v711
      %v713 = vadd.f32 %v712, 0.18741608
      %v714 = vmul.f32 %v705, %v713
      %v715 = vadd.f32 %v714, 1.1283791
      %v716 = vmul.f32 %v617, %v715
      %v717 = vmul.f32 %v705, 3.8918573e-05
      %v718 = vadd.f32 %v717, 0.001143296
      %v719 = vmul.f32 %v705, %v718
      %v720 = vadd.f32 %v719, 0.014752088
      %v721 = vmul.f32 %v705, %v720
      %v722 = vadd.f32 %v721, 0.112945676
      %v723 = vmul.f32 %v705, %v722
      %v724 = vadd.f32 %v723, 0.4994258
      %v725 = vmul.f32 %v705, %v724
      %v726 = vadd.f32 %v725, 1.0
      %v727 = vrcp.pop %v726
      %v728 = vmul.f32 %v726, %v727
      %v729 = vsub.f32 1.0, %v728
      %v730 = vmul.f32 %v727, %v729
      %v731 = vadd.f32 %v727, %v730
      %vm732 = vweird.f32 %v726
      %vm733 = vweird.f32 %v727
      %vm734 = vmor %vm732, %vm733
      %v735 = vsel %vm734, %v727, %v731
      %v736 = vand.u32 2147483647, %v726
      %vm737 = vcmp.eq.f32.partialorder %v736, 8.507059e+37
      %v738 = vand.u32 %v726, 2147483648
      %v739 = vor.u32 1.1754944e-38, %v738
      %v740 = vsel %vm737, %v739, %v735
      %v741 = vmul.f32 %v716, %v740
      %v742 = vmin.f32 %v741, 1.0
      %v743 = vmax.f32 %v742, -1.0
      %v744 = vmul.f32 %v618, %v618
      %v745 = vmin.f32 16.0, %v744
      %v746 = vmul.f32 %v745, 2.1237322e-06
      %v747 = vadd.f32 %v746, 0.00028619796
      %v748 = vmul.f32 %v745, %v747
      %v749 = vadd.f32 %v748, 0.0036580483
      %v750 = vmul.f32 %v745, %v749
      %v751 = vadd.f32 %v750, 0.05243302
      %v752 = vmul.f32 %v745, %v751
      %v753 = vadd.f32 %v752, 0.18741608
      %v754 = vmul.f32 %v745, %v753
      %v755 = vadd.f32 %v754, 1.1283791
      %v756 = vmul.f32 %v618, %v755
      %v757 = vmul.f32 %v745, 3.8918573e-05
      %v758 = vadd.f32 %v757, 0.001143296
      %v759 = vmul.f32 %v745, %v758
      %v760 = vadd.f32 %v759, 0.014752088
      %v761 = vmul.f32 %v745, %v760
      %v762 = vadd.f32 %v761, 0.112945676
      %v763 = vmul.f32 %v745, %v762
      %v764 = vadd.f32 %v763, 0.4994258
      %v765 = vmul.f32 %v745, %v764
      %v766 = vadd.f32 %v765, 1.0
      %v767 = vrcp.pop %v766
      %v768 = vmul.f32 %v766, %v767
      %v769 = vsub.f32 1.0, %v768
      %v770 = vmul.f32 %v767, %v769
      %v771 = vadd.f32 %v767, %v770
      %vm772 = vweird.f32 %v766
      %vm773 = vweird.f32 %v767
      %vm774 = vmor %vm772, %vm773
      %v775 = vsel %vm774, %v767, %v771
      %v776 = vand.u32 2147483647, %v766
      %vm777 = vcmp.eq.f32.partialorder %v776, 8.507059e+37
      %v778 = vand.u32 %v766, 2147483648
      %v779 = vor.u32 1.1754944e-38, %v778
      %v780 = vsel %vm777, %v779, %v775
      %v781 = vmul.f32 %v756, %v780
      %v782 = vmin.f32 %v781, 1.0
      %v783 = vmax.f32 %v782, -1.0
      %v784 = vmul.f32 %v619, %v619
      %v785 = vmin.f32 16.0, %v784
      %v786 = vmul.f32 %v785, 2.1237322e-06
      %v787 = vadd.f32 %v786, 0.00028619796
      %v788 = vmul.f32 %v785, %v787
      %v789 = vadd.f32 %v788, 0.0036580483
      %v790 = vmul.f32 %v785, %v789
      %v791 = vadd.f32 %v790, 0.05243302
      %v792 = vmul.f32 %v785, %v791
      %v793 = vadd.f32 %v792, 0.18741608
      %v794 = vmul.f32 %v785, %v793
      %v795 = vadd.f32 %v794, 1.1283791
      %v796 = vmul.f32 %v619, %v795
      %v797 = vmul.f32 %v785, 3.8918573e-05
      %v798 = vadd.f32 %v797, 0.001143296
      %v799 = vmul.f32 %v785, %v798
      %v800 = vadd.f32 %v799, 0.014752088
      %v801 = vmul.f32 %v785, %v800
      %v802 = vadd.f32 %v801, 0.112945676
      %v803 = vmul.f32 %v785, %v802
      %v804 = vadd.f32 %v803, 0.4994258
      %v805 = vmul.f32 %v785, %v804
      %v806 = vadd.f32 %v805, 1.0
      %v807 = vrcp.pop %v806
      %v808 = vmul.f32 %v806, %v807
      %v809 = vsub.f32 1.0, %v808
      %v810 = vmul.f32 %v807, %v809
      %v811 = vadd.f32 %v807, %v810
      %vm812 = vweird.f32 %v806
      %vm813 = vweird.f32 %v807
      %vm814 = vmor %vm812, %vm813
      %v815 = vsel %vm814, %v807, %v811
      %v816 = vand.u32 2147483647, %v806
      %vm817 = vcmp.eq.f32.partialorder %v816, 8.507059e+37
      %v818 = vand.u32 %v806, 2147483648
      %v819 = vor.u32 1.1754944e-38, %v818
      %v820 = vsel %vm817, %v819, %v815
      %v821 = vmul.f32 %v796, %v820
      %v822 = vmin.f32 %v821, 1.0
      %v823 = vmax.f32 %v822, -1.0
      %v824 = vmul.f32 %v620, %v620
      %v825 = vmin.f32 16.0, %v824
      %v826 = vmul.f32 %v825, 2.1237322e-06
      %v827 = vadd.f32 %v826, 0.00028619796
      %v828 = vmul.f32 %v825, %v827
      %v829 = vadd.f32 %v828, 0.0036580483
      %v830 = vmul.f32 %v825, %v829
      %v831 = vadd.f32 %v830, 0.05243302
      %v832 = vmul.f32 %v825, %v831
      %v833 = vadd.f32 %v832, 0.18741608
      %v834 = vmul.f32 %v825, %v833
      %v835 = vadd.f32 %v834, 1.1283791
      %v836 = vmul.f32 %v620, %v835
      %v837 = vmul.f32 %v825, 3.8918573e-05
      %v838 = vadd.f32 %v837, 0.001143296
      %v839 = vmul.f32 %v825, %v838
      %v840 = vadd.f32 %v839, 0.014752088
      %v841 = vmul.f32 %v825, %v840
      %v842 = vadd.f32 %v841, 0.112945676
      %v843 = vmul.f32 %v825, %v842
      %v844 = vadd.f32 %v843, 0.4994258
      %v845 = vmul.f32 %v825, %v844
      %v846 = vadd.f32 %v845, 1.0
      %v847 = vrcp.pop %v846
      %v848 = vmul.f32 %v846, %v847
      %v849 = vsub.f32 1.0, %v848
      %v850 = vmul.f32 %v847, %v849
      %v851 = vadd.f32 %v847, %v850
      %vm852 = vweird.f32 %v846
      %vm853 = vweird.f32 %v847
      %vm854 = vmor %vm852, %vm853
      %v855 = vsel %vm854, %v847, %v851
      %v856 = vand.u32 2147483647, %v846
      %vm857 = vcmp.eq.f32.partialorder %v856, 8.507059e+37
      %v858 = vand.u32 %v846, 2147483648
      %v859 = vor.u32 1.1754944e-38, %v858
      %v860 = vsel %vm857, %v859, %v855
      %v861 = vmul.f32 %v836, %v860
      %v862 = vmin.f32 %v861, 1.0
      %v863 = vmax.f32 %v862, -1.0
      %v864 = vmul.f32 %v621, %v621
      %v865 = vmin.f32 16.0, %v864
      %v866 = vmul.f32 %v865, 2.1237322e-06
      %v867 = vadd.f32 %v866, 0.00028619796
      %v868 = vmul.f32 %v865, %v867
      %v869 = vadd.f32 %v868, 0.0036580483
      %v870 = vmul.f32 %v865, %v869
      %v871 = vadd.f32 %v870, 0.05243302
      %v872 = vmul.f32 %v865, %v871
      %v873 = vadd.f32 %v872, 0.18741608
      %v874 = vmul.f32 %v865, %v873
      %v875 = vadd.f32 %v874, 1.1283791
      %v876 = vmul.f32 %v621, %v875
      %v877 = vmul.f32 %v865, 3.8918573e-05
      %v878 = vadd.f32 %v877, 0.001143296
      %v879 = vmul.f32 %v865, %v878
      %v880 = vadd.f32 %v879, 0.014752088
      %v881 = vmul.f32 %v865, %v880
      %v882 = vadd.f32 %v881, 0.112945676
      %v883 = vmul.f32 %v865, %v882
      %v884 = vadd.f32 %v883, 0.4994258
      %v885 = vmul.f32 %v865, %v884
      %v886 = vadd.f32 %v885, 1.0
      %v887 = vrcp.pop %v886
      %v888 = vmul.f32 %v886, %v887
      %v889 = vsub.f32 1.0, %v888
      %v890 = vmul.f32 %v887, %v889
      %v891 = vadd.f32 %v887, %v890
      %vm892 = vweird.f32 %v886
      %vm893 = vweird.f32 %v887
      %vm894 = vmor %vm892, %vm893
      %v895 = vsel %vm894, %v887, %v891
      %v896 = vand.u32 2147483647, %v886
      %vm897 = vcmp.eq.f32.partialorder %v896, 8.507059e+37
      %v898 = vand.u32 %v886, 2147483648
      %v899 = vor.u32 1.1754944e-38, %v898
      %v900 = vsel %vm897, %v899, %v895
      %v901 = vmul.f32 %v876, %v900
      %v902 = vmin.f32 %v901, 1.0
      %v903 = vmax.f32 %v902, -1.0
      %v904 = vmul.f32 %v622, %v622
      %v905 = vmin.f32 16.0, %v904
      %v906 = vmul.f32 %v905, 2.1237322e-06
      %v907 = vadd.f32 %v906, 0.00028619796
      %v908 = vmul.f32 %v905, %v907
      %v909 = vadd.f32 %v908, 0.0036580483
      %v910 = vmul.f32 %v905, %v909
      %v911 = vadd.f32 %v910, 0.05243302
      %v912 = vmul.f32 %v905, %v911
      %v913 = vadd.f32 %v912, 0.18741608
      %v914 = vmul.f32 %v905, %v913
      %v915 = vadd.f32 %v914, 1.1283791
      %v916 = vmul.f32 %v622, %v915
      %v917 = vmul.f32 %v905, 3.8918573e-05
      %v918 = vadd.f32 %v917, 0.001143296
      %v919 = vmul.f32 %v905, %v918
      %v920 = vadd.f32 %v919, 0.014752088
      %v921 = vmul.f32 %v905, %v920
      %v922 = vadd.f32 %v921, 0.112945676
      %v923 = vmul.f32 %v905, %v922
      %v924 = vadd.f32 %v923, 0.4994258
      %v925 = vmul.f32 %v905, %v924
      %v926 = vadd.f32 %v925, 1.0
      %v927 = vrcp.pop %v926
      %v928 = vmul.f32 %v926, %v927
      %v929 = vsub.f32 1.0, %v928
      %v930 = vmul.f32 %v927, %v929
      %v931 = vadd.f32 %v927, %v930
      %vm932 = vweird.f32 %v926
      %vm933 = vweird.f32 %v927
      %vm934 = vmor %vm932, %vm933
      %v935 = vsel %vm934, %v927, %v931
      %v936 = vand.u32 2147483647, %v926
      %vm937 = vcmp.eq.f32.partialorder %v936, 8.507059e+37
      %v938 = vand.u32 %v926, 2147483648
      %v939 = vor.u32 1.1754944e-38, %v938
      %v940 = vsel %vm937, %v939, %v935
      %v941 = vmul.f32 %v916, %v940
      %v942 = vmin.f32 %v941, 1.0
      %v943 = vmax.f32 %v942, -1.0
      %v944 = vmul.f32 %v623, %v623
      %v945 = vmin.f32 16.0, %v944
      %v946 = vmul.f32 %v945, 2.1237322e-06
      %v947 = vadd.f32 %v946, 0.00028619796
      %v948 = vmul.f32 %v945, %v947
      %v949 = vadd.f32 %v948, 0.0036580483
      %v950 = vmul.f32 %v945, %v949
      %v951 = vadd.f32 %v950, 0.05243302
      %v952 = vmul.f32 %v945, %v951
      %v953 = vadd.f32 %v952, 0.18741608
      %v954 = vmul.f32 %v945, %v953
      %v955 = vadd.f32 %v954, 1.1283791
      %v956 = vmul.f32 %v623, %v955
      %v957 = vmul.f32 %v945, 3.8918573e-05
      %v958 = vadd.f32 %v957, 0.001143296
      %v959 = vmul.f32 %v945, %v958
      %v960 = vadd.f32 %v959, 0.014752088
      %v961 = vmul.f32 %v945, %v960
      %v962 = vadd.f32 %v961, 0.112945676
      %v963 = vmul.f32 %v945, %v962
      %v964 = vadd.f32 %v963, 0.4994258
      %v965 = vmul.f32 %v945, %v964
      %v966 = vadd.f32 %v965, 1.0
      %v967 = vrcp.pop %v966
      %v968 = vmul.f32 %v966, %v967
      %v969 = vsub.f32 1.0, %v968
      %v970 = vmul.f32 %v967, %v969
      %v971 = vadd.f32 %v967, %v970
      %vm972 = vweird.f32 %v966
      %vm973 = vweird.f32 %v967
      %vm974 = vmor %vm972, %vm973
      %v975 = vsel %vm974, %v967, %v971
      %v976 = vand.u32 2147483647, %v966
      %vm977 = vcmp.eq.f32.partialorder %v976, 8.507059e+37
      %v978 = vand.u32 %v966, 2147483648
      %v979 = vor.u32 1.1754944e-38, %v978
      %v980 = vsel %vm977, %v979, %v975
      %v981 = vmul.f32 %v956, %v980
      %v982 = vmin.f32 %v981, 1.0
      %v983 = vmax.f32 %v982, -1.0
      %v984 = vadd.f32 %v663, 1.0
      %v985 = vadd.f32 %v703, 1.0
      %v986 = vadd.f32 %v743, 1.0
      %v987 = vadd.f32 %v783, 1.0
      %v988 = vadd.f32 %v823, 1.0
      %v989 = vadd.f32 %v863, 1.0
      %v990 = vadd.f32 %v903, 1.0
      %v991 = vadd.f32 %v943, 1.0
      %v992 = vadd.f32 %v983, 1.0
      %v993 = vmul.f32 %v606, %v984
      %v994 = vmul.f32 %v607, %v985
      %v995 = vmul.f32 %v608, %v986
      %v996 = vmul.f32 %v609, %v987
      %v997 = vmul.f32 %v610, %v988
      %v998 = vmul.f32 %v611, %v989
      %v999 = vmul.f32 %v612, %v990
      %v1000 = vmul.f32 %v613, %v991
      %v1001 = vmul.f32 %v614, %v992
      %1002 = vst.msk [vmem:[%s283] sm:$0xff] %vm376, %v993
      %1003 = vst.msk [vmem:[%s283 + $0x8] sm:$0xff] %vm376, %v994
      %1004 = vst.msk [vmem:[%s283 + $0x10] sm:$0xff] %vm376, %v995
      %1005 = vst.msk [vmem:[%s283 + $0x18] sm:$0xff] %vm376, %v996
      %1006 = vst.msk [vmem:[%s283 + $0x20] sm:$0xff] %vm376, %v997
      %1007 = vst.msk [vmem:[%s283 + $0x28] sm:$0xff] %vm376, %v998
      %1008 = vst.msk [vmem:[%s283 + $0x30] sm:$0xff] %vm376, %v999
      %1009 = vst.msk [vmem:[%s283 + $0x38] sm:$0xff] %vm376, %v1000
      %1010 = vst.msk [vmem:[%s283 + $0x40] sm:$0xff] %vm376, %v1001
      %p1011 = scmp.lt.s32.totalorder %s16, 3
      %s1012 = scalar_select %p1011, %s16, 3
      %s1013 = smul.addr %s1012, 9
      %s1014 = smul.addr %s1013, 8
      %s1015 = scalar_lea.vmem %s5, %s1014
      // Predicated region
      $region41: #{ppm_block_forward_pallas.2} parent=39 // pred_check
        %p1016 = pneg %p164
      $region42: #{ppm_block_forward_pallas.2} parent=39 // pred_check_branch
        %1018 = sbr.rel (%p1016) target = $region44
      $region43: #{ppm_block_forward_pallas.2} parent=39 // pred_region
        _
      $region44: #{ppm_block_forward_pallas.2} parent=39 // pred_fallthru
        _
    $region40: #{ppm_block_forward_pallas.2} parent=5 // pred_fallthru
      _
    %p1019 = scmp.le.s32.totalorder 2, %s11
    // Predicated region
    $region45: #{ppm_block_forward_pallas.2} parent=5 // pred_check
      %p1020 = pneg %p1019
    $region46: #{ppm_block_forward_pallas.2} parent=5 // pred_check_branch
      %1022 = sbr.rel (%p1020) target = $region48
    $region47: #{ppm_block_forward_pallas.2} parent=5 // pred_region
      %s1023 = ssub.s32 %s11, 2
      // Predicated region
      $region49: #{ppm_block_forward_pallas.2} parent=47 // pred_check
        %p1024 = pneg %p170
      $region50: #{ppm_block_forward_pallas.2} parent=47 // pred_check_branch
        %1026 = sbr.rel (%p1024) target = $region52
      $region51: #{ppm_block_forward_pallas.2} parent=47 // pred_region
        %p1027 = scmp.lt.s32.totalorder %s17, 3
        %s1028 = scalar_select %p1027, %s17, 3
        %s1029 = smul.addr %s1028, 9
        %s1030 = smul.addr %s1029, 8
        %s1031 = scalar_lea.vmem %s5, %s1030
      $region52: #{ppm_block_forward_pallas.2} parent=47 // pred_fallthru
        _
    $region48: #{ppm_block_forward_pallas.2} parent=5 // pred_fallthru
      _
  $region6: #{ppm_block_forward_pallas.2} parent=0 // loop_footer
    %s15 = sadd.s32 1, %s11
  $region7: #{ppm_block_forward_pallas.2} parent=0 // loop_footer_branch
    %10 = sbr.rel target = $region3
  $region8: #{ppm_block_forward_pallas.2} parent=0 // loop_exit
    _

// kernel: ppm_block_forward_pallas.3
$region0: #{ppm_block_forward_pallas.3}
  #allocation0 [shape = 'u32[]', space=smem, size = 0x4, offset = 0x4, fixed_abs, tag = 'smem constant byte address 0x4 - core index']
  #allocation1 [shape = 'u32[72,128]{1,0:T(1,128)}', space=vmem, size = 0x9000, scoped, tag = 'internal scratch']
  %s0 = inlined_call_operand.vmem [shape: f32[2,1,440,4], index: 0, kind: input, shape index: {}]
  %s1 = inlined_call_operand.vmem [shape: f32[1,440,56], index: 1, kind: input, shape index: {}]
  %s2 = inlined_call_operand.vmem [shape: f32[9,4,8], index: 2, kind: input, shape index: {}]
  %s3 = inlined_call_operand.vmem [shape: f32[2,9,56,8], index: 3, kind: input, shape index: {}]
  %s4 = inlined_call_operand.vmem [shape: f32[1,8], index: 4, kind: input, shape index: {}]
  %s5 = inlined_call_operand.vmem [shape: f32[1,8], index: 5, kind: input, shape index: {}]
  %s6 = inlined_call_operand.vmem [shape: f32[1,8], index: 6, kind: input, shape index: {}]
  %s7 = inlined_call_operand.vmem [shape: f32[2,16,16,8], index: 7, kind: output, shape index: {}]
  %s8 = sld [smem:[#allocation0]]
  $region61: #{ppm_block_forward_pallas.3} parent=0
    _
  %s10 = ssub.s32 1, %s8
  %s11 = scalar_select 0, %s10, %s8
  loop: start=0, step=1, limit=4
  $region2: #{ppm_block_forward_pallas.3} parent=0 // loop_pre_header
    _
  $region3: #{ppm_block_forward_pallas.3} parent=0 // loop_header
    %s13 = sphi 0, %s17
    %p14 = scmp.ge.s32.totalorder %s13, 4
    %s20 = sphi 0, %s32
    %s21 = sphi 0, %s28
    %s22 = sphi 0, %s20
    %s23 = sphi 0, %s21
    %s24 = sphi 0, %s22
    %s25 = sphi 0, %s23
    %s37 = sphi 0, %s39
    %s40 = sphi 0, %s37
    %s41 = sphi 0, %s40
    %s57 = sphi 0, %s41
    %s63 = sphi 0, %s65
    %s66 = sphi 0, %s63
    %s67 = sphi 0, %s66
    %s83 = sphi 0, %s67
    %s87 = sphi 0, %s87
    %s89 = sphi 0, %s87
    %s90 = sphi 0, %s89
    %s104 = sphi 0, %s90
    %s110 = sphi 0, %s112
    %s113 = sphi 0, %s110
    %s114 = sphi 0, %s113
    %s130 = sphi 0, %s114
    %s134 = sphi 0, %s134
    %s136 = sphi 0, %s134
    %s137 = sphi 0, %s136
    %s151 = sphi 0, %s137
    %s155 = sphi 0, %s155
    %s157 = sphi 0, %s155
    %s158 = sphi 0, %s157
    %s172 = sphi 0, %s158
    %s176 = sphi 0, %s176
    %s178 = sphi 0, %s176
    %s179 = sphi 0, %s178
    %s193 = sphi 0, %s179
    %s201 = sphi 0, %s203
    %s204 = sphi 0, %s201
    %s205 = sphi 0, %s204
    %s221 = sphi 0, %s205
  $region4: #{ppm_block_forward_pallas.3} parent=0 // loop_header_branch
    %16 = sbr.rel (%p14) target = $region8
  $region5: #{ppm_block_forward_pallas.3} parent=0 // loop_body
    %s18 = ssub.s32 %s13, 1
    %s19 = ssub.s32 %s13, 2
    %s26 = sadd.s32 1, %s21
    %p27 = scmp.ge.s32.totalorder %s26, 1
    %s28 = scalar_select %p27, 0, %s26
    %s29 = sadd.s32 1, %s20
    %s30 = scalar_select %p27, %s29, %s20
    %p31 = scmp.ge.s32.totalorder %s30, 2
    %s32 = scalar_select %p31, 0, %s30
    %s33 = ssub.s32 %s20, %s32
    %s34 = ssub.s32 %s21, %s28
    %s35 = sor.u32 %s33, %s34
    %p36 = scmp.eq.s32.totalorder %s35, 0
    %s38 = sadd.s32 %s37, 1
    %s39 = scalar_select %p36, %s37, %s38
    %p42 = pneg %p36
    %p43 = scmp.eq.s32.totalorder %s13, 1
    %p44 = por %p42, %p43
    %p45 = scmp.ne.s32.totalorder %s37, %s40
    %p46 = scmp.eq.s32.totalorder %s13, 0
    %p47 = por %p45, %p46
    %p48 = scmp.ne.s32.totalorder %s37, %s40
    %p49 = scmp.eq.s32.totalorder %s18, 1
    %p50 = por %p48, %p49
    %p51 = scmp.ne.s32.totalorder %s40, %s41
    %p52 = scmp.eq.s32.totalorder %s18, 0
    %p53 = por %p51, %p52
    %p54 = scmp.ne.s32.totalorder %s40, %s41
    %p55 = scmp.eq.s32.totalorder %s19, 1
    %p56 = por %p54, %p55
    %p58 = scmp.ne.s32.totalorder %s41, %s57
    %p59 = scmp.eq.s32.totalorder %s19, 0
    %p60 = por %p58, %p59
    %s61 = ssub.s32 %s21, %s28
    %p62 = scmp.eq.s32.totalorder %s61, 0
    %s64 = sadd.s32 %s63, 1
    %s65 = scalar_select %p62, %s63, %s64
    %p68 = pneg %p62
    %p69 = scmp.eq.s32.totalorder %s13, 1
    %p70 = por %p68, %p69
    %p71 = scmp.ne.s32.totalorder %s63, %s66
    %p72 = scmp.eq.s32.totalorder %s13, 0
    %p73 = por %p71, %p72
    %p74 = scmp.ne.s32.totalorder %s63, %s66
    %p75 = scmp.eq.s32.totalorder %s18, 1
    %p76 = por %p74, %p75
    %p77 = scmp.ne.s32.totalorder %s66, %s67
    %p78 = scmp.eq.s32.totalorder %s18, 0
    %p79 = por %p77, %p78
    %p80 = scmp.ne.s32.totalorder %s66, %s67
    %p81 = scmp.eq.s32.totalorder %s19, 1
    %p82 = por %p80, %p81
    %p84 = scmp.ne.s32.totalorder %s67, %s83
    %p85 = scmp.eq.s32.totalorder %s19, 0
    %p86 = por %p84, %p85
    %s88 = sadd.s32 %s87, 1
    %p91 = scmp.eq.s32.totalorder %s13, 1
    %p92 = scmp.ne.s32.totalorder %s87, %s89
    %p93 = scmp.eq.s32.totalorder %s13, 0
    %p94 = por %p92, %p93
    %p95 = scmp.ne.s32.totalorder %s87, %s89
    %p96 = scmp.eq.s32.totalorder %s18, 1
    %p97 = por %p95, %p96
    %p98 = scmp.ne.s32.totalorder %s89, %s90
    %p99 = scmp.eq.s32.totalorder %s18, 0
    %p100 = por %p98, %p99
    %p101 = scmp.ne.s32.totalorder %s89, %s90
    %p102 = scmp.eq.s32.totalorder %s19, 1
    %p103 = por %p101, %p102
    %p105 = scmp.ne.s32.totalorder %s90, %s104
    %p106 = scmp.eq.s32.totalorder %s19, 0
    %p107 = por %p105, %p106
    %s108 = ssub.s32 %s20, %s32
    %p109 = scmp.eq.s32.totalorder %s108, 0
    %s111 = sadd.s32 %s110, 1
    %s112 = scalar_select %p109, %s110, %s111
    %p115 = pneg %p109
    %p116 = scmp.eq.s32.totalorder %s13, 1
    %p117 = por %p115, %p116
    %p118 = scmp.ne.s32.totalorder %s110, %s113
    %p119 = scmp.eq.s32.totalorder %s13, 0
    %p120 = por %p118, %p119
    %p121 = scmp.ne.s32.totalorder %s110, %s113
    %p122 = scmp.eq.s32.totalorder %s18, 1
    %p123 = por %p121, %p122
    %p124 = scmp.ne.s32.totalorder %s113, %s114
    %p125 = scmp.eq.s32.totalorder %s18, 0
    %p126 = por %p124, %p125
    %p127 = scmp.ne.s32.totalorder %s113, %s114
    %p128 = scmp.eq.s32.totalorder %s19, 1
    %p129 = por %p127, %p128
    %p131 = scmp.ne.s32.totalorder %s114, %s130
    %p132 = scmp.eq.s32.totalorder %s19, 0
    %p133 = por %p131, %p132
    %s135 = sadd.s32 %s134, 1
    %p138 = scmp.eq.s32.totalorder %s13, 1
    %p139 = scmp.ne.s32.totalorder %s134, %s136
    %p140 = scmp.eq.s32.totalorder %s13, 0
    %p141 = por %p139, %p140
    %p142 = scmp.ne.s32.totalorder %s134, %s136
    %p143 = scmp.eq.s32.totalorder %s18, 1
    %p144 = por %p142, %p143
    %p145 = scmp.ne.s32.totalorder %s136, %s137
    %p146 = scmp.eq.s32.totalorder %s18, 0
    %p147 = por %p145, %p146
    %p148 = scmp.ne.s32.totalorder %s136, %s137
    %p149 = scmp.eq.s32.totalorder %s19, 1
    %p150 = por %p148, %p149
    %p152 = scmp.ne.s32.totalorder %s137, %s151
    %p153 = scmp.eq.s32.totalorder %s19, 0
    %p154 = por %p152, %p153
    %s156 = sadd.s32 %s155, 1
    %p159 = scmp.eq.s32.totalorder %s13, 1
    %p160 = scmp.ne.s32.totalorder %s155, %s157
    %p161 = scmp.eq.s32.totalorder %s13, 0
    %p162 = por %p160, %p161
    %p163 = scmp.ne.s32.totalorder %s155, %s157
    %p164 = scmp.eq.s32.totalorder %s18, 1
    %p165 = por %p163, %p164
    %p166 = scmp.ne.s32.totalorder %s157, %s158
    %p167 = scmp.eq.s32.totalorder %s18, 0
    %p168 = por %p166, %p167
    %p169 = scmp.ne.s32.totalorder %s157, %s158
    %p170 = scmp.eq.s32.totalorder %s19, 1
    %p171 = por %p169, %p170
    %p173 = scmp.ne.s32.totalorder %s158, %s172
    %p174 = scmp.eq.s32.totalorder %s19, 0
    %p175 = por %p173, %p174
    %s177 = sadd.s32 %s176, 1
    %p180 = scmp.eq.s32.totalorder %s13, 1
    %p181 = scmp.ne.s32.totalorder %s176, %s178
    %p182 = scmp.eq.s32.totalorder %s13, 0
    %p183 = por %p181, %p182
    %p184 = scmp.ne.s32.totalorder %s176, %s178
    %p185 = scmp.eq.s32.totalorder %s18, 1
    %p186 = por %p184, %p185
    %p187 = scmp.ne.s32.totalorder %s178, %s179
    %p188 = scmp.eq.s32.totalorder %s18, 0
    %p189 = por %p187, %p188
    %p190 = scmp.ne.s32.totalorder %s178, %s179
    %p191 = scmp.eq.s32.totalorder %s19, 1
    %p192 = por %p190, %p191
    %p194 = scmp.ne.s32.totalorder %s179, %s193
    %p195 = scmp.eq.s32.totalorder %s19, 0
    %p196 = por %p194, %p195
    %s197 = ssub.s32 %s20, %s32
    %s198 = ssub.s32 %s21, %s28
    %s199 = sor.u32 %s197, %s198
    %p200 = scmp.eq.s32.totalorder %s199, 0
    %s202 = sadd.s32 %s201, 1
    %s203 = scalar_select %p200, %s201, %s202
    %p206 = pneg %p200
    %p207 = scmp.eq.s32.totalorder %s13, 1
    %p208 = por %p206, %p207
    %p209 = scmp.ne.s32.totalorder %s201, %s204
    %p210 = scmp.eq.s32.totalorder %s13, 0
    %p211 = por %p209, %p210
    %p212 = scmp.ne.s32.totalorder %s201, %s204
    %p213 = scmp.eq.s32.totalorder %s18, 1
    %p214 = por %p212, %p213
    %p215 = scmp.ne.s32.totalorder %s204, %s205
    %p216 = scmp.eq.s32.totalorder %s18, 0
    %p217 = por %p215, %p216
    %p218 = scmp.ne.s32.totalorder %s204, %s205
    %p219 = scmp.eq.s32.totalorder %s19, 1
    %p220 = por %p218, %p219
    %p222 = scmp.ne.s32.totalorder %s205, %s221
    %p223 = scmp.eq.s32.totalorder %s19, 0
    %p224 = por %p222, %p223
    %p225 = scmp.le.s32.totalorder 1, %s13
    %p226 = scmp.lt.s32.totalorder %s13, 3
    %p227 = pnand %p225, %p226
    %p228 = pneg %p227
    // Predicated region
    $region9: #{ppm_block_forward_pallas.3} parent=5 // pred_check
      _
    $region10: #{ppm_block_forward_pallas.3} parent=5 // pred_check_branch
      %230 = sbr.rel (%p227) target = $region12
    $region11: #{ppm_block_forward_pallas.3} parent=5 // pred_region
      %s231 = ssub.s32 %s13, 1
      // Predicated region
      $region13: #{ppm_block_forward_pallas.3} parent=11 // pred_check
        %p232 = pneg %p79
      $region14: #{ppm_block_forward_pallas.3} parent=11 // pred_check_branch
        %234 = sbr.rel (%p232) target = $region16
      $region15: #{ppm_block_forward_pallas.3} parent=11 // pred_region
        %p235 = scmp.lt.s32.totalorder %s23, 0
        %s236 = scalar_select %p235, %s23, 0
        %s237 = smul.addr %s236, 55
        %s238 = smul.addr %s237, 8
        %s239 = scalar_lea.vmem %s1, %s238
      $region16: #{ppm_block_forward_pallas.3} parent=11 // pred_fallthru
        _
      // Predicated region
      $region17: #{ppm_block_forward_pallas.3} parent=11 // pred_check
        %p240 = pneg %p100
      $region18: #{ppm_block_forward_pallas.3} parent=11 // pred_check_branch
        %242 = sbr.rel (%p240) target = $region20
      $region19: #{ppm_block_forward_pallas.3} parent=11 // pred_region
        _
      $region20: #{ppm_block_forward_pallas.3} parent=11 // pred_fallthru
        _
      // Predicated region
      $region21: #{ppm_block_forward_pallas.3} parent=11 // pred_check
        %p243 = pneg %p147
      $region22: #{ppm_block_forward_pallas.3} parent=11 // pred_check_branch
        %245 = sbr.rel (%p243) target = $region24
      $region23: #{ppm_block_forward_pallas.3} parent=11 // pred_region
        _
      $region24: #{ppm_block_forward_pallas.3} parent=11 // pred_fallthru
        _
      // Predicated region
      $region25: #{ppm_block_forward_pallas.3} parent=11 // pred_check
        %p246 = pneg %p168
      $region26: #{ppm_block_forward_pallas.3} parent=11 // pred_check_branch
        %248 = sbr.rel (%p246) target = $region28
      $region27: #{ppm_block_forward_pallas.3} parent=11 // pred_region
        _
      $region28: #{ppm_block_forward_pallas.3} parent=11 // pred_fallthru
        _
      // Predicated region
      $region29: #{ppm_block_forward_pallas.3} parent=11 // pred_check
        %p249 = pneg %p189
      $region30: #{ppm_block_forward_pallas.3} parent=11 // pred_check_branch
        %251 = sbr.rel (%p249) target = $region32
      $region31: #{ppm_block_forward_pallas.3} parent=11 // pred_region
        _
      $region32: #{ppm_block_forward_pallas.3} parent=11 // pred_fallthru
        _
    $region12: #{ppm_block_forward_pallas.3} parent=5 // pred_fallthru
      _
    %p252 = scmp.lt.s32.totalorder %s13, 2
    // Predicated region
    $region33: #{ppm_block_forward_pallas.3} parent=5 // pred_check
      %p253 = pneg %p252
    $region34: #{ppm_block_forward_pallas.3} parent=5 // pred_check_branch
      %255 = sbr.rel (%p253) target = $region36
    $region35: #{ppm_block_forward_pallas.3} parent=5 // pred_region
      // Predicated region
      $region37: #{ppm_block_forward_pallas.3} parent=35 // pred_check
        %p256 = pneg %p47
      $region38: #{ppm_block_forward_pallas.3} parent=35 // pred_check_branch
        %258 = sbr.rel (%p256) target = $region40
      $region39: #{ppm_block_forward_pallas.3} parent=35 // pred_region
        %p259 = scmp.lt.s32.totalorder %s20, 1
        %s260 = scalar_select %p259, %s20, 1
        %p261 = scmp.lt.s32.totalorder %s21, 0
        %s262 = scalar_select %p261, %s21, 0
        %s263 = smul.addr %s262, 55
        %s264 = smul.addr %s260, 55
        %s265 = sadd.s32 %s263, %s264
        %s266 = smul.addr %s265, 8
        %s267 = scalar_lea.vmem %s0, %s266
      $region40: #{ppm_block_forward_pallas.3} parent=35 // pred_fallthru
        _
      // Predicated region
      $region41: #{ppm_block_forward_pallas.3} parent=35 // pred_check
        %p268 = pneg %p120
      $region42: #{ppm_block_forward_pallas.3} parent=35 // pred_check_branch
        %270 = sbr.rel (%p268) target = $region44
      $region43: #{ppm_block_forward_pallas.3} parent=35 // pred_region
        %p271 = scmp.lt.s32.totalorder %s20, 1
        %s272 = scalar_select %p271, %s20, 1
        %s273 = smul.addr %s272, 63
        %s274 = smul.addr %s273, 8
        %s275 = scalar_lea.vmem %s3, %s274
      $region44: #{ppm_block_forward_pallas.3} parent=35 // pred_fallthru
        _
    $region36: #{ppm_block_forward_pallas.3} parent=5 // pred_fallthru
      _
    %p276 = scmp.le.s32.totalorder 1, %s13
    %p277 = scmp.lt.s32.totalorder %s13, 3
    %p278 = pnand %p276, %p277
    %p279 = pneg %p278
    // Predicated region
    $region45: #{ppm_block_forward_pallas.3} parent=5 // pred_check
      _
    $region46: #{ppm_block_forward_pallas.3} parent=5 // pred_check_branch
      %281 = sbr.rel (%p278) target = $region48
    $region47: #{ppm_block_forward_pallas.3} parent=5 // pred_region
      %s282 = ssub.s32 %s13, 1
      %p283 = scmp.lt.s32.totalorder %s22, 1
      %s284 = scalar_select %p283, %s22, 1
      %p285 = scmp.lt.s32.totalorder %s23, 0
      %s286 = scalar_select %p285, %s23, 0
      %s287 = smul.addr %s286, 55
      %s288 = smul.addr %s284, 55
      %s289 = sadd.s32 %s287, %s288
      %s290 = smul.addr %s289, 8
      %s291 = scalar_lea.vmem %s0, %s290
      %p292 = pneg %p53
      %p293 = pneg %p50
      %p294 = scmp.lt.s32.totalorder %s23, 0
      %s295 = scalar_select %p294, %s23, 0
      %s296 = smul.addr %s295, 55
      %s297 = smul.addr %s296, 8
      %s298 = scalar_lea.vmem %s1, %s297
      %p299 = pneg %p79
      %p300 = pneg %p76
      %p301 = pneg %p100
      %p302 = pneg %p97
      %p303 = scmp.lt.s32.totalorder %s22, 1
      %s304 = scalar_select %p303, %s22, 1
      %s305 = smul.addr %s304, 63
      %s306 = smul.addr %s305, 8
      %s307 = scalar_lea.vmem %s3, %s306
      %p308 = pneg %p126
      %p309 = pneg %p123
      %p310 = pneg %p147
      %p311 = pneg %p144
      %p312 = pneg %p168
      %p313 = pneg %p165
      %p314 = pneg %p189
      %p315 = pneg %p186
      %p316 = pneg %p217
      %p317 = pneg %p214
      %s318 = smul.u32 16, %s23
      %p319 = scmp.lt.s32.totalorder %s22, 1
      %s320 = scalar_select %p319, %s22, 1
      %p321 = scmp.lt.s32.totalorder %s318, 15
      %s322 = scalar_select %p321, %s318, 15
      %s323 = smul.addr %s322, 2
      %s324 = smul.addr %s320, 32
      %s325 = sadd.s32 %s323, %s324
      %s326 = smul.addr %s325, 8
      %s327 = scalar_lea.vmem %s7, %s326
      %p328 = scmp.lt.s32.totalorder %s22, 1
      %s329 = scalar_select %p328, %s22, 1
      %p330 = scmp.lt.s32.totalorder %s23, 0
      %s331 = scalar_select %p330, %s23, 0
      %s332 = smul.addr %s331, 55
      %s333 = smul.addr %s329, 55
      %s334 = sadd.s32 %s332, %s333
      %s335 = smul.addr %s334, 8
      %s336 = scalar_lea.vmem %s0, %s335
      %p337 = scmp.lt.s32.totalorder %s23, 0
      %s338 = scalar_select %p337, %s23, 0
      %s339 = smul.addr %s338, 55
      %s340 = smul.addr %s339, 8
      %s341 = scalar_lea.vmem %s1, %s340
      %p342 = scmp.lt.s32.totalorder %s22, 1
      %s343 = scalar_select %p342, %s22, 1
      %s344 = smul.addr %s343, 63
      %s345 = smul.addr %s344, 8
      %s346 = scalar_lea.vmem %s3, %s345
      %s347 = smul.u32 16, %s23
      %p348 = scmp.lt.s32.totalorder %s22, 1
      %s349 = scalar_select %p348, %s22, 1
      %p350 = scmp.lt.s32.totalorder %s347, 15
      %s351 = scalar_select %p350, %s347, 15
      %s352 = smul.addr %s351, 2
      %s353 = smul.addr %s349, 32
      %s354 = sadd.s32 %s352, %s353
      %s355 = smul.addr %s354, 8
      %s356 = scalar_lea.vmem %s7, %s355
      %s357 = smul.u32 16, %s23
      %v358 = vld [vmem:[%s336] sm:$0xff]
      %v359 = vld [vmem:[%s336 + $0x8] sm:$0xff]
      %v360 = vld [vmem:[%s336 + $0x10] sm:$0xff]
      %v361 = vld [vmem:[%s336 + $0x18] sm:$0xff]
      %v362 = vld [vmem:[%s336 + $0x20] sm:$0xff]
      %v363 = vld [vmem:[%s336 + $0x28] sm:$0xff]
      %v364 = vld [vmem:[%s336 + $0x30] sm:$0xff]
      %v365 = vld [vmem:[%s336 + $0x38] sm:$0xff]
      %v366 = vld [vmem:[%s336 + $0x40] sm:$0xff]
      %v367 = vld [vmem:[%s336 + $0x48] sm:$0xff]
      %v368 = vld [vmem:[%s336 + $0x50] sm:$0xff]
      %v369 = vld [vmem:[%s336 + $0x58] sm:$0xff]
      %v370 = vld [vmem:[%s336 + $0x60] sm:$0xff]
      %v371 = vld [vmem:[%s336 + $0x68] sm:$0xff]
      %v372 = vld [vmem:[%s336 + $0x70] sm:$0xff]
      %v373 = vld [vmem:[%s336 + $0x78] sm:$0xff]
      %v374 = vld [vmem:[%s336 + $0x80] sm:$0xff]
      %v375 = vld [vmem:[%s336 + $0x88] sm:$0xff]
      %v376 = vld [vmem:[%s336 + $0x90] sm:$0xff]
      %v377 = vld [vmem:[%s336 + $0x98] sm:$0xff]
      %v378 = vld [vmem:[%s336 + $0xa0] sm:$0xff]
      %v379 = vld [vmem:[%s336 + $0xa8] sm:$0xff]
      %v380 = vld [vmem:[%s336 + $0xb0] sm:$0xff]
      %v381 = vld [vmem:[%s336 + $0xb8] sm:$0xff]
      %v382 = vld [vmem:[%s336 + $0xc0] sm:$0xff]
      %v383 = vld [vmem:[%s336 + $0xc8] sm:$0xff]
      %v384 = vld [vmem:[%s336 + $0xd0] sm:$0xff]
      %v385 = vld [vmem:[%s336 + $0xd8] sm:$0xff]
      %v386 = vld [vmem:[%s336 + $0xe0] sm:$0xff]
      %v387 = vld [vmem:[%s336 + $0xe8] sm:$0xff]
      %v388 = vld [vmem:[%s336 + $0xf0] sm:$0xff]
      %v389 = vld [vmem:[%s336 + $0xf8] sm:$0xff]
      %v390 = vld [vmem:[%s336 + $0x100] sm:$0xff]
      %v391 = vld [vmem:[%s336 + $0x108] sm:$0xff]
      %v392 = vld [vmem:[%s336 + $0x110] sm:$0xff]
      %v393 = vld [vmem:[%s336 + $0x118] sm:$0xff]
      %v394 = vld [vmem:[%s336 + $0x120] sm:$0xff]
      %v395 = vld [vmem:[%s336 + $0x128] sm:$0xff]
      %v396 = vld [vmem:[%s336 + $0x130] sm:$0xff]
      %v397 = vld [vmem:[%s336 + $0x138] sm:$0xff]
      %v398 = vld [vmem:[%s336 + $0x140] sm:$0xff]
      %v399 = vld [vmem:[%s336 + $0x148] sm:$0xff]
      %v400 = vld [vmem:[%s336 + $0x150] sm:$0xff]
      %v401 = vld [vmem:[%s336 + $0x158] sm:$0xff]
      %v402 = vld [vmem:[%s336 + $0x160] sm:$0xff]
      %v403 = vld [vmem:[%s336 + $0x168] sm:$0xff]
      %v404 = vld [vmem:[%s336 + $0x170] sm:$0xff]
      %v405 = vld [vmem:[%s336 + $0x178] sm:$0xff]
      %v406 = vld [vmem:[%s336 + $0x180] sm:$0xff]
      %v407 = vld [vmem:[%s336 + $0x188] sm:$0xff]
      %v408 = vld [vmem:[%s336 + $0x190] sm:$0xff]
      %v409 = vld [vmem:[%s336 + $0x198] sm:$0xff]
      %v410 = vld [vmem:[%s336 + $0x1a0] sm:$0xff]
      %v411 = vld [vmem:[%s336 + $0x1a8] sm:$0xff]
      %v412 = vld [vmem:[%s336 + $0x1b0] sm:$0xff]
      %v413 = vld [vmem:[%s341] sm:$0xff]
      %v414 = vld [vmem:[%s341 + $0x8] sm:$0xff]
      %v415 = vld [vmem:[%s341 + $0x10] sm:$0xff]
      %v416 = vld [vmem:[%s341 + $0x18] sm:$0xff]
      %v417 = vld [vmem:[%s341 + $0x20] sm:$0xff]
      %v418 = vld [vmem:[%s341 + $0x28] sm:$0xff]
      %v419 = vld [vmem:[%s341 + $0x30] sm:$0xff]
      %v420 = vld [vmem:[%s341 + $0x38] sm:$0xff]
      %v421 = vld [vmem:[%s341 + $0x40] sm:$0xff]
      %v422 = vld [vmem:[%s341 + $0x48] sm:$0xff]
      %v423 = vld [vmem:[%s341 + $0x50] sm:$0xff]
      %v424 = vld [vmem:[%s341 + $0x58] sm:$0xff]
      %v425 = vld [vmem:[%s341 + $0x60] sm:$0xff]
      %v426 = vld [vmem:[%s341 + $0x68] sm:$0xff]
      %v427 = vld [vmem:[%s341 + $0x70] sm:$0xff]
      %v428 = vld [vmem:[%s341 + $0x78] sm:$0xff]
      %v429 = vld [vmem:[%s341 + $0x80] sm:$0xff]
      %v430 = vld [vmem:[%s341 + $0x88] sm:$0xff]
      %v431 = vld [vmem:[%s341 + $0x90] sm:$0xff]
      %v432 = vld [vmem:[%s341 + $0x98] sm:$0xff]
      %v433 = vld [vmem:[%s341 + $0xa0] sm:$0xff]
      %v434 = vld [vmem:[%s341 + $0xa8] sm:$0xff]
      %v435 = vld [vmem:[%s341 + $0xb0] sm:$0xff]
      %v436 = vld [vmem:[%s341 + $0xb8] sm:$0xff]
      %v437 = vld [vmem:[%s341 + $0xc0] sm:$0xff]
      %v438 = vld [vmem:[%s341 + $0xc8] sm:$0xff]
      %v439 = vld [vmem:[%s341 + $0xd0] sm:$0xff]
      %v440 = vld [vmem:[%s341 + $0xd8] sm:$0xff]
      %v441 = vld [vmem:[%s341 + $0xe0] sm:$0xff]
      %v442 = vld [vmem:[%s341 + $0xe8] sm:$0xff]
      %v443 = vld [vmem:[%s341 + $0xf0] sm:$0xff]
      %v444 = vld [vmem:[%s341 + $0xf8] sm:$0xff]
      %v445 = vld [vmem:[%s341 + $0x100] sm:$0xff]
      %v446 = vld [vmem:[%s341 + $0x108] sm:$0xff]
      %v447 = vld [vmem:[%s341 + $0x110] sm:$0xff]
      %v448 = vld [vmem:[%s341 + $0x118] sm:$0xff]
      %v449 = vld [vmem:[%s341 + $0x120] sm:$0xff]
      %v450 = vld [vmem:[%s341 + $0x128] sm:$0xff]
      %v451 = vld [vmem:[%s341 + $0x130] sm:$0xff]
      %v452 = vld [vmem:[%s341 + $0x138] sm:$0xff]
      %v453 = vld [vmem:[%s341 + $0x140] sm:$0xff]
      %v454 = vld [vmem:[%s341 + $0x148] sm:$0xff]
      %v455 = vld [vmem:[%s341 + $0x150] sm:$0xff]
      %v456 = vld [vmem:[%s341 + $0x158] sm:$0xff]
      %v457 = vld [vmem:[%s341 + $0x160] sm:$0xff]
      %v458 = vld [vmem:[%s341 + $0x168] sm:$0xff]
      %v459 = vld [vmem:[%s341 + $0x170] sm:$0xff]
      %v460 = vld [vmem:[%s341 + $0x178] sm:$0xff]
      %v461 = vld [vmem:[%s341 + $0x180] sm:$0xff]
      %v462 = vld [vmem:[%s341 + $0x188] sm:$0xff]
      %v463 = vld [vmem:[%s341 + $0x190] sm:$0xff]
      %v464 = vld [vmem:[%s341 + $0x198] sm:$0xff]
      %v465 = vld [vmem:[%s341 + $0x1a0] sm:$0xff]
      %v466 = vld [vmem:[%s341 + $0x1a8] sm:$0xff]
      %v467 = vld [vmem:[%s341 + $0x1b0] sm:$0xff]
      %v468 = vld [vmem:[%s2] sm:$0xf]
      %v469 = vld [vmem:[%s2 + $0x4] sm:$0xf]
      %v470 = vld [vmem:[%s2 + $0x8] sm:$0xf]
      %v471 = vld [vmem:[%s2 + $0xc] sm:$0xf]
      %v472 = vld [vmem:[%s2 + $0x10] sm:$0xf]
      %v473 = vld [vmem:[%s2 + $0x14] sm:$0xf]
      %v474 = vld [vmem:[%s2 + $0x18] sm:$0xf]
      %v475 = vld [vmem:[%s2 + $0x1c] sm:$0xf]
      %v476 = vld [vmem:[%s2 + $0x20] sm:$0xf]
      %v477 = vld [vmem:[%s346] sm:$0xff]
      %v478 = vld [vmem:[%s346 + $0x8] sm:$0xff]
      %v479 = vld [vmem:[%s346 + $0x10] sm:$0xff]
      %v480 = vld [vmem:[%s346 + $0x18] sm:$0xff]
      %v481 = vld [vmem:[%s346 + $0x20] sm:$0xff]
      %v482 = vld [vmem:[%s346 + $0x28] sm:$0xff]
      %v483 = vld [vmem:[%s346 + $0x30] sm:$0xff]
      %v484 = vld [vmem:[%s346 + $0x38] sm:$0xff]
      %v485 = vld [vmem:[%s346 + $0x40] sm:$0xff]
      %v486 = vld [vmem:[%s346 + $0x48] sm:$0xff]
      %v487 = vld [vmem:[%s346 + $0x50] sm:$0xff]
      %v488 = vld [vmem:[%s346 + $0x58] sm:$0xff]
      %v489 = vld [vmem:[%s346 + $0x60] sm:$0xff]
      %v490 = vld [vmem:[%s346 + $0x68] sm:$0xff]
      %v491 = vld [vmem:[%s346 + $0x70] sm:$0xff]
      %v492 = vld [vmem:[%s346 + $0x78] sm:$0xff]
      %v493 = vld [vmem:[%s346 + $0x80] sm:$0xff]
      %v494 = vld [vmem:[%s346 + $0x88] sm:$0xff]
      %v495 = vld [vmem:[%s346 + $0x90] sm:$0xff]
      %v496 = vld [vmem:[%s346 + $0x98] sm:$0xff]
      %v497 = vld [vmem:[%s346 + $0xa0] sm:$0xff]
      %v498 = vld [vmem:[%s346 + $0xa8] sm:$0xff]
      %v499 = vld [vmem:[%s346 + $0xb0] sm:$0xff]
      %v500 = vld [vmem:[%s346 + $0xb8] sm:$0xff]
      %v501 = vld [vmem:[%s346 + $0xc0] sm:$0xff]
      %v502 = vld [vmem:[%s346 + $0xc8] sm:$0xff]
      %v503 = vld [vmem:[%s346 + $0xd0] sm:$0xff]
      %v504 = vld [vmem:[%s346 + $0xd8] sm:$0xff]
      %v505 = vld [vmem:[%s346 + $0xe0] sm:$0xff]
      %v506 = vld [vmem:[%s346 + $0xe8] sm:$0xff]
      %v507 = vld [vmem:[%s346 + $0xf0] sm:$0xff]
      %v508 = vld [vmem:[%s346 + $0xf8] sm:$0xff]
      %v509 = vld [vmem:[%s346 + $0x100] sm:$0xff]
      %v510 = vld [vmem:[%s346 + $0x108] sm:$0xff]
      %v511 = vld [vmem:[%s346 + $0x110] sm:$0xff]
      %v512 = vld [vmem:[%s346 + $0x118] sm:$0xff]
      %v513 = vld [vmem:[%s346 + $0x120] sm:$0xff]
      %v514 = vld [vmem:[%s346 + $0x128] sm:$0xff]
      %v515 = vld [vmem:[%s346 + $0x130] sm:$0xff]
      %v516 = vld [vmem:[%s346 + $0x138] sm:$0xff]
      %v517 = vld [vmem:[%s346 + $0x140] sm:$0xff]
      %v518 = vld [vmem:[%s346 + $0x148] sm:$0xff]
      %v519 = vld [vmem:[%s346 + $0x150] sm:$0xff]
      %v520 = vld [vmem:[%s346 + $0x158] sm:$0xff]
      %v521 = vld [vmem:[%s346 + $0x160] sm:$0xff]
      %v522 = vld [vmem:[%s346 + $0x168] sm:$0xff]
      %v523 = vld [vmem:[%s346 + $0x170] sm:$0xff]
      %v524 = vld [vmem:[%s346 + $0x178] sm:$0xff]
      %v525 = vld [vmem:[%s346 + $0x180] sm:$0xff]
      %v526 = vld [vmem:[%s346 + $0x188] sm:$0xff]
      %v527 = vld [vmem:[%s346 + $0x190] sm:$0xff]
      %v528 = vld [vmem:[%s346 + $0x198] sm:$0xff]
      %v529 = vld [vmem:[%s346 + $0x1a0] sm:$0xff]
      %v530 = vld [vmem:[%s346 + $0x1a8] sm:$0xff]
      %v531 = vld [vmem:[%s346 + $0x1b0] sm:$0xff]
      %v532 = vld [vmem:[%s346 + $0x1b8] sm:$0xff]
      %v533 = vld [vmem:[%s346 + $0x1c0] sm:$0xff]
      %v534 = vld [vmem:[%s346 + $0x1c8] sm:$0xff]
      %v535 = vld [vmem:[%s346 + $0x1d0] sm:$0xff]
      %v536 = vld [vmem:[%s346 + $0x1d8] sm:$0xff]
      %v537 = vld [vmem:[%s346 + $0x1e0] sm:$0xff]
      %v538 = vld [vmem:[%s346 + $0x1e8] sm:$0xff]
      %v539 = vld [vmem:[%s346 + $0x1f0] sm:$0xff]
      %vm540 = vcmask 457728
      %v542 = vsel %vm540, %v413, 0
      %v545 = vsel %vm540, %v414, 0
      %v548 = vsel %vm540, %v415, 0
      %v551 = vsel %vm540, %v416, 0
      %v554 = vsel %vm540, %v417, 0
      %v557 = vsel %vm540, %v418, 0
      %v560 = vsel %vm540, %v419, 0
      %v563 = vsel %vm540, %v420, 0
      %v566 = vsel %vm540, %v421, 0
      %v569 = vsel %vm540, %v422, 0
      %v572 = vsel %vm540, %v423, 0
      %v575 = vsel %vm540, %v424, 0
      %v578 = vsel %vm540, %v425, 0
      %v581 = vsel %vm540, %v426, 0
      %v584 = vsel %vm540, %v427, 0
      %v587 = vsel %vm540, %v428, 0
      %v590 = vsel %vm540, %v429, 0
      %v593 = vsel %vm540, %v430, 0
      %v596 = vsel %vm540, %v431, 0
      %v599 = vsel %vm540, %v432, 0
      %v602 = vsel %vm540, %v433, 0
      %v605 = vsel %vm540, %v434, 0
      %v608 = vsel %vm540, %v435, 0
      %v611 = vsel %vm540, %v436, 0
      %v614 = vsel %vm540, %v437, 0
      %v617 = vsel %vm540, %v438, 0
      %v620 = vsel %vm540, %v439, 0
      %v623 = vsel %vm540, %v440, 0
      %v626 = vsel %vm540, %v441, 0
      %v629 = vsel %vm540, %v442, 0
      %v632 = vsel %vm540, %v443, 0
      %v635 = vsel %vm540, %v444, 0
      %v638 = vsel %vm540, %v445, 0
      %v641 = vsel %vm540, %v446, 0
      %v644 = vsel %vm540, %v447, 0
      %v647 = vsel %vm540, %v448, 0
      %v650 = vsel %vm540, %v449, 0
      %v653 = vsel %vm540, %v450, 0
      %v656 = vsel %vm540, %v451, 0
      %v659 = vsel %vm540, %v452, 0
      %v662 = vsel %vm540, %v453, 0
      %v665 = vsel %vm540, %v454, 0
      %v668 = vsel %vm540, %v455, 0
      %v671 = vsel %vm540, %v456, 0
      %v674 = vsel %vm540, %v457, 0
      %v677 = vsel %vm540, %v458, 0
      %v680 = vsel %vm540, %v459, 0
      %v683 = vsel %vm540, %v460, 0
      %v686 = vsel %vm540, %v461, 0
      %v689 = vsel %vm540, %v462, 0
      %v692 = vsel %vm540, %v463, 0
      %v695 = vsel %vm540, %v464, 0
      %v698 = vsel %vm540, %v465, 0
      %v701 = vsel %vm540, %v466, 0
      %v704 = vsel %vm540, %v467, 0
      %706 = vmatpush.msra.mxu0 0.0
      %707 = vmatpush.msra.mxu0 0.0
      %708 = vmatpush.msra.mxu0 0.0
      %709 = vmatpush.msra.mxu0 0.0
      %710 = vmatpush.msra.mxu0 0.0
      %711 = vmatpush.msra.mxu0 0.0
      %712 = vmatpush.msra.mxu0 0.0
      %713 = vmatpush.msra.mxu0 0.0
      %714 = vmatpush.msra.mxu0 0.0
      %715 = vmatpush.msra.mxu0 %v483
      %716 = vmatpush.msra.mxu0 %v482
      %717 = vmatpush.msra.mxu0 %v481
      %718 = vmatpush.msra.mxu0 %v480
      %719 = vmatpush.msra.mxu0 %v479
      %720 = vmatpush.msra.mxu0 %v478
      %721 = vmatpush.msra.mxu0 %v477
      %722 = vmatmul.f32.gmra.mxu0 %v542
      %v723 = vpop.f32.mrf.mxu0
      %v724 = vadd.f32 0.0, %v723
      %725 = vmatmul.f32.gmra.mxu0 %v545
      %v726 = vpop.f32.mrf.mxu0
      %v727 = vadd.f32 0.0, %v726
      %728 = vmatmul.f32.gmra.mxu0 %v548
      %v729 = vpop.f32.mrf.mxu0
      %730 = vmatmul.f32.gmra.mxu0 %v551
      %v731 = vpop.f32.mrf.mxu0
      %v732 = vadd.f32 0.0, %v731
      %733 = vmatmul.f32.gmra.mxu0 %v554
      %v734 = vpop.f32.mrf.mxu0
      %v735 = vadd.f32 0.0, %v734
      %736 = vmatmul.f32.gmra.mxu0 %v557
      %v737 = vpop.f32.mrf.mxu0
      %738 = vmatmul.f32.gmra.mxu0 %v560
      %v739 = vpop.f32.mrf.mxu0
      %v740 = vadd.f32 0.0, %v739
      %741 = vmatmul.f32.gmra.mxu0 %v563
      %v742 = vpop.f32.mrf.mxu0
      %v743 = vadd.f32 0.0, %v742
      %744 = vmatmul.f32.gmra.mxu0 %v566
      %v745 = vpop.f32.mrf.mxu0
      %746 = vmatmul.f32.gmra.mxu0 %v569
      %v747 = vpop.f32.mrf.mxu0
      %v748 = vadd.f32 0.0, %v747
      %749 = vmatmul.f32.gmra.mxu0 %v572
      %v750 = vpop.f32.mrf.mxu0
      %v751 = vadd.f32 0.0, %v750
      %752 = vmatmul.f32.gmra.mxu0 %v575
      %v753 = vpop.f32.mrf.mxu0
      %754 = vmatmul.f32.gmra.mxu0 %v578
      %v755 = vpop.f32.mrf.mxu0
      %v756 = vadd.f32 0.0, %v755
      %757 = vmatmul.f32.gmra.mxu0 %v581
      %v758 = vpop.f32.mrf.mxu0
      %v759 = vadd.f32 0.0, %v758
      %760 = vmatmul.f32.gmra.mxu0 %v584
      %v761 = vpop.f32.mrf.mxu0
      %762 = vmatmul.f32.gmra.mxu0 %v587
      %v763 = vpop.f32.mrf.mxu0
      %v764 = vadd.f32 0.0, %v763
      %765 = vmatmul.f32.gmra.mxu0 %v590
      %v766 = vpop.f32.mrf.mxu0
      %v767 = vadd.f32 0.0, %v766
      %768 = vmatmul.f32.gmra.mxu0 %v593
      %v769 = vpop.f32.mrf.mxu0
      %770 = vmatmul.f32.gmra.mxu0 %v596
      %v771 = vpop.f32.mrf.mxu0
      %v772 = vadd.f32 0.0, %v771
      %773 = vmatmul.f32.gmra.mxu0 %v599
      %v774 = vpop.f32.mrf.mxu0
      %v775 = vadd.f32 0.0, %v774
      %776 = vmatmul.f32.gmra.mxu0 %v602
      %v777 = vpop.f32.mrf.mxu0
      %778 = vmatmul.f32.gmra.mxu0 %v605
      %v779 = vpop.f32.mrf.mxu0
      %v780 = vadd.f32 0.0, %v779
      %781 = vmatmul.f32.gmra.mxu0 %v608
      %v782 = vpop.f32.mrf.mxu0
      %v783 = vadd.f32 0.0, %v782
      %784 = vmatmul.f32.gmra.mxu0 %v611
      %v785 = vpop.f32.mrf.mxu0
      %786 = vmatmul.f32.gmra.mxu0 %v614
      %v787 = vpop.f32.mrf.mxu0
      %v788 = vadd.f32 0.0, %v787
      %789 = vmatmul.f32.gmra.mxu0 %v617
      %v790 = vpop.f32.mrf.mxu0
      %v791 = vadd.f32 0.0, %v790
      %792 = vmatmul.f32.gmra.mxu0 %v620
      %v793 = vpop.f32.mrf.mxu0
      %794 = vmatmul.f32.gmra.mxu0 %v623
      %v795 = vpop.f32.mrf.mxu0
      %v796 = vadd.f32 0.0, %v795
      %797 = vmatmul.f32.gmra.mxu0 %v626
      %v798 = vpop.f32.mrf.mxu0
      %v799 = vadd.f32 0.0, %v798
      %800 = vmatmul.f32.gmra.mxu0 %v629
      %v801 = vpop.f32.mrf.mxu0
      %802 = vmatmul.f32.gmra.mxu0 %v632
      %v803 = vpop.f32.mrf.mxu0
      %v804 = vadd.f32 0.0, %v803
      %805 = vmatmul.f32.gmra.mxu0 %v635
      %v806 = vpop.f32.mrf.mxu0
      %v807 = vadd.f32 0.0, %v806
      %808 = vmatmul.f32.gmra.mxu0 %v638
      %v809 = vpop.f32.mrf.mxu0
      %810 = vmatmul.f32.gmra.mxu0 %v641
      %v811 = vpop.f32.mrf.mxu0
      %v812 = vadd.f32 0.0, %v811
      %813 = vmatmul.f32.gmra.mxu0 %v644
      %v814 = vpop.f32.mrf.mxu0
      %v815 = vadd.f32 0.0, %v814
      %816 = vmatmul.f32.gmra.mxu0 %v647
      %v817 = vpop.f32.mrf.mxu0
      %818 = vmatmul.f32.gmra.mxu0 %v650
      %v819 = vpop.f32.mrf.mxu0
      %v820 = vadd.f32 0.0, %v819
      %821 = vmatmul.f32.gmra.mxu0 %v653
      %v822 = vpop.f32.mrf.mxu0
      %v823 = vadd.f32 0.0, %v822
      %824 = vmatmul.f32.gmra.mxu0 %v656
      %v825 = vpop.f32.mrf.mxu0
      %826 = vmatmul.f32.gmra.mxu0 %v659
      %v827 = vpop.f32.mrf.mxu0
      %v828 = vadd.f32 0.0, %v827
      %829 = vmatmul.f32.gmra.mxu0 %v662
      %v830 = vpop.f32.mrf.mxu0
      %v831 = vadd.f32 0.0, %v830
      %832 = vmatmul.f32.gmra.mxu0 %v665
      %v833 = vpop.f32.mrf.mxu0
      %834 = vmatmul.f32.gmra.mxu0 %v668
      %v835 = vpop.f32.mrf.mxu0
      %v836 = vadd.f32 0.0, %v835
      %837 = vmatmul.f32.gmra.mxu0 %v671
      %v838 = vpop.f32.mrf.mxu0
      %v839 = vadd.f32 0.0, %v838
      %840 = vmatmul.f32.gmra.mxu0 %v674
      %v841 = vpop.f32.mrf.mxu0
      %842 = vmatmul.f32.gmra.mxu0 %v677
      %v843 = vpop.f32.mrf.mxu0
      %v844 = vadd.f32 0.0, %v843
      %845 = vmatmul.f32.gmra.mxu0 %v680
      %v846 = vpop.f32.mrf.mxu0
      %v847 = vadd.f32 0.0, %v846
      %848 = vmatmul.f32.gmra.mxu0 %v683
      %v849 = vpop.f32.mrf.mxu0
      %850 = vmatmul.f32.gmra.mxu0 %v686
      %v851 = vpop.f32.mrf.mxu0
      %852 = vmatmul.f32.gmra.mxu0 %v689
      %v853 = vpop.f32.mrf.mxu0
      %854 = vmatmul.f32.gmra.mxu0 %v692
      %v855 = vpop.f32.mrf.mxu0
      %856 = vmatmul.f32.gmra.mxu0 %v695
      %v857 = vpop.f32.mrf.mxu0
      %858 = vmatmul.f32.gmra.mxu0 %v698
      %v859 = vpop.f32.mrf.mxu0
      %860 = vmatmul.f32.gmra.mxu0 %v701
      %v861 = vpop.f32.mrf.mxu0
      %862 = vmatmul.f32.gmra.mxu0 %v704
      %v863 = vpop.f32.mrf.mxu0
      %864 = vdwg.mxu0
      %vm865 = vcmask 31744
      %v867 = vsel %vm865, %v358, 0
      %v870 = vsel %vm865, %v359, 0
      %v873 = vsel %vm865, %v360, 0
      %v876 = vsel %vm865, %v361, 0
      %v879 = vsel %vm865, %v362, 0
      %v882 = vsel %vm865, %v363, 0
      %v885 = vsel %vm865, %v364, 0
      %v888 = vsel %vm865, %v365, 0
      %v891 = vsel %vm865, %v366, 0
      %v894 = vsel %vm865, %v367, 0
      %v897 = vsel %vm865, %v368, 0
      %v900 = vsel %vm865, %v369, 0
      %v903 = vsel %vm865, %v370, 0
      %v906 = vsel %vm865, %v371, 0
      %v909 = vsel %vm865, %v372, 0
      %v912 = vsel %vm865, %v373, 0
      %v915 = vsel %vm865, %v374, 0
      %v918 = vsel %vm865, %v375, 0
      %v921 = vsel %vm865, %v376, 0
      %v924 = vsel %vm865, %v377, 0
      %v927 = vsel %vm865, %v378, 0
      %v930 = vsel %vm865, %v379, 0
      %v933 = vsel %vm865, %v380, 0
      %v936 = vsel %vm865, %v381, 0
      %v939 = vsel %vm865, %v382, 0
      %v942 = vsel %vm865, %v383, 0
      %v945 = vsel %vm865, %v384, 0
      %v948 = vsel %vm865, %v385, 0
      %v951 = vsel %vm865, %v386, 0
      %v954 = vsel %vm865, %v387, 0
      %v957 = vsel %vm865, %v388, 0
      %v960 = vsel %vm865, %v389, 0
      %v963 = vsel %vm865, %v390, 0
      %v966 = vsel %vm865, %v391, 0
      %v969 = vsel %vm865, %v392, 0
      %v972 = vsel %vm865, %v393, 0
      %v975 = vsel %vm865, %v394, 0
      %v978 = vsel %vm865, %v395, 0
      %v981 = vsel %vm865, %v396, 0
      %v984 = vsel %vm865, %v397, 0
      %v987 = vsel %vm865, %v398, 0
      %v990 = vsel %vm865, %v399, 0
      %v993 = vsel %vm865, %v400, 0
      %v996 = vsel %vm865, %v401, 0
      %v999 = vsel %vm865, %v402, 0
      %v1002 = vsel %vm865, %v403, 0
      %v1005 = vsel %vm865, %v404, 0
      %v1008 = vsel %vm865, %v405, 0
      %v1011 = vsel %vm865, %v406, 0
      %v1014 = vsel %vm865, %v407, 0
      %v1017 = vsel %vm865, %v408, 0
      %v1020 = vsel %vm865, %v409, 0
      %v1023 = vsel %vm865, %v410, 0
      %v1026 = vsel %vm865, %v411, 0
      %v1029 = vsel %vm865, %v412, 0
      %vm1031 = vcmask 1043456
      %v1033 = vsel %vm1031, %v468, 0
      %1035 = vmatpush.msra.mxu0 0.0
      %1036 = vmatpush.msra.mxu0 0.0
      %1037 = vmatpush.msra.mxu0 0.0
      %1038 = vmatpush.msra.mxu0 0.0
      %1039 = vmatpush.msra.mxu0 0.0
      %1040 = vmatpush.msra.mxu0 0.0
      %1041 = vmatpush.msra.mxu0 0.0
      %1042 = vmatpush.msra.mxu0 0.0
      %1043 = vmatpush.msra.mxu0 0.0
      %1044 = vmatpush.msra.mxu0 0.0
      %1045 = vmatpush.msra.mxu0 0.0
      %1046 = vmatpush.msra.mxu0 0.0
      %1047 = vmatpush.msra.mxu0 0.0
      %1048 = vmatpush.msra.mxu0 0.0
      %1049 = vmatpush.msra.mxu0 0.0
      %1050 = vmatpush.msra.mxu0 %v1033
      %1051 = vmatmul.f32.gmra.mxu0 %v867
      %v1052 = vpop.f32.mrf.mxu0
      %v1053 = vadd.f32 %v724, %v1052
      %1054 = vmatmul.f32.gmra.mxu0 %v870
      %v1055 = vpop.f32.mrf.mxu0
      %v1056 = vadd.f32 %v727, %v1055
      %1057 = vmatmul.f32.gmra.mxu0 %v873
      %v1058 = vpop.f32.mrf.mxu0
      %1059 = vmatmul.f32.gmra.mxu0 %v876
      %v1060 = vpop.f32.mrf.mxu0
      %v1061 = vadd.f32 %v732, %v1060
      %1062 = vmatmul.f32.gmra.mxu0 %v879
      %v1063 = vpop.f32.mrf.mxu0
      %v1064 = vadd.f32 %v735, %v1063
      %1065 = vmatmul.f32.gmra.mxu0 %v882
      %v1066 = vpop.f32.mrf.mxu0
      %1067 = vmatmul.f32.gmra.mxu0 %v885
      %v1068 = vpop.f32.mrf.mxu0
      %v1069 = vadd.f32 %v740, %v1068
      %1070 = vmatmul.f32.gmra.mxu0 %v888
      %v1071 = vpop.f32.mrf.mxu0
      %v1072 = vadd.f32 %v743, %v1071
      %1073 = vmatmul.f32.gmra.mxu0 %v891
      %v1074 = vpop.f32.mrf.mxu0
      %1075 = vmatmul.f32.gmra.mxu0 %v894
      %v1076 = vpop.f32.mrf.mxu0
      %v1077 = vadd.f32 %v748, %v1076
      %1078 = vmatmul.f32.gmra.mxu0 %v897
      %v1079 = vpop.f32.mrf.mxu0
      %v1080 = vadd.f32 %v751, %v1079
      %1081 = vmatmul.f32.gmra.mxu0 %v900
      %v1082 = vpop.f32.mrf.mxu0
      %1083 = vmatmul.f32.gmra.mxu0 %v903
      %v1084 = vpop.f32.mrf.mxu0
      %v1085 = vadd.f32 %v756, %v1084
      %1086 = vmatmul.f32.gmra.mxu0 %v906
      %v1087 = vpop.f32.mrf.mxu0
      %v1088 = vadd.f32 %v759, %v1087
      %1089 = vmatmul.f32.gmra.mxu0 %v909
      %v1090 = vpop.f32.mrf.mxu0
      %1091 = vmatmul.f32.gmra.mxu0 %v912
      %v1092 = vpop.f32.mrf.mxu0
      %v1093 = vadd.f32 %v764, %v1092
      %1094 = vmatmul.f32.gmra.mxu0 %v915
      %v1095 = vpop.f32.mrf.mxu0
      %v1096 = vadd.f32 %v767, %v1095
      %1097 = vmatmul.f32.gmra.mxu0 %v918
      %v1098 = vpop.f32.mrf.mxu0
      %1099 = vmatmul.f32.gmra.mxu0 %v921
      %v1100 = vpop.f32.mrf.mxu0
      %v1101 = vadd.f32 %v772, %v1100
      %1102 = vmatmul.f32.gmra.mxu0 %v924
      %v1103 = vpop.f32.mrf.mxu0
      %v1104 = vadd.f32 %v775, %v1103
      %1105 = vmatmul.f32.gmra.mxu0 %v927
      %v1106 = vpop.f32.mrf.mxu0
      %1107 = vmatmul.f32.gmra.mxu0 %v930
      %v1108 = vpop.f32.mrf.mxu0
      %v1109 = vadd.f32 %v780, %v1108
      %1110 = vmatmul.f32.gmra.mxu0 %v933
      %v1111 = vpop.f32.mrf.mxu0
      %v1112 = vadd.f32 %v783, %v1111
      %1113 = vmatmul.f32.gmra.mxu0 %v936
      %v1114 = vpop.f32.mrf.mxu0
      %1115 = vmatmul.f32.gmra.mxu0 %v939
      %v1116 = vpop.f32.mrf.mxu0
      %v1117 = vadd.f32 %v788, %v1116
      %1118 = vmatmul.f32.gmra.mxu0 %v942
      %v1119 = vpop.f32.mrf.mxu0
      %v1120 = vadd.f32 %v791, %v1119
      %1121 = vmatmul.f32.gmra.mxu0 %v945
      %v1122 = vpop.f32.mrf.mxu0
      %1123 = vmatmul.f32.gmra.mxu0 %v948
      %v1124 = vpop.f32.mrf.mxu0
      %v1125 = vadd.f32 %v796, %v1124
      %1126 = vmatmul.f32.gmra.mxu0 %v951
      %v1127 = vpop.f32.mrf.mxu0
      %v1128 = vadd.f32 %v799, %v1127
      %1129 = vmatmul.f32.gmra.mxu0 %v954
      %v1130 = vpop.f32.mrf.mxu0
      %1131 = vmatmul.f32.gmra.mxu0 %v957
      %v1132 = vpop.f32.mrf.mxu0
      %v1133 = vadd.f32 %v804, %v1132
      %1134 = vmatmul.f32.gmra.mxu0 %v960
      %v1135 = vpop.f32.mrf.mxu0
      %v1136 = vadd.f32 %v807, %v1135
      %1137 = vmatmul.f32.gmra.mxu0 %v963
      %v1138 = vpop.f32.mrf.mxu0
      %1139 = vmatmul.f32.gmra.mxu0 %v966
      %v1140 = vpop.f32.mrf.mxu0
      %v1141 = vadd.f32 %v812, %v1140
      %1142 = vmatmul.f32.gmra.mxu0 %v969
      %v1143 = vpop.f32.mrf.mxu0
      %v1144 = vadd.f32 %v815, %v1143
      %1145 = vmatmul.f32.gmra.mxu0 %v972
      %v1146 = vpop.f32.mrf.mxu0
      %1147 = vmatmul.f32.gmra.mxu0 %v975
      %v1148 = vpop.f32.mrf.mxu0
      %v1149 = vadd.f32 %v820, %v1148
      %1150 = vmatmul.f32.gmra.mxu0 %v978
      %v1151 = vpop.f32.mrf.mxu0
      %v1152 = vadd.f32 %v823, %v1151
      %1153 = vmatmul.f32.gmra.mxu0 %v981
      %v1154 = vpop.f32.mrf.mxu0
      %1155 = vmatmul.f32.gmra.mxu0 %v984
      %v1156 = vpop.f32.mrf.mxu0
      %v1157 = vadd.f32 %v828, %v1156
      %1158 = vmatmul.f32.gmra.mxu0 %v987
      %v1159 = vpop.f32.mrf.mxu0
      %v1160 = vadd.f32 %v831, %v1159
      %1161 = vmatmul.f32.gmra.mxu0 %v990
      %v1162 = vpop.f32.mrf.mxu0
      %1163 = vmatmul.f32.gmra.mxu0 %v993
      %v1164 = vpop.f32.mrf.mxu0
      %v1165 = vadd.f32 %v836, %v1164
      %1166 = vmatmul.f32.gmra.mxu0 %v996
      %v1167 = vpop.f32.mrf.mxu0
      %v1168 = vadd.f32 %v839, %v1167
      %1169 = vmatmul.f32.gmra.mxu0 %v999
      %v1170 = vpop.f32.mrf.mxu0
      %1171 = vmatmul.f32.gmra.mxu0 %v1002
      %v1172 = vpop.f32.mrf.mxu0
      %v1173 = vadd.f32 %v844, %v1172
      %1174 = vmatmul.f32.gmra.mxu0 %v1005
      %v1175 = vpop.f32.mrf.mxu0
      %v1176 = vadd.f32 %v847, %v1175
      %1177 = vmatmul.f32.gmra.mxu0 %v1008
      %v1178 = vpop.f32.mrf.mxu0
      %1179 = vmatmul.f32.gmra.mxu0 %v1011
      %v1180 = vpop.f32.mrf.mxu0
      %1181 = vmatmul.f32.gmra.mxu0 %v1014
      %v1182 = vpop.f32.mrf.mxu0
      %1183 = vmatmul.f32.gmra.mxu0 %v1017
      %v1184 = vpop.f32.mrf.mxu0
      %1185 = vmatmul.f32.gmra.mxu0 %v1020
      %v1186 = vpop.f32.mrf.mxu0
      %1187 = vmatmul.f32.gmra.mxu0 %v1023
      %v1188 = vpop.f32.mrf.mxu0
      %1189 = vmatmul.f32.gmra.mxu0 %v1026
      %v1190 = vpop.f32.mrf.mxu0
      %1191 = vmatmul.f32.gmra.mxu0 %v1029
      %v1192 = vpop.f32.mrf.mxu0
      %1193 = vdwg.mxu0
      %v1194 = vadd.f32 %v1053, 0.0
      %v1195 = vadd.f32 %v1056, 0.0
      %v1196 = vadd.f32 %v1061, 0.0
      %v1197 = vadd.f32 %v1064, 0.0
      %v1198 = vadd.f32 %v1069, 0.0
      %v1199 = vadd.f32 %v1072, 0.0
      %v1200 = vadd.f32 %v1077, 0.0
      %v1201 = vadd.f32 %v1080, 0.0
      %v1202 = vadd.f32 %v1085, 0.0
      %v1203 = vadd.f32 %v1088, 0.0
      %v1204 = vadd.f32 %v1093, 0.0
      %v1205 = vadd.f32 %v1096, 0.0
      %v1206 = vadd.f32 %v1101, 0.0
      %v1207 = vadd.f32 %v1104, 0.0
      %v1208 = vadd.f32 %v1109, 0.0
      %v1209 = vadd.f32 %v1112, 0.0
      %v1210 = vadd.f32 %v1117, 0.0
      %v1211 = vadd.f32 %v1120, 0.0
      %v1212 = vadd.f32 %v1125, 0.0
      %v1213 = vadd.f32 %v1128, 0.0
      %v1214 = vadd.f32 %v1133, 0.0
      %v1215 = vadd.f32 %v1136, 0.0
      %v1216 = vadd.f32 %v1141, 0.0
      %v1217 = vadd.f32 %v1144, 0.0
      %v1218 = vadd.f32 %v1149, 0.0
      %v1219 = vadd.f32 %v1152, 0.0
      %v1220 = vadd.f32 %v1157, 0.0
      %v1221 = vadd.f32 %v1160, 0.0
      %v1222 = vadd.f32 %v1165, 0.0
      %v1223 = vadd.f32 %v1168, 0.0
      %v1224 = vadd.f32 %v1173, 0.0
      %v1225 = vadd.f32 %v1176, 0.0
      %1226 = vmatpush.msra.mxu0 0.0
      %1227 = vmatpush.msra.mxu0 0.0
      %1228 = vmatpush.msra.mxu0 0.0
      %1229 = vmatpush.msra.mxu0 0.0
      %1230 = vmatpush.msra.mxu0 0.0
      %1231 = vmatpush.msra.mxu0 0.0
      %1232 = vmatpush.msra.mxu0 0.0
      %1233 = vmatpush.msra.mxu0 0.0
      %1234 = vmatpush.msra.mxu0 0.0
      %1235 = vmatpush.msra.mxu0 %v490
      %1236 = vmatpush.msra.mxu0 %v489
      %1237 = vmatpush.msra.mxu0 %v488
      %1238 = vmatpush.msra.mxu0 %v487
      %1239 = vmatpush.msra.mxu0 %v486
      %1240 = vmatpush.msra.mxu0 %v485
      %1241 = vmatpush.msra.mxu0 %v484
      %1242 = vmatmul.f32.gmra.mxu0 %v542
      %v1243 = vpop.f32.mrf.mxu0
      %v1244 = vadd.f32 0.0, %v1243
      %1245 = vmatmul.f32.gmra.mxu0 %v545
      %v1246 = vpop.f32.mrf.mxu0
      %v1247 = vadd.f32 0.0, %v1246
      %1248 = vmatmul.f32.gmra.mxu0 %v548
      %v1249 = vpop.f32.mrf.mxu0
      %v1250 = vadd.f32 0.0, %v1249
      %1251 = vmatmul.f32.gmra.mxu0 %v551
      %v1252 = vpop.f32.mrf.mxu0
      %v1253 = vadd.f32 0.0, %v1252
      %1254 = vmatmul.f32.gmra.mxu0 %v554
      %v1255 = vpop.f32.mrf.mxu0
      %v1256 = vadd.f32 0.0, %v1255
      %1257 = vmatmul.f32.gmra.mxu0 %v557
      %v1258 = vpop.f32.mrf.mxu0
      %v1259 = vadd.f32 0.0, %v1258
      %1260 = vmatmul.f32.gmra.mxu0 %v560
      %v1261 = vpop.f32.mrf.mxu0
      %v1262 = vadd.f32 0.0, %v1261
      %1263 = vmatmul.f32.gmra.mxu0 %v563
      %v1264 = vpop.f32.mrf.mxu0
      %v1265 = vadd.f32 0.0, %v1264
      %1266 = vmatmul.f32.gmra.mxu0 %v566
      %v1267 = vpop.f32.mrf.mxu0
      %v1268 = vadd.f32 0.0, %v1267
      %1269 = vmatmul.f32.gmra.mxu0 %v569
      %v1270 = vpop.f32.mrf.mxu0
      %v1271 = vadd.f32 0.0, %v1270
      %1272 = vmatmul.f32.gmra.mxu0 %v572
      %v1273 = vpop.f32.mrf.mxu0
      %v1274 = vadd.f32 0.0, %v1273
      %1275 = vmatmul.f32.gmra.mxu0 %v575
      %v1276 = vpop.f32.mrf.mxu0
      %v1277 = vadd.f32 0.0, %v1276
      %1278 = vmatmul.f32.gmra.mxu0 %v578
      %v1279 = vpop.f32.mrf.mxu0
      %v1280 = vadd.f32 0.0, %v1279
      %1281 = vmatmul.f32.gmra.mxu0 %v581
      %v1282 = vpop.f32.mrf.mxu0
      %v1283 = vadd.f32 0.0, %v1282
      %1284 = vmatmul.f32.gmra.mxu0 %v584
      %v1285 = vpop.f32.mrf.mxu0
      %v1286 = vadd.f32 0.0, %v1285
      %1287 = vmatmul.f32.gmra.mxu0 %v587
      %v1288 = vpop.f32.mrf.mxu0
      %v1289 = vadd.f32 0.0, %v1288
      %1290 = vmatmul.f32.gmra.mxu0 %v590
      %v1291 = vpop.f32.mrf.mxu0
      %v1292 = vadd.f32 0.0, %v1291
      %1293 = vmatmul.f32.gmra.mxu0 %v593
      %v1294 = vpop.f32.mrf.mxu0
      %v1295 = vadd.f32 0.0, %v1294
      %1296 = vmatmul.f32.gmra.mxu0 %v596
      %v1297 = vpop.f32.mrf.mxu0
      %v1298 = vadd.f32 0.0, %v1297
      %1299 = vmatmul.f32.gmra.mxu0 %v599
      %v1300 = vpop.f32.mrf.mxu0
      %v1301 = vadd.f32 0.0, %v1300
      %1302 = vmatmul.f32.gmra.mxu0 %v602
      %v1303 = vpop.f32.mrf.mxu0
      %v1304 = vadd.f32 0.0, %v1303
      %1305 = vmatmul.f32.gmra.mxu0 %v605
      %v1306 = vpop.f32.mrf.mxu0
      %v1307 = vadd.f32 0.0, %v1306
      %1308 = vmatmul.f32.gmra.mxu0 %v608
      %v1309 = vpop.f32.mrf.mxu0
      %v1310 = vadd.f32 0.0, %v1309
      %1311 = vmatmul.f32.gmra.mxu0 %v611
      %v1312 = vpop.f32.mrf.mxu0
      %v1313 = vadd.f32 0.0, %v1312
      %1314 = vmatmul.f32.gmra.mxu0 %v614
      %v1315 = vpop.f32.mrf.mxu0
      %v1316 = vadd.f32 0.0, %v1315
      %1317 = vmatmul.f32.gmra.mxu0 %v617
      %v1318 = vpop.f32.mrf.mxu0
      %v1319 = vadd.f32 0.0, %v1318
      %1320 = vmatmul.f32.gmra.mxu0 %v620
      %v1321 = vpop.f32.mrf.mxu0
      %v1322 = vadd.f32 0.0, %v1321
      %1323 = vmatmul.f32.gmra.mxu0 %v623
      %v1324 = vpop.f32.mrf.mxu0
      %v1325 = vadd.f32 0.0, %v1324
      %1326 = vmatmul.f32.gmra.mxu0 %v626
      %v1327 = vpop.f32.mrf.mxu0
      %v1328 = vadd.f32 0.0, %v1327
      %1329 = vmatmul.f32.gmra.mxu0 %v629
      %v1330 = vpop.f32.mrf.mxu0
      %v1331 = vadd.f32 0.0, %v1330
      %1332 = vmatmul.f32.gmra.mxu0 %v632
      %v1333 = vpop.f32.mrf.mxu0
      %v1334 = vadd.f32 0.0, %v1333
      %1335 = vmatmul.f32.gmra.mxu0 %v635
      %v1336 = vpop.f32.mrf.mxu0
      %v1337 = vadd.f32 0.0, %v1336
      %1338 = vmatmul.f32.gmra.mxu0 %v638
      %v1339 = vpop.f32.mrf.mxu0
      %v1340 = vadd.f32 0.0, %v1339
      %1341 = vmatmul.f32.gmra.mxu0 %v641
      %v1342 = vpop.f32.mrf.mxu0
      %v1343 = vadd.f32 0.0, %v1342
      %1344 = vmatmul.f32.gmra.mxu0 %v644
      %v1345 = vpop.f32.mrf.mxu0
      %v1346 = vadd.f32 0.0, %v1345
      %1347 = vmatmul.f32.gmra.mxu0 %v647
      %v1348 = vpop.f32.mrf.mxu0
      %v1349 = vadd.f32 0.0, %v1348
      %1350 = vmatmul.f32.gmra.mxu0 %v650
      %v1351 = vpop.f32.mrf.mxu0
      %v1352 = vadd.f32 0.0, %v1351
      %1353 = vmatmul.f32.gmra.mxu0 %v653
      %v1354 = vpop.f32.mrf.mxu0
      %v1355 = vadd.f32 0.0, %v1354
      %1356 = vmatmul.f32.gmra.mxu0 %v656
      %v1357 = vpop.f32.mrf.mxu0
      %v1358 = vadd.f32 0.0, %v1357
      %1359 = vmatmul.f32.gmra.mxu0 %v659
      %v1360 = vpop.f32.mrf.mxu0
      %v1361 = vadd.f32 0.0, %v1360
      %1362 = vmatmul.f32.gmra.mxu0 %v662
      %v1363 = vpop.f32.mrf.mxu0
      %v1364 = vadd.f32 0.0, %v1363
      %1365 = vmatmul.f32.gmra.mxu0 %v665
      %v1366 = vpop.f32.mrf.mxu0
      %v1367 = vadd.f32 0.0, %v1366
      %1368 = vmatmul.f32.gmra.mxu0 %v668
      %v1369 = vpop.f32.mrf.mxu0
      %v1370 = vadd.f32 0.0, %v1369
      %1371 = vmatmul.f32.gmra.mxu0 %v671
      %v1372 = vpop.f32.mrf.mxu0
      %v1373 = vadd.f32 0.0, %v1372
      %1374 = vmatmul.f32.gmra.mxu0 %v674
      %v1375 = vpop.f32.mrf.mxu0
      %v1376 = vadd.f32 0.0, %v1375
      %1377 = vmatmul.f32.gmra.mxu0 %v677
      %v1378 = vpop.f32.mrf.mxu0
      %v1379 = vadd.f32 0.0, %v1378
      %1380 = vmatmul.f32.gmra.mxu0 %v680
      %v1381 = vpop.f32.mrf.mxu0
      %v1382 = vadd.f32 0.0, %v1381
      %1383 = vmatmul.f32.gmra.mxu0 %v683
      %v1384 = vpop.f32.mrf.mxu0
      %v1385 = vadd.f32 0.0, %v1384
      %1386 = vmatmul.f32.gmra.mxu0 %v686
      %v1387 = vpop.f32.mrf.mxu0
      %1388 = vmatmul.f32.gmra.mxu0 %v689
      %v1389 = vpop.f32.mrf.mxu0
      %1390 = vmatmul.f32.gmra.mxu0 %v692
      %v1391 = vpop.f32.mrf.mxu0
      %1392 = vmatmul.f32.gmra.mxu0 %v695
      %v1393 = vpop.f32.mrf.mxu0
      %1394 = vmatmul.f32.gmra.mxu0 %v698
      %v1395 = vpop.f32.mrf.mxu0
      %1396 = vmatmul.f32.gmra.mxu0 %v701
      %v1397 = vpop.f32.mrf.mxu0
      %1398 = vmatmul.f32.gmra.mxu0 %v704
      %v1399 = vpop.f32.mrf.mxu0
      %1400 = vdwg.mxu0
      %v1402 = vsel %vm1031, %v469, 0
      %1404 = vmatpush.msra.mxu0 0.0
      %1405 = vmatpush.msra.mxu0 0.0
      %1406 = vmatpush.msra.mxu0 0.0
      %1407 = vmatpush.msra.mxu0 0.0
      %1408 = vmatpush.msra.mxu0 0.0
      %1409 = vmatpush.msra.mxu0 0.0
      %1410 = vmatpush.msra.mxu0 0.0
      %1411 = vmatpush.msra.mxu0 0.0
      %1412 = vmatpush.msra.mxu0 0.0
      %1413 = vmatpush.msra.mxu0 0.0
      %1414 = vmatpush.msra.mxu0 0.0
      %1415 = vmatpush.msra.mxu0 0.0
      %1416 = vmatpush.msra.mxu0 0.0
      %1417 = vmatpush.msra.mxu0 0.0
      %1418 = vmatpush.msra.mxu0 0.0
      %1419 = vmatpush.msra.mxu0 %v1402
      %1420 = vmatmul.f32.gmra.mxu0 %v867
      %v1421 = vpop.f32.mrf.mxu0
      %v1422 = vadd.f32 %v1244, %v1421
      %1423 = vmatmul.f32.gmra.mxu0 %v870
      %v1424 = vpop.f32.mrf.mxu0
      %v1425 = vadd.f32 %v1247, %v1424
      %1426 = vmatmul.f32.gmra.mxu0 %v873
      %v1427 = vpop.f32.mrf.mxu0
      %v1428 = vadd.f32 %v1250, %v1427
      %1429 = vmatmul.f32.gmra.mxu0 %v876
      %v1430 = vpop.f32.mrf.mxu0
      %v1431 = vadd.f32 %v1253, %v1430
      %1432 = vmatmul.f32.gmra.mxu0 %v879
      %v1433 = vpop.f32.mrf.mxu0
      %v1434 = vadd.f32 %v1256, %v1433
      %1435 = vmatmul.f32.gmra.mxu0 %v882
      %v1436 = vpop.f32.mrf.mxu0
      %v1437 = vadd.f32 %v1259, %v1436
      %1438 = vmatmul.f32.gmra.mxu0 %v885
      %v1439 = vpop.f32.mrf.mxu0
      %v1440 = vadd.f32 %v1262, %v1439
      %1441 = vmatmul.f32.gmra.mxu0 %v888
      %v1442 = vpop.f32.mrf.mxu0
      %v1443 = vadd.f32 %v1265, %v1442
      %1444 = vmatmul.f32.gmra.mxu0 %v891
      %v1445 = vpop.f32.mrf.mxu0
      %v1446 = vadd.f32 %v1268, %v1445
      %1447 = vmatmul.f32.gmra.mxu0 %v894
      %v1448 = vpop.f32.mrf.mxu0
      %v1449 = vadd.f32 %v1271, %v1448
      %1450 = vmatmul.f32.gmra.mxu0 %v897
      %v1451 = vpop.f32.mrf.mxu0
      %v1452 = vadd.f32 %v1274, %v1451
      %1453 = vmatmul.f32.gmra.mxu0 %v900
      %v1454 = vpop.f32.mrf.mxu0
      %v1455 = vadd.f32 %v1277, %v1454
      %1456 = vmatmul.f32.gmra.mxu0 %v903
      %v1457 = vpop.f32.mrf.mxu0
      %v1458 = vadd.f32 %v1280, %v1457
      %1459 = vmatmul.f32.gmra.mxu0 %v906
      %v1460 = vpop.f32.mrf.mxu0
      %v1461 = vadd.f32 %v1283, %v1460
      %1462 = vmatmul.f32.gmra.mxu0 %v909
      %v1463 = vpop.f32.mrf.mxu0
      %v1464 = vadd.f32 %v1286, %v1463
      %1465 = vmatmul.f32.gmra.mxu0 %v912
      %v1466 = vpop.f32.mrf.mxu0
      %v1467 = vadd.f32 %v1289, %v1466
      %1468 = vmatmul.f32.gmra.mxu0 %v915
      %v1469 = vpop.f32.mrf.mxu0
      %v1470 = vadd.f32 %v1292, %v1469
      %1471 = vmatmul.f32.gmra.mxu0 %v918
      %v1472 = vpop.f32.mrf.mxu0
      %v1473 = vadd.f32 %v1295, %v1472
      %1474 = vmatmul.f32.gmra.mxu0 %v921
      %v1475 = vpop.f32.mrf.mxu0
      %v1476 = vadd.f32 %v1298, %v1475
      %1477 = vmatmul.f32.gmra.mxu0 %v924
      %v1478 = vpop.f32.mrf.mxu0
      %v1479 = vadd.f32 %v1301, %v1478
      %1480 = vmatmul.f32.gmra.mxu0 %v927
      %v1481 = vpop.f32.mrf.mxu0
      %v1482 = vadd.f32 %v1304, %v1481
      %1483 = vmatmul.f32.gmra.mxu0 %v930
      %v1484 = vpop.f32.mrf.mxu0
      %v1485 = vadd.f32 %v1307, %v1484
      %1486 = vmatmul.f32.gmra.mxu0 %v933
      %v1487 = vpop.f32.mrf.mxu0
      %v1488 = vadd.f32 %v1310, %v1487
      %1489 = vmatmul.f32.gmra.mxu0 %v936
      %v1490 = vpop.f32.mrf.mxu0
      %v1491 = vadd.f32 %v1313, %v1490
      %1492 = vmatmul.f32.gmra.mxu0 %v939
      %v1493 = vpop.f32.mrf.mxu0
      %v1494 = vadd.f32 %v1316, %v1493
      %1495 = vmatmul.f32.gmra.mxu0 %v942
      %v1496 = vpop.f32.mrf.mxu0
      %v1497 = vadd.f32 %v1319, %v1496
      %1498 = vmatmul.f32.gmra.mxu0 %v945
      %v1499 = vpop.f32.mrf.mxu0
      %v1500 = vadd.f32 %v1322, %v1499
      %1501 = vmatmul.f32.gmra.mxu0 %v948
      %v1502 = vpop.f32.mrf.mxu0
      %v1503 = vadd.f32 %v1325, %v1502
      %1504 = vmatmul.f32.gmra.mxu0 %v951
      %v1505 = vpop.f32.mrf.mxu0
      %v1506 = vadd.f32 %v1328, %v1505
      %1507 = vmatmul.f32.gmra.mxu0 %v954
      %v1508 = vpop.f32.mrf.mxu0
      %v1509 = vadd.f32 %v1331, %v1508
      %1510 = vmatmul.f32.gmra.mxu0 %v957
      %v1511 = vpop.f32.mrf.mxu0
      %v1512 = vadd.f32 %v1334, %v1511
      %1513 = vmatmul.f32.gmra.mxu0 %v960
      %v1514 = vpop.f32.mrf.mxu0
      %v1515 = vadd.f32 %v1337, %v1514
      %1516 = vmatmul.f32.gmra.mxu0 %v963
      %v1517 = vpop.f32.mrf.mxu0
      %v1518 = vadd.f32 %v1340, %v1517
      %1519 = vmatmul.f32.gmra.mxu0 %v966
      %v1520 = vpop.f32.mrf.mxu0
      %v1521 = vadd.f32 %v1343, %v1520
      %1522 = vmatmul.f32.gmra.mxu0 %v969
      %v1523 = vpop.f32.mrf.mxu0
      %v1524 = vadd.f32 %v1346, %v1523
      %1525 = vmatmul.f32.gmra.mxu0 %v972
      %v1526 = vpop.f32.mrf.mxu0
      %v1527 = vadd.f32 %v1349, %v1526
      %1528 = vmatmul.f32.gmra.mxu0 %v975
      %v1529 = vpop.f32.mrf.mxu0
      %v1530 = vadd.f32 %v1352, %v1529
      %1531 = vmatmul.f32.gmra.mxu0 %v978
      %v1532 = vpop.f32.mrf.mxu0
      %v1533 = vadd.f32 %v1355, %v1532
      %1534 = vmatmul.f32.gmra.mxu0 %v981
      %v1535 = vpop.f32.mrf.mxu0
      %v1536 = vadd.f32 %v1358, %v1535
      %1537 = vmatmul.f32.gmra.mxu0 %v984
      %v1538 = vpop.f32.mrf.mxu0
      %v1539 = vadd.f32 %v1361, %v1538
      %1540 = vmatmul.f32.gmra.mxu0 %v987
      %v1541 = vpop.f32.mrf.mxu0
      %v1542 = vadd.f32 %v1364, %v1541
      %1543 = vmatmul.f32.gmra.mxu0 %v990
      %v1544 = vpop.f32.mrf.mxu0
      %v1545 = vadd.f32 %v1367, %v1544
      %1546 = vmatmul.f32.gmra.mxu0 %v993
      %v1547 = vpop.f32.mrf.mxu0
      %v1548 = vadd.f32 %v1370, %v1547
      %1549 = vmatmul.f32.gmra.mxu0 %v996
      %v1550 = vpop.f32.mrf.mxu0
      %v1551 = vadd.f32 %v1373, %v1550
      %1552 = vmatmul.f32.gmra.mxu0 %v999
      %v1553 = vpop.f32.mrf.mxu0
      %v1554 = vadd.f32 %v1376, %v1553
      %1555 = vmatmul.f32.gmra.mxu0 %v1002
      %v1556 = vpop.f32.mrf.mxu0
      %v1557 = vadd.f32 %v1379, %v1556
      %1558 = vmatmul.f32.gmra.mxu0 %v1005
      %v1559 = vpop.f32.mrf.mxu0
      %v1560 = vadd.f32 %v1382, %v1559
      %1561 = vmatmul.f32.gmra.mxu0 %v1008
      %v1562 = vpop.f32.mrf.mxu0
      %v1563 = vadd.f32 %v1385, %v1562
      %1564 = vmatmul.f32.gmra.mxu0 %v1011
      %v1565 = vpop.f32.mrf.mxu0
      %1566 = vmatmul.f32.gmra.mxu0 %v1014
      %v1567 = vpop.f32.mrf.mxu0
      %1568 = vmatmul.f32.gmra.mxu0 %v1017
      %v1569 = vpop.f32.mrf.mxu0
      %1570 = vmatmul.f32.gmra.mxu0 %v1020
      %v1571 = vpop.f32.mrf.mxu0
      %1572 = vmatmul.f32.gmra.mxu0 %v1023
      %v1573 = vpop.f32.mrf.mxu0
      %1574 = vmatmul.f32.gmra.mxu0 %v1026
      %v1575 = vpop.f32.mrf.mxu0
      %1576 = vmatmul.f32.gmra.mxu0 %v1029
      %v1577 = vpop.f32.mrf.mxu0
      %1578 = vdwg.mxu0
      %vm1627 = vcmask 1046528
      %v1628 = vrot.slane %v1422, 1
      %v1629 = vrot.slane %v1425, 1
      %v1630 = vsel %vm1627, %v1628, %v1629
      %v1631 = vrot.slane %v1428, 1
      %v1632 = vsel %vm1627, %v1629, %v1631
      %v1633 = vrot.slane %v1431, 1
      %v1634 = vrot.slane %v1434, 1
      %v1635 = vsel %vm1627, %v1633, %v1634
      %v1636 = vrot.slane %v1437, 1
      %v1637 = vsel %vm1627, %v1634, %v1636
      %v1638 = vrot.slane %v1440, 1
      %v1639 = vrot.slane %v1443, 1
      %v1640 = vsel %vm1627, %v1638, %v1639
      %v1641 = vrot.slane %v1446, 1
      %v1642 = vsel %vm1627, %v1639, %v1641
      %v1643 = vrot.slane %v1449, 1
      %v1644 = vrot.slane %v1452, 1
      %v1645 = vsel %vm1627, %v1643, %v1644
      %v1646 = vrot.slane %v1455, 1
      %v1647 = vsel %vm1627, %v1644, %v1646
      %v1648 = vrot.slane %v1458, 1
      %v1649 = vrot.slane %v1461, 1
      %v1650 = vsel %vm1627, %v1648, %v1649
      %v1651 = vrot.slane %v1464, 1
      %v1652 = vsel %vm1627, %v1649, %v1651
      %v1653 = vrot.slane %v1467, 1
      %v1654 = vrot.slane %v1470, 1
      %v1655 = vsel %vm1627, %v1653, %v1654
      %v1656 = vrot.slane %v1473, 1
      %v1657 = vsel %vm1627, %v1654, %v1656
      %v1658 = vrot.slane %v1476, 1
      %v1659 = vrot.slane %v1479, 1
      %v1660 = vsel %vm1627, %v1658, %v1659
      %v1661 = vrot.slane %v1482, 1
      %v1662 = vsel %vm1627, %v1659, %v1661
      %v1663 = vrot.slane %v1485, 1
      %v1664 = vrot.slane %v1488, 1
      %v1665 = vsel %vm1627, %v1663, %v1664
      %v1666 = vrot.slane %v1491, 1
      %v1667 = vsel %vm1627, %v1664, %v1666
      %v1668 = vrot.slane %v1494, 1
      %v1669 = vrot.slane %v1497, 1
      %v1670 = vsel %vm1627, %v1668, %v1669
      %v1671 = vrot.slane %v1500, 1
      %v1672 = vsel %vm1627, %v1669, %v1671
      %v1673 = vrot.slane %v1503, 1
      %v1674 = vrot.slane %v1506, 1
      %v1675 = vsel %vm1627, %v1673, %v1674
      %v1676 = vrot.slane %v1509, 1
      %v1677 = vsel %vm1627, %v1674, %v1676
      %v1678 = vrot.slane %v1512, 1
      %v1679 = vrot.slane %v1515, 1
      %v1680 = vsel %vm1627, %v1678, %v1679
      %v1681 = vrot.slane %v1518, 1
      %v1682 = vsel %vm1627, %v1679, %v1681
      %v1683 = vrot.slane %v1521, 1
      %v1684 = vrot.slane %v1524, 1
      %v1685 = vsel %vm1627, %v1683, %v1684
      %v1686 = vrot.slane %v1527, 1
      %v1687 = vsel %vm1627, %v1684, %v1686
      %v1688 = vrot.slane %v1530, 1
      %v1689 = vrot.slane %v1533, 1
      %v1690 = vsel %vm1627, %v1688, %v1689
      %v1691 = vrot.slane %v1536, 1
      %v1692 = vsel %vm1627, %v1689, %v1691
      %v1693 = vrot.slane %v1539, 1
      %v1694 = vrot.slane %v1542, 1
      %v1695 = vsel %vm1627, %v1693, %v1694
      %v1696 = vrot.slane %v1545, 1
      %v1697 = vsel %vm1627, %v1694, %v1696
      %v1698 = vrot.slane %v1548, 1
      %v1699 = vrot.slane %v1551, 1
      %v1700 = vsel %vm1627, %v1698, %v1699
      %v1701 = vrot.slane %v1554, 1
      %v1702 = vsel %vm1627, %v1699, %v1701
      %v1703 = vrot.slane %v1557, 1
      %v1704 = vrot.slane %v1560, 1
      %v1705 = vsel %vm1627, %v1703, %v1704
      %v1706 = vrot.slane %v1563, 1
      %v1707 = vsel %vm1627, %v1704, %v1706
      %v1740 = vadd.f32 %v1194, %v1630
      %v1741 = vadd.f32 %v1195, %v1632
      %v1742 = vadd.f32 %v1196, %v1635
      %v1743 = vadd.f32 %v1197, %v1637
      %v1744 = vadd.f32 %v1198, %v1640
      %v1745 = vadd.f32 %v1199, %v1642
      %v1746 = vadd.f32 %v1200, %v1645
      %v1747 = vadd.f32 %v1201, %v1647
      %v1748 = vadd.f32 %v1202, %v1650
      %v1749 = vadd.f32 %v1203, %v1652
      %v1750 = vadd.f32 %v1204, %v1655
      %v1751 = vadd.f32 %v1205, %v1657
      %v1752 = vadd.f32 %v1206, %v1660
      %v1753 = vadd.f32 %v1207, %v1662
      %v1754 = vadd.f32 %v1208, %v1665
      %v1755 = vadd.f32 %v1209, %v1667
      %v1756 = vadd.f32 %v1210, %v1670
      %v1757 = vadd.f32 %v1211, %v1672
      %v1758 = vadd.f32 %v1212, %v1675
      %v1759 = vadd.f32 %v1213, %v1677
      %v1760 = vadd.f32 %v1214, %v1680
      %v1761 = vadd.f32 %v1215, %v1682
      %v1762 = vadd.f32 %v1216, %v1685
      %v1763 = vadd.f32 %v1217, %v1687
      %v1764 = vadd.f32 %v1218, %v1690
      %v1765 = vadd.f32 %v1219, %v1692
      %v1766 = vadd.f32 %v1220, %v1695
      %v1767 = vadd.f32 %v1221, %v1697
      %v1768 = vadd.f32 %v1222, %v1700
      %v1769 = vadd.f32 %v1223, %v1702
      %v1770 = vadd.f32 %v1224, %v1705
      %v1771 = vadd.f32 %v1225, %v1707
      %1772 = vmatpush.msra.mxu0 0.0
      %1773 = vmatpush.msra.mxu0 0.0
      %1774 = vmatpush.msra.mxu0 0.0
      %1775 = vmatpush.msra.mxu0 0.0
      %1776 = vmatpush.msra.mxu0 0.0
      %1777 = vmatpush.msra.mxu0 0.0
      %1778 = vmatpush.msra.mxu0 0.0
      %1779 = vmatpush.msra.mxu0 0.0
      %1780 = vmatpush.msra.mxu0 0.0
      %1781 = vmatpush.msra.mxu0 %v497
      %1782 = vmatpush.msra.mxu0 %v496
      %1783 = vmatpush.msra.mxu0 %v495
      %1784 = vmatpush.msra.mxu0 %v494
      %1785 = vmatpush.msra.mxu0 %v493
      %1786 = vmatpush.msra.mxu0 %v492
      %1787 = vmatpush.msra.mxu0 %v491
      %1788 = vmatmul.f32.gmra.mxu0 %v542
      %v1789 = vpop.f32.mrf.mxu0
      %v1790 = vadd.f32 0.0, %v1789
      %1791 = vmatmul.f32.gmra.mxu0 %v545
      %v1792 = vpop.f32.mrf.mxu0
      %v1793 = vadd.f32 0.0, %v1792
      %1794 = vmatmul.f32.gmra.mxu0 %v548
      %v1795 = vpop.f32.mrf.mxu0
      %v1796 = vadd.f32 0.0, %v1795
      %1797 = vmatmul.f32.gmra.mxu0 %v551
      %v1798 = vpop.f32.mrf.mxu0
      %v1799 = vadd.f32 0.0, %v1798
      %1800 = vmatmul.f32.gmra.mxu0 %v554
      %v1801 = vpop.f32.mrf.mxu0
      %v1802 = vadd.f32 0.0, %v1801
      %1803 = vmatmul.f32.gmra.mxu0 %v557
      %v1804 = vpop.f32.mrf.mxu0
      %v1805 = vadd.f32 0.0, %v1804
      %1806 = vmatmul.f32.gmra.mxu0 %v560
      %v1807 = vpop.f32.mrf.mxu0
      %v1808 = vadd.f32 0.0, %v1807
      %1809 = vmatmul.f32.gmra.mxu0 %v563
      %v1810 = vpop.f32.mrf.mxu0
      %v1811 = vadd.f32 0.0, %v1810
      %1812 = vmatmul.f32.gmra.mxu0 %v566
      %v1813 = vpop.f32.mrf.mxu0
      %v1814 = vadd.f32 0.0, %v1813
      %1815 = vmatmul.f32.gmra.mxu0 %v569
      %v1816 = vpop.f32.mrf.mxu0
      %v1817 = vadd.f32 0.0, %v1816
      %1818 = vmatmul.f32.gmra.mxu0 %v572
      %v1819 = vpop.f32.mrf.mxu0
      %v1820 = vadd.f32 0.0, %v1819
      %1821 = vmatmul.f32.gmra.mxu0 %v575
      %v1822 = vpop.f32.mrf.mxu0
      %v1823 = vadd.f32 0.0, %v1822
      %1824 = vmatmul.f32.gmra.mxu0 %v578
      %v1825 = vpop.f32.mrf.mxu0
      %v1826 = vadd.f32 0.0, %v1825
      %1827 = vmatmul.f32.gmra.mxu0 %v581
      %v1828 = vpop.f32.mrf.mxu0
      %v1829 = vadd.f32 0.0, %v1828
      %1830 = vmatmul.f32.gmra.mxu0 %v584
      %v1831 = vpop.f32.mrf.mxu0
      %v1832 = vadd.f32 0.0, %v1831
      %1833 = vmatmul.f32.gmra.mxu0 %v587
      %v1834 = vpop.f32.mrf.mxu0
      %v1835 = vadd.f32 0.0, %v1834
      %1836 = vmatmul.f32.gmra.mxu0 %v590
      %v1837 = vpop.f32.mrf.mxu0
      %v1838 = vadd.f32 0.0, %v1837
      %1839 = vmatmul.f32.gmra.mxu0 %v593
      %v1840 = vpop.f32.mrf.mxu0
      %v1841 = vadd.f32 0.0, %v1840
      %1842 = vmatmul.f32.gmra.mxu0 %v596
      %v1843 = vpop.f32.mrf.mxu0
      %v1844 = vadd.f32 0.0, %v1843
      %1845 = vmatmul.f32.gmra.mxu0 %v599
      %v1846 = vpop.f32.mrf.mxu0
      %v1847 = vadd.f32 0.0, %v1846
      %1848 = vmatmul.f32.gmra.mxu0 %v602
      %v1849 = vpop.f32.mrf.mxu0
      %v1850 = vadd.f32 0.0, %v1849
      %1851 = vmatmul.f32.gmra.mxu0 %v605
      %v1852 = vpop.f32.mrf.mxu0
      %v1853 = vadd.f32 0.0, %v1852
      %1854 = vmatmul.f32.gmra.mxu0 %v608
      %v1855 = vpop.f32.mrf.mxu0
      %v1856 = vadd.f32 0.0, %v1855
      %1857 = vmatmul.f32.gmra.mxu0 %v611
      %v1858 = vpop.f32.mrf.mxu0
      %v1859 = vadd.f32 0.0, %v1858
      %1860 = vmatmul.f32.gmra.mxu0 %v614
      %v1861 = vpop.f32.mrf.mxu0
      %v1862 = vadd.f32 0.0, %v1861
      %1863 = vmatmul.f32.gmra.mxu0 %v617
      %v1864 = vpop.f32.mrf.mxu0
      %v1865 = vadd.f32 0.0, %v1864
      %1866 = vmatmul.f32.gmra.mxu0 %v620
      %v1867 = vpop.f32.mrf.mxu0
      %v1868 = vadd.f32 0.0, %v1867
      %1869 = vmatmul.f32.gmra.mxu0 %v623
      %v1870 = vpop.f32.mrf.mxu0
      %v1871 = vadd.f32 0.0, %v1870
      %1872 = vmatmul.f32.gmra.mxu0 %v626
      %v1873 = vpop.f32.mrf.mxu0
      %v1874 = vadd.f32 0.0, %v1873
      %1875 = vmatmul.f32.gmra.mxu0 %v629
      %v1876 = vpop.f32.mrf.mxu0
      %v1877 = vadd.f32 0.0, %v1876
      %1878 = vmatmul.f32.gmra.mxu0 %v632
      %v1879 = vpop.f32.mrf.mxu0
      %v1880 = vadd.f32 0.0, %v1879
      %1881 = vmatmul.f32.gmra.mxu0 %v635
      %v1882 = vpop.f32.mrf.mxu0
      %v1883 = vadd.f32 0.0, %v1882
      %1884 = vmatmul.f32.gmra.mxu0 %v638
      %v1885 = vpop.f32.mrf.mxu0
      %v1886 = vadd.f32 0.0, %v1885
      %1887 = vmatmul.f32.gmra.mxu0 %v641
      %v1888 = vpop.f32.mrf.mxu0
      %v1889 = vadd.f32 0.0, %v1888
      %1890 = vmatmul.f32.gmra.mxu0 %v644
      %v1891 = vpop.f32.mrf.mxu0
      %v1892 = vadd.f32 0.0, %v1891
      %1893 = vmatmul.f32.gmra.mxu0 %v647
      %v1894 = vpop.f32.mrf.mxu0
      %v1895 = vadd.f32 0.0, %v1894
      %1896 = vmatmul.f32.gmra.mxu0 %v650
      %v1897 = vpop.f32.mrf.mxu0
      %v1898 = vadd.f32 0.0, %v1897
      %1899 = vmatmul.f32.gmra.mxu0 %v653
      %v1900 = vpop.f32.mrf.mxu0
      %v1901 = vadd.f32 0.0, %v1900
      %1902 = vmatmul.f32.gmra.mxu0 %v656
      %v1903 = vpop.f32.mrf.mxu0
      %v1904 = vadd.f32 0.0, %v1903
      %1905 = vmatmul.f32.gmra.mxu0 %v659
      %v1906 = vpop.f32.mrf.mxu0
      %v1907 = vadd.f32 0.0, %v1906
      %1908 = vmatmul.f32.gmra.mxu0 %v662
      %v1909 = vpop.f32.mrf.mxu0
      %v1910 = vadd.f32 0.0, %v1909
      %1911 = vmatmul.f32.gmra.mxu0 %v665
      %v1912 = vpop.f32.mrf.mxu0
      %v1913 = vadd.f32 0.0, %v1912
      %1914 = vmatmul.f32.gmra.mxu0 %v668
      %v1915 = vpop.f32.mrf.mxu0
      %v1916 = vadd.f32 0.0, %v1915
      %1917 = vmatmul.f32.gmra.mxu0 %v671
      %v1918 = vpop.f32.mrf.mxu0
      %v1919 = vadd.f32 0.0, %v1918
      %1920 = vmatmul.f32.gmra.mxu0 %v674
      %v1921 = vpop.f32.mrf.mxu0
      %v1922 = vadd.f32 0.0, %v1921
      %1923 = vmatmul.f32.gmra.mxu0 %v677
      %v1924 = vpop.f32.mrf.mxu0
      %v1925 = vadd.f32 0.0, %v1924
      %1926 = vmatmul.f32.gmra.mxu0 %v680
      %v1927 = vpop.f32.mrf.mxu0
      %v1928 = vadd.f32 0.0, %v1927
      %1929 = vmatmul.f32.gmra.mxu0 %v683
      %v1930 = vpop.f32.mrf.mxu0
      %v1931 = vadd.f32 0.0, %v1930
      %1932 = vmatmul.f32.gmra.mxu0 %v686
      %v1933 = vpop.f32.mrf.mxu0
      %1934 = vmatmul.f32.gmra.mxu0 %v689
      %v1935 = vpop.f32.mrf.mxu0
      %1936 = vmatmul.f32.gmra.mxu0 %v692
      %v1937 = vpop.f32.mrf.mxu0
      %1938 = vmatmul.f32.gmra.mxu0 %v695
      %v1939 = vpop.f32.mrf.mxu0
      %1940 = vmatmul.f32.gmra.mxu0 %v698
      %v1941 = vpop.f32.mrf.mxu0
      %1942 = vmatmul.f32.gmra.mxu0 %v701
      %v1943 = vpop.f32.mrf.mxu0
      %1944 = vmatmul.f32.gmra.mxu0 %v704
      %v1945 = vpop.f32.mrf.mxu0
      %1946 = vdwg.mxu0
      %v1948 = vsel %vm1031, %v470, 0
      %1950 = vmatpush.msra.mxu0 0.0
      %1951 = vmatpush.msra.mxu0 0.0
      %1952 = vmatpush.msra.mxu0 0.0
      %1953 = vmatpush.msra.mxu0 0.0
      %1954 = vmatpush.msra.mxu0 0.0
      %1955 = vmatpush.msra.mxu0 0.0
      %1956 = vmatpush.msra.mxu0 0.0
      %1957 = vmatpush.msra.mxu0 0.0
      %1958 = vmatpush.msra.mxu0 0.0
      %1959 = vmatpush.msra.mxu0 0.0
      %1960 = vmatpush.msra.mxu0 0.0
      %1961 = vmatpush.msra.mxu0 0.0
      %1962 = vmatpush.msra.mxu0 0.0
      %1963 = vmatpush.msra.mxu0 0.0
      %1964 = vmatpush.msra.mxu0 0.0
      %1965 = vmatpush.msra.mxu0 %v1948
      %1966 = vmatmul.f32.gmra.mxu0 %v867
      %v1967 = vpop.f32.mrf.mxu0
      %v1968 = vadd.f32 %v1790, %v1967
      %1969 = vmatmul.f32.gmra.mxu0 %v870
      %v1970 = vpop.f32.mrf.mxu0
      %v1971 = vadd.f32 %v1793, %v1970
      %1972 = vmatmul.f32.gmra.mxu0 %v873
      %v1973 = vpop.f32.mrf.mxu0
      %v1974 = vadd.f32 %v1796, %v1973
      %1975 = vmatmul.f32.gmra.mxu0 %v876
      %v1976 = vpop.f32.mrf.mxu0
      %v1977 = vadd.f32 %v1799, %v1976
      %1978 = vmatmul.f32.gmra.mxu0 %v879
      %v1979 = vpop.f32.mrf.mxu0
      %v1980 = vadd.f32 %v1802, %v1979
      %1981 = vmatmul.f32.gmra.mxu0 %v882
      %v1982 = vpop.f32.mrf.mxu0
      %v1983 = vadd.f32 %v1805, %v1982
      %1984 = vmatmul.f32.gmra.mxu0 %v885
      %v1985 = vpop.f32.mrf.mxu0
      %v1986 = vadd.f32 %v1808, %v1985
      %1987 = vmatmul.f32.gmra.mxu0 %v888
      %v1988 = vpop.f32.mrf.mxu0
      %v1989 = vadd.f32 %v1811, %v1988
      %1990 = vmatmul.f32.gmra.mxu0 %v891
      %v1991 = vpop.f32.mrf.mxu0
      %v1992 = vadd.f32 %v1814, %v1991
      %1993 = vmatmul.f32.gmra.mxu0 %v894
      %v1994 = vpop.f32.mrf.mxu0
      %v1995 = vadd.f32 %v1817, %v1994
      %1996 = vmatmul.f32.gmra.mxu0 %v897
      %v1997 = vpop.f32.mrf.mxu0
      %v1998 = vadd.f32 %v1820, %v1997
      %1999 = vmatmul.f32.gmra.mxu0 %v900
      %v2000 = vpop.f32.mrf.mxu0
      %v2001 = vadd.f32 %v1823, %v2000
      %2002 = vmatmul.f32.gmra.mxu0 %v903
      %v2003 = vpop.f32.mrf.mxu0
      %v2004 = vadd.f32 %v1826, %v2003
      %2005 = vmatmul.f32.gmra.mxu0 %v906
      %v2006 = vpop.f32.mrf.mxu0
      %v2007 = vadd.f32 %v1829, %v2006
      %2008 = vmatmul.f32.gmra.mxu0 %v909
      %v2009 = vpop.f32.mrf.mxu0
      %v2010 = vadd.f32 %v1832, %v2009
      %2011 = vmatmul.f32.gmra.mxu0 %v912
      %v2012 = vpop.f32.mrf.mxu0
      %v2013 = vadd.f32 %v1835, %v2012
      %2014 = vmatmul.f32.gmra.mxu0 %v915
      %v2015 = vpop.f32.mrf.mxu0
      %v2016 = vadd.f32 %v1838, %v2015
      %2017 = vmatmul.f32.gmra.mxu0 %v918
      %v2018 = vpop.f32.mrf.mxu0
      %v2019 = vadd.f32 %v1841, %v2018
      %2020 = vmatmul.f32.gmra.mxu0 %v921
      %v2021 = vpop.f32.mrf.mxu0
      %v2022 = vadd.f32 %v1844, %v2021
      %2023 = vmatmul.f32.gmra.mxu0 %v924
      %v2024 = vpop.f32.mrf.mxu0
      %v2025 = vadd.f32 %v1847, %v2024
      %2026 = vmatmul.f32.gmra.mxu0 %v927
      %v2027 = vpop.f32.mrf.mxu0
      %v2028 = vadd.f32 %v1850, %v2027
      %2029 = vmatmul.f32.gmra.mxu0 %v930
      %v2030 = vpop.f32.mrf.mxu0
      %v2031 = vadd.f32 %v1853, %v2030
      %2032 = vmatmul.f32.gmra.mxu0 %v933
      %v2033 = vpop.f32.mrf.mxu0
      %v2034 = vadd.f32 %v1856, %v2033
      %2035 = vmatmul.f32.gmra.mxu0 %v936
      %v2036 = vpop.f32.mrf.mxu0
      %v2037 = vadd.f32 %v1859, %v2036
      %2038 = vmatmul.f32.gmra.mxu0 %v939
      %v2039 = vpop.f32.mrf.mxu0
      %v2040 = vadd.f32 %v1862, %v2039
      %2041 = vmatmul.f32.gmra.mxu0 %v942
      %v2042 = vpop.f32.mrf.mxu0
      %v2043 = vadd.f32 %v1865, %v2042
      %2044 = vmatmul.f32.gmra.mxu0 %v945
      %v2045 = vpop.f32.mrf.mxu0
      %v2046 = vadd.f32 %v1868, %v2045
      %2047 = vmatmul.f32.gmra.mxu0 %v948
      %v2048 = vpop.f32.mrf.mxu0
      %v2049 = vadd.f32 %v1871, %v2048
      %2050 = vmatmul.f32.gmra.mxu0 %v951
      %v2051 = vpop.f32.mrf.mxu0
      %v2052 = vadd.f32 %v1874, %v2051
      %2053 = vmatmul.f32.gmra.mxu0 %v954
      %v2054 = vpop.f32.mrf.mxu0
      %v2055 = vadd.f32 %v1877, %v2054
      %2056 = vmatmul.f32.gmra.mxu0 %v957
      %v2057 = vpop.f32.mrf.mxu0
      %v2058 = vadd.f32 %v1880, %v2057
      %2059 = vmatmul.f32.gmra.mxu0 %v960
      %v2060 = vpop.f32.mrf.mxu0
      %v2061 = vadd.f32 %v1883, %v2060
      %2062 = vmatmul.f32.gmra.mxu0 %v963
      %v2063 = vpop.f32.mrf.mxu0
      %v2064 = vadd.f32 %v1886, %v2063
      %2065 = vmatmul.f32.gmra.mxu0 %v966
      %v2066 = vpop.f32.mrf.mxu0
      %v2067 = vadd.f32 %v1889, %v2066
      %2068 = vmatmul.f32.gmra.mxu0 %v969
      %v2069 = vpop.f32.mrf.mxu0
      %v2070 = vadd.f32 %v1892, %v2069
      %2071 = vmatmul.f32.gmra.mxu0 %v972
      %v2072 = vpop.f32.mrf.mxu0
      %v2073 = vadd.f32 %v1895, %v2072
      %2074 = vmatmul.f32.gmra.mxu0 %v975
      %v2075 = vpop.f32.mrf.mxu0
      %v2076 = vadd.f32 %v1898, %v2075
      %2077 = vmatmul.f32.gmra.mxu0 %v978
      %v2078 = vpop.f32.mrf.mxu0
      %v2079 = vadd.f32 %v1901, %v2078
      %2080 = vmatmul.f32.gmra.mxu0 %v981
      %v2081 = vpop.f32.mrf.mxu0
      %v2082 = vadd.f32 %v1904, %v2081
      %2083 = vmatmul.f32.gmra.mxu0 %v984
      %v2084 = vpop.f32.mrf.mxu0
      %v2085 = vadd.f32 %v1907, %v2084
      %2086 = vmatmul.f32.gmra.mxu0 %v987
      %v2087 = vpop.f32.mrf.mxu0
      %v2088 = vadd.f32 %v1910, %v2087
      %2089 = vmatmul.f32.gmra.mxu0 %v990
      %v2090 = vpop.f32.mrf.mxu0
      %v2091 = vadd.f32 %v1913, %v2090
      %2092 = vmatmul.f32.gmra.mxu0 %v993
      %v2093 = vpop.f32.mrf.mxu0
      %v2094 = vadd.f32 %v1916, %v2093
      %2095 = vmatmul.f32.gmra.mxu0 %v996
      %v2096 = vpop.f32.mrf.mxu0
      %v2097 = vadd.f32 %v1919, %v2096
      %2098 = vmatmul.f32.gmra.mxu0 %v999
      %v2099 = vpop.f32.mrf.mxu0
      %v2100 = vadd.f32 %v1922, %v2099
      %2101 = vmatmul.f32.gmra.mxu0 %v1002
      %v2102 = vpop.f32.mrf.mxu0
      %v2103 = vadd.f32 %v1925, %v2102
      %2104 = vmatmul.f32.gmra.mxu0 %v1005
      %v2105 = vpop.f32.mrf.mxu0
      %v2106 = vadd.f32 %v1928, %v2105
      %2107 = vmatmul.f32.gmra.mxu0 %v1008
      %v2108 = vpop.f32.mrf.mxu0
      %v2109 = vadd.f32 %v1931, %v2108
      %2110 = vmatmul.f32.gmra.mxu0 %v1011
      %v2111 = vpop.f32.mrf.mxu0
      %2112 = vmatmul.f32.gmra.mxu0 %v1014
      %v2113 = vpop.f32.mrf.mxu0
      %2114 = vmatmul.f32.gmra.mxu0 %v1017
      %v2115 = vpop.f32.mrf.mxu0
      %2116 = vmatmul.f32.gmra.mxu0 %v1020
      %v2117 = vpop.f32.mrf.mxu0
      %2118 = vmatmul.f32.gmra.mxu0 %v1023
      %v2119 = vpop.f32.mrf.mxu0
      %2120 = vmatmul.f32.gmra.mxu0 %v1026
      %v2121 = vpop.f32.mrf.mxu0
      %2122 = vmatmul.f32.gmra.mxu0 %v1029
      %v2123 = vpop.f32.mrf.mxu0
      %2124 = vdwg.mxu0
      %vm2173 = vcmask 1045504
      %v2174 = vrot.slane %v1968, 2
      %v2175 = vrot.slane %v1971, 2
      %v2176 = vsel %vm2173, %v2174, %v2175
      %v2177 = vrot.slane %v1974, 2
      %v2178 = vsel %vm2173, %v2175, %v2177
      %v2179 = vrot.slane %v1977, 2
      %v2180 = vrot.slane %v1980, 2
      %v2181 = vsel %vm2173, %v2179, %v2180
      %v2182 = vrot.slane %v1983, 2
      %v2183 = vsel %vm2173, %v2180, %v2182
      %v2184 = vrot.slane %v1986, 2
      %v2185 = vrot.slane %v1989, 2
      %v2186 = vsel %vm2173, %v2184, %v2185
      %v2187 = vrot.slane %v1992, 2
      %v2188 = vsel %vm2173, %v2185, %v2187
      %v2189 = vrot.slane %v1995, 2
      %v2190 = vrot.slane %v1998, 2
      %v2191 = vsel %vm2173, %v2189, %v2190
      %v2192 = vrot.slane %v2001, 2
      %v2193 = vsel %vm2173, %v2190, %v2192
      %v2194 = vrot.slane %v2004, 2
      %v2195 = vrot.slane %v2007, 2
      %v2196 = vsel %vm2173, %v2194, %v2195
      %v2197 = vrot.slane %v2010, 2
      %v2198 = vsel %vm2173, %v2195, %v2197
      %v2199 = vrot.slane %v2013, 2
      %v2200 = vrot.slane %v2016, 2
      %v2201 = vsel %vm2173, %v2199, %v2200
      %v2202 = vrot.slane %v2019, 2
      %v2203 = vsel %vm2173, %v2200, %v2202
      %v2204 = vrot.slane %v2022, 2
      %v2205 = vrot.slane %v2025, 2
      %v2206 = vsel %vm2173, %v2204, %v2205
      %v2207 = vrot.slane %v2028, 2
      %v2208 = vsel %vm2173, %v2205, %v2207
      %v2209 = vrot.slane %v2031, 2
      %v2210 = vrot.slane %v2034, 2
      %v2211 = vsel %vm2173, %v2209, %v2210
      %v2212 = vrot.slane %v2037, 2
      %v2213 = vsel %vm2173, %v2210, %v2212
      %v2214 = vrot.slane %v2040, 2
      %v2215 = vrot.slane %v2043, 2
      %v2216 = vsel %vm2173, %v2214, %v2215
      %v2217 = vrot.slane %v2046, 2
      %v2218 = vsel %vm2173, %v2215, %v2217
      %v2219 = vrot.slane %v2049, 2
      %v2220 = vrot.slane %v2052, 2
      %v2221 = vsel %vm2173, %v2219, %v2220
      %v2222 = vrot.slane %v2055, 2
      %v2223 = vsel %vm2173, %v2220, %v2222
      %v2224 = vrot.slane %v2058, 2
      %v2225 = vrot.slane %v2061, 2
      %v2226 = vsel %vm2173, %v2224, %v2225
      %v2227 = vrot.slane %v2064, 2
      %v2228 = vsel %vm2173, %v2225, %v2227
      %v2229 = vrot.slane %v2067, 2
      %v2230 = vrot.slane %v2070, 2
      %v2231 = vsel %vm2173, %v2229, %v2230
      %v2232 = vrot.slane %v2073, 2
      %v2233 = vsel %vm2173, %v2230, %v2232
      %v2234 = vrot.slane %v2076, 2
      %v2235 = vrot.slane %v2079, 2
      %v2236 = vsel %vm2173, %v2234, %v2235
      %v2237 = vrot.slane %v2082, 2
      %v2238 = vsel %vm2173, %v2235, %v2237
      %v2239 = vrot.slane %v2085, 2
      %v2240 = vrot.slane %v2088, 2
      %v2241 = vsel %vm2173, %v2239, %v2240
      %v2242 = vrot.slane %v2091, 2
      %v2243 = vsel %vm2173, %v2240, %v2242
      %v2244 = vrot.slane %v2094, 2
      %v2245 = vrot.slane %v2097, 2
      %v2246 = vsel %vm2173, %v2244, %v2245
      %v2247 = vrot.slane %v2100, 2
      %v2248 = vsel %vm2173, %v2245, %v2247
      %v2249 = vrot.slane %v2103, 2
      %v2250 = vrot.slane %v2106, 2
      %v2251 = vsel %vm2173, %v2249, %v2250
      %v2252 = vrot.slane %v2109, 2
      %v2253 = vsel %vm2173, %v2250, %v2252
      %v2286 = vadd.f32 %v1740, %v2176
      %v2287 = vadd.f32 %v1741, %v2178
      %v2288 = vadd.f32 %v1742, %v2181
      %v2289 = vadd.f32 %v1743, %v2183
      %v2290 = vadd.f32 %v1744, %v2186
      %v2291 = vadd.f32 %v1745, %v2188
      %v2292 = vadd.f32 %v1746, %v2191
      %v2293 = vadd.f32 %v1747, %v2193
      %v2294 = vadd.f32 %v1748, %v2196
      %v2295 = vadd.f32 %v1749, %v2198
      %v2296 = vadd.f32 %v1750, %v2201
      %v2297 = vadd.f32 %v1751, %v2203
      %v2298 = vadd.f32 %v1752, %v2206
      %v2299 = vadd.f32 %v1753, %v2208
      %v2300 = vadd.f32 %v1754, %v2211
      %v2301 = vadd.f32 %v1755, %v2213
      %v2302 = vadd.f32 %v1756, %v2216
      %v2303 = vadd.f32 %v1757, %v2218
      %v2304 = vadd.f32 %v1758, %v2221
      %v2305 = vadd.f32 %v1759, %v2223
      %v2306 = vadd.f32 %v1760, %v2226
      %v2307 = vadd.f32 %v1761, %v2228
      %v2308 = vadd.f32 %v1762, %v2231
      %v2309 = vadd.f32 %v1763, %v2233
      %v2310 = vadd.f32 %v1764, %v2236
      %v2311 = vadd.f32 %v1765, %v2238
      %v2312 = vadd.f32 %v1766, %v2241
      %v2313 = vadd.f32 %v1767, %v2243
      %v2314 = vadd.f32 %v1768, %v2246
      %v2315 = vadd.f32 %v1769, %v2248
      %v2316 = vadd.f32 %v1770, %v2251
      %v2317 = vadd.f32 %v1771, %v2253
      %2318 = vmatpush.msra.mxu0 0.0
      %2319 = vmatpush.msra.mxu0 0.0
      %2320 = vmatpush.msra.mxu0 0.0
      %2321 = vmatpush.msra.mxu0 0.0
      %2322 = vmatpush.msra.mxu0 0.0
      %2323 = vmatpush.msra.mxu0 0.0
      %2324 = vmatpush.msra.mxu0 0.0
      %2325 = vmatpush.msra.mxu0 0.0
      %2326 = vmatpush.msra.mxu0 0.0
      %2327 = vmatpush.msra.mxu0 %v504
      %2328 = vmatpush.msra.mxu0 %v503
      %2329 = vmatpush.msra.mxu0 %v502
      %2330 = vmatpush.msra.mxu0 %v501
      %2331 = vmatpush.msra.mxu0 %v500
      %2332 = vmatpush.msra.mxu0 %v499
      %2333 = vmatpush.msra.mxu0 %v498
      %2334 = vmatmul.f32.gmra.mxu0 %v542
      %v2335 = vpop.f32.mrf.mxu0
      %2336 = vmatmul.f32.gmra.mxu0 %v545
      %v2337 = vpop.f32.mrf.mxu0
      %2338 = vmatmul.f32.gmra.mxu0 %v548
      %v2339 = vpop.f32.mrf.mxu0
      %2340 = vmatmul.f32.gmra.mxu0 %v551
      %v2341 = vpop.f32.mrf.mxu0
      %v2342 = vadd.f32 0.0, %v2341
      %2343 = vmatmul.f32.gmra.mxu0 %v554
      %v2344 = vpop.f32.mrf.mxu0
      %v2345 = vadd.f32 0.0, %v2344
      %2346 = vmatmul.f32.gmra.mxu0 %v557
      %v2347 = vpop.f32.mrf.mxu0
      %2348 = vmatmul.f32.gmra.mxu0 %v560
      %v2349 = vpop.f32.mrf.mxu0
      %v2350 = vadd.f32 0.0, %v2349
      %2351 = vmatmul.f32.gmra.mxu0 %v563
      %v2352 = vpop.f32.mrf.mxu0
      %v2353 = vadd.f32 0.0, %v2352
      %2354 = vmatmul.f32.gmra.mxu0 %v566
      %v2355 = vpop.f32.mrf.mxu0
      %2356 = vmatmul.f32.gmra.mxu0 %v569
      %v2357 = vpop.f32.mrf.mxu0
      %v2358 = vadd.f32 0.0, %v2357
      %2359 = vmatmul.f32.gmra.mxu0 %v572
      %v2360 = vpop.f32.mrf.mxu0
      %v2361 = vadd.f32 0.0, %v2360
      %2362 = vmatmul.f32.gmra.mxu0 %v575
      %v2363 = vpop.f32.mrf.mxu0
      %2364 = vmatmul.f32.gmra.mxu0 %v578
      %v2365 = vpop.f32.mrf.mxu0
      %v2366 = vadd.f32 0.0, %v2365
      %2367 = vmatmul.f32.gmra.mxu0 %v581
      %v2368 = vpop.f32.mrf.mxu0
      %v2369 = vadd.f32 0.0, %v2368
      %2370 = vmatmul.f32.gmra.mxu0 %v584
      %v2371 = vpop.f32.mrf.mxu0
      %2372 = vmatmul.f32.gmra.mxu0 %v587
      %v2373 = vpop.f32.mrf.mxu0
      %v2374 = vadd.f32 0.0, %v2373
      %2375 = vmatmul.f32.gmra.mxu0 %v590
      %v2376 = vpop.f32.mrf.mxu0
      %v2377 = vadd.f32 0.0, %v2376
      %2378 = vmatmul.f32.gmra.mxu0 %v593
      %v2379 = vpop.f32.mrf.mxu0
      %2380 = vmatmul.f32.gmra.mxu0 %v596
      %v2381 = vpop.f32.mrf.mxu0
      %v2382 = vadd.f32 0.0, %v2381
      %2383 = vmatmul.f32.gmra.mxu0 %v599
      %v2384 = vpop.f32.mrf.mxu0
      %v2385 = vadd.f32 0.0, %v2384
      %2386 = vmatmul.f32.gmra.mxu0 %v602
      %v2387 = vpop.f32.mrf.mxu0
      %2388 = vmatmul.f32.gmra.mxu0 %v605
      %v2389 = vpop.f32.mrf.mxu0
      %v2390 = vadd.f32 0.0, %v2389
      %2391 = vmatmul.f32.gmra.mxu0 %v608
      %v2392 = vpop.f32.mrf.mxu0
      %v2393 = vadd.f32 0.0, %v2392
      %2394 = vmatmul.f32.gmra.mxu0 %v611
      %v2395 = vpop.f32.mrf.mxu0
      %2396 = vmatmul.f32.gmra.mxu0 %v614
      %v2397 = vpop.f32.mrf.mxu0
      %v2398 = vadd.f32 0.0, %v2397
      %2399 = vmatmul.f32.gmra.mxu0 %v617
      %v2400 = vpop.f32.mrf.mxu0
      %v2401 = vadd.f32 0.0, %v2400
      %2402 = vmatmul.f32.gmra.mxu0 %v620
      %v2403 = vpop.f32.mrf.mxu0
      %2404 = vmatmul.f32.gmra.mxu0 %v623
      %v2405 = vpop.f32.mrf.mxu0
      %v2406 = vadd.f32 0.0, %v2405
      %2407 = vmatmul.f32.gmra.mxu0 %v626
      %v2408 = vpop.f32.mrf.mxu0
      %v2409 = vadd.f32 0.0, %v2408
      %2410 = vmatmul.f32.gmra.mxu0 %v629
      %v2411 = vpop.f32.mrf.mxu0
      %2412 = vmatmul.f32.gmra.mxu0 %v632
      %v2413 = vpop.f32.mrf.mxu0
      %v2414 = vadd.f32 0.0, %v2413
      %2415 = vmatmul.f32.gmra.mxu0 %v635
      %v2416 = vpop.f32.mrf.mxu0
      %v2417 = vadd.f32 0.0, %v2416
      %2418 = vmatmul.f32.gmra.mxu0 %v638
      %v2419 = vpop.f32.mrf.mxu0
      %2420 = vmatmul.f32.gmra.mxu0 %v641
      %v2421 = vpop.f32.mrf.mxu0
      %v2422 = vadd.f32 0.0, %v2421
      %2423 = vmatmul.f32.gmra.mxu0 %v644
      %v2424 = vpop.f32.mrf.mxu0
      %v2425 = vadd.f32 0.0, %v2424
      %2426 = vmatmul.f32.gmra.mxu0 %v647
      %v2427 = vpop.f32.mrf.mxu0
      %2428 = vmatmul.f32.gmra.mxu0 %v650
      %v2429 = vpop.f32.mrf.mxu0
      %v2430 = vadd.f32 0.0, %v2429
      %2431 = vmatmul.f32.gmra.mxu0 %v653
      %v2432 = vpop.f32.mrf.mxu0
      %v2433 = vadd.f32 0.0, %v2432
      %2434 = vmatmul.f32.gmra.mxu0 %v656
      %v2435 = vpop.f32.mrf.mxu0
      %2436 = vmatmul.f32.gmra.mxu0 %v659
      %v2437 = vpop.f32.mrf.mxu0
      %v2438 = vadd.f32 0.0, %v2437
      %2439 = vmatmul.f32.gmra.mxu0 %v662
      %v2440 = vpop.f32.mrf.mxu0
      %v2441 = vadd.f32 0.0, %v2440
      %2442 = vmatmul.f32.gmra.mxu0 %v665
      %v2443 = vpop.f32.mrf.mxu0
      %2444 = vmatmul.f32.gmra.mxu0 %v668
      %v2445 = vpop.f32.mrf.mxu0
      %v2446 = vadd.f32 0.0, %v2445
      %2447 = vmatmul.f32.gmra.mxu0 %v671
      %v2448 = vpop.f32.mrf.mxu0
      %v2449 = vadd.f32 0.0, %v2448
      %2450 = vmatmul.f32.gmra.mxu0 %v674
      %v2451 = vpop.f32.mrf.mxu0
      %2452 = vmatmul.f32.gmra.mxu0 %v677
      %v2453 = vpop.f32.mrf.mxu0
      %v2454 = vadd.f32 0.0, %v2453
      %2455 = vmatmul.f32.gmra.mxu0 %v680
      %v2456 = vpop.f32.mrf.mxu0
      %v2457 = vadd.f32 0.0, %v2456
      %2458 = vmatmul.f32.gmra.mxu0 %v683
      %v2459 = vpop.f32.mrf.mxu0
      %2460 = vmatmul.f32.gmra.mxu0 %v686
      %v2461 = vpop.f32.mrf.mxu0
      %v2462 = vadd.f32 0.0, %v2461
      %2463 = vmatmul.f32.gmra.mxu0 %v689
      %v2464 = vpop.f32.mrf.mxu0
      %v2465 = vadd.f32 0.0, %v2464
      %2466 = vmatmul.f32.gmra.mxu0 %v692
      %v2467 = vpop.f32.mrf.mxu0
      %2468 = vmatmul.f32.gmra.mxu0 %v695
      %v2469 = vpop.f32.mrf.mxu0
      %2470 = vmatmul.f32.gmra.mxu0 %v698
      %v2471 = vpop.f32.mrf.mxu0
      %2472 = vmatmul.f32.gmra.mxu0 %v701
      %v2473 = vpop.f32.mrf.mxu0
      %2474 = vmatmul.f32.gmra.mxu0 %v704
      %v2475 = vpop.f32.mrf.mxu0
      %2476 = vdwg.mxu0
      %v2478 = vsel %vm1031, %v471, 0
      %2480 = vmatpush.msra.mxu0 0.0
      %2481 = vmatpush.msra.mxu0 0.0
      %2482 = vmatpush.msra.mxu0 0.0
      %2483 = vmatpush.msra.mxu0 0.0
      %2484 = vmatpush.msra.mxu0 0.0
      %2485 = vmatpush.msra.mxu0 0.0
      %2486 = vmatpush.msra.mxu0 0.0
      %2487 = vmatpush.msra.mxu0 0.0
      %2488 = vmatpush.msra.mxu0 0.0
      %2489 = vmatpush.msra.mxu0 0.0
      %2490 = vmatpush.msra.mxu0 0.0
      %2491 = vmatpush.msra.mxu0 0.0
      %2492 = vmatpush.msra.mxu0 0.0
      %2493 = vmatpush.msra.mxu0 0.0
      %2494 = vmatpush.msra.mxu0 0.0
      %2495 = vmatpush.msra.mxu0 %v2478
      %2496 = vmatmul.f32.gmra.mxu0 %v867
      %v2497 = vpop.f32.mrf.mxu0
      %2498 = vmatmul.f32.gmra.mxu0 %v870
      %v2499 = vpop.f32.mrf.mxu0
      %2500 = vmatmul.f32.gmra.mxu0 %v873
      %v2501 = vpop.f32.mrf.mxu0
      %2502 = vmatmul.f32.gmra.mxu0 %v876
      %v2503 = vpop.f32.mrf.mxu0
      %v2504 = vadd.f32 %v2342, %v2503
      %2505 = vmatmul.f32.gmra.mxu0 %v879
      %v2506 = vpop.f32.mrf.mxu0
      %v2507 = vadd.f32 %v2345, %v2506
      %2508 = vmatmul.f32.gmra.mxu0 %v882
      %v2509 = vpop.f32.mrf.mxu0
      %2510 = vmatmul.f32.gmra.mxu0 %v885
      %v2511 = vpop.f32.mrf.mxu0
      %v2512 = vadd.f32 %v2350, %v2511
      %2513 = vmatmul.f32.gmra.mxu0 %v888
      %v2514 = vpop.f32.mrf.mxu0
      %v2515 = vadd.f32 %v2353, %v2514
      %2516 = vmatmul.f32.gmra.mxu0 %v891
      %v2517 = vpop.f32.mrf.mxu0
      %2518 = vmatmul.f32.gmra.mxu0 %v894
      %v2519 = vpop.f32.mrf.mxu0
      %v2520 = vadd.f32 %v2358, %v2519
      %2521 = vmatmul.f32.gmra.mxu0 %v897
      %v2522 = vpop.f32.mrf.mxu0
      %v2523 = vadd.f32 %v2361, %v2522
      %2524 = vmatmul.f32.gmra.mxu0 %v900
      %v2525 = vpop.f32.mrf.mxu0
      %2526 = vmatmul.f32.gmra.mxu0 %v903
      %v2527 = vpop.f32.mrf.mxu0
      %v2528 = vadd.f32 %v2366, %v2527
      %2529 = vmatmul.f32.gmra.mxu0 %v906
      %v2530 = vpop.f32.mrf.mxu0
      %v2531 = vadd.f32 %v2369, %v2530
      %2532 = vmatmul.f32.gmra.mxu0 %v909
      %v2533 = vpop.f32.mrf.mxu0
      %2534 = vmatmul.f32.gmra.mxu0 %v912
      %v2535 = vpop.f32.mrf.mxu0
      %v2536 = vadd.f32 %v2374, %v2535
      %2537 = vmatmul.f32.gmra.mxu0 %v915
      %v2538 = vpop.f32.mrf.mxu0
      %v2539 = vadd.f32 %v2377, %v2538
      %2540 = vmatmul.f32.gmra.mxu0 %v918
      %v2541 = vpop.f32.mrf.mxu0
      %2542 = vmatmul.f32.gmra.mxu0 %v921
      %v2543 = vpop.f32.mrf.mxu0
      %v2544 = vadd.f32 %v2382, %v2543
      %2545 = vmatmul.f32.gmra.mxu0 %v924
      %v2546 = vpop.f32.mrf.mxu0
      %v2547 = vadd.f32 %v2385, %v2546
      %2548 = vmatmul.f32.gmra.mxu0 %v927
      %v2549 = vpop.f32.mrf.mxu0
      %2550 = vmatmul.f32.gmra.mxu0 %v930
      %v2551 = vpop.f32.mrf.mxu0
      %v2552 = vadd.f32 %v2390, %v2551
      %2553 = vmatmul.f32.gmra.mxu0 %v933
      %v2554 = vpop.f32.mrf.mxu0
      %v2555 = vadd.f32 %v2393, %v2554
      %2556 = vmatmul.f32.gmra.mxu0 %v936
      %v2557 = vpop.f32.mrf.mxu0
      %2558 = vmatmul.f32.gmra.mxu0 %v939
      %v2559 = vpop.f32.mrf.mxu0
      %v2560 = vadd.f32 %v2398, %v2559
      %2561 = vmatmul.f32.gmra.mxu0 %v942
      %v2562 = vpop.f32.mrf.mxu0
      %v2563 = vadd.f32 %v2401, %v2562
      %2564 = vmatmul.f32.gmra.mxu0 %v945
      %v2565 = vpop.f32.mrf.mxu0
      %2566 = vmatmul.f32.gmra.mxu0 %v948
      %v2567 = vpop.f32.mrf.mxu0
      %v2568 = vadd.f32 %v2406, %v2567
      %2569 = vmatmul.f32.gmra.mxu0 %v951
      %v2570 = vpop.f32.mrf.mxu0
      %v2571 = vadd.f32 %v2409, %v2570
      %2572 = vmatmul.f32.gmra.mxu0 %v954
      %v2573 = vpop.f32.mrf.mxu0
      %2574 = vmatmul.f32.gmra.mxu0 %v957
      %v2575 = vpop.f32.mrf.mxu0
      %v2576 = vadd.f32 %v2414, %v2575
      %2577 = vmatmul.f32.gmra.mxu0 %v960
      %v2578 = vpop.f32.mrf.mxu0
      %v2579 = vadd.f32 %v2417, %v2578
      %2580 = vmatmul.f32.gmra.mxu0 %v963
      %v2581 = vpop.f32.mrf.mxu0
      %2582 = vmatmul.f32.gmra.mxu0 %v966
      %v2583 = vpop.f32.mrf.mxu0
      %v2584 = vadd.f32 %v2422, %v2583
      %2585 = vmatmul.f32.gmra.mxu0 %v969
      %v2586 = vpop.f32.mrf.mxu0
      %v2587 = vadd.f32 %v2425, %v2586
      %2588 = vmatmul.f32.gmra.mxu0 %v972
      %v2589 = vpop.f32.mrf.mxu0
      %2590 = vmatmul.f32.gmra.mxu0 %v975
      %v2591 = vpop.f32.mrf.mxu0
      %v2592 = vadd.f32 %v2430, %v2591
      %2593 = vmatmul.f32.gmra.mxu0 %v978
      %v2594 = vpop.f32.mrf.mxu0
      %v2595 = vadd.f32 %v2433, %v2594
      %2596 = vmatmul.f32.gmra.mxu0 %v981
      %v2597 = vpop.f32.mrf.mxu0
      %2598 = vmatmul.f32.gmra.mxu0 %v984
      %v2599 = vpop.f32.mrf.mxu0
      %v2600 = vadd.f32 %v2438, %v2599
      %2601 = vmatmul.f32.gmra.mxu0 %v987
      %v2602 = vpop.f32.mrf.mxu0
      %v2603 = vadd.f32 %v2441, %v2602
      %2604 = vmatmul.f32.gmra.mxu0 %v990
      %v2605 = vpop.f32.mrf.mxu0
      %2606 = vmatmul.f32.gmra.mxu0 %v993
      %v2607 = vpop.f32.mrf.mxu0
      %v2608 = vadd.f32 %v2446, %v2607
      %2609 = vmatmul.f32.gmra.mxu0 %v996
      %v2610 = vpop.f32.mrf.mxu0
      %v2611 = vadd.f32 %v2449, %v2610
      %2612 = vmatmul.f32.gmra.mxu0 %v999
      %v2613 = vpop.f32.mrf.mxu0
      %2614 = vmatmul.f32.gmra.mxu0 %v1002
      %v2615 = vpop.f32.mrf.mxu0
      %v2616 = vadd.f32 %v2454, %v2615
      %2617 = vmatmul.f32.gmra.mxu0 %v1005
      %v2618 = vpop.f32.mrf.mxu0
      %v2619 = vadd.f32 %v2457, %v2618
      %2620 = vmatmul.f32.gmra.mxu0 %v1008
      %v2621 = vpop.f32.mrf.mxu0
      %2622 = vmatmul.f32.gmra.mxu0 %v1011
      %v2623 = vpop.f32.mrf.mxu0
      %v2624 = vadd.f32 %v2462, %v2623
      %2625 = vmatmul.f32.gmra.mxu0 %v1014
      %v2626 = vpop.f32.mrf.mxu0
      %v2627 = vadd.f32 %v2465, %v2626
      %2628 = vmatmul.f32.gmra.mxu0 %v1017
      %v2629 = vpop.f32.mrf.mxu0
      %2630 = vmatmul.f32.gmra.mxu0 %v1020
      %v2631 = vpop.f32.mrf.mxu0
      %2632 = vmatmul.f32.gmra.mxu0 %v1023
      %v2633 = vpop.f32.mrf.mxu0
      %2634 = vmatmul.f32.gmra.mxu0 %v1026
      %v2635 = vpop.f32.mrf.mxu0
      %2636 = vmatmul.f32.gmra.mxu0 %v1029
      %v2637 = vpop.f32.mrf.mxu0
      %2638 = vdwg.mxu0
      %v2639 = vadd.f32 %v2286, %v2504
      %v2640 = vadd.f32 %v2287, %v2507
      %v2641 = vadd.f32 %v2288, %v2512
      %v2642 = vadd.f32 %v2289, %v2515
      %v2643 = vadd.f32 %v2290, %v2520
      %v2644 = vadd.f32 %v2291, %v2523
      %v2645 = vadd.f32 %v2292, %v2528
      %v2646 = vadd.f32 %v2293, %v2531
      %v2647 = vadd.f32 %v2294, %v2536
      %v2648 = vadd.f32 %v2295, %v2539
      %v2649 = vadd.f32 %v2296, %v2544
      %v2650 = vadd.f32 %v2297, %v2547
      %v2651 = vadd.f32 %v2298, %v2552
      %v2652 = vadd.f32 %v2299, %v2555
      %v2653 = vadd.f32 %v2300, %v2560
      %v2654 = vadd.f32 %v2301, %v2563
      %v2655 = vadd.f32 %v2302, %v2568
      %v2656 = vadd.f32 %v2303, %v2571
      %v2657 = vadd.f32 %v2304, %v2576
      %v2658 = vadd.f32 %v2305, %v2579
      %v2659 = vadd.f32 %v2306, %v2584
      %v2660 = vadd.f32 %v2307, %v2587
      %v2661 = vadd.f32 %v2308, %v2592
      %v2662 = vadd.f32 %v2309, %v2595
      %v2663 = vadd.f32 %v2310, %v2600
      %v2664 = vadd.f32 %v2311, %v2603
      %v2665 = vadd.f32 %v2312, %v2608
      %v2666 = vadd.f32 %v2313, %v2611
      %v2667 = vadd.f32 %v2314, %v2616
      %v2668 = vadd.f32 %v2315, %v2619
      %v2669 = vadd.f32 %v2316, %v2624
      %v2670 = vadd.f32 %v2317, %v2627
      %2671 = vmatpush.msra.mxu0 0.0
      %2672 = vmatpush.msra.mxu0 0.0
      %2673 = vmatpush.msra.mxu0 0.0
      %2674 = vmatpush.msra.mxu0 0.0
      %2675 = vmatpush.msra.mxu0 0.0
      %2676 = vmatpush.msra.mxu0 0.0
      %2677 = vmatpush.msra.mxu0 0.0
      %2678 = vmatpush.msra.mxu0 0.0
      %2679 = vmatpush.msra.mxu0 0.0
      %2680 = vmatpush.msra.mxu0 %v511
      %2681 = vmatpush.msra.mxu0 %v510
      %2682 = vmatpush.msra.mxu0 %v509
      %2683 = vmatpush.msra.mxu0 %v508
      %2684 = vmatpush.msra.mxu0 %v507
      %2685 = vmatpush.msra.mxu0 %v506
      %2686 = vmatpush.msra.mxu0 %v505
      %2687 = vmatmul.f32.gmra.mxu0 %v542
      %v2688 = vpop.f32.mrf.mxu0
      %2689 = vmatmul.f32.gmra.mxu0 %v545
      %v2690 = vpop.f32.mrf.mxu0
      %2691 = vmatmul.f32.gmra.mxu0 %v548
      %v2692 = vpop.f32.mrf.mxu0
      %2693 = vmatmul.f32.gmra.mxu0 %v551
      %v2694 = vpop.f32.mrf.mxu0
      %v2695 = vadd.f32 0.0, %v2694
      %2696 = vmatmul.f32.gmra.mxu0 %v554
      %v2697 = vpop.f32.mrf.mxu0
      %v2698 = vadd.f32 0.0, %v2697
      %2699 = vmatmul.f32.gmra.mxu0 %v557
      %v2700 = vpop.f32.mrf.mxu0
      %v2701 = vadd.f32 0.0, %v2700
      %2702 = vmatmul.f32.gmra.mxu0 %v560
      %v2703 = vpop.f32.mrf.mxu0
      %v2704 = vadd.f32 0.0, %v2703
      %2705 = vmatmul.f32.gmra.mxu0 %v563
      %v2706 = vpop.f32.mrf.mxu0
      %v2707 = vadd.f32 0.0, %v2706
      %2708 = vmatmul.f32.gmra.mxu0 %v566
      %v2709 = vpop.f32.mrf.mxu0
      %v2710 = vadd.f32 0.0, %v2709
      %2711 = vmatmul.f32.gmra.mxu0 %v569
      %v2712 = vpop.f32.mrf.mxu0
      %v2713 = vadd.f32 0.0, %v2712
      %2714 = vmatmul.f32.gmra.mxu0 %v572
      %v2715 = vpop.f32.mrf.mxu0
      %v2716 = vadd.f32 0.0, %v2715
      %2717 = vmatmul.f32.gmra.mxu0 %v575
      %v2718 = vpop.f32.mrf.mxu0
      %v2719 = vadd.f32 0.0, %v2718
      %2720 = vmatmul.f32.gmra.mxu0 %v578
      %v2721 = vpop.f32.mrf.mxu0
      %v2722 = vadd.f32 0.0, %v2721
      %2723 = vmatmul.f32.gmra.mxu0 %v581
      %v2724 = vpop.f32.mrf.mxu0
      %v2725 = vadd.f32 0.0, %v2724
      %2726 = vmatmul.f32.gmra.mxu0 %v584
      %v2727 = vpop.f32.mrf.mxu0
      %v2728 = vadd.f32 0.0, %v2727
      %2729 = vmatmul.f32.gmra.mxu0 %v587
      %v2730 = vpop.f32.mrf.mxu0
      %v2731 = vadd.f32 0.0, %v2730
      %2732 = vmatmul.f32.gmra.mxu0 %v590
      %v2733 = vpop.f32.mrf.mxu0
      %v2734 = vadd.f32 0.0, %v2733
      %2735 = vmatmul.f32.gmra.mxu0 %v593
      %v2736 = vpop.f32.mrf.mxu0
      %v2737 = vadd.f32 0.0, %v2736
      %2738 = vmatmul.f32.gmra.mxu0 %v596
      %v2739 = vpop.f32.mrf.mxu0
      %v2740 = vadd.f32 0.0, %v2739
      %2741 = vmatmul.f32.gmra.mxu0 %v599
      %v2742 = vpop.f32.mrf.mxu0
      %v2743 = vadd.f32 0.0, %v2742
      %2744 = vmatmul.f32.gmra.mxu0 %v602
      %v2745 = vpop.f32.mrf.mxu0
      %v2746 = vadd.f32 0.0, %v2745
      %2747 = vmatmul.f32.gmra.mxu0 %v605
      %v2748 = vpop.f32.mrf.mxu0
      %v2749 = vadd.f32 0.0, %v2748
      %2750 = vmatmul.f32.gmra.mxu0 %v608
      %v2751 = vpop.f32.mrf.mxu0
      %v2752 = vadd.f32 0.0, %v2751
      %2753 = vmatmul.f32.gmra.mxu0 %v611
      %v2754 = vpop.f32.mrf.mxu0
      %v2755 = vadd.f32 0.0, %v2754
      %2756 = vmatmul.f32.gmra.mxu0 %v614
      %v2757 = vpop.f32.mrf.mxu0
      %v2758 = vadd.f32 0.0, %v2757
      %2759 = vmatmul.f32.gmra.mxu0 %v617
      %v2760 = vpop.f32.mrf.mxu0
      %v2761 = vadd.f32 0.0, %v2760
      %2762 = vmatmul.f32.gmra.mxu0 %v620
      %v2763 = vpop.f32.mrf.mxu0
      %v2764 = vadd.f32 0.0, %v2763
      %2765 = vmatmul.f32.gmra.mxu0 %v623
      %v2766 = vpop.f32.mrf.mxu0
      %v2767 = vadd.f32 0.0, %v2766
      %2768 = vmatmul.f32.gmra.mxu0 %v626
      %v2769 = vpop.f32.mrf.mxu0
      %v2770 = vadd.f32 0.0, %v2769
      %2771 = vmatmul.f32.gmra.mxu0 %v629
      %v2772 = vpop.f32.mrf.mxu0
      %v2773 = vadd.f32 0.0, %v2772
      %2774 = vmatmul.f32.gmra.mxu0 %v632
      %v2775 = vpop.f32.mrf.mxu0
      %v2776 = vadd.f32 0.0, %v2775
      %2777 = vmatmul.f32.gmra.mxu0 %v635
      %v2778 = vpop.f32.mrf.mxu0
      %v2779 = vadd.f32 0.0, %v2778
      %2780 = vmatmul.f32.gmra.mxu0 %v638
      %v2781 = vpop.f32.mrf.mxu0
      %v2782 = vadd.f32 0.0, %v2781
      %2783 = vmatmul.f32.gmra.mxu0 %v641
      %v2784 = vpop.f32.mrf.mxu0
      %v2785 = vadd.f32 0.0, %v2784
      %2786 = vmatmul.f32.gmra.mxu0 %v644
      %v2787 = vpop.f32.mrf.mxu0
      %v2788 = vadd.f32 0.0, %v2787
      %2789 = vmatmul.f32.gmra.mxu0 %v647
      %v2790 = vpop.f32.mrf.mxu0
      %v2791 = vadd.f32 0.0, %v2790
      %2792 = vmatmul.f32.gmra.mxu0 %v650
      %v2793 = vpop.f32.mrf.mxu0
      %v2794 = vadd.f32 0.0, %v2793
      %2795 = vmatmul.f32.gmra.mxu0 %v653
      %v2796 = vpop.f32.mrf.mxu0
      %v2797 = vadd.f32 0.0, %v2796
      %2798 = vmatmul.f32.gmra.mxu0 %v656
      %v2799 = vpop.f32.mrf.mxu0
      %v2800 = vadd.f32 0.0, %v2799
      %2801 = vmatmul.f32.gmra.mxu0 %v659
      %v2802 = vpop.f32.mrf.mxu0
      %v2803 = vadd.f32 0.0, %v2802
      %2804 = vmatmul.f32.gmra.mxu0 %v662
      %v2805 = vpop.f32.mrf.mxu0
      %v2806 = vadd.f32 0.0, %v2805
      %2807 = vmatmul.f32.gmra.mxu0 %v665
      %v2808 = vpop.f32.mrf.mxu0
      %v2809 = vadd.f32 0.0, %v2808
      %2810 = vmatmul.f32.gmra.mxu0 %v668
      %v2811 = vpop.f32.mrf.mxu0
      %v2812 = vadd.f32 0.0, %v2811
      %2813 = vmatmul.f32.gmra.mxu0 %v671
      %v2814 = vpop.f32.mrf.mxu0
      %v2815 = vadd.f32 0.0, %v2814
      %2816 = vmatmul.f32.gmra.mxu0 %v674
      %v2817 = vpop.f32.mrf.mxu0
      %v2818 = vadd.f32 0.0, %v2817
      %2819 = vmatmul.f32.gmra.mxu0 %v677
      %v2820 = vpop.f32.mrf.mxu0
      %v2821 = vadd.f32 0.0, %v2820
      %2822 = vmatmul.f32.gmra.mxu0 %v680
      %v2823 = vpop.f32.mrf.mxu0
      %v2824 = vadd.f32 0.0, %v2823
      %2825 = vmatmul.f32.gmra.mxu0 %v683
      %v2826 = vpop.f32.mrf.mxu0
      %v2827 = vadd.f32 0.0, %v2826
      %2828 = vmatmul.f32.gmra.mxu0 %v686
      %v2829 = vpop.f32.mrf.mxu0
      %v2830 = vadd.f32 0.0, %v2829
      %2831 = vmatmul.f32.gmra.mxu0 %v689
      %v2832 = vpop.f32.mrf.mxu0
      %v2833 = vadd.f32 0.0, %v2832
      %2834 = vmatmul.f32.gmra.mxu0 %v692
      %v2835 = vpop.f32.mrf.mxu0
      %v2836 = vadd.f32 0.0, %v2835
      %2837 = vmatmul.f32.gmra.mxu0 %v695
      %v2838 = vpop.f32.mrf.mxu0
      %2839 = vmatmul.f32.gmra.mxu0 %v698
      %v2840 = vpop.f32.mrf.mxu0
      %2841 = vmatmul.f32.gmra.mxu0 %v701
      %v2842 = vpop.f32.mrf.mxu0
      %2843 = vmatmul.f32.gmra.mxu0 %v704
      %v2844 = vpop.f32.mrf.mxu0
      %2845 = vdwg.mxu0
      %v2847 = vsel %vm1031, %v472, 0
      %2849 = vmatpush.msra.mxu0 0.0
      %2850 = vmatpush.msra.mxu0 0.0
      %2851 = vmatpush.msra.mxu0 0.0
      %2852 = vmatpush.msra.mxu0 0.0
      %2853 = vmatpush.msra.mxu0 0.0
      %2854 = vmatpush.msra.mxu0 0.0
      %2855 = vmatpush.msra.mxu0 0.0
      %2856 = vmatpush.msra.mxu0 0.0
      %2857 = vmatpush.msra.mxu0 0.0
      %2858 = vmatpush.msra.mxu0 0.0
      %2859 = vmatpush.msra.mxu0 0.0
      %2860 = vmatpush.msra.mxu0 0.0
      %2861 = vmatpush.msra.mxu0 0.0
      %2862 = vmatpush.msra.mxu0 0.0
      %2863 = vmatpush.msra.mxu0 0.0
      %2864 = vmatpush.msra.mxu0 %v2847
      %2865 = vmatmul.f32.gmra.mxu0 %v867
      %v2866 = vpop.f32.mrf.mxu0
      %2867 = vmatmul.f32.gmra.mxu0 %v870
      %v2868 = vpop.f32.mrf.mxu0
      %2869 = vmatmul.f32.gmra.mxu0 %v873
      %v2870 = vpop.f32.mrf.mxu0
      %2871 = vmatmul.f32.gmra.mxu0 %v876
      %v2872 = vpop.f32.mrf.mxu0
      %v2873 = vadd.f32 %v2695, %v2872
      %2874 = vmatmul.f32.gmra.mxu0 %v879
      %v2875 = vpop.f32.mrf.mxu0
      %v2876 = vadd.f32 %v2698, %v2875
      %2877 = vmatmul.f32.gmra.mxu0 %v882
      %v2878 = vpop.f32.mrf.mxu0
      %v2879 = vadd.f32 %v2701, %v2878
      %2880 = vmatmul.f32.gmra.mxu0 %v885
      %v2881 = vpop.f32.mrf.mxu0
      %v2882 = vadd.f32 %v2704, %v2881
      %2883 = vmatmul.f32.gmra.mxu0 %v888
      %v2884 = vpop.f32.mrf.mxu0
      %v2885 = vadd.f32 %v2707, %v2884
      %2886 = vmatmul.f32.gmra.mxu0 %v891
      %v2887 = vpop.f32.mrf.mxu0
      %v2888 = vadd.f32 %v2710, %v2887
      %2889 = vmatmul.f32.gmra.mxu0 %v894
      %v2890 = vpop.f32.mrf.mxu0
      %v2891 = vadd.f32 %v2713, %v2890
      %2892 = vmatmul.f32.gmra.mxu0 %v897
      %v2893 = vpop.f32.mrf.mxu0
      %v2894 = vadd.f32 %v2716, %v2893
      %2895 = vmatmul.f32.gmra.mxu0 %v900
      %v2896 = vpop.f32.mrf.mxu0
      %v2897 = vadd.f32 %v2719, %v2896
      %2898 = vmatmul.f32.gmra.mxu0 %v903
      %v2899 = vpop.f32.mrf.mxu0
      %v2900 = vadd.f32 %v2722, %v2899
      %2901 = vmatmul.f32.gmra.mxu0 %v906
      %v2902 = vpop.f32.mrf.mxu0
      %v2903 = vadd.f32 %v2725, %v2902
      %2904 = vmatmul.f32.gmra.mxu0 %v909
      %v2905 = vpop.f32.mrf.mxu0
      %v2906 = vadd.f32 %v2728, %v2905
      %2907 = vmatmul.f32.gmra.mxu0 %v912
      %v2908 = vpop.f32.mrf.mxu0
      %v2909 = vadd.f32 %v2731, %v2908
      %2910 = vmatmul.f32.gmra.mxu0 %v915
      %v2911 = vpop.f32.mrf.mxu0
      %v2912 = vadd.f32 %v2734, %v2911
      %2913 = vmatmul.f32.gmra.mxu0 %v918
      %v2914 = vpop.f32.mrf.mxu0
      %v2915 = vadd.f32 %v2737, %v2914
      %2916 = vmatmul.f32.gmra.mxu0 %v921
      %v2917 = vpop.f32.mrf.mxu0
      %v2918 = vadd.f32 %v2740, %v2917
      %2919 = vmatmul.f32.gmra.mxu0 %v924
      %v2920 = vpop.f32.mrf.mxu0
      %v2921 = vadd.f32 %v2743, %v2920
      %2922 = vmatmul.f32.gmra.mxu0 %v927
      %v2923 = vpop.f32.mrf.mxu0
      %v2924 = vadd.f32 %v2746, %v2923
      %2925 = vmatmul.f32.gmra.mxu0 %v930
      %v2926 = vpop.f32.mrf.mxu0
      %v2927 = vadd.f32 %v2749, %v2926
      %2928 = vmatmul.f32.gmra.mxu0 %v933
      %v2929 = vpop.f32.mrf.mxu0
      %v2930 = vadd.f32 %v2752, %v2929
      %2931 = vmatmul.f32.gmra.mxu0 %v936
      %v2932 = vpop.f32.mrf.mxu0
      %v2933 = vadd.f32 %v2755, %v2932
      %2934 = vmatmul.f32.gmra.mxu0 %v939
      %v2935 = vpop.f32.mrf.mxu0
      %v2936 = vadd.f32 %v2758, %v2935
      %2937 = vmatmul.f32.gmra.mxu0 %v942
      %v2938 = vpop.f32.mrf.mxu0
      %v2939 = vadd.f32 %v2761, %v2938
      %2940 = vmatmul.f32.gmra.mxu0 %v945
      %v2941 = vpop.f32.mrf.mxu0
      %v2942 = vadd.f32 %v2764, %v2941
      %2943 = vmatmul.f32.gmra.mxu0 %v948
      %v2944 = vpop.f32.mrf.mxu0
      %v2945 = vadd.f32 %v2767, %v2944
      %2946 = vmatmul.f32.gmra.mxu0 %v951
      %v2947 = vpop.f32.mrf.mxu0
      %v2948 = vadd.f32 %v2770, %v2947
      %2949 = vmatmul.f32.gmra.mxu0 %v954
      %v2950 = vpop.f32.mrf.mxu0
      %v2951 = vadd.f32 %v2773, %v2950
      %2952 = vmatmul.f32.gmra.mxu0 %v957
      %v2953 = vpop.f32.mrf.mxu0
      %v2954 = vadd.f32 %v2776, %v2953
      %2955 = vmatmul.f32.gmra.mxu0 %v960
      %v2956 = vpop.f32.mrf.mxu0
      %v2957 = vadd.f32 %v2779, %v2956
      %2958 = vmatmul.f32.gmra.mxu0 %v963
      %v2959 = vpop.f32.mrf.mxu0
      %v2960 = vadd.f32 %v2782, %v2959
      %2961 = vmatmul.f32.gmra.mxu0 %v966
      %v2962 = vpop.f32.mrf.mxu0
      %v2963 = vadd.f32 %v2785, %v2962
      %2964 = vmatmul.f32.gmra.mxu0 %v969
      %v2965 = vpop.f32.mrf.mxu0
      %v2966 = vadd.f32 %v2788, %v2965
      %2967 = vmatmul.f32.gmra.mxu0 %v972
      %v2968 = vpop.f32.mrf.mxu0
      %v2969 = vadd.f32 %v2791, %v2968
      %2970 = vmatmul.f32.gmra.mxu0 %v975
      %v2971 = vpop.f32.mrf.mxu0
      %v2972 = vadd.f32 %v2794, %v2971
      %2973 = vmatmul.f32.gmra.mxu0 %v978
      %v2974 = vpop.f32.mrf.mxu0
      %v2975 = vadd.f32 %v2797, %v2974
      %2976 = vmatmul.f32.gmra.mxu0 %v981
      %v2977 = vpop.f32.mrf.mxu0
      %v2978 = vadd.f32 %v2800, %v2977
      %2979 = vmatmul.f32.gmra.mxu0 %v984
      %v2980 = vpop.f32.mrf.mxu0
      %v2981 = vadd.f32 %v2803, %v2980
      %2982 = vmatmul.f32.gmra.mxu0 %v987
      %v2983 = vpop.f32.mrf.mxu0
      %v2984 = vadd.f32 %v2806, %v2983
      %2985 = vmatmul.f32.gmra.mxu0 %v990
      %v2986 = vpop.f32.mrf.mxu0
      %v2987 = vadd.f32 %v2809, %v2986
      %2988 = vmatmul.f32.gmra.mxu0 %v993
      %v2989 = vpop.f32.mrf.mxu0
      %v2990 = vadd.f32 %v2812, %v2989
      %2991 = vmatmul.f32.gmra.mxu0 %v996
      %v2992 = vpop.f32.mrf.mxu0
      %v2993 = vadd.f32 %v2815, %v2992
      %2994 = vmatmul.f32.gmra.mxu0 %v999
      %v2995 = vpop.f32.mrf.mxu0
      %v2996 = vadd.f32 %v2818, %v2995
      %2997 = vmatmul.f32.gmra.mxu0 %v1002
      %v2998 = vpop.f32.mrf.mxu0
      %v2999 = vadd.f32 %v2821, %v2998
      %3000 = vmatmul.f32.gmra.mxu0 %v1005
      %v3001 = vpop.f32.mrf.mxu0
      %v3002 = vadd.f32 %v2824, %v3001
      %3003 = vmatmul.f32.gmra.mxu0 %v1008
      %v3004 = vpop.f32.mrf.mxu0
      %v3005 = vadd.f32 %v2827, %v3004
      %3006 = vmatmul.f32.gmra.mxu0 %v1011
      %v3007 = vpop.f32.mrf.mxu0
      %v3008 = vadd.f32 %v2830, %v3007
      %3009 = vmatmul.f32.gmra.mxu0 %v1014
      %v3010 = vpop.f32.mrf.mxu0
      %v3011 = vadd.f32 %v2833, %v3010
      %3012 = vmatmul.f32.gmra.mxu0 %v1017
      %v3013 = vpop.f32.mrf.mxu0
      %v3014 = vadd.f32 %v2836, %v3013
      %3015 = vmatmul.f32.gmra.mxu0 %v1020
      %v3016 = vpop.f32.mrf.mxu0
      %3017 = vmatmul.f32.gmra.mxu0 %v1023
      %v3018 = vpop.f32.mrf.mxu0
      %3019 = vmatmul.f32.gmra.mxu0 %v1026
      %v3020 = vpop.f32.mrf.mxu0
      %3021 = vmatmul.f32.gmra.mxu0 %v1029
      %v3022 = vpop.f32.mrf.mxu0
      %3023 = vdwg.mxu0
      %v3072 = vrot.slane %v2873, 1
      %v3073 = vrot.slane %v2876, 1
      %v3074 = vsel %vm1627, %v3072, %v3073
      %v3075 = vrot.slane %v2879, 1
      %v3076 = vsel %vm1627, %v3073, %v3075
      %v3077 = vrot.slane %v2882, 1
      %v3078 = vrot.slane %v2885, 1
      %v3079 = vsel %vm1627, %v3077, %v3078
      %v3080 = vrot.slane %v2888, 1
      %v3081 = vsel %vm1627, %v3078, %v3080
      %v3082 = vrot.slane %v2891, 1
      %v3083 = vrot.slane %v2894, 1
      %v3084 = vsel %vm1627, %v3082, %v3083
      %v3085 = vrot.slane %v2897, 1
      %v3086 = vsel %vm1627, %v3083, %v3085
      %v3087 = vrot.slane %v2900, 1
      %v3088 = vrot.slane %v2903, 1
      %v3089 = vsel %vm1627, %v3087, %v3088
      %v3090 = vrot.slane %v2906, 1
      %v3091 = vsel %vm1627, %v3088, %v3090
      %v3092 = vrot.slane %v2909, 1
      %v3093 = vrot.slane %v2912, 1
      %v3094 = vsel %vm1627, %v3092, %v3093
      %v3095 = vrot.slane %v2915, 1
      %v3096 = vsel %vm1627, %v3093, %v3095
      %v3097 = vrot.slane %v2918, 1
      %v3098 = vrot.slane %v2921, 1
      %v3099 = vsel %vm1627, %v3097, %v3098
      %v3100 = vrot.slane %v2924, 1
      %v3101 = vsel %vm1627, %v3098, %v3100
      %v3102 = vrot.slane %v2927, 1
      %v3103 = vrot.slane %v2930, 1
      %v3104 = vsel %vm1627, %v3102, %v3103
      %v3105 = vrot.slane %v2933, 1
      %v3106 = vsel %vm1627, %v3103, %v3105
      %v3107 = vrot.slane %v2936, 1
      %v3108 = vrot.slane %v2939, 1
      %v3109 = vsel %vm1627, %v3107, %v3108
      %v3110 = vrot.slane %v2942, 1
      %v3111 = vsel %vm1627, %v3108, %v3110
      %v3112 = vrot.slane %v2945, 1
      %v3113 = vrot.slane %v2948, 1
      %v3114 = vsel %vm1627, %v3112, %v3113
      %v3115 = vrot.slane %v2951, 1
      %v3116 = vsel %vm1627, %v3113, %v3115
      %v3117 = vrot.slane %v2954, 1
      %v3118 = vrot.slane %v2957, 1
      %v3119 = vsel %vm1627, %v3117, %v3118
      %v3120 = vrot.slane %v2960, 1
      %v3121 = vsel %vm1627, %v3118, %v3120
      %v3122 = vrot.slane %v2963, 1
      %v3123 = vrot.slane %v2966, 1
      %v3124 = vsel %vm1627, %v3122, %v3123
      %v3125 = vrot.slane %v2969, 1
      %v3126 = vsel %vm1627, %v3123, %v3125
      %v3127 = vrot.slane %v2972, 1
      %v3128 = vrot.slane %v2975, 1
      %v3129 = vsel %vm1627, %v3127, %v3128
      %v3130 = vrot.slane %v2978, 1
      %v3131 = vsel %vm1627, %v3128, %v3130
      %v3132 = vrot.slane %v2981, 1
      %v3133 = vrot.slane %v2984, 1
      %v3134 = vsel %vm1627, %v3132, %v3133
      %v3135 = vrot.slane %v2987, 1
      %v3136 = vsel %vm1627, %v3133, %v3135
      %v3137 = vrot.slane %v2990, 1
      %v3138 = vrot.slane %v2993, 1
      %v3139 = vsel %vm1627, %v3137, %v3138
      %v3140 = vrot.slane %v2996, 1
      %v3141 = vsel %vm1627, %v3138, %v3140
      %v3142 = vrot.slane %v2999, 1
      %v3143 = vrot.slane %v3002, 1
      %v3144 = vsel %vm1627, %v3142, %v3143
      %v3145 = vrot.slane %v3005, 1
      %v3146 = vsel %vm1627, %v3143, %v3145
      %v3147 = vrot.slane %v3008, 1
      %v3148 = vrot.slane %v3011, 1
      %v3149 = vsel %vm1627, %v3147, %v3148
      %v3150 = vrot.slane %v3014, 1
      %v3151 = vsel %vm1627, %v3148, %v3150
      %v3184 = vadd.f32 %v2639, %v3074
      %v3185 = vadd.f32 %v2640, %v3076
      %v3186 = vadd.f32 %v2641, %v3079
      %v3187 = vadd.f32 %v2642, %v3081
      %v3188 = vadd.f32 %v2643, %v3084
      %v3189 = vadd.f32 %v2644, %v3086
      %v3190 = vadd.f32 %v2645, %v3089
      %v3191 = vadd.f32 %v2646, %v3091
      %v3192 = vadd.f32 %v2647, %v3094
      %v3193 = vadd.f32 %v2648, %v3096
      %v3194 = vadd.f32 %v2649, %v3099
      %v3195 = vadd.f32 %v2650, %v3101
      %v3196 = vadd.f32 %v2651, %v3104
      %v3197 = vadd.f32 %v2652, %v3106
      %v3198 = vadd.f32 %v2653, %v3109
      %v3199 = vadd.f32 %v2654, %v3111
      %v3200 = vadd.f32 %v2655, %v3114
      %v3201 = vadd.f32 %v2656, %v3116
      %v3202 = vadd.f32 %v2657, %v3119
      %v3203 = vadd.f32 %v2658, %v3121
      %v3204 = vadd.f32 %v2659, %v3124
      %v3205 = vadd.f32 %v2660, %v3126
      %v3206 = vadd.f32 %v2661, %v3129
      %v3207 = vadd.f32 %v2662, %v3131
      %v3208 = vadd.f32 %v2663, %v3134
      %v3209 = vadd.f32 %v2664, %v3136
      %v3210 = vadd.f32 %v2665, %v3139
      %v3211 = vadd.f32 %v2666, %v3141
      %v3212 = vadd.f32 %v2667, %v3144
      %v3213 = vadd.f32 %v2668, %v3146
      %v3214 = vadd.f32 %v2669, %v3149
      %v3215 = vadd.f32 %v2670, %v3151
      %3216 = vmatpush.msra.mxu0 0.0
      %3217 = vmatpush.msra.mxu0 0.0
      %3218 = vmatpush.msra.mxu0 0.0
      %3219 = vmatpush.msra.mxu0 0.0
      %3220 = vmatpush.msra.mxu0 0.0
      %3221 = vmatpush.msra.mxu0 0.0
      %3222 = vmatpush.msra.mxu0 0.0
      %3223 = vmatpush.msra.mxu0 0.0
      %3224 = vmatpush.msra.mxu0 0.0
      %3225 = vmatpush.msra.mxu0 %v518
      %3226 = vmatpush.msra.mxu0 %v517
      %3227 = vmatpush.msra.mxu0 %v516
      %3228 = vmatpush.msra.mxu0 %v515
      %3229 = vmatpush.msra.mxu0 %v514
      %3230 = vmatpush.msra.mxu0 %v513
      %3231 = vmatpush.msra.mxu0 %v512
      %3232 = vmatmul.f32.gmra.mxu0 %v542
      %v3233 = vpop.f32.mrf.mxu0
      %3234 = vmatmul.f32.gmra.mxu0 %v545
      %v3235 = vpop.f32.mrf.mxu0
      %3236 = vmatmul.f32.gmra.mxu0 %v548
      %v3237 = vpop.f32.mrf.mxu0
      %3238 = vmatmul.f32.gmra.mxu0 %v551
      %v3239 = vpop.f32.mrf.mxu0
      %v3240 = vadd.f32 0.0, %v3239
      %3241 = vmatmul.f32.gmra.mxu0 %v554
      %v3242 = vpop.f32.mrf.mxu0
      %v3243 = vadd.f32 0.0, %v3242
      %3244 = vmatmul.f32.gmra.mxu0 %v557
      %v3245 = vpop.f32.mrf.mxu0
      %v3246 = vadd.f32 0.0, %v3245
      %3247 = vmatmul.f32.gmra.mxu0 %v560
      %v3248 = vpop.f32.mrf.mxu0
      %v3249 = vadd.f32 0.0, %v3248
      %3250 = vmatmul.f32.gmra.mxu0 %v563
      %v3251 = vpop.f32.mrf.mxu0
      %v3252 = vadd.f32 0.0, %v3251
      %3253 = vmatmul.f32.gmra.mxu0 %v566
      %v3254 = vpop.f32.mrf.mxu0
      %v3255 = vadd.f32 0.0, %v3254
      %3256 = vmatmul.f32.gmra.mxu0 %v569
      %v3257 = vpop.f32.mrf.mxu0
      %v3258 = vadd.f32 0.0, %v3257
      %3259 = vmatmul.f32.gmra.mxu0 %v572
      %v3260 = vpop.f32.mrf.mxu0
      %v3261 = vadd.f32 0.0, %v3260
      %3262 = vmatmul.f32.gmra.mxu0 %v575
      %v3263 = vpop.f32.mrf.mxu0
      %v3264 = vadd.f32 0.0, %v3263
      %3265 = vmatmul.f32.gmra.mxu0 %v578
      %v3266 = vpop.f32.mrf.mxu0
      %v3267 = vadd.f32 0.0, %v3266
      %3268 = vmatmul.f32.gmra.mxu0 %v581
      %v3269 = vpop.f32.mrf.mxu0
      %v3270 = vadd.f32 0.0, %v3269
      %3271 = vmatmul.f32.gmra.mxu0 %v584
      %v3272 = vpop.f32.mrf.mxu0
      %v3273 = vadd.f32 0.0, %v3272
      %3274 = vmatmul.f32.gmra.mxu0 %v587
      %v3275 = vpop.f32.mrf.mxu0
      %v3276 = vadd.f32 0.0, %v3275
      %3277 = vmatmul.f32.gmra.mxu0 %v590
      %v3278 = vpop.f32.mrf.mxu0
      %v3279 = vadd.f32 0.0, %v3278
      %3280 = vmatmul.f32.gmra.mxu0 %v593
      %v3281 = vpop.f32.mrf.mxu0
      %v3282 = vadd.f32 0.0, %v3281
      %3283 = vmatmul.f32.gmra.mxu0 %v596
      %v3284 = vpop.f32.mrf.mxu0
      %v3285 = vadd.f32 0.0, %v3284
      %3286 = vmatmul.f32.gmra.mxu0 %v599
      %v3287 = vpop.f32.mrf.mxu0
      %v3288 = vadd.f32 0.0, %v3287
      %3289 = vmatmul.f32.gmra.mxu0 %v602
      %v3290 = vpop.f32.mrf.mxu0
      %v3291 = vadd.f32 0.0, %v3290
      %3292 = vmatmul.f32.gmra.mxu0 %v605
      %v3293 = vpop.f32.mrf.mxu0
      %v3294 = vadd.f32 0.0, %v3293
      %3295 = vmatmul.f32.gmra.mxu0 %v608
      %v3296 = vpop.f32.mrf.mxu0
      %v3297 = vadd.f32 0.0, %v3296
      %3298 = vmatmul.f32.gmra.mxu0 %v611
      %v3299 = vpop.f32.mrf.mxu0
      %v3300 = vadd.f32 0.0, %v3299
      %3301 = vmatmul.f32.gmra.mxu0 %v614
      %v3302 = vpop.f32.mrf.mxu0
      %v3303 = vadd.f32 0.0, %v3302
      %3304 = vmatmul.f32.gmra.mxu0 %v617
      %v3305 = vpop.f32.mrf.mxu0
      %v3306 = vadd.f32 0.0, %v3305
      %3307 = vmatmul.f32.gmra.mxu0 %v620
      %v3308 = vpop.f32.mrf.mxu0
      %v3309 = vadd.f32 0.0, %v3308
      %3310 = vmatmul.f32.gmra.mxu0 %v623
      %v3311 = vpop.f32.mrf.mxu0
      %v3312 = vadd.f32 0.0, %v3311
      %3313 = vmatmul.f32.gmra.mxu0 %v626
      %v3314 = vpop.f32.mrf.mxu0
      %v3315 = vadd.f32 0.0, %v3314
      %3316 = vmatmul.f32.gmra.mxu0 %v629
      %v3317 = vpop.f32.mrf.mxu0
      %v3318 = vadd.f32 0.0, %v3317
      %3319 = vmatmul.f32.gmra.mxu0 %v632
      %v3320 = vpop.f32.mrf.mxu0
      %v3321 = vadd.f32 0.0, %v3320
      %3322 = vmatmul.f32.gmra.mxu0 %v635
      %v3323 = vpop.f32.mrf.mxu0
      %v3324 = vadd.f32 0.0, %v3323
      %3325 = vmatmul.f32.gmra.mxu0 %v638
      %v3326 = vpop.f32.mrf.mxu0
      %v3327 = vadd.f32 0.0, %v3326
      %3328 = vmatmul.f32.gmra.mxu0 %v641
      %v3329 = vpop.f32.mrf.mxu0
      %v3330 = vadd.f32 0.0, %v3329
      %3331 = vmatmul.f32.gmra.mxu0 %v644
      %v3332 = vpop.f32.mrf.mxu0
      %v3333 = vadd.f32 0.0, %v3332
      %3334 = vmatmul.f32.gmra.mxu0 %v647
      %v3335 = vpop.f32.mrf.mxu0
      %v3336 = vadd.f32 0.0, %v3335
      %3337 = vmatmul.f32.gmra.mxu0 %v650
      %v3338 = vpop.f32.mrf.mxu0
      %v3339 = vadd.f32 0.0, %v3338
      %3340 = vmatmul.f32.gmra.mxu0 %v653
      %v3341 = vpop.f32.mrf.mxu0
      %v3342 = vadd.f32 0.0, %v3341
      %3343 = vmatmul.f32.gmra.mxu0 %v656
      %v3344 = vpop.f32.mrf.mxu0
      %v3345 = vadd.f32 0.0, %v3344
      %3346 = vmatmul.f32.gmra.mxu0 %v659
      %v3347 = vpop.f32.mrf.mxu0
      %v3348 = vadd.f32 0.0, %v3347
      %3349 = vmatmul.f32.gmra.mxu0 %v662
      %v3350 = vpop.f32.mrf.mxu0
      %v3351 = vadd.f32 0.0, %v3350
      %3352 = vmatmul.f32.gmra.mxu0 %v665
      %v3353 = vpop.f32.mrf.mxu0
      %v3354 = vadd.f32 0.0, %v3353
      %3355 = vmatmul.f32.gmra.mxu0 %v668
      %v3356 = vpop.f32.mrf.mxu0
      %v3357 = vadd.f32 0.0, %v3356
      %3358 = vmatmul.f32.gmra.mxu0 %v671
      %v3359 = vpop.f32.mrf.mxu0
      %v3360 = vadd.f32 0.0, %v3359
      %3361 = vmatmul.f32.gmra.mxu0 %v674
      %v3362 = vpop.f32.mrf.mxu0
      %v3363 = vadd.f32 0.0, %v3362
      %3364 = vmatmul.f32.gmra.mxu0 %v677
      %v3365 = vpop.f32.mrf.mxu0
      %v3366 = vadd.f32 0.0, %v3365
      %3367 = vmatmul.f32.gmra.mxu0 %v680
      %v3368 = vpop.f32.mrf.mxu0
      %v3369 = vadd.f32 0.0, %v3368
      %3370 = vmatmul.f32.gmra.mxu0 %v683
      %v3371 = vpop.f32.mrf.mxu0
      %v3372 = vadd.f32 0.0, %v3371
      %3373 = vmatmul.f32.gmra.mxu0 %v686
      %v3374 = vpop.f32.mrf.mxu0
      %v3375 = vadd.f32 0.0, %v3374
      %3376 = vmatmul.f32.gmra.mxu0 %v689
      %v3377 = vpop.f32.mrf.mxu0
      %v3378 = vadd.f32 0.0, %v3377
      %3379 = vmatmul.f32.gmra.mxu0 %v692
      %v3380 = vpop.f32.mrf.mxu0
      %v3381 = vadd.f32 0.0, %v3380
      %3382 = vmatmul.f32.gmra.mxu0 %v695
      %v3383 = vpop.f32.mrf.mxu0
      %3384 = vmatmul.f32.gmra.mxu0 %v698
      %v3385 = vpop.f32.mrf.mxu0
      %3386 = vmatmul.f32.gmra.mxu0 %v701
      %v3387 = vpop.f32.mrf.mxu0
      %3388 = vmatmul.f32.gmra.mxu0 %v704
      %v3389 = vpop.f32.mrf.mxu0
      %3390 = vdwg.mxu0
      %v3392 = vsel %vm1031, %v473, 0
      %3394 = vmatpush.msra.mxu0 0.0
      %3395 = vmatpush.msra.mxu0 0.0
      %3396 = vmatpush.msra.mxu0 0.0
      %3397 = vmatpush.msra.mxu0 0.0
      %3398 = vmatpush.msra.mxu0 0.0
      %3399 = vmatpush.msra.mxu0 0.0
      %3400 = vmatpush.msra.mxu0 0.0
      %3401 = vmatpush.msra.mxu0 0.0
      %3402 = vmatpush.msra.mxu0 0.0
      %3403 = vmatpush.msra.mxu0 0.0
      %3404 = vmatpush.msra.mxu0 0.0
      %3405 = vmatpush.msra.mxu0 0.0
      %3406 = vmatpush.msra.mxu0 0.0
      %3407 = vmatpush.msra.mxu0 0.0
      %3408 = vmatpush.msra.mxu0 0.0
      %3409 = vmatpush.msra.mxu0 %v3392
      %3410 = vmatmul.f32.gmra.mxu0 %v867
      %v3411 = vpop.f32.mrf.mxu0
      %3412 = vmatmul.f32.gmra.mxu0 %v870
      %v3413 = vpop.f32.mrf.mxu0
      %3414 = vmatmul.f32.gmra.mxu0 %v873
      %v3415 = vpop.f32.mrf.mxu0
      %3416 = vmatmul.f32.gmra.mxu0 %v876
      %v3417 = vpop.f32.mrf.mxu0
      %v3418 = vadd.f32 %v3240, %v3417
      %3419 = vmatmul.f32.gmra.mxu0 %v879
      %v3420 = vpop.f32.mrf.mxu0
      %v3421 = vadd.f32 %v3243, %v3420
      %3422 = vmatmul.f32.gmra.mxu0 %v882
      %v3423 = vpop.f32.mrf.mxu0
      %v3424 = vadd.f32 %v3246, %v3423
      %3425 = vmatmul.f32.gmra.mxu0 %v885
      %v3426 = vpop.f32.mrf.mxu0
      %v3427 = vadd.f32 %v3249, %v3426
      %3428 = vmatmul.f32.gmra.mxu0 %v888
      %v3429 = vpop.f32.mrf.mxu0
      %v3430 = vadd.f32 %v3252, %v3429
      %3431 = vmatmul.f32.gmra.mxu0 %v891
      %v3432 = vpop.f32.mrf.mxu0
      %v3433 = vadd.f32 %v3255, %v3432
      %3434 = vmatmul.f32.gmra.mxu0 %v894
      %v3435 = vpop.f32.mrf.mxu0
      %v3436 = vadd.f32 %v3258, %v3435
      %3437 = vmatmul.f32.gmra.mxu0 %v897
      %v3438 = vpop.f32.mrf.mxu0
      %v3439 = vadd.f32 %v3261, %v3438
      %3440 = vmatmul.f32.gmra.mxu0 %v900
      %v3441 = vpop.f32.mrf.mxu0
      %v3442 = vadd.f32 %v3264, %v3441
      %3443 = vmatmul.f32.gmra.mxu0 %v903
      %v3444 = vpop.f32.mrf.mxu0
      %v3445 = vadd.f32 %v3267, %v3444
      %3446 = vmatmul.f32.gmra.mxu0 %v906
      %v3447 = vpop.f32.mrf.mxu0
      %v3448 = vadd.f32 %v3270, %v3447
      %3449 = vmatmul.f32.gmra.mxu0 %v909
      %v3450 = vpop.f32.mrf.mxu0
      %v3451 = vadd.f32 %v3273, %v3450
      %3452 = vmatmul.f32.gmra.mxu0 %v912
      %v3453 = vpop.f32.mrf.mxu0
      %v3454 = vadd.f32 %v3276, %v3453
      %3455 = vmatmul.f32.gmra.mxu0 %v915
      %v3456 = vpop.f32.mrf.mxu0
      %v3457 = vadd.f32 %v3279, %v3456
      %3458 = vmatmul.f32.gmra.mxu0 %v918
      %v3459 = vpop.f32.mrf.mxu0
      %v3460 = vadd.f32 %v3282, %v3459
      %3461 = vmatmul.f32.gmra.mxu0 %v921
      %v3462 = vpop.f32.mrf.mxu0
      %v3463 = vadd.f32 %v3285, %v3462
      %3464 = vmatmul.f32.gmra.mxu0 %v924
      %v3465 = vpop.f32.mrf.mxu0
      %v3466 = vadd.f32 %v3288, %v3465
      %3467 = vmatmul.f32.gmra.mxu0 %v927
      %v3468 = vpop.f32.mrf.mxu0
      %v3469 = vadd.f32 %v3291, %v3468
      %3470 = vmatmul.f32.gmra.mxu0 %v930
      %v3471 = vpop.f32.mrf.mxu0
      %v3472 = vadd.f32 %v3294, %v3471
      %3473 = vmatmul.f32.gmra.mxu0 %v933
      %v3474 = vpop.f32.mrf.mxu0
      %v3475 = vadd.f32 %v3297, %v3474
      %3476 = vmatmul.f32.gmra.mxu0 %v936
      %v3477 = vpop.f32.mrf.mxu0
      %v3478 = vadd.f32 %v3300, %v3477
      %3479 = vmatmul.f32.gmra.mxu0 %v939
      %v3480 = vpop.f32.mrf.mxu0
      %v3481 = vadd.f32 %v3303, %v3480
      %3482 = vmatmul.f32.gmra.mxu0 %v942
      %v3483 = vpop.f32.mrf.mxu0
      %v3484 = vadd.f32 %v3306, %v3483
      %3485 = vmatmul.f32.gmra.mxu0 %v945
      %v3486 = vpop.f32.mrf.mxu0
      %v3487 = vadd.f32 %v3309, %v3486
      %3488 = vmatmul.f32.gmra.mxu0 %v948
      %v3489 = vpop.f32.mrf.mxu0
      %v3490 = vadd.f32 %v3312, %v3489
      %3491 = vmatmul.f32.gmra.mxu0 %v951
      %v3492 = vpop.f32.mrf.mxu0
      %v3493 = vadd.f32 %v3315, %v3492
      %3494 = vmatmul.f32.gmra.mxu0 %v954
      %v3495 = vpop.f32.mrf.mxu0
      %v3496 = vadd.f32 %v3318, %v3495
      %3497 = vmatmul.f32.gmra.mxu0 %v957
      %v3498 = vpop.f32.mrf.mxu0
      %v3499 = vadd.f32 %v3321, %v3498
      %3500 = vmatmul.f32.gmra.mxu0 %v960
      %v3501 = vpop.f32.mrf.mxu0
      %v3502 = vadd.f32 %v3324, %v3501
      %3503 = vmatmul.f32.gmra.mxu0 %v963
      %v3504 = vpop.f32.mrf.mxu0
      %v3505 = vadd.f32 %v3327, %v3504
      %3506 = vmatmul.f32.gmra.mxu0 %v966
      %v3507 = vpop.f32.mrf.mxu0
      %v3508 = vadd.f32 %v3330, %v3507
      %3509 = vmatmul.f32.gmra.mxu0 %v969
      %v3510 = vpop.f32.mrf.mxu0
      %v3511 = vadd.f32 %v3333, %v3510
      %3512 = vmatmul.f32.gmra.mxu0 %v972
      %v3513 = vpop.f32.mrf.mxu0
      %v3514 = vadd.f32 %v3336, %v3513
      %3515 = vmatmul.f32.gmra.mxu0 %v975
      %v3516 = vpop.f32.mrf.mxu0
      %v3517 = vadd.f32 %v3339, %v3516
      %3518 = vmatmul.f32.gmra.mxu0 %v978
      %v3519 = vpop.f32.mrf.mxu0
      %v3520 = vadd.f32 %v3342, %v3519
      %3521 = vmatmul.f32.gmra.mxu0 %v981
      %v3522 = vpop.f32.mrf.mxu0
      %v3523 = vadd.f32 %v3345, %v3522
      %3524 = vmatmul.f32.gmra.mxu0 %v984
      %v3525 = vpop.f32.mrf.mxu0
      %v3526 = vadd.f32 %v3348, %v3525
      %3527 = vmatmul.f32.gmra.mxu0 %v987
      %v3528 = vpop.f32.mrf.mxu0
      %v3529 = vadd.f32 %v3351, %v3528
      %3530 = vmatmul.f32.gmra.mxu0 %v990
      %v3531 = vpop.f32.mrf.mxu0
      %v3532 = vadd.f32 %v3354, %v3531
      %3533 = vmatmul.f32.gmra.mxu0 %v993
      %v3534 = vpop.f32.mrf.mxu0
      %v3535 = vadd.f32 %v3357, %v3534
      %3536 = vmatmul.f32.gmra.mxu0 %v996
      %v3537 = vpop.f32.mrf.mxu0
      %v3538 = vadd.f32 %v3360, %v3537
      %3539 = vmatmul.f32.gmra.mxu0 %v999
      %v3540 = vpop.f32.mrf.mxu0
      %v3541 = vadd.f32 %v3363, %v3540
      %3542 = vmatmul.f32.gmra.mxu0 %v1002
      %v3543 = vpop.f32.mrf.mxu0
      %v3544 = vadd.f32 %v3366, %v3543
      %3545 = vmatmul.f32.gmra.mxu0 %v1005
      %v3546 = vpop.f32.mrf.mxu0
      %v3547 = vadd.f32 %v3369, %v3546
      %3548 = vmatmul.f32.gmra.mxu0 %v1008
      %v3549 = vpop.f32.mrf.mxu0
      %v3550 = vadd.f32 %v3372, %v3549
      %3551 = vmatmul.f32.gmra.mxu0 %v1011
      %v3552 = vpop.f32.mrf.mxu0
      %v3553 = vadd.f32 %v3375, %v3552
      %3554 = vmatmul.f32.gmra.mxu0 %v1014
      %v3555 = vpop.f32.mrf.mxu0
      %v3556 = vadd.f32 %v3378, %v3555
      %3557 = vmatmul.f32.gmra.mxu0 %v1017
      %v3558 = vpop.f32.mrf.mxu0
      %v3559 = vadd.f32 %v3381, %v3558
      %3560 = vmatmul.f32.gmra.mxu0 %v1020
      %v3561 = vpop.f32.mrf.mxu0
      %3562 = vmatmul.f32.gmra.mxu0 %v1023
      %v3563 = vpop.f32.mrf.mxu0
      %3564 = vmatmul.f32.gmra.mxu0 %v1026
      %v3565 = vpop.f32.mrf.mxu0
      %3566 = vmatmul.f32.gmra.mxu0 %v1029
      %v3567 = vpop.f32.mrf.mxu0
      %3568 = vdwg.mxu0
      %v3617 = vrot.slane %v3418, 2
      %v3618 = vrot.slane %v3421, 2
      %v3619 = vsel %vm2173, %v3617, %v3618
      %v3620 = vrot.slane %v3424, 2
      %v3621 = vsel %vm2173, %v3618, %v3620
      %v3622 = vrot.slane %v3427, 2
      %v3623 = vrot.slane %v3430, 2
      %v3624 = vsel %vm2173, %v3622, %v3623
      %v3625 = vrot.slane %v3433, 2
      %v3626 = vsel %vm2173, %v3623, %v3625
      %v3627 = vrot.slane %v3436, 2
      %v3628 = vrot.slane %v3439, 2
      %v3629 = vsel %vm2173, %v3627, %v3628
      %v3630 = vrot.slane %v3442, 2
      %v3631 = vsel %vm2173, %v3628, %v3630
      %v3632 = vrot.slane %v3445, 2
      %v3633 = vrot.slane %v3448, 2
      %v3634 = vsel %vm2173, %v3632, %v3633
      %v3635 = vrot.slane %v3451, 2
      %v3636 = vsel %vm2173, %v3633, %v3635
      %v3637 = vrot.slane %v3454, 2
      %v3638 = vrot.slane %v3457, 2
      %v3639 = vsel %vm2173, %v3637, %v3638
      %v3640 = vrot.slane %v3460, 2
      %v3641 = vsel %vm2173, %v3638, %v3640
      %v3642 = vrot.slane %v3463, 2
      %v3643 = vrot.slane %v3466, 2
      %v3644 = vsel %vm2173, %v3642, %v3643
      %v3645 = vrot.slane %v3469, 2
      %v3646 = vsel %vm2173, %v3643, %v3645
      %v3647 = vrot.slane %v3472, 2
      %v3648 = vrot.slane %v3475, 2
      %v3649 = vsel %vm2173, %v3647, %v3648
      %v3650 = vrot.slane %v3478, 2
      %v3651 = vsel %vm2173, %v3648, %v3650
      %v3652 = vrot.slane %v3481, 2
      %v3653 = vrot.slane %v3484, 2
      %v3654 = vsel %vm2173, %v3652, %v3653
      %v3655 = vrot.slane %v3487, 2
      %v3656 = vsel %vm2173, %v3653, %v3655
      %v3657 = vrot.slane %v3490, 2
      %v3658 = vrot.slane %v3493, 2
      %v3659 = vsel %vm2173, %v3657, %v3658
      %v3660 = vrot.slane %v3496, 2
      %v3661 = vsel %vm2173, %v3658, %v3660
      %v3662 = vrot.slane %v3499, 2
      %v3663 = vrot.slane %v3502, 2
      %v3664 = vsel %vm2173, %v3662, %v3663
      %v3665 = vrot.slane %v3505, 2
      %v3666 = vsel %vm2173, %v3663, %v3665
      %v3667 = vrot.slane %v3508, 2
      %v3668 = vrot.slane %v3511, 2
      %v3669 = vsel %vm2173, %v3667, %v3668
      %v3670 = vrot.slane %v3514, 2
      %v3671 = vsel %vm2173, %v3668, %v3670
      %v3672 = vrot.slane %v3517, 2
      %v3673 = vrot.slane %v3520, 2
      %v3674 = vsel %vm2173, %v3672, %v3673
      %v3675 = vrot.slane %v3523, 2
      %v3676 = vsel %vm2173, %v3673, %v3675
      %v3677 = vrot.slane %v3526, 2
      %v3678 = vrot.slane %v3529, 2
      %v3679 = vsel %vm2173, %v3677, %v3678
      %v3680 = vrot.slane %v3532, 2
      %v3681 = vsel %vm2173, %v3678, %v3680
      %v3682 = vrot.slane %v3535, 2
      %v3683 = vrot.slane %v3538, 2
      %v3684 = vsel %vm2173, %v3682, %v3683
      %v3685 = vrot.slane %v3541, 2
      %v3686 = vsel %vm2173, %v3683, %v3685
      %v3687 = vrot.slane %v3544, 2
      %v3688 = vrot.slane %v3547, 2
      %v3689 = vsel %vm2173, %v3687, %v3688
      %v3690 = vrot.slane %v3550, 2
      %v3691 = vsel %vm2173, %v3688, %v3690
      %v3692 = vrot.slane %v3553, 2
      %v3693 = vrot.slane %v3556, 2
      %v3694 = vsel %vm2173, %v3692, %v3693
      %v3695 = vrot.slane %v3559, 2
      %v3696 = vsel %vm2173, %v3693, %v3695
      %v3729 = vadd.f32 %v3184, %v3619
      %v3730 = vadd.f32 %v3185, %v3621
      %v3731 = vadd.f32 %v3186, %v3624
      %v3732 = vadd.f32 %v3187, %v3626
      %v3733 = vadd.f32 %v3188, %v3629
      %v3734 = vadd.f32 %v3189, %v3631
      %v3735 = vadd.f32 %v3190, %v3634
      %v3736 = vadd.f32 %v3191, %v3636
      %v3737 = vadd.f32 %v3192, %v3639
      %v3738 = vadd.f32 %v3193, %v3641
      %v3739 = vadd.f32 %v3194, %v3644
      %v3740 = vadd.f32 %v3195, %v3646
      %v3741 = vadd.f32 %v3196, %v3649
      %v3742 = vadd.f32 %v3197, %v3651
      %v3743 = vadd.f32 %v3198, %v3654
      %v3744 = vadd.f32 %v3199, %v3656
      %v3745 = vadd.f32 %v3200, %v3659
      %v3746 = vadd.f32 %v3201, %v3661
      %v3747 = vadd.f32 %v3202, %v3664
      %v3748 = vadd.f32 %v3203, %v3666
      %v3749 = vadd.f32 %v3204, %v3669
      %v3750 = vadd.f32 %v3205, %v3671
      %v3751 = vadd.f32 %v3206, %v3674
      %v3752 = vadd.f32 %v3207, %v3676
      %v3753 = vadd.f32 %v3208, %v3679
      %v3754 = vadd.f32 %v3209, %v3681
      %v3755 = vadd.f32 %v3210, %v3684
      %v3756 = vadd.f32 %v3211, %v3686
      %v3757 = vadd.f32 %v3212, %v3689
      %v3758 = vadd.f32 %v3213, %v3691
      %v3759 = vadd.f32 %v3214, %v3694
      %v3760 = vadd.f32 %v3215, %v3696
      %3761 = vmatpush.msra.mxu0 0.0
      %3762 = vmatpush.msra.mxu0 0.0
      %3763 = vmatpush.msra.mxu0 0.0
      %3764 = vmatpush.msra.mxu0 0.0
      %3765 = vmatpush.msra.mxu0 0.0
      %3766 = vmatpush.msra.mxu0 0.0
      %3767 = vmatpush.msra.mxu0 0.0
      %3768 = vmatpush.msra.mxu0 0.0
      %3769 = vmatpush.msra.mxu0 0.0
      %3770 = vmatpush.msra.mxu0 %v525
      %3771 = vmatpush.msra.mxu0 %v524
      %3772 = vmatpush.msra.mxu0 %v523
      %3773 = vmatpush.msra.mxu0 %v522
      %3774 = vmatpush.msra.mxu0 %v521
      %3775 = vmatpush.msra.mxu0 %v520
      %3776 = vmatpush.msra.mxu0 %v519
      %3777 = vmatmul.f32.gmra.mxu0 %v542
      %v3778 = vpop.f32.mrf.mxu0
      %3779 = vmatmul.f32.gmra.mxu0 %v545
      %v3780 = vpop.f32.mrf.mxu0
      %3781 = vmatmul.f32.gmra.mxu0 %v548
      %v3782 = vpop.f32.mrf.mxu0
      %3783 = vmatmul.f32.gmra.mxu0 %v551
      %v3784 = vpop.f32.mrf.mxu0
      %3785 = vmatmul.f32.gmra.mxu0 %v554
      %v3786 = vpop.f32.mrf.mxu0
      %3787 = vmatmul.f32.gmra.mxu0 %v557
      %v3788 = vpop.f32.mrf.mxu0
      %3789 = vmatmul.f32.gmra.mxu0 %v560
      %v3790 = vpop.f32.mrf.mxu0
      %v3791 = vadd.f32 0.0, %v3790
      %3792 = vmatmul.f32.gmra.mxu0 %v563
      %v3793 = vpop.f32.mrf.mxu0
      %v3794 = vadd.f32 0.0, %v3793
      %3795 = vmatmul.f32.gmra.mxu0 %v566
      %v3796 = vpop.f32.mrf.mxu0
      %3797 = vmatmul.f32.gmra.mxu0 %v569
      %v3798 = vpop.f32.mrf.mxu0
      %v3799 = vadd.f32 0.0, %v3798
      %3800 = vmatmul.f32.gmra.mxu0 %v572
      %v3801 = vpop.f32.mrf.mxu0
      %v3802 = vadd.f32 0.0, %v3801
      %3803 = vmatmul.f32.gmra.mxu0 %v575
      %v3804 = vpop.f32.mrf.mxu0
      %3805 = vmatmul.f32.gmra.mxu0 %v578
      %v3806 = vpop.f32.mrf.mxu0
      %v3807 = vadd.f32 0.0, %v3806
      %3808 = vmatmul.f32.gmra.mxu0 %v581
      %v3809 = vpop.f32.mrf.mxu0
      %v3810 = vadd.f32 0.0, %v3809
      %3811 = vmatmul.f32.gmra.mxu0 %v584
      %v3812 = vpop.f32.mrf.mxu0
      %3813 = vmatmul.f32.gmra.mxu0 %v587
      %v3814 = vpop.f32.mrf.mxu0
      %v3815 = vadd.f32 0.0, %v3814
      %3816 = vmatmul.f32.gmra.mxu0 %v590
      %v3817 = vpop.f32.mrf.mxu0
      %v3818 = vadd.f32 0.0, %v3817
      %3819 = vmatmul.f32.gmra.mxu0 %v593
      %v3820 = vpop.f32.mrf.mxu0
      %3821 = vmatmul.f32.gmra.mxu0 %v596
      %v3822 = vpop.f32.mrf.mxu0
      %v3823 = vadd.f32 0.0, %v3822
      %3824 = vmatmul.f32.gmra.mxu0 %v599
      %v3825 = vpop.f32.mrf.mxu0
      %v3826 = vadd.f32 0.0, %v3825
      %3827 = vmatmul.f32.gmra.mxu0 %v602
      %v3828 = vpop.f32.mrf.mxu0
      %3829 = vmatmul.f32.gmra.mxu0 %v605
      %v3830 = vpop.f32.mrf.mxu0
      %v3831 = vadd.f32 0.0, %v3830
      %3832 = vmatmul.f32.gmra.mxu0 %v608
      %v3833 = vpop.f32.mrf.mxu0
      %v3834 = vadd.f32 0.0, %v3833
      %3835 = vmatmul.f32.gmra.mxu0 %v611
      %v3836 = vpop.f32.mrf.mxu0
      %3837 = vmatmul.f32.gmra.mxu0 %v614
      %v3838 = vpop.f32.mrf.mxu0
      %v3839 = vadd.f32 0.0, %v3838
      %3840 = vmatmul.f32.gmra.mxu0 %v617
      %v3841 = vpop.f32.mrf.mxu0
      %v3842 = vadd.f32 0.0, %v3841
      %3843 = vmatmul.f32.gmra.mxu0 %v620
      %v3844 = vpop.f32.mrf.mxu0
      %3845 = vmatmul.f32.gmra.mxu0 %v623
      %v3846 = vpop.f32.mrf.mxu0
      %v3847 = vadd.f32 0.0, %v3846
      %3848 = vmatmul.f32.gmra.mxu0 %v626
      %v3849 = vpop.f32.mrf.mxu0
      %v3850 = vadd.f32 0.0, %v3849
      %3851 = vmatmul.f32.gmra.mxu0 %v629
      %v3852 = vpop.f32.mrf.mxu0
      %3853 = vmatmul.f32.gmra.mxu0 %v632
      %v3854 = vpop.f32.mrf.mxu0
      %v3855 = vadd.f32 0.0, %v3854
      %3856 = vmatmul.f32.gmra.mxu0 %v635
      %v3857 = vpop.f32.mrf.mxu0
      %v3858 = vadd.f32 0.0, %v3857
      %3859 = vmatmul.f32.gmra.mxu0 %v638
      %v3860 = vpop.f32.mrf.mxu0
      %3861 = vmatmul.f32.gmra.mxu0 %v641
      %v3862 = vpop.f32.mrf.mxu0
      %v3863 = vadd.f32 0.0, %v3862
      %3864 = vmatmul.f32.gmra.mxu0 %v644
      %v3865 = vpop.f32.mrf.mxu0
      %v3866 = vadd.f32 0.0, %v3865
      %3867 = vmatmul.f32.gmra.mxu0 %v647
      %v3868 = vpop.f32.mrf.mxu0
      %3869 = vmatmul.f32.gmra.mxu0 %v650
      %v3870 = vpop.f32.mrf.mxu0
      %v3871 = vadd.f32 0.0, %v3870
      %3872 = vmatmul.f32.gmra.mxu0 %v653
      %v3873 = vpop.f32.mrf.mxu0
      %v3874 = vadd.f32 0.0, %v3873
      %3875 = vmatmul.f32.gmra.mxu0 %v656
      %v3876 = vpop.f32.mrf.mxu0
      %3877 = vmatmul.f32.gmra.mxu0 %v659
      %v3878 = vpop.f32.mrf.mxu0
      %v3879 = vadd.f32 0.0, %v3878
      %3880 = vmatmul.f32.gmra.mxu0 %v662
      %v3881 = vpop.f32.mrf.mxu0
      %v3882 = vadd.f32 0.0, %v3881
      %3883 = vmatmul.f32.gmra.mxu0 %v665
      %v3884 = vpop.f32.mrf.mxu0
      %3885 = vmatmul.f32.gmra.mxu0 %v668
      %v3886 = vpop.f32.mrf.mxu0
      %v3887 = vadd.f32 0.0, %v3886
      %3888 = vmatmul.f32.gmra.mxu0 %v671
      %v3889 = vpop.f32.mrf.mxu0
      %v3890 = vadd.f32 0.0, %v3889
      %3891 = vmatmul.f32.gmra.mxu0 %v674
      %v3892 = vpop.f32.mrf.mxu0
      %3893 = vmatmul.f32.gmra.mxu0 %v677
      %v3894 = vpop.f32.mrf.mxu0
      %v3895 = vadd.f32 0.0, %v3894
      %3896 = vmatmul.f32.gmra.mxu0 %v680
      %v3897 = vpop.f32.mrf.mxu0
      %v3898 = vadd.f32 0.0, %v3897
      %3899 = vmatmul.f32.gmra.mxu0 %v683
      %v3900 = vpop.f32.mrf.mxu0
      %3901 = vmatmul.f32.gmra.mxu0 %v686
      %v3902 = vpop.f32.mrf.mxu0
      %v3903 = vadd.f32 0.0, %v3902
      %3904 = vmatmul.f32.gmra.mxu0 %v689
      %v3905 = vpop.f32.mrf.mxu0
      %v3906 = vadd.f32 0.0, %v3905
      %3907 = vmatmul.f32.gmra.mxu0 %v692
      %v3908 = vpop.f32.mrf.mxu0
      %3909 = vmatmul.f32.gmra.mxu0 %v695
      %v3910 = vpop.f32.mrf.mxu0
      %v3911 = vadd.f32 0.0, %v3910
      %3912 = vmatmul.f32.gmra.mxu0 %v698
      %v3913 = vpop.f32.mrf.mxu0
      %v3914 = vadd.f32 0.0, %v3913
      %3915 = vmatmul.f32.gmra.mxu0 %v701
      %v3916 = vpop.f32.mrf.mxu0
      %3917 = vmatmul.f32.gmra.mxu0 %v704
      %v3918 = vpop.f32.mrf.mxu0
      %3919 = vdwg.mxu0
      %v3921 = vsel %vm1031, %v474, 0
      %3923 = vmatpush.msra.mxu0 0.0
      %3924 = vmatpush.msra.mxu0 0.0
      %3925 = vmatpush.msra.mxu0 0.0
      %3926 = vmatpush.msra.mxu0 0.0
      %3927 = vmatpush.msra.mxu0 0.0
      %3928 = vmatpush.msra.mxu0 0.0
      %3929 = vmatpush.msra.mxu0 0.0
      %3930 = vmatpush.msra.mxu0 0.0
      %3931 = vmatpush.msra.mxu0 0.0
      %3932 = vmatpush.msra.mxu0 0.0
      %3933 = vmatpush.msra.mxu0 0.0
      %3934 = vmatpush.msra.mxu0 0.0
      %3935 = vmatpush.msra.mxu0 0.0
      %3936 = vmatpush.msra.mxu0 0.0
      %3937 = vmatpush.msra.mxu0 0.0
      %3938 = vmatpush.msra.mxu0 %v3921
      %3939 = vmatmul.f32.gmra.mxu0 %v867
      %v3940 = vpop.f32.mrf.mxu0
      %3941 = vmatmul.f32.gmra.mxu0 %v870
      %v3942 = vpop.f32.mrf.mxu0
      %3943 = vmatmul.f32.gmra.mxu0 %v873
      %v3944 = vpop.f32.mrf.mxu0
      %3945 = vmatmul.f32.gmra.mxu0 %v876
      %v3946 = vpop.f32.mrf.mxu0
      %3947 = vmatmul.f32.gmra.mxu0 %v879
      %v3948 = vpop.f32.mrf.mxu0
      %3949 = vmatmul.f32.gmra.mxu0 %v882
      %v3950 = vpop.f32.mrf.mxu0
      %3951 = vmatmul.f32.gmra.mxu0 %v885
      %v3952 = vpop.f32.mrf.mxu0
      %v3953 = vadd.f32 %v3791, %v3952
      %3954 = vmatmul.f32.gmra.mxu0 %v888
      %v3955 = vpop.f32.mrf.mxu0
      %v3956 = vadd.f32 %v3794, %v3955
      %3957 = vmatmul.f32.gmra.mxu0 %v891
      %v3958 = vpop.f32.mrf.mxu0
      %3959 = vmatmul.f32.gmra.mxu0 %v894
      %v3960 = vpop.f32.mrf.mxu0
      %v3961 = vadd.f32 %v3799, %v3960
      %3962 = vmatmul.f32.gmra.mxu0 %v897
      %v3963 = vpop.f32.mrf.mxu0
      %v3964 = vadd.f32 %v3802, %v3963
      %3965 = vmatmul.f32.gmra.mxu0 %v900
      %v3966 = vpop.f32.mrf.mxu0
      %3967 = vmatmul.f32.gmra.mxu0 %v903
      %v3968 = vpop.f32.mrf.mxu0
      %v3969 = vadd.f32 %v3807, %v3968
      %3970 = vmatmul.f32.gmra.mxu0 %v906
      %v3971 = vpop.f32.mrf.mxu0
      %v3972 = vadd.f32 %v3810, %v3971
      %3973 = vmatmul.f32.gmra.mxu0 %v909
      %v3974 = vpop.f32.mrf.mxu0
      %3975 = vmatmul.f32.gmra.mxu0 %v912
      %v3976 = vpop.f32.mrf.mxu0
      %v3977 = vadd.f32 %v3815, %v3976
      %3978 = vmatmul.f32.gmra.mxu0 %v915
      %v3979 = vpop.f32.mrf.mxu0
      %v3980 = vadd.f32 %v3818, %v3979
      %3981 = vmatmul.f32.gmra.mxu0 %v918
      %v3982 = vpop.f32.mrf.mxu0
      %3983 = vmatmul.f32.gmra.mxu0 %v921
      %v3984 = vpop.f32.mrf.mxu0
      %v3985 = vadd.f32 %v3823, %v3984
      %3986 = vmatmul.f32.gmra.mxu0 %v924
      %v3987 = vpop.f32.mrf.mxu0
      %v3988 = vadd.f32 %v3826, %v3987
      %3989 = vmatmul.f32.gmra.mxu0 %v927
      %v3990 = vpop.f32.mrf.mxu0
      %3991 = vmatmul.f32.gmra.mxu0 %v930
      %v3992 = vpop.f32.mrf.mxu0
      %v3993 = vadd.f32 %v3831, %v3992
      %3994 = vmatmul.f32.gmra.mxu0 %v933
      %v3995 = vpop.f32.mrf.mxu0
      %v3996 = vadd.f32 %v3834, %v3995
      %3997 = vmatmul.f32.gmra.mxu0 %v936
      %v3998 = vpop.f32.mrf.mxu0
      %3999 = vmatmul.f32.gmra.mxu0 %v939
      %v4000 = vpop.f32.mrf.mxu0
      %v4001 = vadd.f32 %v3839, %v4000
      %4002 = vmatmul.f32.gmra.mxu0 %v942
      %v4003 = vpop.f32.mrf.mxu0
      %v4004 = vadd.f32 %v3842, %v4003
      %4005 = vmatmul.f32.gmra.mxu0 %v945
      %v4006 = vpop.f32.mrf.mxu0
      %4007 = vmatmul.f32.gmra.mxu0 %v948
      %v4008 = vpop.f32.mrf.mxu0
      %v4009 = vadd.f32 %v3847, %v4008
      %4010 = vmatmul.f32.gmra.mxu0 %v951
      %v4011 = vpop.f32.mrf.mxu0
      %v4012 = vadd.f32 %v3850, %v4011
      %4013 = vmatmul.f32.gmra.mxu0 %v954
      %v4014 = vpop.f32.mrf.mxu0
      %4015 = vmatmul.f32.gmra.mxu0 %v957
      %v4016 = vpop.f32.mrf.mxu0
      %v4017 = vadd.f32 %v3855, %v4016
      %4018 = vmatmul.f32.gmra.mxu0 %v960
      %v4019 = vpop.f32.mrf.mxu0
      %v4020 = vadd.f32 %v3858, %v4019
      %4021 = vmatmul.f32.gmra.mxu0 %v963
      %v4022 = vpop.f32.mrf.mxu0
      %4023 = vmatmul.f32.gmra.mxu0 %v966
      %v4024 = vpop.f32.mrf.mxu0
      %v4025 = vadd.f32 %v3863, %v4024
      %4026 = vmatmul.f32.gmra.mxu0 %v969
      %v4027 = vpop.f32.mrf.mxu0
      %v4028 = vadd.f32 %v3866, %v4027
      %4029 = vmatmul.f32.gmra.mxu0 %v972
      %v4030 = vpop.f32.mrf.mxu0
      %4031 = vmatmul.f32.gmra.mxu0 %v975
      %v4032 = vpop.f32.mrf.mxu0
      %v4033 = vadd.f32 %v3871, %v4032
      %4034 = vmatmul.f32.gmra.mxu0 %v978
      %v4035 = vpop.f32.mrf.mxu0
      %v4036 = vadd.f32 %v3874, %v4035
      %4037 = vmatmul.f32.gmra.mxu0 %v981
      %v4038 = vpop.f32.mrf.mxu0
      %4039 = vmatmul.f32.gmra.mxu0 %v984
      %v4040 = vpop.f32.mrf.mxu0
      %v4041 = vadd.f32 %v3879, %v4040
      %4042 = vmatmul.f32.gmra.mxu0 %v987
      %v4043 = vpop.f32.mrf.mxu0
      %v4044 = vadd.f32 %v3882, %v4043
      %4045 = vmatmul.f32.gmra.mxu0 %v990
      %v4046 = vpop.f32.mrf.mxu0
      %4047 = vmatmul.f32.gmra.mxu0 %v993
      %v4048 = vpop.f32.mrf.mxu0
      %v4049 = vadd.f32 %v3887, %v4048
      %4050 = vmatmul.f32.gmra.mxu0 %v996
      %v4051 = vpop.f32.mrf.mxu0
      %v4052 = vadd.f32 %v3890, %v4051
      %4053 = vmatmul.f32.gmra.mxu0 %v999
      %v4054 = vpop.f32.mrf.mxu0
      %4055 = vmatmul.f32.gmra.mxu0 %v1002
      %v4056 = vpop.f32.mrf.mxu0
      %v4057 = vadd.f32 %v3895, %v4056
      %4058 = vmatmul.f32.gmra.mxu0 %v1005
      %v4059 = vpop.f32.mrf.mxu0
      %v4060 = vadd.f32 %v3898, %v4059
      %4061 = vmatmul.f32.gmra.mxu0 %v1008
      %v4062 = vpop.f32.mrf.mxu0
      %4063 = vmatmul.f32.gmra.mxu0 %v1011
      %v4064 = vpop.f32.mrf.mxu0
      %v4065 = vadd.f32 %v3903, %v4064
      %4066 = vmatmul.f32.gmra.mxu0 %v1014
      %v4067 = vpop.f32.mrf.mxu0
      %v4068 = vadd.f32 %v3906, %v4067
      %4069 = vmatmul.f32.gmra.mxu0 %v1017
      %v4070 = vpop.f32.mrf.mxu0
      %4071 = vmatmul.f32.gmra.mxu0 %v1020
      %v4072 = vpop.f32.mrf.mxu0
      %v4073 = vadd.f32 %v3911, %v4072
      %4074 = vmatmul.f32.gmra.mxu0 %v1023
      %v4075 = vpop.f32.mrf.mxu0
      %v4076 = vadd.f32 %v3914, %v4075
      %4077 = vmatmul.f32.gmra.mxu0 %v1026
      %v4078 = vpop.f32.mrf.mxu0
      %4079 = vmatmul.f32.gmra.mxu0 %v1029
      %v4080 = vpop.f32.mrf.mxu0
      %4081 = vdwg.mxu0
      %v4082 = vadd.f32 %v3729, %v3953
      %v4083 = vadd.f32 %v3730, %v3956
      %v4084 = vadd.f32 %v3731, %v3961
      %v4085 = vadd.f32 %v3732, %v3964
      %v4086 = vadd.f32 %v3733, %v3969
      %v4087 = vadd.f32 %v3734, %v3972
      %v4088 = vadd.f32 %v3735, %v3977
      %v4089 = vadd.f32 %v3736, %v3980
      %v4090 = vadd.f32 %v3737, %v3985
      %v4091 = vadd.f32 %v3738, %v3988
      %v4092 = vadd.f32 %v3739, %v3993
      %v4093 = vadd.f32 %v3740, %v3996
      %v4094 = vadd.f32 %v3741, %v4001
      %v4095 = vadd.f32 %v3742, %v4004
      %v4096 = vadd.f32 %v3743, %v4009
      %v4097 = vadd.f32 %v3744, %v4012
      %v4098 = vadd.f32 %v3745, %v4017
      %v4099 = vadd.f32 %v3746, %v4020
      %v4100 = vadd.f32 %v3747, %v4025
      %v4101 = vadd.f32 %v3748, %v4028
      %v4102 = vadd.f32 %v3749, %v4033
      %v4103 = vadd.f32 %v3750, %v4036
      %v4104 = vadd.f32 %v3751, %v4041
      %v4105 = vadd.f32 %v3752, %v4044
      %v4106 = vadd.f32 %v3753, %v4049
      %v4107 = vadd.f32 %v3754, %v4052
      %v4108 = vadd.f32 %v3755, %v4057
      %v4109 = vadd.f32 %v3756, %v4060
      %v4110 = vadd.f32 %v3757, %v4065
      %v4111 = vadd.f32 %v3758, %v4068
      %v4112 = vadd.f32 %v3759, %v4073
      %v4113 = vadd.f32 %v3760, %v4076
      %4114 = vmatpush.msra.mxu0 0.0
      %4115 = vmatpush.msra.mxu0 0.0
      %4116 = vmatpush.msra.mxu0 0.0
      %4117 = vmatpush.msra.mxu0 0.0
      %4118 = vmatpush.msra.mxu0 0.0
      %4119 = vmatpush.msra.mxu0 0.0
      %4120 = vmatpush.msra.mxu0 0.0
      %4121 = vmatpush.msra.mxu0 0.0
      %4122 = vmatpush.msra.mxu0 0.0
      %4123 = vmatpush.msra.mxu0 %v532
      %4124 = vmatpush.msra.mxu0 %v531
      %4125 = vmatpush.msra.mxu0 %v530
      %4126 = vmatpush.msra.mxu0 %v529
      %4127 = vmatpush.msra.mxu0 %v528
      %4128 = vmatpush.msra.mxu0 %v527
      %4129 = vmatpush.msra.mxu0 %v526
      %4130 = vmatmul.f32.gmra.mxu0 %v542
      %v4131 = vpop.f32.mrf.mxu0
      %4132 = vmatmul.f32.gmra.mxu0 %v545
      %v4133 = vpop.f32.mrf.mxu0
      %4134 = vmatmul.f32.gmra.mxu0 %v548
      %v4135 = vpop.f32.mrf.mxu0
      %4136 = vmatmul.f32.gmra.mxu0 %v551
      %v4137 = vpop.f32.mrf.mxu0
      %4138 = vmatmul.f32.gmra.mxu0 %v554
      %v4139 = vpop.f32.mrf.mxu0
      %4140 = vmatmul.f32.gmra.mxu0 %v557
      %v4141 = vpop.f32.mrf.mxu0
      %4142 = vmatmul.f32.gmra.mxu0 %v560
      %v4143 = vpop.f32.mrf.mxu0
      %v4144 = vadd.f32 0.0, %v4143
      %4145 = vmatmul.f32.gmra.mxu0 %v563
      %v4146 = vpop.f32.mrf.mxu0
      %v4147 = vadd.f32 0.0, %v4146
      %4148 = vmatmul.f32.gmra.mxu0 %v566
      %v4149 = vpop.f32.mrf.mxu0
      %v4150 = vadd.f32 0.0, %v4149
      %4151 = vmatmul.f32.gmra.mxu0 %v569
      %v4152 = vpop.f32.mrf.mxu0
      %v4153 = vadd.f32 0.0, %v4152
      %4154 = vmatmul.f32.gmra.mxu0 %v572
      %v4155 = vpop.f32.mrf.mxu0
      %v4156 = vadd.f32 0.0, %v4155
      %4157 = vmatmul.f32.gmra.mxu0 %v575
      %v4158 = vpop.f32.mrf.mxu0
      %v4159 = vadd.f32 0.0, %v4158
      %4160 = vmatmul.f32.gmra.mxu0 %v578
      %v4161 = vpop.f32.mrf.mxu0
      %v4162 = vadd.f32 0.0, %v4161
      %4163 = vmatmul.f32.gmra.mxu0 %v581
      %v4164 = vpop.f32.mrf.mxu0
      %v4165 = vadd.f32 0.0, %v4164
      %4166 = vmatmul.f32.gmra.mxu0 %v584
      %v4167 = vpop.f32.mrf.mxu0
      %v4168 = vadd.f32 0.0, %v4167
      %4169 = vmatmul.f32.gmra.mxu0 %v587
      %v4170 = vpop.f32.mrf.mxu0
      %v4171 = vadd.f32 0.0, %v4170
      %4172 = vmatmul.f32.gmra.mxu0 %v590
      %v4173 = vpop.f32.mrf.mxu0
      %v4174 = vadd.f32 0.0, %v4173
      %4175 = vmatmul.f32.gmra.mxu0 %v593
      %v4176 = vpop.f32.mrf.mxu0
      %v4177 = vadd.f32 0.0, %v4176
      %4178 = vmatmul.f32.gmra.mxu0 %v596
      %v4179 = vpop.f32.mrf.mxu0
      %v4180 = vadd.f32 0.0, %v4179
      %4181 = vmatmul.f32.gmra.mxu0 %v599
      %v4182 = vpop.f32.mrf.mxu0
      %v4183 = vadd.f32 0.0, %v4182
      %4184 = vmatmul.f32.gmra.mxu0 %v602
      %v4185 = vpop.f32.mrf.mxu0
      %v4186 = vadd.f32 0.0, %v4185
      %4187 = vmatmul.f32.gmra.mxu0 %v605
      %v4188 = vpop.f32.mrf.mxu0
      %v4189 = vadd.f32 0.0, %v4188
      %4190 = vmatmul.f32.gmra.mxu0 %v608
      %v4191 = vpop.f32.mrf.mxu0
      %v4192 = vadd.f32 0.0, %v4191
      %4193 = vmatmul.f32.gmra.mxu0 %v611
      %v4194 = vpop.f32.mrf.mxu0
      %v4195 = vadd.f32 0.0, %v4194
      %4196 = vmatmul.f32.gmra.mxu0 %v614
      %v4197 = vpop.f32.mrf.mxu0
      %v4198 = vadd.f32 0.0, %v4197
      %4199 = vmatmul.f32.gmra.mxu0 %v617
      %v4200 = vpop.f32.mrf.mxu0
      %v4201 = vadd.f32 0.0, %v4200
      %4202 = vmatmul.f32.gmra.mxu0 %v620
      %v4203 = vpop.f32.mrf.mxu0
      %v4204 = vadd.f32 0.0, %v4203
      %4205 = vmatmul.f32.gmra.mxu0 %v623
      %v4206 = vpop.f32.mrf.mxu0
      %v4207 = vadd.f32 0.0, %v4206
      %4208 = vmatmul.f32.gmra.mxu0 %v626
      %v4209 = vpop.f32.mrf.mxu0
      %v4210 = vadd.f32 0.0, %v4209
      %4211 = vmatmul.f32.gmra.mxu0 %v629
      %v4212 = vpop.f32.mrf.mxu0
      %v4213 = vadd.f32 0.0, %v4212
      %4214 = vmatmul.f32.gmra.mxu0 %v632
      %v4215 = vpop.f32.mrf.mxu0
      %v4216 = vadd.f32 0.0, %v4215
      %4217 = vmatmul.f32.gmra.mxu0 %v635
      %v4218 = vpop.f32.mrf.mxu0
      %v4219 = vadd.f32 0.0, %v4218
      %4220 = vmatmul.f32.gmra.mxu0 %v638
      %v4221 = vpop.f32.mrf.mxu0
      %v4222 = vadd.f32 0.0, %v4221
      %4223 = vmatmul.f32.gmra.mxu0 %v641
      %v4224 = vpop.f32.mrf.mxu0
      %v4225 = vadd.f32 0.0, %v4224
      %4226 = vmatmul.f32.gmra.mxu0 %v644
      %v4227 = vpop.f32.mrf.mxu0
      %v4228 = vadd.f32 0.0, %v4227
      %4229 = vmatmul.f32.gmra.mxu0 %v647
      %v4230 = vpop.f32.mrf.mxu0
      %v4231 = vadd.f32 0.0, %v4230
      %4232 = vmatmul.f32.gmra.mxu0 %v650
      %v4233 = vpop.f32.mrf.mxu0
      %v4234 = vadd.f32 0.0, %v4233
      %4235 = vmatmul.f32.gmra.mxu0 %v653
      %v4236 = vpop.f32.mrf.mxu0
      %v4237 = vadd.f32 0.0, %v4236
      %4238 = vmatmul.f32.gmra.mxu0 %v656
      %v4239 = vpop.f32.mrf.mxu0
      %v4240 = vadd.f32 0.0, %v4239
      %4241 = vmatmul.f32.gmra.mxu0 %v659
      %v4242 = vpop.f32.mrf.mxu0
      %v4243 = vadd.f32 0.0, %v4242
      %4244 = vmatmul.f32.gmra.mxu0 %v662
      %v4245 = vpop.f32.mrf.mxu0
      %v4246 = vadd.f32 0.0, %v4245
      %4247 = vmatmul.f32.gmra.mxu0 %v665
      %v4248 = vpop.f32.mrf.mxu0
      %v4249 = vadd.f32 0.0, %v4248
      %4250 = vmatmul.f32.gmra.mxu0 %v668
      %v4251 = vpop.f32.mrf.mxu0
      %v4252 = vadd.f32 0.0, %v4251
      %4253 = vmatmul.f32.gmra.mxu0 %v671
      %v4254 = vpop.f32.mrf.mxu0
      %v4255 = vadd.f32 0.0, %v4254
      %4256 = vmatmul.f32.gmra.mxu0 %v674
      %v4257 = vpop.f32.mrf.mxu0
      %v4258 = vadd.f32 0.0, %v4257
      %4259 = vmatmul.f32.gmra.mxu0 %v677
      %v4260 = vpop.f32.mrf.mxu0
      %v4261 = vadd.f32 0.0, %v4260
      %4262 = vmatmul.f32.gmra.mxu0 %v680
      %v4263 = vpop.f32.mrf.mxu0
      %v4264 = vadd.f32 0.0, %v4263
      %4265 = vmatmul.f32.gmra.mxu0 %v683
      %v4266 = vpop.f32.mrf.mxu0
      %v4267 = vadd.f32 0.0, %v4266
      %4268 = vmatmul.f32.gmra.mxu0 %v686
      %v4269 = vpop.f32.mrf.mxu0
      %v4270 = vadd.f32 0.0, %v4269
      %4271 = vmatmul.f32.gmra.mxu0 %v689
      %v4272 = vpop.f32.mrf.mxu0
      %v4273 = vadd.f32 0.0, %v4272
      %4274 = vmatmul.f32.gmra.mxu0 %v692
      %v4275 = vpop.f32.mrf.mxu0
      %v4276 = vadd.f32 0.0, %v4275
      %4277 = vmatmul.f32.gmra.mxu0 %v695
      %v4278 = vpop.f32.mrf.mxu0
      %v4279 = vadd.f32 0.0, %v4278
      %4280 = vmatmul.f32.gmra.mxu0 %v698
      %v4281 = vpop.f32.mrf.mxu0
      %v4282 = vadd.f32 0.0, %v4281
      %4283 = vmatmul.f32.gmra.mxu0 %v701
      %v4284 = vpop.f32.mrf.mxu0
      %v4285 = vadd.f32 0.0, %v4284
      %4286 = vmatmul.f32.gmra.mxu0 %v704
      %v4287 = vpop.f32.mrf.mxu0
      %4288 = vdwg.mxu0
      %v4290 = vsel %vm1031, %v475, 0
      %4292 = vmatpush.msra.mxu0 0.0
      %4293 = vmatpush.msra.mxu0 0.0
      %4294 = vmatpush.msra.mxu0 0.0
      %4295 = vmatpush.msra.mxu0 0.0
      %4296 = vmatpush.msra.mxu0 0.0
      %4297 = vmatpush.msra.mxu0 0.0
      %4298 = vmatpush.msra.mxu0 0.0
      %4299 = vmatpush.msra.mxu0 0.0
      %4300 = vmatpush.msra.mxu0 0.0
      %4301 = vmatpush.msra.mxu0 0.0
      %4302 = vmatpush.msra.mxu0 0.0
      %4303 = vmatpush.msra.mxu0 0.0
      %4304 = vmatpush.msra.mxu0 0.0
      %4305 = vmatpush.msra.mxu0 0.0
      %4306 = vmatpush.msra.mxu0 0.0
      %4307 = vmatpush.msra.mxu0 %v4290
      %4308 = vmatmul.f32.gmra.mxu0 %v867
      %v4309 = vpop.f32.mrf.mxu0
      %4310 = vmatmul.f32.gmra.mxu0 %v870
      %v4311 = vpop.f32.mrf.mxu0
      %4312 = vmatmul.f32.gmra.mxu0 %v873
      %v4313 = vpop.f32.mrf.mxu0
      %4314 = vmatmul.f32.gmra.mxu0 %v876
      %v4315 = vpop.f32.mrf.mxu0
      %4316 = vmatmul.f32.gmra.mxu0 %v879
      %v4317 = vpop.f32.mrf.mxu0
      %4318 = vmatmul.f32.gmra.mxu0 %v882
      %v4319 = vpop.f32.mrf.mxu0
      %4320 = vmatmul.f32.gmra.mxu0 %v885
      %v4321 = vpop.f32.mrf.mxu0
      %v4322 = vadd.f32 %v4144, %v4321
      %4323 = vmatmul.f32.gmra.mxu0 %v888
      %v4324 = vpop.f32.mrf.mxu0
      %v4325 = vadd.f32 %v4147, %v4324
      %4326 = vmatmul.f32.gmra.mxu0 %v891
      %v4327 = vpop.f32.mrf.mxu0
      %v4328 = vadd.f32 %v4150, %v4327
      %4329 = vmatmul.f32.gmra.mxu0 %v894
      %v4330 = vpop.f32.mrf.mxu0
      %v4331 = vadd.f32 %v4153, %v4330
      %4332 = vmatmul.f32.gmra.mxu0 %v897
      %v4333 = vpop.f32.mrf.mxu0
      %v4334 = vadd.f32 %v4156, %v4333
      %4335 = vmatmul.f32.gmra.mxu0 %v900
      %v4336 = vpop.f32.mrf.mxu0
      %v4337 = vadd.f32 %v4159, %v4336
      %4338 = vmatmul.f32.gmra.mxu0 %v903
      %v4339 = vpop.f32.mrf.mxu0
      %v4340 = vadd.f32 %v4162, %v4339
      %4341 = vmatmul.f32.gmra.mxu0 %v906
      %v4342 = vpop.f32.mrf.mxu0
      %v4343 = vadd.f32 %v4165, %v4342
      %4344 = vmatmul.f32.gmra.mxu0 %v909
      %v4345 = vpop.f32.mrf.mxu0
      %v4346 = vadd.f32 %v4168, %v4345
      %4347 = vmatmul.f32.gmra.mxu0 %v912
      %v4348 = vpop.f32.mrf.mxu0
      %v4349 = vadd.f32 %v4171, %v4348
      %4350 = vmatmul.f32.gmra.mxu0 %v915
      %v4351 = vpop.f32.mrf.mxu0
      %v4352 = vadd.f32 %v4174, %v4351
      %4353 = vmatmul.f32.gmra.mxu0 %v918
      %v4354 = vpop.f32.mrf.mxu0
      %v4355 = vadd.f32 %v4177, %v4354
      %4356 = vmatmul.f32.gmra.mxu0 %v921
      %v4357 = vpop.f32.mrf.mxu0
      %v4358 = vadd.f32 %v4180, %v4357
      %4359 = vmatmul.f32.gmra.mxu0 %v924
      %v4360 = vpop.f32.mrf.mxu0
      %v4361 = vadd.f32 %v4183, %v4360
      %4362 = vmatmul.f32.gmra.mxu0 %v927
      %v4363 = vpop.f32.mrf.mxu0
      %v4364 = vadd.f32 %v4186, %v4363
      %4365 = vmatmul.f32.gmra.mxu0 %v930
      %v4366 = vpop.f32.mrf.mxu0
      %v4367 = vadd.f32 %v4189, %v4366
      %4368 = vmatmul.f32.gmra.mxu0 %v933
      %v4369 = vpop.f32.mrf.mxu0
      %v4370 = vadd.f32 %v4192, %v4369
      %4371 = vmatmul.f32.gmra.mxu0 %v936
      %v4372 = vpop.f32.mrf.mxu0
      %v4373 = vadd.f32 %v4195, %v4372
      %4374 = vmatmul.f32.gmra.mxu0 %v939
      %v4375 = vpop.f32.mrf.mxu0
      %v4376 = vadd.f32 %v4198, %v4375
      %4377 = vmatmul.f32.gmra.mxu0 %v942
      %v4378 = vpop.f32.mrf.mxu0
      %v4379 = vadd.f32 %v4201, %v4378
      %4380 = vmatmul.f32.gmra.mxu0 %v945
      %v4381 = vpop.f32.mrf.mxu0
      %v4382 = vadd.f32 %v4204, %v4381
      %4383 = vmatmul.f32.gmra.mxu0 %v948
      %v4384 = vpop.f32.mrf.mxu0
      %v4385 = vadd.f32 %v4207, %v4384
      %4386 = vmatmul.f32.gmra.mxu0 %v951
      %v4387 = vpop.f32.mrf.mxu0
      %v4388 = vadd.f32 %v4210, %v4387
      %4389 = vmatmul.f32.gmra.mxu0 %v954
      %v4390 = vpop.f32.mrf.mxu0
      %v4391 = vadd.f32 %v4213, %v4390
      %4392 = vmatmul.f32.gmra.mxu0 %v957
      %v4393 = vpop.f32.mrf.mxu0
      %v4394 = vadd.f32 %v4216, %v4393
      %4395 = vmatmul.f32.gmra.mxu0 %v960
      %v4396 = vpop.f32.mrf.mxu0
      %v4397 = vadd.f32 %v4219, %v4396
      %4398 = vmatmul.f32.gmra.mxu0 %v963
      %v4399 = vpop.f32.mrf.mxu0
      %v4400 = vadd.f32 %v4222, %v4399
      %4401 = vmatmul.f32.gmra.mxu0 %v966
      %v4402 = vpop.f32.mrf.mxu0
      %v4403 = vadd.f32 %v4225, %v4402
      %4404 = vmatmul.f32.gmra.mxu0 %v969
      %v4405 = vpop.f32.mrf.mxu0
      %v4406 = vadd.f32 %v4228, %v4405
      %4407 = vmatmul.f32.gmra.mxu0 %v972
      %v4408 = vpop.f32.mrf.mxu0
      %v4409 = vadd.f32 %v4231, %v4408
      %4410 = vmatmul.f32.gmra.mxu0 %v975
      %v4411 = vpop.f32.mrf.mxu0
      %v4412 = vadd.f32 %v4234, %v4411
      %4413 = vmatmul.f32.gmra.mxu0 %v978
      %v4414 = vpop.f32.mrf.mxu0
      %v4415 = vadd.f32 %v4237, %v4414
      %4416 = vmatmul.f32.gmra.mxu0 %v981
      %v4417 = vpop.f32.mrf.mxu0
      %v4418 = vadd.f32 %v4240, %v4417
      %4419 = vmatmul.f32.gmra.mxu0 %v984
      %v4420 = vpop.f32.mrf.mxu0
      %v4421 = vadd.f32 %v4243, %v4420
      %4422 = vmatmul.f32.gmra.mxu0 %v987
      %v4423 = vpop.f32.mrf.mxu0
      %v4424 = vadd.f32 %v4246, %v4423
      %4425 = vmatmul.f32.gmra.mxu0 %v990
      %v4426 = vpop.f32.mrf.mxu0
      %v4427 = vadd.f32 %v4249, %v4426
      %4428 = vmatmul.f32.gmra.mxu0 %v993
      %v4429 = vpop.f32.mrf.mxu0
      %v4430 = vadd.f32 %v4252, %v4429
      %4431 = vmatmul.f32.gmra.mxu0 %v996
      %v4432 = vpop.f32.mrf.mxu0
      %v4433 = vadd.f32 %v4255, %v4432
      %4434 = vmatmul.f32.gmra.mxu0 %v999
      %v4435 = vpop.f32.mrf.mxu0
      %v4436 = vadd.f32 %v4258, %v4435
      %4437 = vmatmul.f32.gmra.mxu0 %v1002
      %v4438 = vpop.f32.mrf.mxu0
      %v4439 = vadd.f32 %v4261, %v4438
      %4440 = vmatmul.f32.gmra.mxu0 %v1005
      %v4441 = vpop.f32.mrf.mxu0
      %v4442 = vadd.f32 %v4264, %v4441
      %4443 = vmatmul.f32.gmra.mxu0 %v1008
      %v4444 = vpop.f32.mrf.mxu0
      %v4445 = vadd.f32 %v4267, %v4444
      %4446 = vmatmul.f32.gmra.mxu0 %v1011
      %v4447 = vpop.f32.mrf.mxu0
      %v4448 = vadd.f32 %v4270, %v4447
      %4449 = vmatmul.f32.gmra.mxu0 %v1014
      %v4450 = vpop.f32.mrf.mxu0
      %v4451 = vadd.f32 %v4273, %v4450
      %4452 = vmatmul.f32.gmra.mxu0 %v1017
      %v4453 = vpop.f32.mrf.mxu0
      %v4454 = vadd.f32 %v4276, %v4453
      %4455 = vmatmul.f32.gmra.mxu0 %v1020
      %v4456 = vpop.f32.mrf.mxu0
      %v4457 = vadd.f32 %v4279, %v4456
      %4458 = vmatmul.f32.gmra.mxu0 %v1023
      %v4459 = vpop.f32.mrf.mxu0
      %v4460 = vadd.f32 %v4282, %v4459
      %4461 = vmatmul.f32.gmra.mxu0 %v1026
      %v4462 = vpop.f32.mrf.mxu0
      %v4463 = vadd.f32 %v4285, %v4462
      %4464 = vmatmul.f32.gmra.mxu0 %v1029
      %v4465 = vpop.f32.mrf.mxu0
      %4466 = vdwg.mxu0
      %v4515 = vrot.slane %v4322, 1
      %v4516 = vrot.slane %v4325, 1
      %v4517 = vsel %vm1627, %v4515, %v4516
      %v4518 = vrot.slane %v4328, 1
      %v4519 = vsel %vm1627, %v4516, %v4518
      %v4520 = vrot.slane %v4331, 1
      %v4521 = vrot.slane %v4334, 1
      %v4522 = vsel %vm1627, %v4520, %v4521
      %v4523 = vrot.slane %v4337, 1
      %v4524 = vsel %vm1627, %v4521, %v4523
      %v4525 = vrot.slane %v4340, 1
      %v4526 = vrot.slane %v4343, 1
      %v4527 = vsel %vm1627, %v4525, %v4526
      %v4528 = vrot.slane %v4346, 1
      %v4529 = vsel %vm1627, %v4526, %v4528
      %v4530 = vrot.slane %v4349, 1
      %v4531 = vrot.slane %v4352, 1
      %v4532 = vsel %vm1627, %v4530, %v4531
      %v4533 = vrot.slane %v4355, 1
      %v4534 = vsel %vm1627, %v4531, %v4533
      %v4535 = vrot.slane %v4358, 1
      %v4536 = vrot.slane %v4361, 1
      %v4537 = vsel %vm1627, %v4535, %v4536
      %v4538 = vrot.slane %v4364, 1
      %v4539 = vsel %vm1627, %v4536, %v4538
      %v4540 = vrot.slane %v4367, 1
      %v4541 = vrot.slane %v4370, 1
      %v4542 = vsel %vm1627, %v4540, %v4541
      %v4543 = vrot.slane %v4373, 1
      %v4544 = vsel %vm1627, %v4541, %v4543
      %v4545 = vrot.slane %v4376, 1
      %v4546 = vrot.slane %v4379, 1
      %v4547 = vsel %vm1627, %v4545, %v4546
      %v4548 = vrot.slane %v4382, 1
      %v4549 = vsel %vm1627, %v4546, %v4548
      %v4550 = vrot.slane %v4385, 1
      %v4551 = vrot.slane %v4388, 1
      %v4552 = vsel %vm1627, %v4550, %v4551
      %v4553 = vrot.slane %v4391, 1
      %v4554 = vsel %vm1627, %v4551, %v4553
      %v4555 = vrot.slane %v4394, 1
      %v4556 = vrot.slane %v4397, 1
      %v4557 = vsel %vm1627, %v4555, %v4556
      %v4558 = vrot.slane %v4400, 1
      %v4559 = vsel %vm1627, %v4556, %v4558
      %v4560 = vrot.slane %v4403, 1
      %v4561 = vrot.slane %v4406, 1
      %v4562 = vsel %vm1627, %v4560, %v4561
      %v4563 = vrot.slane %v4409, 1
      %v4564 = vsel %vm1627, %v4561, %v4563
      %v4565 = vrot.slane %v4412, 1
      %v4566 = vrot.slane %v4415, 1
      %v4567 = vsel %vm1627, %v4565, %v4566
      %v4568 = vrot.slane %v4418, 1
      %v4569 = vsel %vm1627, %v4566, %v4568
      %v4570 = vrot.slane %v4421, 1
      %v4571 = vrot.slane %v4424, 1
      %v4572 = vsel %vm1627, %v4570, %v4571
      %v4573 = vrot.slane %v4427, 1
      %v4574 = vsel %vm1627, %v4571, %v4573
      %v4575 = vrot.slane %v4430, 1
      %v4576 = vrot.slane %v4433, 1
      %v4577 = vsel %vm1627, %v4575, %v4576
      %v4578 = vrot.slane %v4436, 1
      %v4579 = vsel %vm1627, %v4576, %v4578
      %v4580 = vrot.slane %v4439, 1
      %v4581 = vrot.slane %v4442, 1
      %v4582 = vsel %vm1627, %v4580, %v4581
      %v4583 = vrot.slane %v4445, 1
      %v4584 = vsel %vm1627, %v4581, %v4583
      %v4585 = vrot.slane %v4448, 1
      %v4586 = vrot.slane %v4451, 1
      %v4587 = vsel %vm1627, %v4585, %v4586
      %v4588 = vrot.slane %v4454, 1
      %v4589 = vsel %vm1627, %v4586, %v4588
      %v4590 = vrot.slane %v4457, 1
      %v4591 = vrot.slane %v4460, 1
      %v4592 = vsel %vm1627, %v4590, %v4591
      %v4593 = vrot.slane %v4463, 1
      %v4594 = vsel %vm1627, %v4591, %v4593
      %v4627 = vadd.f32 %v4082, %v4517
      %v4628 = vadd.f32 %v4083, %v4519
      %v4629 = vadd.f32 %v4084, %v4522
      %v4630 = vadd.f32 %v4085, %v4524
      %v4631 = vadd.f32 %v4086, %v4527
      %v4632 = vadd.f32 %v4087, %v4529
      %v4633 = vadd.f32 %v4088, %v4532
      %v4634 = vadd.f32 %v4089, %v4534
      %v4635 = vadd.f32 %v4090, %v4537
      %v4636 = vadd.f32 %v4091, %v4539
      %v4637 = vadd.f32 %v4092, %v4542
      %v4638 = vadd.f32 %v4093, %v4544
      %v4639 = vadd.f32 %v4094, %v4547
      %v4640 = vadd.f32 %v4095, %v4549
      %v4641 = vadd.f32 %v4096, %v4552
      %v4642 = vadd.f32 %v4097, %v4554
      %v4643 = vadd.f32 %v4098, %v4557
      %v4644 = vadd.f32 %v4099, %v4559
      %v4645 = vadd.f32 %v4100, %v4562
      %v4646 = vadd.f32 %v4101, %v4564
      %v4647 = vadd.f32 %v4102, %v4567
      %v4648 = vadd.f32 %v4103, %v4569
      %v4649 = vadd.f32 %v4104, %v4572
      %v4650 = vadd.f32 %v4105, %v4574
      %v4651 = vadd.f32 %v4106, %v4577
      %v4652 = vadd.f32 %v4107, %v4579
      %v4653 = vadd.f32 %v4108, %v4582
      %v4654 = vadd.f32 %v4109, %v4584
      %v4655 = vadd.f32 %v4110, %v4587
      %v4656 = vadd.f32 %v4111, %v4589
      %v4657 = vadd.f32 %v4112, %v4592
      %v4658 = vadd.f32 %v4113, %v4594
      %4659 = vmatpush.msra.mxu0 0.0
      %4660 = vmatpush.msra.mxu0 0.0
      %4661 = vmatpush.msra.mxu0 0.0
      %4662 = vmatpush.msra.mxu0 0.0
      %4663 = vmatpush.msra.mxu0 0.0
      %4664 = vmatpush.msra.mxu0 0.0
      %4665 = vmatpush.msra.mxu0 0.0
      %4666 = vmatpush.msra.mxu0 0.0
      %4667 = vmatpush.msra.mxu0 0.0
      %4668 = vmatpush.msra.mxu0 %v539
      %4669 = vmatpush.msra.mxu0 %v538
      %4670 = vmatpush.msra.mxu0 %v537
      %4671 = vmatpush.msra.mxu0 %v536
      %4672 = vmatpush.msra.mxu0 %v535
      %4673 = vmatpush.msra.mxu0 %v534
      %4674 = vmatpush.msra.mxu0 %v533
      %4675 = vmatmul.f32.gmra.mxu0 %v542
      %v4676 = vpop.f32.mrf.mxu0
      %4677 = vmatmul.f32.gmra.mxu0 %v545
      %v4678 = vpop.f32.mrf.mxu0
      %4679 = vmatmul.f32.gmra.mxu0 %v548
      %v4680 = vpop.f32.mrf.mxu0
      %4681 = vmatmul.f32.gmra.mxu0 %v551
      %v4682 = vpop.f32.mrf.mxu0
      %4683 = vmatmul.f32.gmra.mxu0 %v554
      %v4684 = vpop.f32.mrf.mxu0
      %4685 = vmatmul.f32.gmra.mxu0 %v557
      %v4686 = vpop.f32.mrf.mxu0
      %4687 = vmatmul.f32.gmra.mxu0 %v560
      %v4688 = vpop.f32.mrf.mxu0
      %v4689 = vadd.f32 0.0, %v4688
      %4690 = vmatmul.f32.gmra.mxu0 %v563
      %v4691 = vpop.f32.mrf.mxu0
      %v4692 = vadd.f32 0.0, %v4691
      %4693 = vmatmul.f32.gmra.mxu0 %v566
      %v4694 = vpop.f32.mrf.mxu0
      %v4695 = vadd.f32 0.0, %v4694
      %4696 = vmatmul.f32.gmra.mxu0 %v569
      %v4697 = vpop.f32.mrf.mxu0
      %v4698 = vadd.f32 0.0, %v4697
      %4699 = vmatmul.f32.gmra.mxu0 %v572
      %v4700 = vpop.f32.mrf.mxu0
      %v4701 = vadd.f32 0.0, %v4700
      %4702 = vmatmul.f32.gmra.mxu0 %v575
      %v4703 = vpop.f32.mrf.mxu0
      %v4704 = vadd.f32 0.0, %v4703
      %4705 = vmatmul.f32.gmra.mxu0 %v578
      %v4706 = vpop.f32.mrf.mxu0
      %v4707 = vadd.f32 0.0, %v4706
      %4708 = vmatmul.f32.gmra.mxu0 %v581
      %v4709 = vpop.f32.mrf.mxu0
      %v4710 = vadd.f32 0.0, %v4709
      %4711 = vmatmul.f32.gmra.mxu0 %v584
      %v4712 = vpop.f32.mrf.mxu0
      %v4713 = vadd.f32 0.0, %v4712
      %4714 = vmatmul.f32.gmra.mxu0 %v587
      %v4715 = vpop.f32.mrf.mxu0
      %v4716 = vadd.f32 0.0, %v4715
      %4717 = vmatmul.f32.gmra.mxu0 %v590
      %v4718 = vpop.f32.mrf.mxu0
      %v4719 = vadd.f32 0.0, %v4718
      %4720 = vmatmul.f32.gmra.mxu0 %v593
      %v4721 = vpop.f32.mrf.mxu0
      %v4722 = vadd.f32 0.0, %v4721
      %4723 = vmatmul.f32.gmra.mxu0 %v596
      %v4724 = vpop.f32.mrf.mxu0
      %v4725 = vadd.f32 0.0, %v4724
      %4726 = vmatmul.f32.gmra.mxu0 %v599
      %v4727 = vpop.f32.mrf.mxu0
      %v4728 = vadd.f32 0.0, %v4727
      %4729 = vmatmul.f32.gmra.mxu0 %v602
      %v4730 = vpop.f32.mrf.mxu0
      %v4731 = vadd.f32 0.0, %v4730
      %4732 = vmatmul.f32.gmra.mxu0 %v605
      %v4733 = vpop.f32.mrf.mxu0
      %v4734 = vadd.f32 0.0, %v4733
      %4735 = vmatmul.f32.gmra.mxu0 %v608
      %v4736 = vpop.f32.mrf.mxu0
      %v4737 = vadd.f32 0.0, %v4736
      %4738 = vmatmul.f32.gmra.mxu0 %v611
      %v4739 = vpop.f32.mrf.mxu0
      %v4740 = vadd.f32 0.0, %v4739
      %4741 = vmatmul.f32.gmra.mxu0 %v614
      %v4742 = vpop.f32.mrf.mxu0
      %v4743 = vadd.f32 0.0, %v4742
      %4744 = vmatmul.f32.gmra.mxu0 %v617
      %v4745 = vpop.f32.mrf.mxu0
      %v4746 = vadd.f32 0.0, %v4745
      %4747 = vmatmul.f32.gmra.mxu0 %v620
      %v4748 = vpop.f32.mrf.mxu0
      %v4749 = vadd.f32 0.0, %v4748
      %4750 = vmatmul.f32.gmra.mxu0 %v623
      %v4751 = vpop.f32.mrf.mxu0
      %v4752 = vadd.f32 0.0, %v4751
      %4753 = vmatmul.f32.gmra.mxu0 %v626
      %v4754 = vpop.f32.mrf.mxu0
      %v4755 = vadd.f32 0.0, %v4754
      %4756 = vmatmul.f32.gmra.mxu0 %v629
      %v4757 = vpop.f32.mrf.mxu0
      %v4758 = vadd.f32 0.0, %v4757
      %4759 = vmatmul.f32.gmra.mxu0 %v632
      %v4760 = vpop.f32.mrf.mxu0
      %v4761 = vadd.f32 0.0, %v4760
      %4762 = vmatmul.f32.gmra.mxu0 %v635
      %v4763 = vpop.f32.mrf.mxu0
      %v4764 = vadd.f32 0.0, %v4763
      %4765 = vmatmul.f32.gmra.mxu0 %v638
      %v4766 = vpop.f32.mrf.mxu0
      %v4767 = vadd.f32 0.0, %v4766
      %4768 = vmatmul.f32.gmra.mxu0 %v641
      %v4769 = vpop.f32.mrf.mxu0
      %v4770 = vadd.f32 0.0, %v4769
      %4771 = vmatmul.f32.gmra.mxu0 %v644
      %v4772 = vpop.f32.mrf.mxu0
      %v4773 = vadd.f32 0.0, %v4772
      %4774 = vmatmul.f32.gmra.mxu0 %v647
      %v4775 = vpop.f32.mrf.mxu0
      %v4776 = vadd.f32 0.0, %v4775
      %4777 = vmatmul.f32.gmra.mxu0 %v650
      %v4778 = vpop.f32.mrf.mxu0
      %v4779 = vadd.f32 0.0, %v4778
      %4780 = vmatmul.f32.gmra.mxu0 %v653
      %v4781 = vpop.f32.mrf.mxu0
      %v4782 = vadd.f32 0.0, %v4781
      %4783 = vmatmul.f32.gmra.mxu0 %v656
      %v4784 = vpop.f32.mrf.mxu0
      %v4785 = vadd.f32 0.0, %v4784
      %4786 = vmatmul.f32.gmra.mxu0 %v659
      %v4787 = vpop.f32.mrf.mxu0
      %v4788 = vadd.f32 0.0, %v4787
      %4789 = vmatmul.f32.gmra.mxu0 %v662
      %v4790 = vpop.f32.mrf.mxu0
      %v4791 = vadd.f32 0.0, %v4790
      %4792 = vmatmul.f32.gmra.mxu0 %v665
      %v4793 = vpop.f32.mrf.mxu0
      %v4794 = vadd.f32 0.0, %v4793
      %4795 = vmatmul.f32.gmra.mxu0 %v668
      %v4796 = vpop.f32.mrf.mxu0
      %v4797 = vadd.f32 0.0, %v4796
      %4798 = vmatmul.f32.gmra.mxu0 %v671
      %v4799 = vpop.f32.mrf.mxu0
      %v4800 = vadd.f32 0.0, %v4799
      %4801 = vmatmul.f32.gmra.mxu0 %v674
      %v4802 = vpop.f32.mrf.mxu0
      %v4803 = vadd.f32 0.0, %v4802
      %4804 = vmatmul.f32.gmra.mxu0 %v677
      %v4805 = vpop.f32.mrf.mxu0
      %v4806 = vadd.f32 0.0, %v4805
      %4807 = vmatmul.f32.gmra.mxu0 %v680
      %v4808 = vpop.f32.mrf.mxu0
      %v4809 = vadd.f32 0.0, %v4808
      %4810 = vmatmul.f32.gmra.mxu0 %v683
      %v4811 = vpop.f32.mrf.mxu0
      %v4812 = vadd.f32 0.0, %v4811
      %4813 = vmatmul.f32.gmra.mxu0 %v686
      %v4814 = vpop.f32.mrf.mxu0
      %v4815 = vadd.f32 0.0, %v4814
      %4816 = vmatmul.f32.gmra.mxu0 %v689
      %v4817 = vpop.f32.mrf.mxu0
      %v4818 = vadd.f32 0.0, %v4817
      %4819 = vmatmul.f32.gmra.mxu0 %v692
      %v4820 = vpop.f32.mrf.mxu0
      %v4821 = vadd.f32 0.0, %v4820
      %4822 = vmatmul.f32.gmra.mxu0 %v695
      %v4823 = vpop.f32.mrf.mxu0
      %v4824 = vadd.f32 0.0, %v4823
      %4825 = vmatmul.f32.gmra.mxu0 %v698
      %v4826 = vpop.f32.mrf.mxu0
      %v4827 = vadd.f32 0.0, %v4826
      %4828 = vmatmul.f32.gmra.mxu0 %v701
      %v4829 = vpop.f32.mrf.mxu0
      %v4830 = vadd.f32 0.0, %v4829
      %4831 = vmatmul.f32.gmra.mxu0 %v704
      %v4832 = vpop.f32.mrf.mxu0
      %4833 = vdwg.mxu0
      %v4835 = vsel %vm1031, %v476, 0
      %4837 = vmatpush.msra.mxu0 0.0
      %4838 = vmatpush.msra.mxu0 0.0
      %4839 = vmatpush.msra.mxu0 0.0
      %4840 = vmatpush.msra.mxu0 0.0
      %4841 = vmatpush.msra.mxu0 0.0
      %4842 = vmatpush.msra.mxu0 0.0
      %4843 = vmatpush.msra.mxu0 0.0
      %4844 = vmatpush.msra.mxu0 0.0
      %4845 = vmatpush.msra.mxu0 0.0
      %4846 = vmatpush.msra.mxu0 0.0
      %4847 = vmatpush.msra.mxu0 0.0
      %4848 = vmatpush.msra.mxu0 0.0
      %4849 = vmatpush.msra.mxu0 0.0
      %4850 = vmatpush.msra.mxu0 0.0
      %4851 = vmatpush.msra.mxu0 0.0
      %4852 = vmatpush.msra.mxu0 %v4835
      %4853 = vmatmul.f32.gmra.mxu0 %v867
      %v4854 = vpop.f32.mrf.mxu0
      %4855 = vmatmul.f32.gmra.mxu0 %v870
      %v4856 = vpop.f32.mrf.mxu0
      %4857 = vmatmul.f32.gmra.mxu0 %v873
      %v4858 = vpop.f32.mrf.mxu0
      %4859 = vmatmul.f32.gmra.mxu0 %v876
      %v4860 = vpop.f32.mrf.mxu0
      %4861 = vmatmul.f32.gmra.mxu0 %v879
      %v4862 = vpop.f32.mrf.mxu0
      %4863 = vmatmul.f32.gmra.mxu0 %v882
      %v4864 = vpop.f32.mrf.mxu0
      %4865 = vmatmul.f32.gmra.mxu0 %v885
      %v4866 = vpop.f32.mrf.mxu0
      %v4867 = vadd.f32 %v4689, %v4866
      %4868 = vmatmul.f32.gmra.mxu0 %v888
      %v4869 = vpop.f32.mrf.mxu0
      %v4870 = vadd.f32 %v4692, %v4869
      %4871 = vmatmul.f32.gmra.mxu0 %v891
      %v4872 = vpop.f32.mrf.mxu0
      %v4873 = vadd.f32 %v4695, %v4872
      %4874 = vmatmul.f32.gmra.mxu0 %v894
      %v4875 = vpop.f32.mrf.mxu0
      %v4876 = vadd.f32 %v4698, %v4875
      %4877 = vmatmul.f32.gmra.mxu0 %v897
      %v4878 = vpop.f32.mrf.mxu0
      %v4879 = vadd.f32 %v4701, %v4878
      %4880 = vmatmul.f32.gmra.mxu0 %v900
      %v4881 = vpop.f32.mrf.mxu0
      %v4882 = vadd.f32 %v4704, %v4881
      %4883 = vmatmul.f32.gmra.mxu0 %v903
      %v4884 = vpop.f32.mrf.mxu0
      %v4885 = vadd.f32 %v4707, %v4884
      %4886 = vmatmul.f32.gmra.mxu0 %v906
      %v4887 = vpop.f32.mrf.mxu0
      %v4888 = vadd.f32 %v4710, %v4887
      %4889 = vmatmul.f32.gmra.mxu0 %v909
      %v4890 = vpop.f32.mrf.mxu0
      %v4891 = vadd.f32 %v4713, %v4890
      %4892 = vmatmul.f32.gmra.mxu0 %v912
      %v4893 = vpop.f32.mrf.mxu0
      %v4894 = vadd.f32 %v4716, %v4893
      %4895 = vmatmul.f32.gmra.mxu0 %v915
      %v4896 = vpop.f32.mrf.mxu0
      %v4897 = vadd.f32 %v4719, %v4896
      %4898 = vmatmul.f32.gmra.mxu0 %v918
      %v4899 = vpop.f32.mrf.mxu0
      %v4900 = vadd.f32 %v4722, %v4899
      %4901 = vmatmul.f32.gmra.mxu0 %v921
      %v4902 = vpop.f32.mrf.mxu0
      %v4903 = vadd.f32 %v4725, %v4902
      %4904 = vmatmul.f32.gmra.mxu0 %v924
      %v4905 = vpop.f32.mrf.mxu0
      %v4906 = vadd.f32 %v4728, %v4905
      %4907 = vmatmul.f32.gmra.mxu0 %v927
      %v4908 = vpop.f32.mrf.mxu0
      %v4909 = vadd.f32 %v4731, %v4908
      %4910 = vmatmul.f32.gmra.mxu0 %v930
      %v4911 = vpop.f32.mrf.mxu0
      %v4912 = vadd.f32 %v4734, %v4911
      %4913 = vmatmul.f32.gmra.mxu0 %v933
      %v4914 = vpop.f32.mrf.mxu0
      %v4915 = vadd.f32 %v4737, %v4914
      %4916 = vmatmul.f32.gmra.mxu0 %v936
      %v4917 = vpop.f32.mrf.mxu0
      %v4918 = vadd.f32 %v4740, %v4917
      %4919 = vmatmul.f32.gmra.mxu0 %v939
      %v4920 = vpop.f32.mrf.mxu0
      %v4921 = vadd.f32 %v4743, %v4920
      %4922 = vmatmul.f32.gmra.mxu0 %v942
      %v4923 = vpop.f32.mrf.mxu0
      %v4924 = vadd.f32 %v4746, %v4923
      %4925 = vmatmul.f32.gmra.mxu0 %v945
      %v4926 = vpop.f32.mrf.mxu0
      %v4927 = vadd.f32 %v4749, %v4926
      %4928 = vmatmul.f32.gmra.mxu0 %v948
      %v4929 = vpop.f32.mrf.mxu0
      %v4930 = vadd.f32 %v4752, %v4929
      %4931 = vmatmul.f32.gmra.mxu0 %v951
      %v4932 = vpop.f32.mrf.mxu0
      %v4933 = vadd.f32 %v4755, %v4932
      %4934 = vmatmul.f32.gmra.mxu0 %v954
      %v4935 = vpop.f32.mrf.mxu0
      %v4936 = vadd.f32 %v4758, %v4935
      %4937 = vmatmul.f32.gmra.mxu0 %v957
      %v4938 = vpop.f32.mrf.mxu0
      %v4939 = vadd.f32 %v4761, %v4938
      %4940 = vmatmul.f32.gmra.mxu0 %v960
      %v4941 = vpop.f32.mrf.mxu0
      %v4942 = vadd.f32 %v4764, %v4941
      %4943 = vmatmul.f32.gmra.mxu0 %v963
      %v4944 = vpop.f32.mrf.mxu0
      %v4945 = vadd.f32 %v4767, %v4944
      %4946 = vmatmul.f32.gmra.mxu0 %v966
      %v4947 = vpop.f32.mrf.mxu0
      %v4948 = vadd.f32 %v4770, %v4947
      %4949 = vmatmul.f32.gmra.mxu0 %v969
      %v4950 = vpop.f32.mrf.mxu0
      %v4951 = vadd.f32 %v4773, %v4950
      %4952 = vmatmul.f32.gmra.mxu0 %v972
      %v4953 = vpop.f32.mrf.mxu0
      %v4954 = vadd.f32 %v4776, %v4953
      %4955 = vmatmul.f32.gmra.mxu0 %v975
      %v4956 = vpop.f32.mrf.mxu0
      %v4957 = vadd.f32 %v4779, %v4956
      %4958 = vmatmul.f32.gmra.mxu0 %v978
      %v4959 = vpop.f32.mrf.mxu0
      %v4960 = vadd.f32 %v4782, %v4959
      %4961 = vmatmul.f32.gmra.mxu0 %v981
      %v4962 = vpop.f32.mrf.mxu0
      %v4963 = vadd.f32 %v4785, %v4962
      %4964 = vmatmul.f32.gmra.mxu0 %v984
      %v4965 = vpop.f32.mrf.mxu0
      %v4966 = vadd.f32 %v4788, %v4965
      %4967 = vmatmul.f32.gmra.mxu0 %v987
      %v4968 = vpop.f32.mrf.mxu0
      %v4969 = vadd.f32 %v4791, %v4968
      %4970 = vmatmul.f32.gmra.mxu0 %v990
      %v4971 = vpop.f32.mrf.mxu0
      %v4972 = vadd.f32 %v4794, %v4971
      %4973 = vmatmul.f32.gmra.mxu0 %v993
      %v4974 = vpop.f32.mrf.mxu0
      %v4975 = vadd.f32 %v4797, %v4974
      %4976 = vmatmul.f32.gmra.mxu0 %v996
      %v4977 = vpop.f32.mrf.mxu0
      %v4978 = vadd.f32 %v4800, %v4977
      %4979 = vmatmul.f32.gmra.mxu0 %v999
      %v4980 = vpop.f32.mrf.mxu0
      %v4981 = vadd.f32 %v4803, %v4980
      %4982 = vmatmul.f32.gmra.mxu0 %v1002
      %v4983 = vpop.f32.mrf.mxu0
      %v4984 = vadd.f32 %v4806, %v4983
      %4985 = vmatmul.f32.gmra.mxu0 %v1005
      %v4986 = vpop.f32.mrf.mxu0
      %v4987 = vadd.f32 %v4809, %v4986
      %4988 = vmatmul.f32.gmra.mxu0 %v1008
      %v4989 = vpop.f32.mrf.mxu0
      %v4990 = vadd.f32 %v4812, %v4989
      %4991 = vmatmul.f32.gmra.mxu0 %v1011
      %v4992 = vpop.f32.mrf.mxu0
      %v4993 = vadd.f32 %v4815, %v4992
      %4994 = vmatmul.f32.gmra.mxu0 %v1014
      %v4995 = vpop.f32.mrf.mxu0
      %v4996 = vadd.f32 %v4818, %v4995
      %4997 = vmatmul.f32.gmra.mxu0 %v1017
      %v4998 = vpop.f32.mrf.mxu0
      %v4999 = vadd.f32 %v4821, %v4998
      %5000 = vmatmul.f32.gmra.mxu0 %v1020
      %v5001 = vpop.f32.mrf.mxu0
      %v5002 = vadd.f32 %v4824, %v5001
      %5003 = vmatmul.f32.gmra.mxu0 %v1023
      %v5004 = vpop.f32.mrf.mxu0
      %v5005 = vadd.f32 %v4827, %v5004
      %5006 = vmatmul.f32.gmra.mxu0 %v1026
      %v5007 = vpop.f32.mrf.mxu0
      %v5008 = vadd.f32 %v4830, %v5007
      %5009 = vmatmul.f32.gmra.mxu0 %v1029
      %v5010 = vpop.f32.mrf.mxu0
      %5011 = vdwg.mxu0
      %v5060 = vrot.slane %v4867, 2
      %v5061 = vrot.slane %v4870, 2
      %v5062 = vsel %vm2173, %v5060, %v5061
      %v5063 = vrot.slane %v4873, 2
      %v5064 = vsel %vm2173, %v5061, %v5063
      %v5065 = vrot.slane %v4876, 2
      %v5066 = vrot.slane %v4879, 2
      %v5067 = vsel %vm2173, %v5065, %v5066
      %v5068 = vrot.slane %v4882, 2
      %v5069 = vsel %vm2173, %v5066, %v5068
      %v5070 = vrot.slane %v4885, 2
      %v5071 = vrot.slane %v4888, 2
      %v5072 = vsel %vm2173, %v5070, %v5071
      %v5073 = vrot.slane %v4891, 2
      %v5074 = vsel %vm2173, %v5071, %v5073
      %v5075 = vrot.slane %v4894, 2
      %v5076 = vrot.slane %v4897, 2
      %v5077 = vsel %vm2173, %v5075, %v5076
      %v5078 = vrot.slane %v4900, 2
      %v5079 = vsel %vm2173, %v5076, %v5078
      %v5080 = vrot.slane %v4903, 2
      %v5081 = vrot.slane %v4906, 2
      %v5082 = vsel %vm2173, %v5080, %v5081
      %v5083 = vrot.slane %v4909, 2
      %v5084 = vsel %vm2173, %v5081, %v5083
      %v5085 = vrot.slane %v4912, 2
      %v5086 = vrot.slane %v4915, 2
      %v5087 = vsel %vm2173, %v5085, %v5086
      %v5088 = vrot.slane %v4918, 2
      %v5089 = vsel %vm2173, %v5086, %v5088
      %v5090 = vrot.slane %v4921, 2
      %v5091 = vrot.slane %v4924, 2
      %v5092 = vsel %vm2173, %v5090, %v5091
      %v5093 = vrot.slane %v4927, 2
      %v5094 = vsel %vm2173, %v5091, %v5093
      %v5095 = vrot.slane %v4930, 2
      %v5096 = vrot.slane %v4933, 2
      %v5097 = vsel %vm2173, %v5095, %v5096
      %v5098 = vrot.slane %v4936, 2
      %v5099 = vsel %vm2173, %v5096, %v5098
      %v5100 = vrot.slane %v4939, 2
      %v5101 = vrot.slane %v4942, 2
      %v5102 = vsel %vm2173, %v5100, %v5101
      %v5103 = vrot.slane %v4945, 2
      %v5104 = vsel %vm2173, %v5101, %v5103
      %v5105 = vrot.slane %v4948, 2
      %v5106 = vrot.slane %v4951, 2
      %v5107 = vsel %vm2173, %v5105, %v5106
      %v5108 = vrot.slane %v4954, 2
      %v5109 = vsel %vm2173, %v5106, %v5108
      %v5110 = vrot.slane %v4957, 2
      %v5111 = vrot.slane %v4960, 2
      %v5112 = vsel %vm2173, %v5110, %v5111
      %v5113 = vrot.slane %v4963, 2
      %v5114 = vsel %vm2173, %v5111, %v5113
      %v5115 = vrot.slane %v4966, 2
      %v5116 = vrot.slane %v4969, 2
      %v5117 = vsel %vm2173, %v5115, %v5116
      %v5118 = vrot.slane %v4972, 2
      %v5119 = vsel %vm2173, %v5116, %v5118
      %v5120 = vrot.slane %v4975, 2
      %v5121 = vrot.slane %v4978, 2
      %v5122 = vsel %vm2173, %v5120, %v5121
      %v5123 = vrot.slane %v4981, 2
      %v5124 = vsel %vm2173, %v5121, %v5123
      %v5125 = vrot.slane %v4984, 2
      %v5126 = vrot.slane %v4987, 2
      %v5127 = vsel %vm2173, %v5125, %v5126
      %v5128 = vrot.slane %v4990, 2
      %v5129 = vsel %vm2173, %v5126, %v5128
      %v5130 = vrot.slane %v4993, 2
      %v5131 = vrot.slane %v4996, 2
      %v5132 = vsel %vm2173, %v5130, %v5131
      %v5133 = vrot.slane %v4999, 2
      %v5134 = vsel %vm2173, %v5131, %v5133
      %v5135 = vrot.slane %v5002, 2
      %v5136 = vrot.slane %v5005, 2
      %v5137 = vsel %vm2173, %v5135, %v5136
      %v5138 = vrot.slane %v5008, 2
      %v5139 = vsel %vm2173, %v5136, %v5138
      %v5172 = vadd.f32 %v4627, %v5062
      %v5173 = vadd.f32 %v4628, %v5064
      %v5174 = vadd.f32 %v4629, %v5067
      %v5175 = vadd.f32 %v4630, %v5069
      %v5176 = vadd.f32 %v4631, %v5072
      %v5177 = vadd.f32 %v4632, %v5074
      %v5178 = vadd.f32 %v4633, %v5077
      %v5179 = vadd.f32 %v4634, %v5079
      %v5180 = vadd.f32 %v4635, %v5082
      %v5181 = vadd.f32 %v4636, %v5084
      %v5182 = vadd.f32 %v4637, %v5087
      %v5183 = vadd.f32 %v4638, %v5089
      %v5184 = vadd.f32 %v4639, %v5092
      %v5185 = vadd.f32 %v4640, %v5094
      %v5186 = vadd.f32 %v4641, %v5097
      %v5187 = vadd.f32 %v4642, %v5099
      %v5188 = vadd.f32 %v4643, %v5102
      %v5189 = vadd.f32 %v4644, %v5104
      %v5190 = vadd.f32 %v4645, %v5107
      %v5191 = vadd.f32 %v4646, %v5109
      %v5192 = vadd.f32 %v4647, %v5112
      %v5193 = vadd.f32 %v4648, %v5114
      %v5194 = vadd.f32 %v4649, %v5117
      %v5195 = vadd.f32 %v4650, %v5119
      %v5196 = vadd.f32 %v4651, %v5122
      %v5197 = vadd.f32 %v4652, %v5124
      %v5198 = vadd.f32 %v4653, %v5127
      %v5199 = vadd.f32 %v4654, %v5129
      %v5200 = vadd.f32 %v4655, %v5132
      %v5201 = vadd.f32 %v4656, %v5134
      %v5202 = vadd.f32 %v4657, %v5137
      %v5203 = vadd.f32 %v4658, %v5139
      %v5204 = vld [vmem:[%s4] sm:$0x1]
      %v5206 = vperm.slane %v5204, 0
      %v5208 = vadd.f32 %v5172, %v5206
      %v5209 = vadd.f32 %v5173, %v5206
      %v5210 = vadd.f32 %v5174, %v5206
      %v5211 = vadd.f32 %v5175, %v5206
      %v5212 = vadd.f32 %v5176, %v5206
      %v5213 = vadd.f32 %v5177, %v5206
      %v5214 = vadd.f32 %v5178, %v5206
      %v5215 = vadd.f32 %v5179, %v5206
      %v5216 = vadd.f32 %v5180, %v5206
      %v5217 = vadd.f32 %v5181, %v5206
      %v5218 = vadd.f32 %v5182, %v5206
      %v5219 = vadd.f32 %v5183, %v5206
      %v5220 = vadd.f32 %v5184, %v5206
      %v5221 = vadd.f32 %v5185, %v5206
      %v5222 = vadd.f32 %v5186, %v5206
      %v5223 = vadd.f32 %v5187, %v5206
      %v5224 = vadd.f32 %v5188, %v5206
      %v5225 = vadd.f32 %v5189, %v5206
      %v5226 = vadd.f32 %v5190, %v5206
      %v5227 = vadd.f32 %v5191, %v5206
      %v5228 = vadd.f32 %v5192, %v5206
      %v5229 = vadd.f32 %v5193, %v5206
      %v5230 = vadd.f32 %v5194, %v5206
      %v5231 = vadd.f32 %v5195, %v5206
      %v5232 = vadd.f32 %v5196, %v5206
      %v5233 = vadd.f32 %v5197, %v5206
      %v5234 = vadd.f32 %v5198, %v5206
      %v5235 = vadd.f32 %v5199, %v5206
      %v5236 = vadd.f32 %v5200, %v5206
      %v5237 = vadd.f32 %v5201, %v5206
      %v5238 = vadd.f32 %v5202, %v5206
      %v5239 = vadd.f32 %v5203, %v5206
      %v5240 = vld [vmem:[%s5] sm:$0x1]
      %v5241 = vld [vmem:[%s6] sm:$0x1]
      %vm5242 = vcmask 64512
      %v5243 = vsel %vm5242, %v5208, 0.0
      %5244 = vadd.xlane.f32.xlu0 %v5243
      %v5245 = vpop.xlane.xlu0 %5244
      %v5246 = vsel %vm5242, %v5209, 0.0
      %5247 = vadd.xlane.f32.xlu0 %v5246
      %v5248 = vpop.xlane.xlu0 %5247
      %v5249 = vsel %vm5242, %v5210, 0.0
      %5250 = vadd.xlane.f32.xlu0 %v5249
      %v5251 = vpop.xlane.xlu0 %5250
      %v5252 = vsel %vm5242, %v5211, 0.0
      %5253 = vadd.xlane.f32.xlu0 %v5252
      %v5254 = vpop.xlane.xlu0 %5253
      %v5255 = vsel %vm5242, %v5212, 0.0
      %5256 = vadd.xlane.f32.xlu0 %v5255
      %v5257 = vpop.xlane.xlu0 %5256
      %v5258 = vsel %vm5242, %v5213, 0.0
      %5259 = vadd.xlane.f32.xlu0 %v5258
      %v5260 = vpop.xlane.xlu0 %5259
      %v5261 = vsel %vm5242, %v5214, 0.0
      %5262 = vadd.xlane.f32.xlu0 %v5261
      %v5263 = vpop.xlane.xlu0 %5262
      %v5264 = vsel %vm5242, %v5215, 0.0
      %5265 = vadd.xlane.f32.xlu0 %v5264
      %v5266 = vpop.xlane.xlu0 %5265
      %v5267 = vsel %vm5242, %v5216, 0.0
      %5268 = vadd.xlane.f32.xlu0 %v5267
      %v5269 = vpop.xlane.xlu0 %5268
      %v5270 = vsel %vm5242, %v5217, 0.0
      %5271 = vadd.xlane.f32.xlu0 %v5270
      %v5272 = vpop.xlane.xlu0 %5271
      %v5273 = vsel %vm5242, %v5218, 0.0
      %5274 = vadd.xlane.f32.xlu0 %v5273
      %v5275 = vpop.xlane.xlu0 %5274
      %v5276 = vsel %vm5242, %v5219, 0.0
      %5277 = vadd.xlane.f32.xlu0 %v5276
      %v5278 = vpop.xlane.xlu0 %5277
      %v5279 = vsel %vm5242, %v5220, 0.0
      %5280 = vadd.xlane.f32.xlu0 %v5279
      %v5281 = vpop.xlane.xlu0 %5280
      %v5282 = vsel %vm5242, %v5221, 0.0
      %5283 = vadd.xlane.f32.xlu0 %v5282
      %v5284 = vpop.xlane.xlu0 %5283
      %v5285 = vsel %vm5242, %v5222, 0.0
      %5286 = vadd.xlane.f32.xlu0 %v5285
      %v5287 = vpop.xlane.xlu0 %5286
      %v5288 = vsel %vm5242, %v5223, 0.0
      %5289 = vadd.xlane.f32.xlu0 %v5288
      %v5290 = vpop.xlane.xlu0 %5289
      %v5291 = vsel %vm5242, %v5224, 0.0
      %5292 = vadd.xlane.f32.xlu0 %v5291
      %v5293 = vpop.xlane.xlu0 %5292
      %v5294 = vsel %vm5242, %v5225, 0.0
      %5295 = vadd.xlane.f32.xlu0 %v5294
      %v5296 = vpop.xlane.xlu0 %5295
      %v5297 = vsel %vm5242, %v5226, 0.0
      %5298 = vadd.xlane.f32.xlu0 %v5297
      %v5299 = vpop.xlane.xlu0 %5298
      %v5300 = vsel %vm5242, %v5227, 0.0
      %5301 = vadd.xlane.f32.xlu0 %v5300
      %v5302 = vpop.xlane.xlu0 %5301
      %v5303 = vsel %vm5242, %v5228, 0.0
      %5304 = vadd.xlane.f32.xlu0 %v5303
      %v5305 = vpop.xlane.xlu0 %5304
      %v5306 = vsel %vm5242, %v5229, 0.0
      %5307 = vadd.xlane.f32.xlu0 %v5306
      %v5308 = vpop.xlane.xlu0 %5307
      %v5309 = vsel %vm5242, %v5230, 0.0
      %5310 = vadd.xlane.f32.xlu0 %v5309
      %v5311 = vpop.xlane.xlu0 %5310
      %v5312 = vsel %vm5242, %v5231, 0.0
      %5313 = vadd.xlane.f32.xlu0 %v5312
      %v5314 = vpop.xlane.xlu0 %5313
      %v5315 = vsel %vm5242, %v5232, 0.0
      %5316 = vadd.xlane.f32.xlu0 %v5315
      %v5317 = vpop.xlane.xlu0 %5316
      %v5318 = vsel %vm5242, %v5233, 0.0
      %5319 = vadd.xlane.f32.xlu0 %v5318
      %v5320 = vpop.xlane.xlu0 %5319
      %v5321 = vsel %vm5242, %v5234, 0.0
      %5322 = vadd.xlane.f32.xlu0 %v5321
      %v5323 = vpop.xlane.xlu0 %5322
      %v5324 = vsel %vm5242, %v5235, 0.0
      %5325 = vadd.xlane.f32.xlu0 %v5324
      %v5326 = vpop.xlane.xlu0 %5325
      %v5327 = vsel %vm5242, %v5236, 0.0
      %5328 = vadd.xlane.f32.xlu0 %v5327
      %v5329 = vpop.xlane.xlu0 %5328
      %v5330 = vsel %vm5242, %v5237, 0.0
      %5331 = vadd.xlane.f32.xlu0 %v5330
      %v5332 = vpop.xlane.xlu0 %5331
      %v5333 = vsel %vm5242, %v5238, 0.0
      %5334 = vadd.xlane.f32.xlu0 %v5333
      %v5335 = vpop.xlane.xlu0 %5334
      %v5336 = vsel %vm5242, %v5239, 0.0
      %5337 = vadd.xlane.f32.xlu0 %v5336
      %v5338 = vpop.xlane.xlu0 %5337
      %v5339 = vrcp.pop 8.0
      %v5340 = vmul.f32 8.0, %v5339
      %v5341 = vsub.f32 1.0, %v5340
      %v5342 = vmul.f32 %v5339, %v5341
      %v5343 = vadd.f32 %v5339, %v5342
      %vm5344 = vweird.f32 %v5339
      %v5345 = vsel %vm5344, %v5339, %v5343
      %v5346 = vmul.f32 %v5245, %v5345
      %v5347 = vmul.f32 %v5248, %v5345
      %v5348 = vmul.f32 %v5251, %v5345
      %v5349 = vmul.f32 %v5254, %v5345
      %v5350 = vmul.f32 %v5257, %v5345
      %v5351 = vmul.f32 %v5260, %v5345
      %v5352 = vmul.f32 %v5263, %v5345
      %v5353 = vmul.f32 %v5266, %v5345
      %v5354 = vmul.f32 %v5269, %v5345
      %v5355 = vmul.f32 %v5272, %v5345
      %v5356 = vmul.f32 %v5275, %v5345
      %v5357 = vmul.f32 %v5278, %v5345
      %v5358 = vmul.f32 %v5281, %v5345
      %v5359 = vmul.f32 %v5284, %v5345
      %v5360 = vmul.f32 %v5287, %v5345
      %v5361 = vmul.f32 %v5290, %v5345
      %v5362 = vmul.f32 %v5293, %v5345
      %v5363 = vmul.f32 %v5296, %v5345
      %v5364 = vmul.f32 %v5299, %v5345
      %v5365 = vmul.f32 %v5302, %v5345
      %v5366 = vmul.f32 %v5305, %v5345
      %v5367 = vmul.f32 %v5308, %v5345
      %v5368 = vmul.f32 %v5311, %v5345
      %v5369 = vmul.f32 %v5314, %v5345
      %v5370 = vmul.f32 %v5317, %v5345
      %v5371 = vmul.f32 %v5320, %v5345
      %v5372 = vmul.f32 %v5323, %v5345
      %v5373 = vmul.f32 %v5326, %v5345
      %v5374 = vmul.f32 %v5329, %v5345
      %v5375 = vmul.f32 %v5332, %v5345
      %v5376 = vmul.f32 %v5335, %v5345
      %v5377 = vmul.f32 %v5338, %v5345
      %v5378 = vsub.f32 %v5208, %v5346
      %v5379 = vsub.f32 %v5209, %v5347
      %v5380 = vsub.f32 %v5210, %v5348
      %v5381 = vsub.f32 %v5211, %v5349
      %v5382 = vsub.f32 %v5212, %v5350
      %v5383 = vsub.f32 %v5213, %v5351
      %v5384 = vsub.f32 %v5214, %v5352
      %v5385 = vsub.f32 %v5215, %v5353
      %v5386 = vsub.f32 %v5216, %v5354
      %v5387 = vsub.f32 %v5217, %v5355
      %v5388 = vsub.f32 %v5218, %v5356
      %v5389 = vsub.f32 %v5219, %v5357
      %v5390 = vsub.f32 %v5220, %v5358
      %v5391 = vsub.f32 %v5221, %v5359
      %v5392 = vsub.f32 %v5222, %v5360
      %v5393 = vsub.f32 %v5223, %v5361
      %v5394 = vsub.f32 %v5224, %v5362
      %v5395 = vsub.f32 %v5225, %v5363
      %v5396 = vsub.f32 %v5226, %v5364
      %v5397 = vsub.f32 %v5227, %v5365
      %v5398 = vsub.f32 %v5228, %v5366
      %v5399 = vsub.f32 %v5229, %v5367
      %v5400 = vsub.f32 %v5230, %v5368
      %v5401 = vsub.f32 %v5231, %v5369
      %v5402 = vsub.f32 %v5232, %v5370
      %v5403 = vsub.f32 %v5233, %v5371
      %v5404 = vsub.f32 %v5234, %v5372
      %v5405 = vsub.f32 %v5235, %v5373
      %v5406 = vsub.f32 %v5236, %v5374
      %v5407 = vsub.f32 %v5237, %v5375
      %v5408 = vsub.f32 %v5238, %v5376
      %v5409 = vsub.f32 %v5239, %v5377
      %v5410 = vmul.f32 %v5378, %v5378
      %v5411 = vmul.f32 %v5379, %v5379
      %v5412 = vmul.f32 %v5380, %v5380
      %v5413 = vmul.f32 %v5381, %v5381
      %v5414 = vmul.f32 %v5382, %v5382
      %v5415 = vmul.f32 %v5383, %v5383
      %v5416 = vmul.f32 %v5384, %v5384
      %v5417 = vmul.f32 %v5385, %v5385
      %v5418 = vmul.f32 %v5386, %v5386
      %v5419 = vmul.f32 %v5387, %v5387
      %v5420 = vmul.f32 %v5388, %v5388
      %v5421 = vmul.f32 %v5389, %v5389
      %v5422 = vmul.f32 %v5390, %v5390
      %v5423 = vmul.f32 %v5391, %v5391
      %v5424 = vmul.f32 %v5392, %v5392
      %v5425 = vmul.f32 %v5393, %v5393
      %v5426 = vmul.f32 %v5394, %v5394
      %v5427 = vmul.f32 %v5395, %v5395
      %v5428 = vmul.f32 %v5396, %v5396
      %v5429 = vmul.f32 %v5397, %v5397
      %v5430 = vmul.f32 %v5398, %v5398
      %v5431 = vmul.f32 %v5399, %v5399
      %v5432 = vmul.f32 %v5400, %v5400
      %v5433 = vmul.f32 %v5401, %v5401
      %v5434 = vmul.f32 %v5402, %v5402
      %v5435 = vmul.f32 %v5403, %v5403
      %v5436 = vmul.f32 %v5404, %v5404
      %v5437 = vmul.f32 %v5405, %v5405
      %v5438 = vmul.f32 %v5406, %v5406
      %v5439 = vmul.f32 %v5407, %v5407
      %v5440 = vmul.f32 %v5408, %v5408
      %v5441 = vmul.f32 %v5409, %v5409
      %v5442 = vsel %vm5242, %v5410, 0.0
      %5443 = vadd.xlane.f32.xlu0 %v5442
      %v5444 = vpop.xlane.xlu0 %5443
      %v5445 = vsel %vm5242, %v5411, 0.0
      %5446 = vadd.xlane.f32.xlu0 %v5445
      %v5447 = vpop.xlane.xlu0 %5446
      %v5448 = vsel %vm5242, %v5412, 0.0
      %5449 = vadd.xlane.f32.xlu0 %v5448
      %v5450 = vpop.xlane.xlu0 %5449
      %v5451 = vsel %vm5242, %v5413, 0.0
      %5452 = vadd.xlane.f32.xlu0 %v5451
      %v5453 = vpop.xlane.xlu0 %5452
      %v5454 = vsel %vm5242, %v5414, 0.0
      %5455 = vadd.xlane.f32.xlu0 %v5454
      %v5456 = vpop.xlane.xlu0 %5455
      %v5457 = vsel %vm5242, %v5415, 0.0
      %5458 = vadd.xlane.f32.xlu0 %v5457
      %v5459 = vpop.xlane.xlu0 %5458
      %v5460 = vsel %vm5242, %v5416, 0.0
      %5461 = vadd.xlane.f32.xlu0 %v5460
      %v5462 = vpop.xlane.xlu0 %5461
      %v5463 = vsel %vm5242, %v5417, 0.0
      %5464 = vadd.xlane.f32.xlu0 %v5463
      %v5465 = vpop.xlane.xlu0 %5464
      %v5466 = vsel %vm5242, %v5418, 0.0
      %5467 = vadd.xlane.f32.xlu0 %v5466
      %v5468 = vpop.xlane.xlu0 %5467
      %v5469 = vsel %vm5242, %v5419, 0.0
      %5470 = vadd.xlane.f32.xlu0 %v5469
      %v5471 = vpop.xlane.xlu0 %5470
      %v5472 = vsel %vm5242, %v5420, 0.0
      %5473 = vadd.xlane.f32.xlu0 %v5472
      %v5474 = vpop.xlane.xlu0 %5473
      %v5475 = vsel %vm5242, %v5421, 0.0
      %5476 = vadd.xlane.f32.xlu0 %v5475
      %v5477 = vpop.xlane.xlu0 %5476
      %v5478 = vsel %vm5242, %v5422, 0.0
      %5479 = vadd.xlane.f32.xlu0 %v5478
      %v5480 = vpop.xlane.xlu0 %5479
      %v5481 = vsel %vm5242, %v5423, 0.0
      %5482 = vadd.xlane.f32.xlu0 %v5481
      %v5483 = vpop.xlane.xlu0 %5482
      %v5484 = vsel %vm5242, %v5424, 0.0
      %5485 = vadd.xlane.f32.xlu0 %v5484
      %v5486 = vpop.xlane.xlu0 %5485
      %v5487 = vsel %vm5242, %v5425, 0.0
      %5488 = vadd.xlane.f32.xlu0 %v5487
      %v5489 = vpop.xlane.xlu0 %5488
      %v5490 = vsel %vm5242, %v5426, 0.0
      %5491 = vadd.xlane.f32.xlu0 %v5490
      %v5492 = vpop.xlane.xlu0 %5491
      %v5493 = vsel %vm5242, %v5427, 0.0
      %5494 = vadd.xlane.f32.xlu0 %v5493
      %v5495 = vpop.xlane.xlu0 %5494
      %v5496 = vsel %vm5242, %v5428, 0.0
      %5497 = vadd.xlane.f32.xlu0 %v5496
      %v5498 = vpop.xlane.xlu0 %5497
      %v5499 = vsel %vm5242, %v5429, 0.0
      %5500 = vadd.xlane.f32.xlu0 %v5499
      %v5501 = vpop.xlane.xlu0 %5500
      %v5502 = vsel %vm5242, %v5430, 0.0
      %5503 = vadd.xlane.f32.xlu0 %v5502
      %v5504 = vpop.xlane.xlu0 %5503
      %v5505 = vsel %vm5242, %v5431, 0.0
      %5506 = vadd.xlane.f32.xlu0 %v5505
      %v5507 = vpop.xlane.xlu0 %5506
      %v5508 = vsel %vm5242, %v5432, 0.0
      %5509 = vadd.xlane.f32.xlu0 %v5508
      %v5510 = vpop.xlane.xlu0 %5509
      %v5511 = vsel %vm5242, %v5433, 0.0
      %5512 = vadd.xlane.f32.xlu0 %v5511
      %v5513 = vpop.xlane.xlu0 %5512
      %v5514 = vsel %vm5242, %v5434, 0.0
      %5515 = vadd.xlane.f32.xlu0 %v5514
      %v5516 = vpop.xlane.xlu0 %5515
      %v5517 = vsel %vm5242, %v5435, 0.0
      %5518 = vadd.xlane.f32.xlu0 %v5517
      %v5519 = vpop.xlane.xlu0 %5518
      %v5520 = vsel %vm5242, %v5436, 0.0
      %5521 = vadd.xlane.f32.xlu0 %v5520
      %v5522 = vpop.xlane.xlu0 %5521
      %v5523 = vsel %vm5242, %v5437, 0.0
      %5524 = vadd.xlane.f32.xlu0 %v5523
      %v5525 = vpop.xlane.xlu0 %5524
      %v5526 = vsel %vm5242, %v5438, 0.0
      %5527 = vadd.xlane.f32.xlu0 %v5526
      %v5528 = vpop.xlane.xlu0 %5527
      %v5529 = vsel %vm5242, %v5439, 0.0
      %5530 = vadd.xlane.f32.xlu0 %v5529
      %v5531 = vpop.xlane.xlu0 %5530
      %v5532 = vsel %vm5242, %v5440, 0.0
      %5533 = vadd.xlane.f32.xlu0 %v5532
      %v5534 = vpop.xlane.xlu0 %5533
      %v5535 = vsel %vm5242, %v5441, 0.0
      %5536 = vadd.xlane.f32.xlu0 %v5535
      %v5537 = vpop.xlane.xlu0 %5536
      %v5538 = vmul.f32 %v5444, %v5345
      %v5539 = vmul.f32 %v5447, %v5345
      %v5540 = vmul.f32 %v5450, %v5345
      %v5541 = vmul.f32 %v5453, %v5345
      %v5542 = vmul.f32 %v5456, %v5345
      %v5543 = vmul.f32 %v5459, %v5345
      %v5544 = vmul.f32 %v5462, %v5345
      %v5545 = vmul.f32 %v5465, %v5345
      %v5546 = vmul.f32 %v5468, %v5345
      %v5547 = vmul.f32 %v5471, %v5345
      %v5548 = vmul.f32 %v5474, %v5345
      %v5549 = vmul.f32 %v5477, %v5345
      %v5550 = vmul.f32 %v5480, %v5345
      %v5551 = vmul.f32 %v5483, %v5345
      %v5552 = vmul.f32 %v5486, %v5345
      %v5553 = vmul.f32 %v5489, %v5345
      %v5554 = vmul.f32 %v5492, %v5345
      %v5555 = vmul.f32 %v5495, %v5345
      %v5556 = vmul.f32 %v5498, %v5345
      %v5557 = vmul.f32 %v5501, %v5345
      %v5558 = vmul.f32 %v5504, %v5345
      %v5559 = vmul.f32 %v5507, %v5345
      %v5560 = vmul.f32 %v5510, %v5345
      %v5561 = vmul.f32 %v5513, %v5345
      %v5562 = vmul.f32 %v5516, %v5345
      %v5563 = vmul.f32 %v5519, %v5345
      %v5564 = vmul.f32 %v5522, %v5345
      %v5565 = vmul.f32 %v5525, %v5345
      %v5566 = vmul.f32 %v5528, %v5345
      %v5567 = vmul.f32 %v5531, %v5345
      %v5568 = vmul.f32 %v5534, %v5345
      %v5569 = vmul.f32 %v5537, %v5345
      %v5570 = vadd.f32 %v5538, 1e-05
      %v5571 = vadd.f32 %v5539, 1e-05
      %v5572 = vadd.f32 %v5540, 1e-05
      %v5573 = vadd.f32 %v5541, 1e-05
      %v5574 = vadd.f32 %v5542, 1e-05
      %v5575 = vadd.f32 %v5543, 1e-05
      %v5576 = vadd.f32 %v5544, 1e-05
      %v5577 = vadd.f32 %v5545, 1e-05
      %v5578 = vadd.f32 %v5546, 1e-05
      %v5579 = vadd.f32 %v5547, 1e-05
      %v5580 = vadd.f32 %v5548, 1e-05
      %v5581 = vadd.f32 %v5549, 1e-05
      %v5582 = vadd.f32 %v5550, 1e-05
      %v5583 = vadd.f32 %v5551, 1e-05
      %v5584 = vadd.f32 %v5552, 1e-05
      %v5585 = vadd.f32 %v5553, 1e-05
      %v5586 = vadd.f32 %v5554, 1e-05
      %v5587 = vadd.f32 %v5555, 1e-05
      %v5588 = vadd.f32 %v5556, 1e-05
      %v5589 = vadd.f32 %v5557, 1e-05
      %v5590 = vadd.f32 %v5558, 1e-05
      %v5591 = vadd.f32 %v5559, 1e-05
      %v5592 = vadd.f32 %v5560, 1e-05
      %v5593 = vadd.f32 %v5561, 1e-05
      %v5594 = vadd.f32 %v5562, 1e-05
      %v5595 = vadd.f32 %v5563, 1e-05
      %v5596 = vadd.f32 %v5564, 1e-05
      %v5597 = vadd.f32 %v5565, 1e-05
      %v5598 = vadd.f32 %v5566, 1e-05
      %v5599 = vadd.f32 %v5567, 1e-05
      %v5600 = vadd.f32 %v5568, 1e-05
      %v5601 = vadd.f32 %v5569, 1e-05
      %v5602 = vrsqrt.pop %v5570
      %v5603 = vmul.f32 %v5602, %v5570
      %v5604 = vmul.f32 %v5603, %v5602
      %v5605 = vmul.f32 0.5, %v5604
      %v5606 = vsub.f32 1.5, %v5605
      %v5607 = vmul.f32 %v5602, %v5606
      %vm5608 = vweird.f32 %v5570
      %vm5609 = vweird.f32 %v5602
      %vm5610 = vmor %vm5608, %vm5609
      %v5611 = vsel %vm5610, %v5602, %v5607
      %v5612 = vrsqrt.pop %v5571
      %v5613 = vmul.f32 %v5612, %v5571
      %v5614 = vmul.f32 %v5613, %v5612
      %v5615 = vmul.f32 0.5, %v5614
      %v5616 = vsub.f32 1.5, %v5615
      %v5617 = vmul.f32 %v5612, %v5616
      %vm5618 = vweird.f32 %v5571
      %vm5619 = vweird.f32 %v5612
      %vm5620 = vmor %vm5618, %vm5619
      %v5621 = vsel %vm5620, %v5612, %v5617
      %v5622 = vrsqrt.pop %v5572
      %v5623 = vmul.f32 %v5622, %v5572
      %v5624 = vmul.f32 %v5623, %v5622
      %v5625 = vmul.f32 0.5, %v5624
      %v5626 = vsub.f32 1.5, %v5625
      %v5627 = vmul.f32 %v5622, %v5626
      %vm5628 = vweird.f32 %v5572
      %vm5629 = vweird.f32 %v5622
      %vm5630 = vmor %vm5628, %vm5629
      %v5631 = vsel %vm5630, %v5622, %v5627
      %v5632 = vrsqrt.pop %v5573
      %v5633 = vmul.f32 %v5632, %v5573
      %v5634 = vmul.f32 %v5633, %v5632
      %v5635 = vmul.f32 0.5, %v5634
      %v5636 = vsub.f32 1.5, %v5635
      %v5637 = vmul.f32 %v5632, %v5636
      %vm5638 = vweird.f32 %v5573
      %vm5639 = vweird.f32 %v5632
      %vm5640 = vmor %vm5638, %vm5639
      %v5641 = vsel %vm5640, %v5632, %v5637
      %v5642 = vrsqrt.pop %v5574
      %v5643 = vmul.f32 %v5642, %v5574
      %v5644 = vmul.f32 %v5643, %v5642
      %v5645 = vmul.f32 0.5, %v5644
      %v5646 = vsub.f32 1.5, %v5645
      %v5647 = vmul.f32 %v5642, %v5646
      %vm5648 = vweird.f32 %v5574
      %vm5649 = vweird.f32 %v5642
      %vm5650 = vmor %vm5648, %vm5649
      %v5651 = vsel %vm5650, %v5642, %v5647
      %v5652 = vrsqrt.pop %v5575
      %v5653 = vmul.f32 %v5652, %v5575
      %v5654 = vmul.f32 %v5653, %v5652
      %v5655 = vmul.f32 0.5, %v5654
      %v5656 = vsub.f32 1.5, %v5655
      %v5657 = vmul.f32 %v5652, %v5656
      %vm5658 = vweird.f32 %v5575
      %vm5659 = vweird.f32 %v5652
      %vm5660 = vmor %vm5658, %vm5659
      %v5661 = vsel %vm5660, %v5652, %v5657
      %v5662 = vrsqrt.pop %v5576
      %v5663 = vmul.f32 %v5662, %v5576
      %v5664 = vmul.f32 %v5663, %v5662
      %v5665 = vmul.f32 0.5, %v5664
      %v5666 = vsub.f32 1.5, %v5665
      %v5667 = vmul.f32 %v5662, %v5666
      %vm5668 = vweird.f32 %v5576
      %vm5669 = vweird.f32 %v5662
      %vm5670 = vmor %vm5668, %vm5669
      %v5671 = vsel %vm5670, %v5662, %v5667
      %v5672 = vrsqrt.pop %v5577
      %v5673 = vmul.f32 %v5672, %v5577
      %v5674 = vmul.f32 %v5673, %v5672
      %v5675 = vmul.f32 0.5, %v5674
      %v5676 = vsub.f32 1.5, %v5675
      %v5677 = vmul.f32 %v5672, %v5676
      %vm5678 = vweird.f32 %v5577
      %vm5679 = vweird.f32 %v5672
      %vm5680 = vmor %vm5678, %vm5679
      %v5681 = vsel %vm5680, %v5672, %v5677
      %v5682 = vrsqrt.pop %v5578
      %v5683 = vmul.f32 %v5682, %v5578
      %v5684 = vmul.f32 %v5683, %v5682
      %v5685 = vmul.f32 0.5, %v5684
      %v5686 = vsub.f32 1.5, %v5685
      %v5687 = vmul.f32 %v5682, %v5686
      %vm5688 = vweird.f32 %v5578
      %vm5689 = vweird.f32 %v5682
      %vm5690 = vmor %vm5688, %vm5689
      %v5691 = vsel %vm5690, %v5682, %v5687
      %v5692 = vrsqrt.pop %v5579
      %v5693 = vmul.f32 %v5692, %v5579
      %v5694 = vmul.f32 %v5693, %v5692
      %v5695 = vmul.f32 0.5, %v5694
      %v5696 = vsub.f32 1.5, %v5695
      %v5697 = vmul.f32 %v5692, %v5696
      %vm5698 = vweird.f32 %v5579
      %vm5699 = vweird.f32 %v5692
      %vm5700 = vmor %vm5698, %vm5699
      %v5701 = vsel %vm5700, %v5692, %v5697
      %v5702 = vrsqrt.pop %v5580
      %v5703 = vmul.f32 %v5702, %v5580
      %v5704 = vmul.f32 %v5703, %v5702
      %v5705 = vmul.f32 0.5, %v5704
      %v5706 = vsub.f32 1.5, %v5705
      %v5707 = vmul.f32 %v5702, %v5706
      %vm5708 = vweird.f32 %v5580
      %vm5709 = vweird.f32 %v5702
      %vm5710 = vmor %vm5708, %vm5709
      %v5711 = vsel %vm5710, %v5702, %v5707
      %v5712 = vrsqrt.pop %v5581
      %v5713 = vmul.f32 %v5712, %v5581
      %v5714 = vmul.f32 %v5713, %v5712
      %v5715 = vmul.f32 0.5, %v5714
      %v5716 = vsub.f32 1.5, %v5715
      %v5717 = vmul.f32 %v5712, %v5716
      %vm5718 = vweird.f32 %v5581
      %vm5719 = vweird.f32 %v5712
      %vm5720 = vmor %vm5718, %vm5719
      %v5721 = vsel %vm5720, %v5712, %v5717
      %v5722 = vrsqrt.pop %v5582
      %v5723 = vmul.f32 %v5722, %v5582
      %v5724 = vmul.f32 %v5723, %v5722
      %v5725 = vmul.f32 0.5, %v5724
      %v5726 = vsub.f32 1.5, %v5725
      %v5727 = vmul.f32 %v5722, %v5726
      %vm5728 = vweird.f32 %v5582
      %vm5729 = vweird.f32 %v5722
      %vm5730 = vmor %vm5728, %vm5729
      %v5731 = vsel %vm5730, %v5722, %v5727
      %v5732 = vrsqrt.pop %v5583
      %v5733 = vmul.f32 %v5732, %v5583
      %v5734 = vmul.f32 %v5733, %v5732
      %v5735 = vmul.f32 0.5, %v5734
      %v5736 = vsub.f32 1.5, %v5735
      %v5737 = vmul.f32 %v5732, %v5736
      %vm5738 = vweird.f32 %v5583
      %vm5739 = vweird.f32 %v5732
      %vm5740 = vmor %vm5738, %vm5739
      %v5741 = vsel %vm5740, %v5732, %v5737
      %v5742 = vrsqrt.pop %v5584
      %v5743 = vmul.f32 %v5742, %v5584
      %v5744 = vmul.f32 %v5743, %v5742
      %v5745 = vmul.f32 0.5, %v5744
      %v5746 = vsub.f32 1.5, %v5745
      %v5747 = vmul.f32 %v5742, %v5746
      %vm5748 = vweird.f32 %v5584
      %vm5749 = vweird.f32 %v5742
      %vm5750 = vmor %vm5748, %vm5749
      %v5751 = vsel %vm5750, %v5742, %v5747
      %v5752 = vrsqrt.pop %v5585
      %v5753 = vmul.f32 %v5752, %v5585
      %v5754 = vmul.f32 %v5753, %v5752
      %v5755 = vmul.f32 0.5, %v5754
      %v5756 = vsub.f32 1.5, %v5755
      %v5757 = vmul.f32 %v5752, %v5756
      %vm5758 = vweird.f32 %v5585
      %vm5759 = vweird.f32 %v5752
      %vm5760 = vmor %vm5758, %vm5759
      %v5761 = vsel %vm5760, %v5752, %v5757
      %v5762 = vrsqrt.pop %v5586
      %v5763 = vmul.f32 %v5762, %v5586
      %v5764 = vmul.f32 %v5763, %v5762
      %v5765 = vmul.f32 0.5, %v5764
      %v5766 = vsub.f32 1.5, %v5765
      %v5767 = vmul.f32 %v5762, %v5766
      %vm5768 = vweird.f32 %v5586
      %vm5769 = vweird.f32 %v5762
      %vm5770 = vmor %vm5768, %vm5769
      %v5771 = vsel %vm5770, %v5762, %v5767
      %v5772 = vrsqrt.pop %v5587
      %v5773 = vmul.f32 %v5772, %v5587
      %v5774 = vmul.f32 %v5773, %v5772
      %v5775 = vmul.f32 0.5, %v5774
      %v5776 = vsub.f32 1.5, %v5775
      %v5777 = vmul.f32 %v5772, %v5776
      %vm5778 = vweird.f32 %v5587
      %vm5779 = vweird.f32 %v5772
      %vm5780 = vmor %vm5778, %vm5779
      %v5781 = vsel %vm5780, %v5772, %v5777
      %v5782 = vrsqrt.pop %v5588
      %v5783 = vmul.f32 %v5782, %v5588
      %v5784 = vmul.f32 %v5783, %v5782
      %v5785 = vmul.f32 0.5, %v5784
      %v5786 = vsub.f32 1.5, %v5785
      %v5787 = vmul.f32 %v5782, %v5786
      %vm5788 = vweird.f32 %v5588
      %vm5789 = vweird.f32 %v5782
      %vm5790 = vmor %vm5788, %vm5789
      %v5791 = vsel %vm5790, %v5782, %v5787
      %v5792 = vrsqrt.pop %v5589
      %v5793 = vmul.f32 %v5792, %v5589
      %v5794 = vmul.f32 %v5793, %v5792
      %v5795 = vmul.f32 0.5, %v5794
      %v5796 = vsub.f32 1.5, %v5795
      %v5797 = vmul.f32 %v5792, %v5796
      %vm5798 = vweird.f32 %v5589
      %vm5799 = vweird.f32 %v5792
      %vm5800 = vmor %vm5798, %vm5799
      %v5801 = vsel %vm5800, %v5792, %v5797
      %v5802 = vrsqrt.pop %v5590
      %v5803 = vmul.f32 %v5802, %v5590
      %v5804 = vmul.f32 %v5803, %v5802
      %v5805 = vmul.f32 0.5, %v5804
      %v5806 = vsub.f32 1.5, %v5805
      %v5807 = vmul.f32 %v5802, %v5806
      %vm5808 = vweird.f32 %v5590
      %vm5809 = vweird.f32 %v5802
      %vm5810 = vmor %vm5808, %vm5809
      %v5811 = vsel %vm5810, %v5802, %v5807
      %v5812 = vrsqrt.pop %v5591
      %v5813 = vmul.f32 %v5812, %v5591
      %v5814 = vmul.f32 %v5813, %v5812
      %v5815 = vmul.f32 0.5, %v5814
      %v5816 = vsub.f32 1.5, %v5815
      %v5817 = vmul.f32 %v5812, %v5816
      %vm5818 = vweird.f32 %v5591
      %vm5819 = vweird.f32 %v5812
      %vm5820 = vmor %vm5818, %vm5819
      %v5821 = vsel %vm5820, %v5812, %v5817
      %v5822 = vrsqrt.pop %v5592
      %v5823 = vmul.f32 %v5822, %v5592
      %v5824 = vmul.f32 %v5823, %v5822
      %v5825 = vmul.f32 0.5, %v5824
      %v5826 = vsub.f32 1.5, %v5825
      %v5827 = vmul.f32 %v5822, %v5826
      %vm5828 = vweird.f32 %v5592
      %vm5829 = vweird.f32 %v5822
      %vm5830 = vmor %vm5828, %vm5829
      %v5831 = vsel %vm5830, %v5822, %v5827
      %v5832 = vrsqrt.pop %v5593
      %v5833 = vmul.f32 %v5832, %v5593
      %v5834 = vmul.f32 %v5833, %v5832
      %v5835 = vmul.f32 0.5, %v5834
      %v5836 = vsub.f32 1.5, %v5835
      %v5837 = vmul.f32 %v5832, %v5836
      %vm5838 = vweird.f32 %v5593
      %vm5839 = vweird.f32 %v5832
      %vm5840 = vmor %vm5838, %vm5839
      %v5841 = vsel %vm5840, %v5832, %v5837
      %v5842 = vrsqrt.pop %v5594
      %v5843 = vmul.f32 %v5842, %v5594
      %v5844 = vmul.f32 %v5843, %v5842
      %v5845 = vmul.f32 0.5, %v5844
      %v5846 = vsub.f32 1.5, %v5845
      %v5847 = vmul.f32 %v5842, %v5846
      %vm5848 = vweird.f32 %v5594
      %vm5849 = vweird.f32 %v5842
      %vm5850 = vmor %vm5848, %vm5849
      %v5851 = vsel %vm5850, %v5842, %v5847
      %v5852 = vrsqrt.pop %v5595
      %v5853 = vmul.f32 %v5852, %v5595
      %v5854 = vmul.f32 %v5853, %v5852
      %v5855 = vmul.f32 0.5, %v5854
      %v5856 = vsub.f32 1.5, %v5855
      %v5857 = vmul.f32 %v5852, %v5856
      %vm5858 = vweird.f32 %v5595
      %vm5859 = vweird.f32 %v5852
      %vm5860 = vmor %vm5858, %vm5859
      %v5861 = vsel %vm5860, %v5852, %v5857
      %v5862 = vrsqrt.pop %v5596
      %v5863 = vmul.f32 %v5862, %v5596
      %v5864 = vmul.f32 %v5863, %v5862
      %v5865 = vmul.f32 0.5, %v5864
      %v5866 = vsub.f32 1.5, %v5865
      %v5867 = vmul.f32 %v5862, %v5866
      %vm5868 = vweird.f32 %v5596
      %vm5869 = vweird.f32 %v5862
      %vm5870 = vmor %vm5868, %vm5869
      %v5871 = vsel %vm5870, %v5862, %v5867
      %v5872 = vrsqrt.pop %v5597
      %v5873 = vmul.f32 %v5872, %v5597
      %v5874 = vmul.f32 %v5873, %v5872
      %v5875 = vmul.f32 0.5, %v5874
      %v5876 = vsub.f32 1.5, %v5875
      %v5877 = vmul.f32 %v5872, %v5876
      %vm5878 = vweird.f32 %v5597
      %vm5879 = vweird.f32 %v5872
      %vm5880 = vmor %vm5878, %vm5879
      %v5881 = vsel %vm5880, %v5872, %v5877
      %v5882 = vrsqrt.pop %v5598
      %v5883 = vmul.f32 %v5882, %v5598
      %v5884 = vmul.f32 %v5883, %v5882
      %v5885 = vmul.f32 0.5, %v5884
      %v5886 = vsub.f32 1.5, %v5885
      %v5887 = vmul.f32 %v5882, %v5886
      %vm5888 = vweird.f32 %v5598
      %vm5889 = vweird.f32 %v5882
      %vm5890 = vmor %vm5888, %vm5889
      %v5891 = vsel %vm5890, %v5882, %v5887
      %v5892 = vrsqrt.pop %v5599
      %v5893 = vmul.f32 %v5892, %v5599
      %v5894 = vmul.f32 %v5893, %v5892
      %v5895 = vmul.f32 0.5, %v5894
      %v5896 = vsub.f32 1.5, %v5895
      %v5897 = vmul.f32 %v5892, %v5896
      %vm5898 = vweird.f32 %v5599
      %vm5899 = vweird.f32 %v5892
      %vm5900 = vmor %vm5898, %vm5899
      %v5901 = vsel %vm5900, %v5892, %v5897
      %v5902 = vrsqrt.pop %v5600
      %v5903 = vmul.f32 %v5902, %v5600
      %v5904 = vmul.f32 %v5903, %v5902
      %v5905 = vmul.f32 0.5, %v5904
      %v5906 = vsub.f32 1.5, %v5905
      %v5907 = vmul.f32 %v5902, %v5906
      %vm5908 = vweird.f32 %v5600
      %vm5909 = vweird.f32 %v5902
      %vm5910 = vmor %vm5908, %vm5909
      %v5911 = vsel %vm5910, %v5902, %v5907
      %v5912 = vrsqrt.pop %v5601
      %v5913 = vmul.f32 %v5912, %v5601
      %v5914 = vmul.f32 %v5913, %v5912
      %v5915 = vmul.f32 0.5, %v5914
      %v5916 = vsub.f32 1.5, %v5915
      %v5917 = vmul.f32 %v5912, %v5916
      %vm5918 = vweird.f32 %v5601
      %vm5919 = vweird.f32 %v5912
      %vm5920 = vmor %vm5918, %vm5919
      %v5921 = vsel %vm5920, %v5912, %v5917
      %v5922 = vmul.f32 %v5378, %v5611
      %v5923 = vmul.f32 %v5379, %v5621
      %v5924 = vmul.f32 %v5380, %v5631
      %v5925 = vmul.f32 %v5381, %v5641
      %v5926 = vmul.f32 %v5382, %v5651
      %v5927 = vmul.f32 %v5383, %v5661
      %v5928 = vmul.f32 %v5384, %v5671
      %v5929 = vmul.f32 %v5385, %v5681
      %v5930 = vmul.f32 %v5386, %v5691
      %v5931 = vmul.f32 %v5387, %v5701
      %v5932 = vmul.f32 %v5388, %v5711
      %v5933 = vmul.f32 %v5389, %v5721
      %v5934 = vmul.f32 %v5390, %v5731
      %v5935 = vmul.f32 %v5391, %v5741
      %v5936 = vmul.f32 %v5392, %v5751
      %v5937 = vmul.f32 %v5393, %v5761
      %v5938 = vmul.f32 %v5394, %v5771
      %v5939 = vmul.f32 %v5395, %v5781
      %v5940 = vmul.f32 %v5396, %v5791
      %v5941 = vmul.f32 %v5397, %v5801
      %v5942 = vmul.f32 %v5398, %v5811
      %v5943 = vmul.f32 %v5399, %v5821
      %v5944 = vmul.f32 %v5400, %v5831
      %v5945 = vmul.f32 %v5401, %v5841
      %v5946 = vmul.f32 %v5402, %v5851
      %v5947 = vmul.f32 %v5403, %v5861
      %v5948 = vmul.f32 %v5404, %v5871
      %v5949 = vmul.f32 %v5405, %v5881
      %v5950 = vmul.f32 %v5406, %v5891
      %v5951 = vmul.f32 %v5407, %v5901
      %v5952 = vmul.f32 %v5408, %v5911
      %v5953 = vmul.f32 %v5409, %v5921
      %v5955 = vperm.slane %v5240, 0
      %v5957 = vmul.f32 %v5922, %v5955
      %v5958 = vmul.f32 %v5923, %v5955
      %v5959 = vmul.f32 %v5924, %v5955
      %v5960 = vmul.f32 %v5925, %v5955
      %v5961 = vmul.f32 %v5926, %v5955
      %v5962 = vmul.f32 %v5927, %v5955
      %v5963 = vmul.f32 %v5928, %v5955
      %v5964 = vmul.f32 %v5929, %v5955
      %v5965 = vmul.f32 %v5930, %v5955
      %v5966 = vmul.f32 %v5931, %v5955
      %v5967 = vmul.f32 %v5932, %v5955
      %v5968 = vmul.f32 %v5933, %v5955
      %v5969 = vmul.f32 %v5934, %v5955
      %v5970 = vmul.f32 %v5935, %v5955
      %v5971 = vmul.f32 %v5936, %v5955
      %v5972 = vmul.f32 %v5937, %v5955
      %v5973 = vmul.f32 %v5938, %v5955
      %v5974 = vmul.f32 %v5939, %v5955
      %v5975 = vmul.f32 %v5940, %v5955
      %v5976 = vmul.f32 %v5941, %v5955
      %v5977 = vmul.f32 %v5942, %v5955
      %v5978 = vmul.f32 %v5943, %v5955
      %v5979 = vmul.f32 %v5944, %v5955
      %v5980 = vmul.f32 %v5945, %v5955
      %v5981 = vmul.f32 %v5946, %v5955
      %v5982 = vmul.f32 %v5947, %v5955
      %v5983 = vmul.f32 %v5948, %v5955
      %v5984 = vmul.f32 %v5949, %v5955
      %v5985 = vmul.f32 %v5950, %v5955
      %v5986 = vmul.f32 %v5951, %v5955
      %v5987 = vmul.f32 %v5952, %v5955
      %v5988 = vmul.f32 %v5953, %v5955
      %v5990 = vperm.slane %v5241, 0
      %v5992 = vadd.f32 %v5957, %v5990
      %v5993 = vadd.f32 %v5958, %v5990
      %v5994 = vadd.f32 %v5959, %v5990
      %v5995 = vadd.f32 %v5960, %v5990
      %v5996 = vadd.f32 %v5961, %v5990
      %v5997 = vadd.f32 %v5962, %v5990
      %v5998 = vadd.f32 %v5963, %v5990
      %v5999 = vadd.f32 %v5964, %v5990
      %v6000 = vadd.f32 %v5965, %v5990
      %v6001 = vadd.f32 %v5966, %v5990
      %v6002 = vadd.f32 %v5967, %v5990
      %v6003 = vadd.f32 %v5968, %v5990
      %v6004 = vadd.f32 %v5969, %v5990
      %v6005 = vadd.f32 %v5970, %v5990
      %v6006 = vadd.f32 %v5971, %v5990
      %v6007 = vadd.f32 %v5972, %v5990
      %v6008 = vadd.f32 %v5973, %v5990
      %v6009 = vadd.f32 %v5974, %v5990
      %v6010 = vadd.f32 %v5975, %v5990
      %v6011 = vadd.f32 %v5976, %v5990
      %v6012 = vadd.f32 %v5977, %v5990
      %v6013 = vadd.f32 %v5978, %v5990
      %v6014 = vadd.f32 %v5979, %v5990
      %v6015 = vadd.f32 %v5980, %v5990
      %v6016 = vadd.f32 %v5981, %v5990
      %v6017 = vadd.f32 %v5982, %v5990
      %v6018 = vadd.f32 %v5983, %v5990
      %v6019 = vadd.f32 %v5984, %v5990
      %v6020 = vadd.f32 %v5985, %v5990
      %v6021 = vadd.f32 %v5986, %v5990
      %v6022 = vadd.f32 %v5987, %v5990
      %v6023 = vadd.f32 %v5988, %v5990
      %v6024 = vmul.f32 %v5992, 0.5
      %v6025 = vmul.f32 %v5993, 0.5
      %v6026 = vmul.f32 %v5994, 0.5
      %v6027 = vmul.f32 %v5995, 0.5
      %v6028 = vmul.f32 %v5996, 0.5
      %v6029 = vmul.f32 %v5997, 0.5
      %v6030 = vmul.f32 %v5998, 0.5
      %v6031 = vmul.f32 %v5999, 0.5
      %v6032 = vmul.f32 %v6000, 0.5
      %v6033 = vmul.f32 %v6001, 0.5
      %v6034 = vmul.f32 %v6002, 0.5
      %v6035 = vmul.f32 %v6003, 0.5
      %v6036 = vmul.f32 %v6004, 0.5
      %v6037 = vmul.f32 %v6005, 0.5
      %v6038 = vmul.f32 %v6006, 0.5
      %v6039 = vmul.f32 %v6007, 0.5
      %v6040 = vmul.f32 %v6008, 0.5
      %v6041 = vmul.f32 %v6009, 0.5
      %v6042 = vmul.f32 %v6010, 0.5
      %v6043 = vmul.f32 %v6011, 0.5
      %v6044 = vmul.f32 %v6012, 0.5
      %v6045 = vmul.f32 %v6013, 0.5
      %v6046 = vmul.f32 %v6014, 0.5
      %v6047 = vmul.f32 %v6015, 0.5
      %v6048 = vmul.f32 %v6016, 0.5
      %v6049 = vmul.f32 %v6017, 0.5
      %v6050 = vmul.f32 %v6018, 0.5
      %v6051 = vmul.f32 %v6019, 0.5
      %v6052 = vmul.f32 %v6020, 0.5
      %v6053 = vmul.f32 %v6021, 0.5
      %v6054 = vmul.f32 %v6022, 0.5
      %v6055 = vmul.f32 %v6023, 0.5
      %v6056 = vmul.f32 %v5992, 0.70710677
      %v6057 = vmul.f32 %v5993, 0.70710677
      %v6058 = vmul.f32 %v5994, 0.70710677
      %v6059 = vmul.f32 %v5995, 0.70710677
      %v6060 = vmul.f32 %v5996, 0.70710677
      %v6061 = vmul.f32 %v5997, 0.70710677
      %v6062 = vmul.f32 %v5998, 0.70710677
      %v6063 = vmul.f32 %v5999, 0.70710677
      %v6064 = vmul.f32 %v6000, 0.70710677
      %v6065 = vmul.f32 %v6001, 0.70710677
      %v6066 = vmul.f32 %v6002, 0.70710677
      %v6067 = vmul.f32 %v6003, 0.70710677
      %v6068 = vmul.f32 %v6004, 0.70710677
      %v6069 = vmul.f32 %v6005, 0.70710677
      %v6070 = vmul.f32 %v6006, 0.70710677
      %v6071 = vmul.f32 %v6007, 0.70710677
      %v6072 = vmul.f32 %v6008, 0.70710677
      %v6073 = vmul.f32 %v6009, 0.70710677
      %v6074 = vmul.f32 %v6010, 0.70710677
      %v6075 = vmul.f32 %v6011, 0.70710677
      %v6076 = vmul.f32 %v6012, 0.70710677
      %v6077 = vmul.f32 %v6013, 0.70710677
      %v6078 = vmul.f32 %v6014, 0.70710677
      %v6079 = vmul.f32 %v6015, 0.70710677
      %v6080 = vmul.f32 %v6016, 0.70710677
      %v6081 = vmul.f32 %v6017, 0.70710677
      %v6082 = vmul.f32 %v6018, 0.70710677
      %v6083 = vmul.f32 %v6019, 0.70710677
      %v6084 = vmul.f32 %v6020, 0.70710677
      %v6085 = vmul.f32 %v6021, 0.70710677
      %v6086 = vmul.f32 %v6022, 0.70710677
      %v6087 = vmul.f32 %v6023, 0.70710677
      %v6088 = vmul.f32 %v6056, %v6056
      %v6089 = vmin.f32 16.0, %v6088
      %v6090 = vmul.f32 %v6089, 2.1237322e-06
      %v6091 = vadd.f32 %v6090, 0.00028619796
      %v6092 = vmul.f32 %v6089, %v6091
      %v6093 = vadd.f32 %v6092, 0.0036580483
      %v6094 = vmul.f32 %v6089, %v6093
      %v6095 = vadd.f32 %v6094, 0.05243302
      %v6096 = vmul.f32 %v6089, %v6095
      %v6097 = vadd.f32 %v6096, 0.18741608
      %v6098 = vmul.f32 %v6089, %v6097
      %v6099 = vadd.f32 %v6098, 1.1283791
      %v6100 = vmul.f32 %v6056, %v6099
      %v6101 = vmul.f32 %v6089, 3.8918573e-05
      %v6102 = vadd.f32 %v6101, 0.001143296
      %v6103 = vmul.f32 %v6089, %v6102
      %v6104 = vadd.f32 %v6103, 0.014752088
      %v6105 = vmul.f32 %v6089, %v6104
      %v6106 = vadd.f32 %v6105, 0.112945676
      %v6107 = vmul.f32 %v6089, %v6106
      %v6108 = vadd.f32 %v6107, 0.4994258
      %v6109 = vmul.f32 %v6089, %v6108
      %v6110 = vadd.f32 %v6109, 1.0
      %v6111 = vrcp.pop %v6110
      %v6112 = vmul.f32 %v6110, %v6111
      %v6113 = vsub.f32 1.0, %v6112
      %v6114 = vmul.f32 %v6111, %v6113
      %v6115 = vadd.f32 %v6111, %v6114
      %vm6116 = vweird.f32 %v6110
      %vm6117 = vweird.f32 %v6111
      %vm6118 = vmor %vm6116, %vm6117
      %v6119 = vsel %vm6118, %v6111, %v6115
      %v6120 = vand.u32 2147483647, %v6110
      %vm6121 = vcmp.eq.f32.partialorder %v6120, 8.507059e+37
      %v6122 = vand.u32 %v6110, 2147483648
      %v6123 = vor.u32 1.1754944e-38, %v6122
      %v6124 = vsel %vm6121, %v6123, %v6119
      %v6125 = vmul.f32 %v6100, %v6124
      %v6126 = vmin.f32 %v6125, 1.0
      %v6127 = vmax.f32 %v6126, -1.0
      %v6128 = vmul.f32 %v6057, %v6057
      %v6129 = vmin.f32 16.0, %v6128
      %v6130 = vmul.f32 %v6129, 2.1237322e-06
      %v6131 = vadd.f32 %v6130, 0.00028619796
      %v6132 = vmul.f32 %v6129, %v6131
      %v6133 = vadd.f32 %v6132, 0.0036580483
      %v6134 = vmul.f32 %v6129, %v6133
      %v6135 = vadd.f32 %v6134, 0.05243302
      %v6136 = vmul.f32 %v6129, %v6135
      %v6137 = vadd.f32 %v6136, 0.18741608
      %v6138 = vmul.f32 %v6129, %v6137
      %v6139 = vadd.f32 %v6138, 1.1283791
      %v6140 = vmul.f32 %v6057, %v6139
      %v6141 = vmul.f32 %v6129, 3.8918573e-05
      %v6142 = vadd.f32 %v6141, 0.001143296
      %v6143 = vmul.f32 %v6129, %v6142
      %v6144 = vadd.f32 %v6143, 0.014752088
      %v6145 = vmul.f32 %v6129, %v6144
      %v6146 = vadd.f32 %v6145, 0.112945676
      %v6147 = vmul.f32 %v6129, %v6146
      %v6148 = vadd.f32 %v6147, 0.4994258
      %v6149 = vmul.f32 %v6129, %v6148
      %v6150 = vadd.f32 %v6149, 1.0
      %v6151 = vrcp.pop %v6150
      %v6152 = vmul.f32 %v6150, %v6151
      %v6153 = vsub.f32 1.0, %v6152
      %v6154 = vmul.f32 %v6151, %v6153
      %v6155 = vadd.f32 %v6151, %v6154
      %vm6156 = vweird.f32 %v6150
      %vm6157 = vweird.f32 %v6151
      %vm6158 = vmor %vm6156, %vm6157
      %v6159 = vsel %vm6158, %v6151, %v6155
      %v6160 = vand.u32 2147483647, %v6150
      %vm6161 = vcmp.eq.f32.partialorder %v6160, 8.507059e+37
      %v6162 = vand.u32 %v6150, 2147483648
      %v6163 = vor.u32 1.1754944e-38, %v6162
      %v6164 = vsel %vm6161, %v6163, %v6159
      %v6165 = vmul.f32 %v6140, %v6164
      %v6166 = vmin.f32 %v6165, 1.0
      %v6167 = vmax.f32 %v6166, -1.0
      %v6168 = vmul.f32 %v6058, %v6058
      %v6169 = vmin.f32 16.0, %v6168
      %v6170 = vmul.f32 %v6169, 2.1237322e-06
      %v6171 = vadd.f32 %v6170, 0.00028619796
      %v6172 = vmul.f32 %v6169, %v6171
      %v6173 = vadd.f32 %v6172, 0.0036580483
      %v6174 = vmul.f32 %v6169, %v6173
      %v6175 = vadd.f32 %v6174, 0.05243302
      %v6176 = vmul.f32 %v6169, %v6175
      %v6177 = vadd.f32 %v6176, 0.18741608
      %v6178 = vmul.f32 %v6169, %v6177
      %v6179 = vadd.f32 %v6178, 1.1283791
      %v6180 = vmul.f32 %v6058, %v6179
      %v6181 = vmul.f32 %v6169, 3.8918573e-05
      %v6182 = vadd.f32 %v6181, 0.001143296
      %v6183 = vmul.f32 %v6169, %v6182
      %v6184 = vadd.f32 %v6183, 0.014752088
      %v6185 = vmul.f32 %v6169, %v6184
      %v6186 = vadd.f32 %v6185, 0.112945676
      %v6187 = vmul.f32 %v6169, %v6186
      %v6188 = vadd.f32 %v6187, 0.4994258
      %v6189 = vmul.f32 %v6169, %v6188
      %v6190 = vadd.f32 %v6189, 1.0
      %v6191 = vrcp.pop %v6190
      %v6192 = vmul.f32 %v6190, %v6191
      %v6193 = vsub.f32 1.0, %v6192
      %v6194 = vmul.f32 %v6191, %v6193
      %v6195 = vadd.f32 %v6191, %v6194
      %vm6196 = vweird.f32 %v6190
      %vm6197 = vweird.f32 %v6191
      %vm6198 = vmor %vm6196, %vm6197
      %v6199 = vsel %vm6198, %v6191, %v6195
      %v6200 = vand.u32 2147483647, %v6190
      %vm6201 = vcmp.eq.f32.partialorder %v6200, 8.507059e+37
      %v6202 = vand.u32 %v6190, 2147483648
      %v6203 = vor.u32 1.1754944e-38, %v6202
      %v6204 = vsel %vm6201, %v6203, %v6199
      %v6205 = vmul.f32 %v6180, %v6204
      %v6206 = vmin.f32 %v6205, 1.0
      %v6207 = vmax.f32 %v6206, -1.0
      %v6208 = vmul.f32 %v6059, %v6059
      %v6209 = vmin.f32 16.0, %v6208
      %v6210 = vmul.f32 %v6209, 2.1237322e-06
      %v6211 = vadd.f32 %v6210, 0.00028619796
      %v6212 = vmul.f32 %v6209, %v6211
      %v6213 = vadd.f32 %v6212, 0.0036580483
      %v6214 = vmul.f32 %v6209, %v6213
      %v6215 = vadd.f32 %v6214, 0.05243302
      %v6216 = vmul.f32 %v6209, %v6215
      %v6217 = vadd.f32 %v6216, 0.18741608
      %v6218 = vmul.f32 %v6209, %v6217
      %v6219 = vadd.f32 %v6218, 1.1283791
      %v6220 = vmul.f32 %v6059, %v6219
      %v6221 = vmul.f32 %v6209, 3.8918573e-05
      %v6222 = vadd.f32 %v6221, 0.001143296
      %v6223 = vmul.f32 %v6209, %v6222
      %v6224 = vadd.f32 %v6223, 0.014752088
      %v6225 = vmul.f32 %v6209, %v6224
      %v6226 = vadd.f32 %v6225, 0.112945676
      %v6227 = vmul.f32 %v6209, %v6226
      %v6228 = vadd.f32 %v6227, 0.4994258
      %v6229 = vmul.f32 %v6209, %v6228
      %v6230 = vadd.f32 %v6229, 1.0
      %v6231 = vrcp.pop %v6230
      %v6232 = vmul.f32 %v6230, %v6231
      %v6233 = vsub.f32 1.0, %v6232
      %v6234 = vmul.f32 %v6231, %v6233
      %v6235 = vadd.f32 %v6231, %v6234
      %vm6236 = vweird.f32 %v6230
      %vm6237 = vweird.f32 %v6231
      %vm6238 = vmor %vm6236, %vm6237
      %v6239 = vsel %vm6238, %v6231, %v6235
      %v6240 = vand.u32 2147483647, %v6230
      %vm6241 = vcmp.eq.f32.partialorder %v6240, 8.507059e+37
      %v6242 = vand.u32 %v6230, 2147483648
      %v6243 = vor.u32 1.1754944e-38, %v6242
      %v6244 = vsel %vm6241, %v6243, %v6239
      %v6245 = vmul.f32 %v6220, %v6244
      %v6246 = vmin.f32 %v6245, 1.0
      %v6247 = vmax.f32 %v6246, -1.0
      %v6248 = vmul.f32 %v6060, %v6060
      %v6249 = vmin.f32 16.0, %v6248
      %v6250 = vmul.f32 %v6249, 2.1237322e-06
      %v6251 = vadd.f32 %v6250, 0.00028619796
      %v6252 = vmul.f32 %v6249, %v6251
      %v6253 = vadd.f32 %v6252, 0.0036580483
      %v6254 = vmul.f32 %v6249, %v6253
      %v6255 = vadd.f32 %v6254, 0.05243302
      %v6256 = vmul.f32 %v6249, %v6255
      %v6257 = vadd.f32 %v6256, 0.18741608
      %v6258 = vmul.f32 %v6249, %v6257
      %v6259 = vadd.f32 %v6258, 1.1283791
      %v6260 = vmul.f32 %v6060, %v6259
      %v6261 = vmul.f32 %v6249, 3.8918573e-05
      %v6262 = vadd.f32 %v6261, 0.001143296
      %v6263 = vmul.f32 %v6249, %v6262
      %v6264 = vadd.f32 %v6263, 0.014752088
      %v6265 = vmul.f32 %v6249, %v6264
      %v6266 = vadd.f32 %v6265, 0.112945676
      %v6267 = vmul.f32 %v6249, %v6266
      %v6268 = vadd.f32 %v6267, 0.4994258
      %v6269 = vmul.f32 %v6249, %v6268
      %v6270 = vadd.f32 %v6269, 1.0
      %v6271 = vrcp.pop %v6270
      %v6272 = vmul.f32 %v6270, %v6271
      %v6273 = vsub.f32 1.0, %v6272
      %v6274 = vmul.f32 %v6271, %v6273
      %v6275 = vadd.f32 %v6271, %v6274
      %vm6276 = vweird.f32 %v6270
      %vm6277 = vweird.f32 %v6271
      %vm6278 = vmor %vm6276, %vm6277
      %v6279 = vsel %vm6278, %v6271, %v6275
      %v6280 = vand.u32 2147483647, %v6270
      %vm6281 = vcmp.eq.f32.partialorder %v6280, 8.507059e+37
      %v6282 = vand.u32 %v6270, 2147483648
      %v6283 = vor.u32 1.1754944e-38, %v6282
      %v6284 = vsel %vm6281, %v6283, %v6279
      %v6285 = vmul.f32 %v6260, %v6284
      %v6286 = vmin.f32 %v6285, 1.0
      %v6287 = vmax.f32 %v6286, -1.0
      %v6288 = vmul.f32 %v6061, %v6061
      %v6289 = vmin.f32 16.0, %v6288
      %v6290 = vmul.f32 %v6289, 2.1237322e-06
      %v6291 = vadd.f32 %v6290, 0.00028619796
      %v6292 = vmul.f32 %v6289, %v6291
      %v6293 = vadd.f32 %v6292, 0.0036580483
      %v6294 = vmul.f32 %v6289, %v6293
      %v6295 = vadd.f32 %v6294, 0.05243302
      %v6296 = vmul.f32 %v6289, %v6295
      %v6297 = vadd.f32 %v6296, 0.18741608
      %v6298 = vmul.f32 %v6289, %v6297
      %v6299 = vadd.f32 %v6298, 1.1283791
      %v6300 = vmul.f32 %v6061, %v6299
      %v6301 = vmul.f32 %v6289, 3.8918573e-05
      %v6302 = vadd.f32 %v6301, 0.001143296
      %v6303 = vmul.f32 %v6289, %v6302
      %v6304 = vadd.f32 %v6303, 0.014752088
      %v6305 = vmul.f32 %v6289, %v6304
      %v6306 = vadd.f32 %v6305, 0.112945676
      %v6307 = vmul.f32 %v6289, %v6306
      %v6308 = vadd.f32 %v6307, 0.4994258
      %v6309 = vmul.f32 %v6289, %v6308
      %v6310 = vadd.f32 %v6309, 1.0
      %v6311 = vrcp.pop %v6310
      %v6312 = vmul.f32 %v6310, %v6311
      %v6313 = vsub.f32 1.0, %v6312
      %v6314 = vmul.f32 %v6311, %v6313
      %v6315 = vadd.f32 %v6311, %v6314
      %vm6316 = vweird.f32 %v6310
      %vm6317 = vweird.f32 %v6311
      %vm6318 = vmor %vm6316, %vm6317
      %v6319 = vsel %vm6318, %v6311, %v6315
      %v6320 = vand.u32 2147483647, %v6310
      %vm6321 = vcmp.eq.f32.partialorder %v6320, 8.507059e+37
      %v6322 = vand.u32 %v6310, 2147483648
      %v6323 = vor.u32 1.1754944e-38, %v6322
      %v6324 = vsel %vm6321, %v6323, %v6319
      %v6325 = vmul.f32 %v6300, %v6324
      %v6326 = vmin.f32 %v6325, 1.0
      %v6327 = vmax.f32 %v6326, -1.0
      %v6328 = vmul.f32 %v6062, %v6062
      %v6329 = vmin.f32 16.0, %v6328
      %v6330 = vmul.f32 %v6329, 2.1237322e-06
      %v6331 = vadd.f32 %v6330, 0.00028619796
      %v6332 = vmul.f32 %v6329, %v6331
      %v6333 = vadd.f32 %v6332, 0.0036580483
      %v6334 = vmul.f32 %v6329, %v6333
      %v6335 = vadd.f32 %v6334, 0.05243302
      %v6336 = vmul.f32 %v6329, %v6335
      %v6337 = vadd.f32 %v6336, 0.18741608
      %v6338 = vmul.f32 %v6329, %v6337
      %v6339 = vadd.f32 %v6338, 1.1283791
      %v6340 = vmul.f32 %v6062, %v6339
      %v6341 = vmul.f32 %v6329, 3.8918573e-05
      %v6342 = vadd.f32 %v6341, 0.001143296
      %v6343 = vmul.f32 %v6329, %v6342
      %v6344 = vadd.f32 %v6343, 0.014752088
      %v6345 = vmul.f32 %v6329, %v6344
      %v6346 = vadd.f32 %v6345, 0.112945676
      %v6347 = vmul.f32 %v6329, %v6346
      %v6348 = vadd.f32 %v6347, 0.4994258
      %v6349 = vmul.f32 %v6329, %v6348
      %v6350 = vadd.f32 %v6349, 1.0
      %v6351 = vrcp.pop %v6350
      %v6352 = vmul.f32 %v6350, %v6351
      %v6353 = vsub.f32 1.0, %v6352
      %v6354 = vmul.f32 %v6351, %v6353
      %v6355 = vadd.f32 %v6351, %v6354
      %vm6356 = vweird.f32 %v6350
      %vm6357 = vweird.f32 %v6351
      %vm6358 = vmor %vm6356, %vm6357
      %v6359 = vsel %vm6358, %v6351, %v6355
      %v6360 = vand.u32 2147483647, %v6350
      %vm6361 = vcmp.eq.f32.partialorder %v6360, 8.507059e+37
      %v6362 = vand.u32 %v6350, 2147483648
      %v6363 = vor.u32 1.1754944e-38, %v6362
      %v6364 = vsel %vm6361, %v6363, %v6359
      %v6365 = vmul.f32 %v6340, %v6364
      %v6366 = vmin.f32 %v6365, 1.0
      %v6367 = vmax.f32 %v6366, -1.0
      %v6368 = vmul.f32 %v6063, %v6063
      %v6369 = vmin.f32 16.0, %v6368
      %v6370 = vmul.f32 %v6369, 2.1237322e-06
      %v6371 = vadd.f32 %v6370, 0.00028619796
      %v6372 = vmul.f32 %v6369, %v6371
      %v6373 = vadd.f32 %v6372, 0.0036580483
      %v6374 = vmul.f32 %v6369, %v6373
      %v6375 = vadd.f32 %v6374, 0.05243302
      %v6376 = vmul.f32 %v6369, %v6375
      %v6377 = vadd.f32 %v6376, 0.18741608
      %v6378 = vmul.f32 %v6369, %v6377
      %v6379 = vadd.f32 %v6378, 1.1283791
      %v6380 = vmul.f32 %v6063, %v6379
      %v6381 = vmul.f32 %v6369, 3.8918573e-05
      %v6382 = vadd.f32 %v6381, 0.001143296
      %v6383 = vmul.f32 %v6369, %v6382
      %v6384 = vadd.f32 %v6383, 0.014752088
      %v6385 = vmul.f32 %v6369, %v6384
      %v6386 = vadd.f32 %v6385, 0.112945676
      %v6387 = vmul.f32 %v6369, %v6386
      %v6388 = vadd.f32 %v6387, 0.4994258
      %v6389 = vmul.f32 %v6369, %v6388
      %v6390 = vadd.f32 %v6389, 1.0
      %v6391 = vrcp.pop %v6390
      %v6392 = vmul.f32 %v6390, %v6391
      %v6393 = vsub.f32 1.0, %v6392
      %v6394 = vmul.f32 %v6391, %v6393
      %v6395 = vadd.f32 %v6391, %v6394
      %vm6396 = vweird.f32 %v6390
      %vm6397 = vweird.f32 %v6391
      %vm6398 = vmor %vm6396, %vm6397
      %v6399 = vsel %vm6398, %v6391, %v6395
      %v6400 = vand.u32 2147483647, %v6390
      %vm6401 = vcmp.eq.f32.partialorder %v6400, 8.507059e+37
      %v6402 = vand.u32 %v6390, 2147483648
      %v6403 = vor.u32 1.1754944e-38, %v6402
      %v6404 = vsel %vm6401, %v6403, %v6399
      %v6405 = vmul.f32 %v6380, %v6404
      %v6406 = vmin.f32 %v6405, 1.0
      %v6407 = vmax.f32 %v6406, -1.0
      %v6408 = vmul.f32 %v6064, %v6064
      %v6409 = vmin.f32 16.0, %v6408
      %v6410 = vmul.f32 %v6409, 2.1237322e-06
      %v6411 = vadd.f32 %v6410, 0.00028619796
      %v6412 = vmul.f32 %v6409, %v6411
      %v6413 = vadd.f32 %v6412, 0.0036580483
      %v6414 = vmul.f32 %v6409, %v6413
      %v6415 = vadd.f32 %v6414, 0.05243302
      %v6416 = vmul.f32 %v6409, %v6415
      %v6417 = vadd.f32 %v6416, 0.18741608
      %v6418 = vmul.f32 %v6409, %v6417
      %v6419 = vadd.f32 %v6418, 1.1283791
      %v6420 = vmul.f32 %v6064, %v6419
      %v6421 = vmul.f32 %v6409, 3.8918573e-05
      %v6422 = vadd.f32 %v6421, 0.001143296
      %v6423 = vmul.f32 %v6409, %v6422
      %v6424 = vadd.f32 %v6423, 0.014752088
      %v6425 = vmul.f32 %v6409, %v6424
      %v6426 = vadd.f32 %v6425, 0.112945676
      %v6427 = vmul.f32 %v6409, %v6426
      %v6428 = vadd.f32 %v6427, 0.4994258
      %v6429 = vmul.f32 %v6409, %v6428
      %v6430 = vadd.f32 %v6429, 1.0
      %v6431 = vrcp.pop %v6430
      %v6432 = vmul.f32 %v6430, %v6431
      %v6433 = vsub.f32 1.0, %v6432
      %v6434 = vmul.f32 %v6431, %v6433
      %v6435 = vadd.f32 %v6431, %v6434
      %vm6436 = vweird.f32 %v6430
      %vm6437 = vweird.f32 %v6431
      %vm6438 = vmor %vm6436, %vm6437
      %v6439 = vsel %vm6438, %v6431, %v6435
      %v6440 = vand.u32 2147483647, %v6430
      %vm6441 = vcmp.eq.f32.partialorder %v6440, 8.507059e+37
      %v6442 = vand.u32 %v6430, 2147483648
      %v6443 = vor.u32 1.1754944e-38, %v6442
      %v6444 = vsel %vm6441, %v6443, %v6439
      %v6445 = vmul.f32 %v6420, %v6444
      %v6446 = vmin.f32 %v6445, 1.0
      %v6447 = vmax.f32 %v6446, -1.0
      %v6448 = vmul.f32 %v6065, %v6065
      %v6449 = vmin.f32 16.0, %v6448
      %v6450 = vmul.f32 %v6449, 2.1237322e-06
      %v6451 = vadd.f32 %v6450, 0.00028619796
      %v6452 = vmul.f32 %v6449, %v6451
      %v6453 = vadd.f32 %v6452, 0.0036580483
      %v6454 = vmul.f32 %v6449, %v6453
      %v6455 = vadd.f32 %v6454, 0.05243302
      %v6456 = vmul.f32 %v6449, %v6455
      %v6457 = vadd.f32 %v6456, 0.18741608
      %v6458 = vmul.f32 %v6449, %v6457
      %v6459 = vadd.f32 %v6458, 1.1283791
      %v6460 = vmul.f32 %v6065, %v6459
      %v6461 = vmul.f32 %v6449, 3.8918573e-05
      %v6462 = vadd.f32 %v6461, 0.001143296
      %v6463 = vmul.f32 %v6449, %v6462
      %v6464 = vadd.f32 %v6463, 0.014752088
      %v6465 = vmul.f32 %v6449, %v6464
      %v6466 = vadd.f32 %v6465, 0.112945676
      %v6467 = vmul.f32 %v6449, %v6466
      %v6468 = vadd.f32 %v6467, 0.4994258
      %v6469 = vmul.f32 %v6449, %v6468
      %v6470 = vadd.f32 %v6469, 1.0
      %v6471 = vrcp.pop %v6470
      %v6472 = vmul.f32 %v6470, %v6471
      %v6473 = vsub.f32 1.0, %v6472
      %v6474 = vmul.f32 %v6471, %v6473
      %v6475 = vadd.f32 %v6471, %v6474
      %vm6476 = vweird.f32 %v6470
      %vm6477 = vweird.f32 %v6471
      %vm6478 = vmor %vm6476, %vm6477
      %v6479 = vsel %vm6478, %v6471, %v6475
      %v6480 = vand.u32 2147483647, %v6470
      %vm6481 = vcmp.eq.f32.partialorder %v6480, 8.507059e+37
      %v6482 = vand.u32 %v6470, 2147483648
      %v6483 = vor.u32 1.1754944e-38, %v6482
      %v6484 = vsel %vm6481, %v6483, %v6479
      %v6485 = vmul.f32 %v6460, %v6484
      %v6486 = vmin.f32 %v6485, 1.0
      %v6487 = vmax.f32 %v6486, -1.0
      %v6488 = vmul.f32 %v6066, %v6066
      %v6489 = vmin.f32 16.0, %v6488
      %v6490 = vmul.f32 %v6489, 2.1237322e-06
      %v6491 = vadd.f32 %v6490, 0.00028619796
      %v6492 = vmul.f32 %v6489, %v6491
      %v6493 = vadd.f32 %v6492, 0.0036580483
      %v6494 = vmul.f32 %v6489, %v6493
      %v6495 = vadd.f32 %v6494, 0.05243302
      %v6496 = vmul.f32 %v6489, %v6495
      %v6497 = vadd.f32 %v6496, 0.18741608
      %v6498 = vmul.f32 %v6489, %v6497
      %v6499 = vadd.f32 %v6498, 1.1283791
      %v6500 = vmul.f32 %v6066, %v6499
      %v6501 = vmul.f32 %v6489, 3.8918573e-05
      %v6502 = vadd.f32 %v6501, 0.001143296
      %v6503 = vmul.f32 %v6489, %v6502
      %v6504 = vadd.f32 %v6503, 0.014752088
      %v6505 = vmul.f32 %v6489, %v6504
      %v6506 = vadd.f32 %v6505, 0.112945676
      %v6507 = vmul.f32 %v6489, %v6506
      %v6508 = vadd.f32 %v6507, 0.4994258
      %v6509 = vmul.f32 %v6489, %v6508
      %v6510 = vadd.f32 %v6509, 1.0
      %v6511 = vrcp.pop %v6510
      %v6512 = vmul.f32 %v6510, %v6511
      %v6513 = vsub.f32 1.0, %v6512
      %v6514 = vmul.f32 %v6511, %v6513
      %v6515 = vadd.f32 %v6511, %v6514
      %vm6516 = vweird.f32 %v6510
      %vm6517 = vweird.f32 %v6511
      %vm6518 = vmor %vm6516, %vm6517
      %v6519 = vsel %vm6518, %v6511, %v6515
      %v6520 = vand.u32 2147483647, %v6510
      %vm6521 = vcmp.eq.f32.partialorder %v6520, 8.507059e+37
      %v6522 = vand.u32 %v6510, 2147483648
      %v6523 = vor.u32 1.1754944e-38, %v6522
      %v6524 = vsel %vm6521, %v6523, %v6519
      %v6525 = vmul.f32 %v6500, %v6524
      %v6526 = vmin.f32 %v6525, 1.0
      %v6527 = vmax.f32 %v6526, -1.0
      %v6528 = vmul.f32 %v6067, %v6067
      %v6529 = vmin.f32 16.0, %v6528
      %v6530 = vmul.f32 %v6529, 2.1237322e-06
      %v6531 = vadd.f32 %v6530, 0.00028619796
      %v6532 = vmul.f32 %v6529, %v6531
      %v6533 = vadd.f32 %v6532, 0.0036580483
      %v6534 = vmul.f32 %v6529, %v6533
      %v6535 = vadd.f32 %v6534, 0.05243302
      %v6536 = vmul.f32 %v6529, %v6535
      %v6537 = vadd.f32 %v6536, 0.18741608
      %v6538 = vmul.f32 %v6529, %v6537
      %v6539 = vadd.f32 %v6538, 1.1283791
      %v6540 = vmul.f32 %v6067, %v6539
      %v6541 = vmul.f32 %v6529, 3.8918573e-05
      %v6542 = vadd.f32 %v6541, 0.001143296
      %v6543 = vmul.f32 %v6529, %v6542
      %v6544 = vadd.f32 %v6543, 0.014752088
      %v6545 = vmul.f32 %v6529, %v6544
      %v6546 = vadd.f32 %v6545, 0.112945676
      %v6547 = vmul.f32 %v6529, %v6546
      %v6548 = vadd.f32 %v6547, 0.4994258
      %v6549 = vmul.f32 %v6529, %v6548
      %v6550 = vadd.f32 %v6549, 1.0
      %v6551 = vrcp.pop %v6550
      %v6552 = vmul.f32 %v6550, %v6551
      %v6553 = vsub.f32 1.0, %v6552
      %v6554 = vmul.f32 %v6551, %v6553
      %v6555 = vadd.f32 %v6551, %v6554
      %vm6556 = vweird.f32 %v6550
      %vm6557 = vweird.f32 %v6551
      %vm6558 = vmor %vm6556, %vm6557
      %v6559 = vsel %vm6558, %v6551, %v6555
      %v6560 = vand.u32 2147483647, %v6550
      %vm6561 = vcmp.eq.f32.partialorder %v6560, 8.507059e+37
      %v6562 = vand.u32 %v6550, 2147483648
      %v6563 = vor.u32 1.1754944e-38, %v6562
      %v6564 = vsel %vm6561, %v6563, %v6559
      %v6565 = vmul.f32 %v6540, %v6564
      %v6566 = vmin.f32 %v6565, 1.0
      %v6567 = vmax.f32 %v6566, -1.0
      %v6568 = vmul.f32 %v6068, %v6068
      %v6569 = vmin.f32 16.0, %v6568
      %v6570 = vmul.f32 %v6569, 2.1237322e-06
      %v6571 = vadd.f32 %v6570, 0.00028619796
      %v6572 = vmul.f32 %v6569, %v6571
      %v6573 = vadd.f32 %v6572, 0.0036580483
      %v6574 = vmul.f32 %v6569, %v6573
      %v6575 = vadd.f32 %v6574, 0.05243302
      %v6576 = vmul.f32 %v6569, %v6575
      %v6577 = vadd.f32 %v6576, 0.18741608
      %v6578 = vmul.f32 %v6569, %v6577
      %v6579 = vadd.f32 %v6578, 1.1283791
      %v6580 = vmul.f32 %v6068, %v6579
      %v6581 = vmul.f32 %v6569, 3.8918573e-05
      %v6582 = vadd.f32 %v6581, 0.001143296
      %v6583 = vmul.f32 %v6569, %v6582
      %v6584 = vadd.f32 %v6583, 0.014752088
      %v6585 = vmul.f32 %v6569, %v6584
      %v6586 = vadd.f32 %v6585, 0.112945676
      %v6587 = vmul.f32 %v6569, %v6586
      %v6588 = vadd.f32 %v6587, 0.4994258
      %v6589 = vmul.f32 %v6569, %v6588
      %v6590 = vadd.f32 %v6589, 1.0
      %v6591 = vrcp.pop %v6590
      %v6592 = vmul.f32 %v6590, %v6591
      %v6593 = vsub.f32 1.0, %v6592
      %v6594 = vmul.f32 %v6591, %v6593
      %v6595 = vadd.f32 %v6591, %v6594
      %vm6596 = vweird.f32 %v6590
      %vm6597 = vweird.f32 %v6591
      %vm6598 = vmor %vm6596, %vm6597
      %v6599 = vsel %vm6598, %v6591, %v6595
      %v6600 = vand.u32 2147483647, %v6590
      %vm6601 = vcmp.eq.f32.partialorder %v6600, 8.507059e+37
      %v6602 = vand.u32 %v6590, 2147483648
      %v6603 = vor.u32 1.1754944e-38, %v6602
      %v6604 = vsel %vm6601, %v6603, %v6599
      %v6605 = vmul.f32 %v6580, %v6604
      %v6606 = vmin.f32 %v6605, 1.0
      %v6607 = vmax.f32 %v6606, -1.0
      %v6608 = vmul.f32 %v6069, %v6069
      %v6609 = vmin.f32 16.0, %v6608
      %v6610 = vmul.f32 %v6609, 2.1237322e-06
      %v6611 = vadd.f32 %v6610, 0.00028619796
      %v6612 = vmul.f32 %v6609, %v6611
      %v6613 = vadd.f32 %v6612, 0.0036580483
      %v6614 = vmul.f32 %v6609, %v6613
      %v6615 = vadd.f32 %v6614, 0.05243302
      %v6616 = vmul.f32 %v6609, %v6615
      %v6617 = vadd.f32 %v6616, 0.18741608
      %v6618 = vmul.f32 %v6609, %v6617
      %v6619 = vadd.f32 %v6618, 1.1283791
      %v6620 = vmul.f32 %v6069, %v6619
      %v6621 = vmul.f32 %v6609, 3.8918573e-05
      %v6622 = vadd.f32 %v6621, 0.001143296
      %v6623 = vmul.f32 %v6609, %v6622
      %v6624 = vadd.f32 %v6623, 0.014752088
      %v6625 = vmul.f32 %v6609, %v6624
      %v6626 = vadd.f32 %v6625, 0.112945676
      %v6627 = vmul.f32 %v6609, %v6626
      %v6628 = vadd.f32 %v6627, 0.4994258
      %v6629 = vmul.f32 %v6609, %v6628
      %v6630 = vadd.f32 %v6629, 1.0
      %v6631 = vrcp.pop %v6630
      %v6632 = vmul.f32 %v6630, %v6631
      %v6633 = vsub.f32 1.0, %v6632
      %v6634 = vmul.f32 %v6631, %v6633
      %v6635 = vadd.f32 %v6631, %v6634
      %vm6636 = vweird.f32 %v6630
      %vm6637 = vweird.f32 %v6631
      %vm6638 = vmor %vm6636, %vm6637
      %v6639 = vsel %vm6638, %v6631, %v6635
      %v6640 = vand.u32 2147483647, %v6630
      %vm6641 = vcmp.eq.f32.partialorder %v6640, 8.507059e+37
      %v6642 = vand.u32 %v6630, 2147483648
      %v6643 = vor.u32 1.1754944e-38, %v6642
      %v6644 = vsel %vm6641, %v6643, %v6639
      %v6645 = vmul.f32 %v6620, %v6644
      %v6646 = vmin.f32 %v6645, 1.0
      %v6647 = vmax.f32 %v6646, -1.0
      %v6648 = vmul.f32 %v6070, %v6070
      %v6649 = vmin.f32 16.0, %v6648
      %v6650 = vmul.f32 %v6649, 2.1237322e-06
      %v6651 = vadd.f32 %v6650, 0.00028619796
      %v6652 = vmul.f32 %v6649, %v6651
      %v6653 = vadd.f32 %v6652, 0.0036580483
      %v6654 = vmul.f32 %v6649, %v6653
      %v6655 = vadd.f32 %v6654, 0.05243302
      %v6656 = vmul.f32 %v6649, %v6655
      %v6657 = vadd.f32 %v6656, 0.18741608
      %v6658 = vmul.f32 %v6649, %v6657
      %v6659 = vadd.f32 %v6658, 1.1283791
      %v6660 = vmul.f32 %v6070, %v6659
      %v6661 = vmul.f32 %v6649, 3.8918573e-05
      %v6662 = vadd.f32 %v6661, 0.001143296
      %v6663 = vmul.f32 %v6649, %v6662
      %v6664 = vadd.f32 %v6663, 0.014752088
      %v6665 = vmul.f32 %v6649, %v6664
      %v6666 = vadd.f32 %v6665, 0.112945676
      %v6667 = vmul.f32 %v6649, %v6666
      %v6668 = vadd.f32 %v6667, 0.4994258
      %v6669 = vmul.f32 %v6649, %v6668
      %v6670 = vadd.f32 %v6669, 1.0
      %v6671 = vrcp.pop %v6670
      %v6672 = vmul.f32 %v6670, %v6671
      %v6673 = vsub.f32 1.0, %v6672
      %v6674 = vmul.f32 %v6671, %v6673
      %v6675 = vadd.f32 %v6671, %v6674
      %vm6676 = vweird.f32 %v6670
      %vm6677 = vweird.f32 %v6671
      %vm6678 = vmor %vm6676, %vm6677
      %v6679 = vsel %vm6678, %v6671, %v6675
      %v6680 = vand.u32 2147483647, %v6670
      %vm6681 = vcmp.eq.f32.partialorder %v6680, 8.507059e+37
      %v6682 = vand.u32 %v6670, 2147483648
      %v6683 = vor.u32 1.1754944e-38, %v6682
      %v6684 = vsel %vm6681, %v6683, %v6679
      %v6685 = vmul.f32 %v6660, %v6684
      %v6686 = vmin.f32 %v6685, 1.0
      %v6687 = vmax.f32 %v6686, -1.0
      %v6688 = vmul.f32 %v6071, %v6071
      %v6689 = vmin.f32 16.0, %v6688
      %v6690 = vmul.f32 %v6689, 2.1237322e-06
      %v6691 = vadd.f32 %v6690, 0.00028619796
      %v6692 = vmul.f32 %v6689, %v6691
      %v6693 = vadd.f32 %v6692, 0.0036580483
      %v6694 = vmul.f32 %v6689, %v6693
      %v6695 = vadd.f32 %v6694, 0.05243302
      %v6696 = vmul.f32 %v6689, %v6695
      %v6697 = vadd.f32 %v6696, 0.18741608
      %v6698 = vmul.f32 %v6689, %v6697
      %v6699 = vadd.f32 %v6698, 1.1283791
      %v6700 = vmul.f32 %v6071, %v6699
      %v6701 = vmul.f32 %v6689, 3.8918573e-05
      %v6702 = vadd.f32 %v6701, 0.001143296
      %v6703 = vmul.f32 %v6689, %v6702
      %v6704 = vadd.f32 %v6703, 0.014752088
      %v6705 = vmul.f32 %v6689, %v6704
      %v6706 = vadd.f32 %v6705, 0.112945676
      %v6707 = vmul.f32 %v6689, %v6706
      %v6708 = vadd.f32 %v6707, 0.4994258
      %v6709 = vmul.f32 %v6689, %v6708
      %v6710 = vadd.f32 %v6709, 1.0
      %v6711 = vrcp.pop %v6710
      %v6712 = vmul.f32 %v6710, %v6711
      %v6713 = vsub.f32 1.0, %v6712
      %v6714 = vmul.f32 %v6711, %v6713
      %v6715 = vadd.f32 %v6711, %v6714
      %vm6716 = vweird.f32 %v6710
      %vm6717 = vweird.f32 %v6711
      %vm6718 = vmor %vm6716, %vm6717
      %v6719 = vsel %vm6718, %v6711, %v6715
      %v6720 = vand.u32 2147483647, %v6710
      %vm6721 = vcmp.eq.f32.partialorder %v6720, 8.507059e+37
      %v6722 = vand.u32 %v6710, 2147483648
      %v6723 = vor.u32 1.1754944e-38, %v6722
      %v6724 = vsel %vm6721, %v6723, %v6719
      %v6725 = vmul.f32 %v6700, %v6724
      %v6726 = vmin.f32 %v6725, 1.0
      %v6727 = vmax.f32 %v6726, -1.0
      %v6728 = vmul.f32 %v6072, %v6072
      %v6729 = vmin.f32 16.0, %v6728
      %v6730 = vmul.f32 %v6729, 2.1237322e-06
      %v6731 = vadd.f32 %v6730, 0.00028619796
      %v6732 = vmul.f32 %v6729, %v6731
      %v6733 = vadd.f32 %v6732, 0.0036580483
      %v6734 = vmul.f32 %v6729, %v6733
      %v6735 = vadd.f32 %v6734, 0.05243302
      %v6736 = vmul.f32 %v6729, %v6735
      %v6737 = vadd.f32 %v6736, 0.18741608
      %v6738 = vmul.f32 %v6729, %v6737
      %v6739 = vadd.f32 %v6738, 1.1283791
      %v6740 = vmul.f32 %v6072, %v6739
      %v6741 = vmul.f32 %v6729, 3.8918573e-05
      %v6742 = vadd.f32 %v6741, 0.001143296
      %v6743 = vmul.f32 %v6729, %v6742
      %v6744 = vadd.f32 %v6743, 0.014752088
      %v6745 = vmul.f32 %v6729, %v6744
      %v6746 = vadd.f32 %v6745, 0.112945676
      %v6747 = vmul.f32 %v6729, %v6746
      %v6748 = vadd.f32 %v6747, 0.4994258
      %v6749 = vmul.f32 %v6729, %v6748
      %v6750 = vadd.f32 %v6749, 1.0
      %v6751 = vrcp.pop %v6750
      %v6752 = vmul.f32 %v6750, %v6751
      %v6753 = vsub.f32 1.0, %v6752
      %v6754 = vmul.f32 %v6751, %v6753
      %v6755 = vadd.f32 %v6751, %v6754
      %vm6756 = vweird.f32 %v6750
      %vm6757 = vweird.f32 %v6751
      %vm6758 = vmor %vm6756, %vm6757
      %v6759 = vsel %vm6758, %v6751, %v6755
      %v6760 = vand.u32 2147483647, %v6750
      %vm6761 = vcmp.eq.f32.partialorder %v6760, 8.507059e+37
      %v6762 = vand.u32 %v6750, 2147483648
      %v6763 = vor.u32 1.1754944e-38, %v6762
      %v6764 = vsel %vm6761, %v6763, %v6759
      %v6765 = vmul.f32 %v6740, %v6764
      %v6766 = vmin.f32 %v6765, 1.0
      %v6767 = vmax.f32 %v6766, -1.0
      %v6768 = vmul.f32 %v6073, %v6073
      %v6769 = vmin.f32 16.0, %v6768
      %v6770 = vmul.f32 %v6769, 2.1237322e-06
      %v6771 = vadd.f32 %v6770, 0.00028619796
      %v6772 = vmul.f32 %v6769, %v6771
      %v6773 = vadd.f32 %v6772, 0.0036580483
      %v6774 = vmul.f32 %v6769, %v6773
      %v6775 = vadd.f32 %v6774, 0.05243302
      %v6776 = vmul.f32 %v6769, %v6775
      %v6777 = vadd.f32 %v6776, 0.18741608
      %v6778 = vmul.f32 %v6769, %v6777
      %v6779 = vadd.f32 %v6778, 1.1283791
      %v6780 = vmul.f32 %v6073, %v6779
      %v6781 = vmul.f32 %v6769, 3.8918573e-05
      %v6782 = vadd.f32 %v6781, 0.001143296
      %v6783 = vmul.f32 %v6769, %v6782
      %v6784 = vadd.f32 %v6783, 0.014752088
      %v6785 = vmul.f32 %v6769, %v6784
      %v6786 = vadd.f32 %v6785, 0.112945676
      %v6787 = vmul.f32 %v6769, %v6786
      %v6788 = vadd.f32 %v6787, 0.4994258
      %v6789 = vmul.f32 %v6769, %v6788
      %v6790 = vadd.f32 %v6789, 1.0
      %v6791 = vrcp.pop %v6790
      %v6792 = vmul.f32 %v6790, %v6791
      %v6793 = vsub.f32 1.0, %v6792
      %v6794 = vmul.f32 %v6791, %v6793
      %v6795 = vadd.f32 %v6791, %v6794
      %vm6796 = vweird.f32 %v6790
      %vm6797 = vweird.f32 %v6791
      %vm6798 = vmor %vm6796, %vm6797
      %v6799 = vsel %vm6798, %v6791, %v6795
      %v6800 = vand.u32 2147483647, %v6790
      %vm6801 = vcmp.eq.f32.partialorder %v6800, 8.507059e+37
      %v6802 = vand.u32 %v6790, 2147483648
      %v6803 = vor.u32 1.1754944e-38, %v6802
      %v6804 = vsel %vm6801, %v6803, %v6799
      %v6805 = vmul.f32 %v6780, %v6804
      %v6806 = vmin.f32 %v6805, 1.0
      %v6807 = vmax.f32 %v6806, -1.0
      %v6808 = vmul.f32 %v6074, %v6074
      %v6809 = vmin.f32 16.0, %v6808
      %v6810 = vmul.f32 %v6809, 2.1237322e-06
      %v6811 = vadd.f32 %v6810, 0.00028619796
      %v6812 = vmul.f32 %v6809, %v6811
      %v6813 = vadd.f32 %v6812, 0.0036580483
      %v6814 = vmul.f32 %v6809, %v6813
      %v6815 = vadd.f32 %v6814, 0.05243302
      %v6816 = vmul.f32 %v6809, %v6815
      %v6817 = vadd.f32 %v6816, 0.18741608
      %v6818 = vmul.f32 %v6809, %v6817
      %v6819 = vadd.f32 %v6818, 1.1283791
      %v6820 = vmul.f32 %v6074, %v6819
      %v6821 = vmul.f32 %v6809, 3.8918573e-05
      %v6822 = vadd.f32 %v6821, 0.001143296
      %v6823 = vmul.f32 %v6809, %v6822
      %v6824 = vadd.f32 %v6823, 0.014752088
      %v6825 = vmul.f32 %v6809, %v6824
      %v6826 = vadd.f32 %v6825, 0.112945676
      %v6827 = vmul.f32 %v6809, %v6826
      %v6828 = vadd.f32 %v6827, 0.4994258
      %v6829 = vmul.f32 %v6809, %v6828
      %v6830 = vadd.f32 %v6829, 1.0
      %v6831 = vrcp.pop %v6830
      %v6832 = vmul.f32 %v6830, %v6831
      %v6833 = vsub.f32 1.0, %v6832
      %v6834 = vmul.f32 %v6831, %v6833
      %v6835 = vadd.f32 %v6831, %v6834
      %vm6836 = vweird.f32 %v6830
      %vm6837 = vweird.f32 %v6831
      %vm6838 = vmor %vm6836, %vm6837
      %v6839 = vsel %vm6838, %v6831, %v6835
      %v6840 = vand.u32 2147483647, %v6830
      %vm6841 = vcmp.eq.f32.partialorder %v6840, 8.507059e+37
      %v6842 = vand.u32 %v6830, 2147483648
      %v6843 = vor.u32 1.1754944e-38, %v6842
      %v6844 = vsel %vm6841, %v6843, %v6839
      %v6845 = vmul.f32 %v6820, %v6844
      %v6846 = vmin.f32 %v6845, 1.0
      %v6847 = vmax.f32 %v6846, -1.0
      %v6848 = vmul.f32 %v6075, %v6075
      %v6849 = vmin.f32 16.0, %v6848
      %v6850 = vmul.f32 %v6849, 2.1237322e-06
      %v6851 = vadd.f32 %v6850, 0.00028619796
      %v6852 = vmul.f32 %v6849, %v6851
      %v6853 = vadd.f32 %v6852, 0.0036580483
      %v6854 = vmul.f32 %v6849, %v6853
      %v6855 = vadd.f32 %v6854, 0.05243302
      %v6856 = vmul.f32 %v6849, %v6855
      %v6857 = vadd.f32 %v6856, 0.18741608
      %v6858 = vmul.f32 %v6849, %v6857
      %v6859 = vadd.f32 %v6858, 1.1283791
      %v6860 = vmul.f32 %v6075, %v6859
      %v6861 = vmul.f32 %v6849, 3.8918573e-05
      %v6862 = vadd.f32 %v6861, 0.001143296
      %v6863 = vmul.f32 %v6849, %v6862
      %v6864 = vadd.f32 %v6863, 0.014752088
      %v6865 = vmul.f32 %v6849, %v6864
      %v6866 = vadd.f32 %v6865, 0.112945676
      %v6867 = vmul.f32 %v6849, %v6866
      %v6868 = vadd.f32 %v6867, 0.4994258
      %v6869 = vmul.f32 %v6849, %v6868
      %v6870 = vadd.f32 %v6869, 1.0
      %v6871 = vrcp.pop %v6870
      %v6872 = vmul.f32 %v6870, %v6871
      %v6873 = vsub.f32 1.0, %v6872
      %v6874 = vmul.f32 %v6871, %v6873
      %v6875 = vadd.f32 %v6871, %v6874
      %vm6876 = vweird.f32 %v6870
      %vm6877 = vweird.f32 %v6871
      %vm6878 = vmor %vm6876, %vm6877
      %v6879 = vsel %vm6878, %v6871, %v6875
      %v6880 = vand.u32 2147483647, %v6870
      %vm6881 = vcmp.eq.f32.partialorder %v6880, 8.507059e+37
      %v6882 = vand.u32 %v6870, 2147483648
      %v6883 = vor.u32 1.1754944e-38, %v6882
      %v6884 = vsel %vm6881, %v6883, %v6879
      %v6885 = vmul.f32 %v6860, %v6884
      %v6886 = vmin.f32 %v6885, 1.0
      %v6887 = vmax.f32 %v6886, -1.0
      %v6888 = vmul.f32 %v6076, %v6076
      %v6889 = vmin.f32 16.0, %v6888
      %v6890 = vmul.f32 %v6889, 2.1237322e-06
      %v6891 = vadd.f32 %v6890, 0.00028619796
      %v6892 = vmul.f32 %v6889, %v6891
      %v6893 = vadd.f32 %v6892, 0.0036580483
      %v6894 = vmul.f32 %v6889, %v6893
      %v6895 = vadd.f32 %v6894, 0.05243302
      %v6896 = vmul.f32 %v6889, %v6895
      %v6897 = vadd.f32 %v6896, 0.18741608
      %v6898 = vmul.f32 %v6889, %v6897
      %v6899 = vadd.f32 %v6898, 1.1283791
      %v6900 = vmul.f32 %v6076, %v6899
      %v6901 = vmul.f32 %v6889, 3.8918573e-05
      %v6902 = vadd.f32 %v6901, 0.001143296
      %v6903 = vmul.f32 %v6889, %v6902
      %v6904 = vadd.f32 %v6903, 0.014752088
      %v6905 = vmul.f32 %v6889, %v6904
      %v6906 = vadd.f32 %v6905, 0.112945676
      %v6907 = vmul.f32 %v6889, %v6906
      %v6908 = vadd.f32 %v6907, 0.4994258
      %v6909 = vmul.f32 %v6889, %v6908
      %v6910 = vadd.f32 %v6909, 1.0
      %v6911 = vrcp.pop %v6910
      %v6912 = vmul.f32 %v6910, %v6911
      %v6913 = vsub.f32 1.0, %v6912
      %v6914 = vmul.f32 %v6911, %v6913
      %v6915 = vadd.f32 %v6911, %v6914
      %vm6916 = vweird.f32 %v6910
      %vm6917 = vweird.f32 %v6911
      %vm6918 = vmor %vm6916, %vm6917
      %v6919 = vsel %vm6918, %v6911, %v6915
      %v6920 = vand.u32 2147483647, %v6910
      %vm6921 = vcmp.eq.f32.partialorder %v6920, 8.507059e+37
      %v6922 = vand.u32 %v6910, 2147483648
      %v6923 = vor.u32 1.1754944e-38, %v6922
      %v6924 = vsel %vm6921, %v6923, %v6919
      %v6925 = vmul.f32 %v6900, %v6924
      %v6926 = vmin.f32 %v6925, 1.0
      %v6927 = vmax.f32 %v6926, -1.0
      %v6928 = vmul.f32 %v6077, %v6077
      %v6929 = vmin.f32 16.0, %v6928
      %v6930 = vmul.f32 %v6929, 2.1237322e-06
      %v6931 = vadd.f32 %v6930, 0.00028619796
      %v6932 = vmul.f32 %v6929, %v6931
      %v6933 = vadd.f32 %v6932, 0.0036580483
      %v6934 = vmul.f32 %v6929, %v6933
      %v6935 = vadd.f32 %v6934, 0.05243302
      %v6936 = vmul.f32 %v6929, %v6935
      %v6937 = vadd.f32 %v6936, 0.18741608
      %v6938 = vmul.f32 %v6929, %v6937
      %v6939 = vadd.f32 %v6938, 1.1283791
      %v6940 = vmul.f32 %v6077, %v6939
      %v6941 = vmul.f32 %v6929, 3.8918573e-05
      %v6942 = vadd.f32 %v6941, 0.001143296
      %v6943 = vmul.f32 %v6929, %v6942
      %v6944 = vadd.f32 %v6943, 0.014752088
      %v6945 = vmul.f32 %v6929, %v6944
      %v6946 = vadd.f32 %v6945, 0.112945676
      %v6947 = vmul.f32 %v6929, %v6946
      %v6948 = vadd.f32 %v6947, 0.4994258
      %v6949 = vmul.f32 %v6929, %v6948
      %v6950 = vadd.f32 %v6949, 1.0
      %v6951 = vrcp.pop %v6950
      %v6952 = vmul.f32 %v6950, %v6951
      %v6953 = vsub.f32 1.0, %v6952
      %v6954 = vmul.f32 %v6951, %v6953
      %v6955 = vadd.f32 %v6951, %v6954
      %vm6956 = vweird.f32 %v6950
      %vm6957 = vweird.f32 %v6951
      %vm6958 = vmor %vm6956, %vm6957
      %v6959 = vsel %vm6958, %v6951, %v6955
      %v6960 = vand.u32 2147483647, %v6950
      %vm6961 = vcmp.eq.f32.partialorder %v6960, 8.507059e+37
      %v6962 = vand.u32 %v6950, 2147483648
      %v6963 = vor.u32 1.1754944e-38, %v6962
      %v6964 = vsel %vm6961, %v6963, %v6959
      %v6965 = vmul.f32 %v6940, %v6964
      %v6966 = vmin.f32 %v6965, 1.0
      %v6967 = vmax.f32 %v6966, -1.0
      %v6968 = vmul.f32 %v6078, %v6078
      %v6969 = vmin.f32 16.0, %v6968
      %v6970 = vmul.f32 %v6969, 2.1237322e-06
      %v6971 = vadd.f32 %v6970, 0.00028619796
      %v6972 = vmul.f32 %v6969, %v6971
      %v6973 = vadd.f32 %v6972, 0.0036580483
      %v6974 = vmul.f32 %v6969, %v6973
      %v6975 = vadd.f32 %v6974, 0.05243302
      %v6976 = vmul.f32 %v6969, %v6975
      %v6977 = vadd.f32 %v6976, 0.18741608
      %v6978 = vmul.f32 %v6969, %v6977
      %v6979 = vadd.f32 %v6978, 1.1283791
      %v6980 = vmul.f32 %v6078, %v6979
      %v6981 = vmul.f32 %v6969, 3.8918573e-05
      %v6982 = vadd.f32 %v6981, 0.001143296
      %v6983 = vmul.f32 %v6969, %v6982
      %v6984 = vadd.f32 %v6983, 0.014752088
      %v6985 = vmul.f32 %v6969, %v6984
      %v6986 = vadd.f32 %v6985, 0.112945676
      %v6987 = vmul.f32 %v6969, %v6986
      %v6988 = vadd.f32 %v6987, 0.4994258
      %v6989 = vmul.f32 %v6969, %v6988
      %v6990 = vadd.f32 %v6989, 1.0
      %v6991 = vrcp.pop %v6990
      %v6992 = vmul.f32 %v6990, %v6991
      %v6993 = vsub.f32 1.0, %v6992
      %v6994 = vmul.f32 %v6991, %v6993
      %v6995 = vadd.f32 %v6991, %v6994
      %vm6996 = vweird.f32 %v6990
      %vm6997 = vweird.f32 %v6991
      %vm6998 = vmor %vm6996, %vm6997
      %v6999 = vsel %vm6998, %v6991, %v6995
      %v7000 = vand.u32 2147483647, %v6990
      %vm7001 = vcmp.eq.f32.partialorder %v7000, 8.507059e+37
      %v7002 = vand.u32 %v6990, 2147483648
      %v7003 = vor.u32 1.1754944e-38, %v7002
      %v7004 = vsel %vm7001, %v7003, %v6999
      %v7005 = vmul.f32 %v6980, %v7004
      %v7006 = vmin.f32 %v7005, 1.0
      %v7007 = vmax.f32 %v7006, -1.0
      %v7008 = vmul.f32 %v6079, %v6079
      %v7009 = vmin.f32 16.0, %v7008
      %v7010 = vmul.f32 %v7009, 2.1237322e-06
      %v7011 = vadd.f32 %v7010, 0.00028619796
      %v7012 = vmul.f32 %v7009, %v7011
      %v7013 = vadd.f32 %v7012, 0.0036580483
      %v7014 = vmul.f32 %v7009, %v7013
      %v7015 = vadd.f32 %v7014, 0.05243302
      %v7016 = vmul.f32 %v7009, %v7015
      %v7017 = vadd.f32 %v7016, 0.18741608
      %v7018 = vmul.f32 %v7009, %v7017
      %v7019 = vadd.f32 %v7018, 1.1283791
      %v7020 = vmul.f32 %v6079, %v7019
      %v7021 = vmul.f32 %v7009, 3.8918573e-05
      %v7022 = vadd.f32 %v7021, 0.001143296
      %v7023 = vmul.f32 %v7009, %v7022
      %v7024 = vadd.f32 %v7023, 0.014752088
      %v7025 = vmul.f32 %v7009, %v7024
      %v7026 = vadd.f32 %v7025, 0.112945676
      %v7027 = vmul.f32 %v7009, %v7026
      %v7028 = vadd.f32 %v7027, 0.4994258
      %v7029 = vmul.f32 %v7009, %v7028
      %v7030 = vadd.f32 %v7029, 1.0
      %v7031 = vrcp.pop %v7030
      %v7032 = vmul.f32 %v7030, %v7031
      %v7033 = vsub.f32 1.0, %v7032
      %v7034 = vmul.f32 %v7031, %v7033
      %v7035 = vadd.f32 %v7031, %v7034
      %vm7036 = vweird.f32 %v7030
      %vm7037 = vweird.f32 %v7031
      %vm7038 = vmor %vm7036, %vm7037
      %v7039 = vsel %vm7038, %v7031, %v7035
      %v7040 = vand.u32 2147483647, %v7030
      %vm7041 = vcmp.eq.f32.partialorder %v7040, 8.507059e+37
      %v7042 = vand.u32 %v7030, 2147483648
      %v7043 = vor.u32 1.1754944e-38, %v7042
      %v7044 = vsel %vm7041, %v7043, %v7039
      %v7045 = vmul.f32 %v7020, %v7044
      %v7046 = vmin.f32 %v7045, 1.0
      %v7047 = vmax.f32 %v7046, -1.0
      %v7048 = vmul.f32 %v6080, %v6080
      %v7049 = vmin.f32 16.0, %v7048
      %v7050 = vmul.f32 %v7049, 2.1237322e-06
      %v7051 = vadd.f32 %v7050, 0.00028619796
      %v7052 = vmul.f32 %v7049, %v7051
      %v7053 = vadd.f32 %v7052, 0.0036580483
      %v7054 = vmul.f32 %v7049, %v7053
      %v7055 = vadd.f32 %v7054, 0.05243302
      %v7056 = vmul.f32 %v7049, %v7055
      %v7057 = vadd.f32 %v7056, 0.18741608
      %v7058 = vmul.f32 %v7049, %v7057
      %v7059 = vadd.f32 %v7058, 1.1283791
      %v7060 = vmul.f32 %v6080, %v7059
      %v7061 = vmul.f32 %v7049, 3.8918573e-05
      %v7062 = vadd.f32 %v7061, 0.001143296
      %v7063 = vmul.f32 %v7049, %v7062
      %v7064 = vadd.f32 %v7063, 0.014752088
      %v7065 = vmul.f32 %v7049, %v7064
      %v7066 = vadd.f32 %v7065, 0.112945676
      %v7067 = vmul.f32 %v7049, %v7066
      %v7068 = vadd.f32 %v7067, 0.4994258
      %v7069 = vmul.f32 %v7049, %v7068
      %v7070 = vadd.f32 %v7069, 1.0
      %v7071 = vrcp.pop %v7070
      %v7072 = vmul.f32 %v7070, %v7071
      %v7073 = vsub.f32 1.0, %v7072
      %v7074 = vmul.f32 %v7071, %v7073
      %v7075 = vadd.f32 %v7071, %v7074
      %vm7076 = vweird.f32 %v7070
      %vm7077 = vweird.f32 %v7071
      %vm7078 = vmor %vm7076, %vm7077
      %v7079 = vsel %vm7078, %v7071, %v7075
      %v7080 = vand.u32 2147483647, %v7070
      %vm7081 = vcmp.eq.f32.partialorder %v7080, 8.507059e+37
      %v7082 = vand.u32 %v7070, 2147483648
      %v7083 = vor.u32 1.1754944e-38, %v7082
      %v7084 = vsel %vm7081, %v7083, %v7079
      %v7085 = vmul.f32 %v7060, %v7084
      %v7086 = vmin.f32 %v7085, 1.0
      %v7087 = vmax.f32 %v7086, -1.0
      %v7088 = vmul.f32 %v6081, %v6081
      %v7089 = vmin.f32 16.0, %v7088
      %v7090 = vmul.f32 %v7089, 2.1237322e-06
      %v7091 = vadd.f32 %v7090, 0.00028619796
      %v7092 = vmul.f32 %v7089, %v7091
      %v7093 = vadd.f32 %v7092, 0.0036580483
      %v7094 = vmul.f32 %v7089, %v7093
      %v7095 = vadd.f32 %v7094, 0.05243302
      %v7096 = vmul.f32 %v7089, %v7095
      %v7097 = vadd.f32 %v7096, 0.18741608
      %v7098 = vmul.f32 %v7089, %v7097
      %v7099 = vadd.f32 %v7098, 1.1283791
      %v7100 = vmul.f32 %v6081, %v7099
      %v7101 = vmul.f32 %v7089, 3.8918573e-05
      %v7102 = vadd.f32 %v7101, 0.001143296
      %v7103 = vmul.f32 %v7089, %v7102
      %v7104 = vadd.f32 %v7103, 0.014752088
      %v7105 = vmul.f32 %v7089, %v7104
      %v7106 = vadd.f32 %v7105, 0.112945676
      %v7107 = vmul.f32 %v7089, %v7106
      %v7108 = vadd.f32 %v7107, 0.4994258
      %v7109 = vmul.f32 %v7089, %v7108
      %v7110 = vadd.f32 %v7109, 1.0
      %v7111 = vrcp.pop %v7110
      %v7112 = vmul.f32 %v7110, %v7111
      %v7113 = vsub.f32 1.0, %v7112
      %v7114 = vmul.f32 %v7111, %v7113
      %v7115 = vadd.f32 %v7111, %v7114
      %vm7116 = vweird.f32 %v7110
      %vm7117 = vweird.f32 %v7111
      %vm7118 = vmor %vm7116, %vm7117
      %v7119 = vsel %vm7118, %v7111, %v7115
      %v7120 = vand.u32 2147483647, %v7110
      %vm7121 = vcmp.eq.f32.partialorder %v7120, 8.507059e+37
      %v7122 = vand.u32 %v7110, 2147483648
      %v7123 = vor.u32 1.1754944e-38, %v7122
      %v7124 = vsel %vm7121, %v7123, %v7119
      %v7125 = vmul.f32 %v7100, %v7124
      %v7126 = vmin.f32 %v7125, 1.0
      %v7127 = vmax.f32 %v7126, -1.0
      %v7128 = vmul.f32 %v6082, %v6082
      %v7129 = vmin.f32 16.0, %v7128
      %v7130 = vmul.f32 %v7129, 2.1237322e-06
      %v7131 = vadd.f32 %v7130, 0.00028619796
      %v7132 = vmul.f32 %v7129, %v7131
      %v7133 = vadd.f32 %v7132, 0.0036580483
      %v7134 = vmul.f32 %v7129, %v7133
      %v7135 = vadd.f32 %v7134, 0.05243302
      %v7136 = vmul.f32 %v7129, %v7135
      %v7137 = vadd.f32 %v7136, 0.18741608
      %v7138 = vmul.f32 %v7129, %v7137
      %v7139 = vadd.f32 %v7138, 1.1283791
      %v7140 = vmul.f32 %v6082, %v7139
      %v7141 = vmul.f32 %v7129, 3.8918573e-05
      %v7142 = vadd.f32 %v7141, 0.001143296
      %v7143 = vmul.f32 %v7129, %v7142
      %v7144 = vadd.f32 %v7143, 0.014752088
      %v7145 = vmul.f32 %v7129, %v7144
      %v7146 = vadd.f32 %v7145, 0.112945676
      %v7147 = vmul.f32 %v7129, %v7146
      %v7148 = vadd.f32 %v7147, 0.4994258
      %v7149 = vmul.f32 %v7129, %v7148
      %v7150 = vadd.f32 %v7149, 1.0
      %v7151 = vrcp.pop %v7150
      %v7152 = vmul.f32 %v7150, %v7151
      %v7153 = vsub.f32 1.0, %v7152
      %v7154 = vmul.f32 %v7151, %v7153
      %v7155 = vadd.f32 %v7151, %v7154
      %vm7156 = vweird.f32 %v7150
      %vm7157 = vweird.f32 %v7151
      %vm7158 = vmor %vm7156, %vm7157
      %v7159 = vsel %vm7158, %v7151, %v7155
      %v7160 = vand.u32 2147483647, %v7150
      %vm7161 = vcmp.eq.f32.partialorder %v7160, 8.507059e+37
      %v7162 = vand.u32 %v7150, 2147483648
      %v7163 = vor.u32 1.1754944e-38, %v7162
      %v7164 = vsel %vm7161, %v7163, %v7159
      %v7165 = vmul.f32 %v7140, %v7164
      %v7166 = vmin.f32 %v7165, 1.0
      %v7167 = vmax.f32 %v7166, -1.0
      %v7168 = vmul.f32 %v6083, %v6083
      %v7169 = vmin.f32 16.0, %v7168
      %v7170 = vmul.f32 %v7169, 2.1237322e-06
      %v7171 = vadd.f32 %v7170, 0.00028619796
      %v7172 = vmul.f32 %v7169, %v7171
      %v7173 = vadd.f32 %v7172, 0.0036580483
      %v7174 = vmul.f32 %v7169, %v7173
      %v7175 = vadd.f32 %v7174, 0.05243302
      %v7176 = vmul.f32 %v7169, %v7175
      %v7177 = vadd.f32 %v7176, 0.18741608
      %v7178 = vmul.f32 %v7169, %v7177
      %v7179 = vadd.f32 %v7178, 1.1283791
      %v7180 = vmul.f32 %v6083, %v7179
      %v7181 = vmul.f32 %v7169, 3.8918573e-05
      %v7182 = vadd.f32 %v7181, 0.001143296
      %v7183 = vmul.f32 %v7169, %v7182
      %v7184 = vadd.f32 %v7183, 0.014752088
      %v7185 = vmul.f32 %v7169, %v7184
      %v7186 = vadd.f32 %v7185, 0.112945676
      %v7187 = vmul.f32 %v7169, %v7186
      %v7188 = vadd.f32 %v7187, 0.4994258
      %v7189 = vmul.f32 %v7169, %v7188
      %v7190 = vadd.f32 %v7189, 1.0
      %v7191 = vrcp.pop %v7190
      %v7192 = vmul.f32 %v7190, %v7191
      %v7193 = vsub.f32 1.0, %v7192
      %v7194 = vmul.f32 %v7191, %v7193
      %v7195 = vadd.f32 %v7191, %v7194
      %vm7196 = vweird.f32 %v7190
      %vm7197 = vweird.f32 %v7191
      %vm7198 = vmor %vm7196, %vm7197
      %v7199 = vsel %vm7198, %v7191, %v7195
      %v7200 = vand.u32 2147483647, %v7190
      %vm7201 = vcmp.eq.f32.partialorder %v7200, 8.507059e+37
      %v7202 = vand.u32 %v7190, 2147483648
      %v7203 = vor.u32 1.1754944e-38, %v7202
      %v7204 = vsel %vm7201, %v7203, %v7199
      %v7205 = vmul.f32 %v7180, %v7204
      %v7206 = vmin.f32 %v7205, 1.0
      %v7207 = vmax.f32 %v7206, -1.0
      %v7208 = vmul.f32 %v6084, %v6084
      %v7209 = vmin.f32 16.0, %v7208
      %v7210 = vmul.f32 %v7209, 2.1237322e-06
      %v7211 = vadd.f32 %v7210, 0.00028619796
      %v7212 = vmul.f32 %v7209, %v7211
      %v7213 = vadd.f32 %v7212, 0.0036580483
      %v7214 = vmul.f32 %v7209, %v7213
      %v7215 = vadd.f32 %v7214, 0.05243302
      %v7216 = vmul.f32 %v7209, %v7215
      %v7217 = vadd.f32 %v7216, 0.18741608
      %v7218 = vmul.f32 %v7209, %v7217
      %v7219 = vadd.f32 %v7218, 1.1283791
      %v7220 = vmul.f32 %v6084, %v7219
      %v7221 = vmul.f32 %v7209, 3.8918573e-05
      %v7222 = vadd.f32 %v7221, 0.001143296
      %v7223 = vmul.f32 %v7209, %v7222
      %v7224 = vadd.f32 %v7223, 0.014752088
      %v7225 = vmul.f32 %v7209, %v7224
      %v7226 = vadd.f32 %v7225, 0.112945676
      %v7227 = vmul.f32 %v7209, %v7226
      %v7228 = vadd.f32 %v7227, 0.4994258
      %v7229 = vmul.f32 %v7209, %v7228
      %v7230 = vadd.f32 %v7229, 1.0
      %v7231 = vrcp.pop %v7230
      %v7232 = vmul.f32 %v7230, %v7231
      %v7233 = vsub.f32 1.0, %v7232
      %v7234 = vmul.f32 %v7231, %v7233
      %v7235 = vadd.f32 %v7231, %v7234
      %vm7236 = vweird.f32 %v7230
      %vm7237 = vweird.f32 %v7231
      %vm7238 = vmor %vm7236, %vm7237
      %v7239 = vsel %vm7238, %v7231, %v7235
      %v7240 = vand.u32 2147483647, %v7230
      %vm7241 = vcmp.eq.f32.partialorder %v7240, 8.507059e+37
      %v7242 = vand.u32 %v7230, 2147483648
      %v7243 = vor.u32 1.1754944e-38, %v7242
      %v7244 = vsel %vm7241, %v7243, %v7239
      %v7245 = vmul.f32 %v7220, %v7244
      %v7246 = vmin.f32 %v7245, 1.0
      %v7247 = vmax.f32 %v7246, -1.0
      %v7248 = vmul.f32 %v6085, %v6085
      %v7249 = vmin.f32 16.0, %v7248
      %v7250 = vmul.f32 %v7249, 2.1237322e-06
      %v7251 = vadd.f32 %v7250, 0.00028619796
      %v7252 = vmul.f32 %v7249, %v7251
      %v7253 = vadd.f32 %v7252, 0.0036580483
      %v7254 = vmul.f32 %v7249, %v7253
      %v7255 = vadd.f32 %v7254, 0.05243302
      %v7256 = vmul.f32 %v7249, %v7255
      %v7257 = vadd.f32 %v7256, 0.18741608
      %v7258 = vmul.f32 %v7249, %v7257
      %v7259 = vadd.f32 %v7258, 1.1283791
      %v7260 = vmul.f32 %v6085, %v7259
      %v7261 = vmul.f32 %v7249, 3.8918573e-05
      %v7262 = vadd.f32 %v7261, 0.001143296
      %v7263 = vmul.f32 %v7249, %v7262
      %v7264 = vadd.f32 %v7263, 0.014752088
      %v7265 = vmul.f32 %v7249, %v7264
      %v7266 = vadd.f32 %v7265, 0.112945676
      %v7267 = vmul.f32 %v7249, %v7266
      %v7268 = vadd.f32 %v7267, 0.4994258
      %v7269 = vmul.f32 %v7249, %v7268
      %v7270 = vadd.f32 %v7269, 1.0
      %v7271 = vrcp.pop %v7270
      %v7272 = vmul.f32 %v7270, %v7271
      %v7273 = vsub.f32 1.0, %v7272
      %v7274 = vmul.f32 %v7271, %v7273
      %v7275 = vadd.f32 %v7271, %v7274
      %vm7276 = vweird.f32 %v7270
      %vm7277 = vweird.f32 %v7271
      %vm7278 = vmor %vm7276, %vm7277
      %v7279 = vsel %vm7278, %v7271, %v7275
      %v7280 = vand.u32 2147483647, %v7270
      %vm7281 = vcmp.eq.f32.partialorder %v7280, 8.507059e+37
      %v7282 = vand.u32 %v7270, 2147483648
      %v7283 = vor.u32 1.1754944e-38, %v7282
      %v7284 = vsel %vm7281, %v7283, %v7279
      %v7285 = vmul.f32 %v7260, %v7284
      %v7286 = vmin.f32 %v7285, 1.0
      %v7287 = vmax.f32 %v7286, -1.0
      %v7288 = vmul.f32 %v6086, %v6086
      %v7289 = vmin.f32 16.0, %v7288
      %v7290 = vmul.f32 %v7289, 2.1237322e-06
      %v7291 = vadd.f32 %v7290, 0.00028619796
      %v7292 = vmul.f32 %v7289, %v7291
      %v7293 = vadd.f32 %v7292, 0.0036580483
      %v7294 = vmul.f32 %v7289, %v7293
      %v7295 = vadd.f32 %v7294, 0.05243302
      %v7296 = vmul.f32 %v7289, %v7295
      %v7297 = vadd.f32 %v7296, 0.18741608
      %v7298 = vmul.f32 %v7289, %v7297
      %v7299 = vadd.f32 %v7298, 1.1283791
      %v7300 = vmul.f32 %v6086, %v7299
      %v7301 = vmul.f32 %v7289, 3.8918573e-05
      %v7302 = vadd.f32 %v7301, 0.001143296
      %v7303 = vmul.f32 %v7289, %v7302
      %v7304 = vadd.f32 %v7303, 0.014752088
      %v7305 = vmul.f32 %v7289, %v7304
      %v7306 = vadd.f32 %v7305, 0.112945676
      %v7307 = vmul.f32 %v7289, %v7306
      %v7308 = vadd.f32 %v7307, 0.4994258
      %v7309 = vmul.f32 %v7289, %v7308
      %v7310 = vadd.f32 %v7309, 1.0
      %v7311 = vrcp.pop %v7310
      %v7312 = vmul.f32 %v7310, %v7311
      %v7313 = vsub.f32 1.0, %v7312
      %v7314 = vmul.f32 %v7311, %v7313
      %v7315 = vadd.f32 %v7311, %v7314
      %vm7316 = vweird.f32 %v7310
      %vm7317 = vweird.f32 %v7311
      %vm7318 = vmor %vm7316, %vm7317
      %v7319 = vsel %vm7318, %v7311, %v7315
      %v7320 = vand.u32 2147483647, %v7310
      %vm7321 = vcmp.eq.f32.partialorder %v7320, 8.507059e+37
      %v7322 = vand.u32 %v7310, 2147483648
      %v7323 = vor.u32 1.1754944e-38, %v7322
      %v7324 = vsel %vm7321, %v7323, %v7319
      %v7325 = vmul.f32 %v7300, %v7324
      %v7326 = vmin.f32 %v7325, 1.0
      %v7327 = vmax.f32 %v7326, -1.0
      %v7328 = vmul.f32 %v6087, %v6087
      %v7329 = vmin.f32 16.0, %v7328
      %v7330 = vmul.f32 %v7329, 2.1237322e-06
      %v7331 = vadd.f32 %v7330, 0.00028619796
      %v7332 = vmul.f32 %v7329, %v7331
      %v7333 = vadd.f32 %v7332, 0.0036580483
      %v7334 = vmul.f32 %v7329, %v7333
      %v7335 = vadd.f32 %v7334, 0.05243302
      %v7336 = vmul.f32 %v7329, %v7335
      %v7337 = vadd.f32 %v7336, 0.18741608
      %v7338 = vmul.f32 %v7329, %v7337
      %v7339 = vadd.f32 %v7338, 1.1283791
      %v7340 = vmul.f32 %v6087, %v7339
      %v7341 = vmul.f32 %v7329, 3.8918573e-05
      %v7342 = vadd.f32 %v7341, 0.001143296
      %v7343 = vmul.f32 %v7329, %v7342
      %v7344 = vadd.f32 %v7343, 0.014752088
      %v7345 = vmul.f32 %v7329, %v7344
      %v7346 = vadd.f32 %v7345, 0.112945676
      %v7347 = vmul.f32 %v7329, %v7346
      %v7348 = vadd.f32 %v7347, 0.4994258
      %v7349 = vmul.f32 %v7329, %v7348
      %v7350 = vadd.f32 %v7349, 1.0
      %v7351 = vrcp.pop %v7350
      %v7352 = vmul.f32 %v7350, %v7351
      %v7353 = vsub.f32 1.0, %v7352
      %v7354 = vmul.f32 %v7351, %v7353
      %v7355 = vadd.f32 %v7351, %v7354
      %vm7356 = vweird.f32 %v7350
      %vm7357 = vweird.f32 %v7351
      %vm7358 = vmor %vm7356, %vm7357
      %v7359 = vsel %vm7358, %v7351, %v7355
      %v7360 = vand.u32 2147483647, %v7350
      %vm7361 = vcmp.eq.f32.partialorder %v7360, 8.507059e+37
      %v7362 = vand.u32 %v7350, 2147483648
      %v7363 = vor.u32 1.1754944e-38, %v7362
      %v7364 = vsel %vm7361, %v7363, %v7359
      %v7365 = vmul.f32 %v7340, %v7364
      %v7366 = vmin.f32 %v7365, 1.0
      %v7367 = vmax.f32 %v7366, -1.0
      %v7368 = vadd.f32 %v6127, 1.0
      %v7369 = vadd.f32 %v6167, 1.0
      %v7370 = vadd.f32 %v6207, 1.0
      %v7371 = vadd.f32 %v6247, 1.0
      %v7372 = vadd.f32 %v6287, 1.0
      %v7373 = vadd.f32 %v6327, 1.0
      %v7374 = vadd.f32 %v6367, 1.0
      %v7375 = vadd.f32 %v6407, 1.0
      %v7376 = vadd.f32 %v6447, 1.0
      %v7377 = vadd.f32 %v6487, 1.0
      %v7378 = vadd.f32 %v6527, 1.0
      %v7379 = vadd.f32 %v6567, 1.0
      %v7380 = vadd.f32 %v6607, 1.0
      %v7381 = vadd.f32 %v6647, 1.0
      %v7382 = vadd.f32 %v6687, 1.0
      %v7383 = vadd.f32 %v6727, 1.0
      %v7384 = vadd.f32 %v6767, 1.0
      %v7385 = vadd.f32 %v6807, 1.0
      %v7386 = vadd.f32 %v6847, 1.0
      %v7387 = vadd.f32 %v6887, 1.0
      %v7388 = vadd.f32 %v6927, 1.0
      %v7389 = vadd.f32 %v6967, 1.0
      %v7390 = vadd.f32 %v7007, 1.0
      %v7391 = vadd.f32 %v7047, 1.0
      %v7392 = vadd.f32 %v7087, 1.0
      %v7393 = vadd.f32 %v7127, 1.0
      %v7394 = vadd.f32 %v7167, 1.0
      %v7395 = vadd.f32 %v7207, 1.0
      %v7396 = vadd.f32 %v7247, 1.0
      %v7397 = vadd.f32 %v7287, 1.0
      %v7398 = vadd.f32 %v7327, 1.0
      %v7399 = vadd.f32 %v7367, 1.0
      %v7400 = vmul.f32 %v6024, %v7368
      %v7401 = vmul.f32 %v6025, %v7369
      %v7402 = vmul.f32 %v6026, %v7370
      %v7403 = vmul.f32 %v6027, %v7371
      %v7404 = vmul.f32 %v6028, %v7372
      %v7405 = vmul.f32 %v6029, %v7373
      %v7406 = vmul.f32 %v6030, %v7374
      %v7407 = vmul.f32 %v6031, %v7375
      %v7408 = vmul.f32 %v6032, %v7376
      %v7409 = vmul.f32 %v6033, %v7377
      %v7410 = vmul.f32 %v6034, %v7378
      %v7411 = vmul.f32 %v6035, %v7379
      %v7412 = vmul.f32 %v6036, %v7380
      %v7413 = vmul.f32 %v6037, %v7381
      %v7414 = vmul.f32 %v6038, %v7382
      %v7415 = vmul.f32 %v6039, %v7383
      %v7416 = vmul.f32 %v6040, %v7384
      %v7417 = vmul.f32 %v6041, %v7385
      %v7418 = vmul.f32 %v6042, %v7386
      %v7419 = vmul.f32 %v6043, %v7387
      %v7420 = vmul.f32 %v6044, %v7388
      %v7421 = vmul.f32 %v6045, %v7389
      %v7422 = vmul.f32 %v6046, %v7390
      %v7423 = vmul.f32 %v6047, %v7391
      %v7424 = vmul.f32 %v6048, %v7392
      %v7425 = vmul.f32 %v6049, %v7393
      %v7426 = vmul.f32 %v6050, %v7394
      %v7427 = vmul.f32 %v6051, %v7395
      %v7428 = vmul.f32 %v6052, %v7396
      %v7429 = vmul.f32 %v6053, %v7397
      %v7430 = vmul.f32 %v6054, %v7398
      %v7431 = vmul.f32 %v6055, %v7399
      %7432 = vst.msk [vmem:[%s356] sm:$0xff] %vm5242, %v7400
      %7433 = vst.msk [vmem:[%s356 + $0x8] sm:$0xff] %vm5242, %v7401
      %7434 = vst.msk [vmem:[%s356 + $0x10] sm:$0xff] %vm5242, %v7402
      %7435 = vst.msk [vmem:[%s356 + $0x18] sm:$0xff] %vm5242, %v7403
      %7436 = vst.msk [vmem:[%s356 + $0x20] sm:$0xff] %vm5242, %v7404
      %7437 = vst.msk [vmem:[%s356 + $0x28] sm:$0xff] %vm5242, %v7405
      %7438 = vst.msk [vmem:[%s356 + $0x30] sm:$0xff] %vm5242, %v7406
      %7439 = vst.msk [vmem:[%s356 + $0x38] sm:$0xff] %vm5242, %v7407
      %7440 = vst.msk [vmem:[%s356 + $0x40] sm:$0xff] %vm5242, %v7408
      %7441 = vst.msk [vmem:[%s356 + $0x48] sm:$0xff] %vm5242, %v7409
      %7442 = vst.msk [vmem:[%s356 + $0x50] sm:$0xff] %vm5242, %v7410
      %7443 = vst.msk [vmem:[%s356 + $0x58] sm:$0xff] %vm5242, %v7411
      %7444 = vst.msk [vmem:[%s356 + $0x60] sm:$0xff] %vm5242, %v7412
      %7445 = vst.msk [vmem:[%s356 + $0x68] sm:$0xff] %vm5242, %v7413
      %7446 = vst.msk [vmem:[%s356 + $0x70] sm:$0xff] %vm5242, %v7414
      %7447 = vst.msk [vmem:[%s356 + $0x78] sm:$0xff] %vm5242, %v7415
      %7448 = vst.msk [vmem:[%s356 + $0x80] sm:$0xff] %vm5242, %v7416
      %7449 = vst.msk [vmem:[%s356 + $0x88] sm:$0xff] %vm5242, %v7417
      %7450 = vst.msk [vmem:[%s356 + $0x90] sm:$0xff] %vm5242, %v7418
      %7451 = vst.msk [vmem:[%s356 + $0x98] sm:$0xff] %vm5242, %v7419
      %7452 = vst.msk [vmem:[%s356 + $0xa0] sm:$0xff] %vm5242, %v7420
      %7453 = vst.msk [vmem:[%s356 + $0xa8] sm:$0xff] %vm5242, %v7421
      %7454 = vst.msk [vmem:[%s356 + $0xb0] sm:$0xff] %vm5242, %v7422
      %7455 = vst.msk [vmem:[%s356 + $0xb8] sm:$0xff] %vm5242, %v7423
      %7456 = vst.msk [vmem:[%s356 + $0xc0] sm:$0xff] %vm5242, %v7424
      %7457 = vst.msk [vmem:[%s356 + $0xc8] sm:$0xff] %vm5242, %v7425
      %7458 = vst.msk [vmem:[%s356 + $0xd0] sm:$0xff] %vm5242, %v7426
      %7459 = vst.msk [vmem:[%s356 + $0xd8] sm:$0xff] %vm5242, %v7427
      %7460 = vst.msk [vmem:[%s356 + $0xe0] sm:$0xff] %vm5242, %v7428
      %7461 = vst.msk [vmem:[%s356 + $0xe8] sm:$0xff] %vm5242, %v7429
      %7462 = vst.msk [vmem:[%s356 + $0xf0] sm:$0xff] %vm5242, %v7430
      %7463 = vst.msk [vmem:[%s356 + $0xf8] sm:$0xff] %vm5242, %v7431
      %s7464 = smul.u32 16, %s23
      %p7465 = scmp.lt.s32.totalorder %s22, 1
      %s7466 = scalar_select %p7465, %s22, 1
      %p7467 = scmp.lt.s32.totalorder %s7464, 15
      %s7468 = scalar_select %p7467, %s7464, 15
      %s7469 = smul.addr %s7468, 2
      %s7470 = smul.addr %s7466, 32
      %s7471 = sadd.s32 %s7469, %s7470
      %s7472 = smul.addr %s7471, 8
      %s7473 = scalar_lea.vmem %s7, %s7472
      // Predicated region
      $region49: #{ppm_block_forward_pallas.3} parent=47 // pred_check
        %p7474 = pneg %p214
      $region50: #{ppm_block_forward_pallas.3} parent=47 // pred_check_branch
        %7476 = sbr.rel (%p7474) target = $region52
      $region51: #{ppm_block_forward_pallas.3} parent=47 // pred_region
        %s7477 = smul.u32 16, %s23
      $region52: #{ppm_block_forward_pallas.3} parent=47 // pred_fallthru
        _
    $region48: #{ppm_block_forward_pallas.3} parent=5 // pred_fallthru
      _
    %p7478 = scmp.le.s32.totalorder 2, %s13
    // Predicated region
    $region53: #{ppm_block_forward_pallas.3} parent=5 // pred_check
      %p7479 = pneg %p7478
    $region54: #{ppm_block_forward_pallas.3} parent=5 // pred_check_branch
      %7481 = sbr.rel (%p7479) target = $region56
    $region55: #{ppm_block_forward_pallas.3} parent=5 // pred_region
      %s7482 = ssub.s32 %s13, 2
      // Predicated region
      $region57: #{ppm_block_forward_pallas.3} parent=55 // pred_check
        %p7483 = pneg %p220
      $region58: #{ppm_block_forward_pallas.3} parent=55 // pred_check_branch
        %7485 = sbr.rel (%p7483) target = $region60
      $region59: #{ppm_block_forward_pallas.3} parent=55 // pred_region
        %s7486 = smul.u32 16, %s25
        %p7487 = scmp.lt.s32.totalorder %s24, 1
        %s7488 = scalar_select %p7487, %s24, 1
        %p7489 = scmp.lt.s32.totalorder %s7486, 15
        %s7490 = scalar_select %p7489, %s7486, 15
        %s7491 = smul.addr %s7490, 2
        %s7492 = smul.addr %s7488, 32
        %s7493 = sadd.s32 %s7491, %s7492
        %s7494 = smul.addr %s7493, 8
        %s7495 = scalar_lea.vmem %s7, %s7494
      $region60: #{ppm_block_forward_pallas.3} parent=55 // pred_fallthru
        _
    $region56: #{ppm_block_forward_pallas.3} parent=5 // pred_fallthru
      _
  $region6: #{ppm_block_forward_pallas.3} parent=0 // loop_footer
    %s17 = sadd.s32 1, %s13
  $region7: #{ppm_block_forward_pallas.3} parent=0 // loop_footer_branch
    %12 = sbr.rel target = $region3
  $region8: #{ppm_block_forward_pallas.3} parent=0 // loop_exit
    _

</llo_original>
